<compile_context>
chip_gen: v7x
topology: tpu7x:2x2x1
jax: 0.10.0
libtpu: 0.0.40
codegen_flags: <defaults>
</compile_context>

<pallas_src>
import math

import jax
import jax.numpy as jnp
from jax.experimental import pallas as pl
from jax.experimental.pallas import tpu as pltpu

# ----------------------------- mini config ---------------------------------
HIDDEN = 64
HEADS = 4
HEAD_DIM = HIDDEN // HEADS
INTER = 128
VOCAB = 100
MAX_POS = 32
TYPE_VOCAB = 2
VIS_FEAT_DIM = 16
VIS_POS_DIM = 4
L_LAYERS = 1   # args.llayers
R_LAYERS = 1   # args.rlayers
X_LAYERS = 1   # args.xlayers
LN_EPS = 1e-12

assert HIDDEN % HEADS == 0


# --------------------- in-kernel building blocks (traced) -------------------
def _ln(y, g, b):
    """BertLayerNorm over the last dim (biased variance, eps=1e-12). f32."""
    mu = jnp.mean(y, axis=-1, keepdims=True)
    var = jnp.mean((y - mu) * (y - mu), axis=-1, keepdims=True)
    return (y - mu) * jax.lax.rsqrt(var + LN_EPS) * g + b


def _gelu(y):
    # TODO(synk): BERT uses exact erf-GELU; tanh approximation used here.
    c = math.sqrt(2.0 / math.pi)
    return 0.5 * y * (1.0 + jnp.tanh(c * (y + 0.044715 * y * y * y)))


def _mm(x, w_bf16, b_f32=None):
    """bf16 MXU matmul with f32 accumulation (+ optional f32 bias)."""
    y = jnp.dot(x.astype(jnp.bfloat16), w_bf16,
                preferred_element_type=jnp.float32)
    return y if b_f32 is None else y + b_f32


def _mha(q, k, v, bias, B, Sq, Sk):
    """Multi-head attention on projected activations.

    q: (B*Sq, D) f32 (Q already pre-scaled via folded weights),
    k, v: (B*Sk, D) f32, bias: (B, Sk) additive mask.
    Batched over B with single 3-D einsums; static 4-way head loop only.
    """
    q3 = q.reshape(B, Sq, HIDDEN).astype(jnp.bfloat16)
    k3 = k.reshape(B, Sk, HIDDEN).astype(jnp.bfloat16)
    v3 = v.reshape(B, Sk, HIDDEN).astype(jnp.bfloat16)
    bias3 = bias[:, None, :]                                   # (B, 1, Sk)
    ctx_heads = []
    for h in range(HEADS):                                     # static unroll
        sl = slice(h * HEAD_DIM, (h + 1) * HEAD_DIM)
        s = jnp.einsum('bqd,bkd->bqk', q3[:, :, sl], k3[:, :, sl],
                       preferred_element_type=jnp.float32) + bias3
        s = s - jnp.max(s, axis=-1, keepdims=True)
        e = jnp.exp(s)
        p = e * pl.reciprocal(jnp.sum(e, axis=-1, keepdims=True), approx=True)
        ctx_heads.append(
            jnp.einsum('bqk,bkd->bqd', p.astype(jnp.bfloat16), v3[:, :, sl],
                       preferred_element_type=jnp.float32))
    ctx = jnp.concatenate(ctx_heads, axis=-1)                  # (B, Sq, D)
    return ctx.reshape(B * Sq, HIDDEN)


def _proj_qkv(p, x):
    """Fused (D, 3D) QKV projection; Q columns pre-scaled at init."""
    return _mm(x, p["qkv_w"][...], p["qkv_b"][...])


def _attn_out(p, ctx, residual):
    out = _mm(ctx, p["o_w"][...], p["o_b"][...])
    return _ln(out + residual, p["ln_g"][...], p["ln_b"][...])


def _self_att(p, x, bias, B, S):
    D = HIDDEN
    qkv = _proj_qkv(p, x)                                      # (B*S, 3D)
    ctx = _mha(qkv[:, :D], qkv[:, D:2 * D], qkv[:, 2 * D:], bias, B, S, S)
    return _attn_out(p, ctx, x)


def _ffn(p, x):
    h = _gelu(_mm(x, p["i_w"][...], p["i_b"][...]))
    o = _mm(h, p["o_w"][...], p["o_b"][...])
    return _ln(o + x, p["ln_g"][...], p["ln_b"][...])


def _bert_layer(p, x, bias, B, S):
    return _ffn(p["ffn"], _self_att(p["att"], x, bias, B, S))


def _cross_pair(p, lang, visn, lang_bias, visn_bias, B, S, V):
    """Shared-weight cross attention, BOTH directions from one stacked
    projection matmul (weights DMA'd once, 2x rows through the MXU)."""
    D = HIDDEN
    nl = B * S
    stacked = jnp.concatenate([lang, visn], axis=0)            # (B*S+B*V, D)
    qkv = _proj_qkv(p, stacked)                                # (rows, 3D)
    ql, kl, vl = qkv[:nl, :D], qkv[:nl, D:2 * D], qkv[:nl, 2 * D:]
    qv, kv, vv = qkv[nl:, :D], qkv[nl:, D:2 * D], qkv[nl:, 2 * D:]
    lang_ctx = _mha(ql, kv, vv, visn_bias, B, S, V)            # lang -> visn
    visn_ctx = _mha(qv, kl, vl, lang_bias, B, V, S)            # visn -> lang
    return _attn_out(p, lang_ctx, lang), _attn_out(p, visn_ctx, visn)


def _visual_encoder(p, feats, pos):
    vx = _ln(_mm(feats, p["visn_fc_w"][...], p["visn_fc_b"][...]),
             p["visn_ln_g"][...], p["visn_ln_b"][...])
    vy = _ln(_mm(pos, p["box_fc_w"][...], p["box_fc_b"][...]),
             p["box_ln_g"][...], p["box_ln_b"][...])
    return (vx + vy) * 0.5


def _pooler(p, lang, B, S):
    cls = lang.reshape(B, S, HIDDEN)[:, 0, :]                  # CLS rows (B, D)
    return jnp.tanh(_mm(cls, p["pool_w"][...], p["pool_b"][...]))


# ----------------------- the single fused forward kernel --------------------
def _make_forward_kernel(treedef, B, S, V):
    def kernel(*refs):
        emb_ref, feats_ref, pos_ref, lbias_ref, vbias_ref = refs[:5]
        out_ref = refs[-1]
        p = jax.tree_util.tree_unflatten(treedef, refs[5:-1])

        lbias = lbias_ref[...]
        vbias = vbias_ref[...]

        # BERT embedding LayerNorm (gathers stay in XLA outside the kernel).
        lang = _ln(emb_ref[...], p["emb_ln_g"][...], p["emb_ln_b"][...])
        # Visual feature encoder: (LN(fc(feat)) + LN(fc(box))) / 2.
        visn = _visual_encoder(p, feats_ref[...], pos_ref[...])

        for lp in p["l_layers"]:
            lang = _bert_layer(lp, lang, lbias, B, S)
        for rp in p["r_layers"]:
            visn = _bert_layer(rp, visn, vbias, B, V)
        for xp in p["x_layers"]:
            lang, visn = _cross_pair(xp["cross"], lang, visn,
                                     lbias, vbias, B, S, V)
            lang = _bert_layer(dict(att=xp["lang_self"], ffn=xp["lang_ffn"]),
                               lang, lbias, B, S)
            visn = _bert_layer(dict(att=xp["visn_self"], ffn=xp["visn_ffn"]),
                               visn, vbias, B, V)

        # mode='x' pooled output on the [CLS] token.
        out_ref[...] = _pooler(p, lang, B, S)

    return kernel


# ------------------------- rough advisory cost model ------------------------
def _flops_estimate(B, S, V):
    def lin(T, din, dout):
        return 2 * T * din * dout

    def att(T, Sq, Sk):
        return (lin(T, HIDDEN, 3 * HIDDEN) + lin(T, HIDDEN, HIDDEN)
                + 4 * B * HEADS * Sq * Sk * HEAD_DIM)

    def ffn(T):
        return lin(T, HIDDEN, INTER) + lin(T, INTER, HIDDEN)

    Tl, Tv = B * S, B * V
    total = L_LAYERS * (att(Tl, S, S) + ffn(Tl))
    total += R_LAYERS * (att(Tv, V, V) + ffn(Tv))
    for _ in range(X_LAYERS):
        total += lin(Tl + Tv, HIDDEN, 3 * HIDDEN)
        total += 4 * B * HEADS * S * V * HEAD_DIM * 2
        total += lin(Tl, HIDDEN, HIDDEN) + lin(Tv, HIDDEN, HIDDEN)
        total += att(Tl, S, S) + ffn(Tl) + att(Tv, V, V) + ffn(Tv)
    total += lin(Tv, VIS_FEAT_DIM, HIDDEN) + lin(Tv, VIS_POS_DIM, HIDDEN)
    total += lin(B, HIDDEN, HIDDEN)
    return int(total)


def _transcendentals_estimate(B, S, V):
    def att(Sq, Sk):
        return B * HEADS * Sq * Sk

    Tl, Tv = B * S, B * V
    t = L_LAYERS * (att(S, S) + Tl * INTER)
    t += R_LAYERS * (att(V, V) + Tv * INTER)
    t += X_LAYERS * (att(S, V) + att(V, S)
                     + att(S, S) + Tl * INTER + att(V, V) + Tv * INTER)
    t += B * HIDDEN
    return int(t)


# ----------------------------- parameters -----------------------------------
def _dense(key, din, dout):
    return (0.02 * jax.random.normal(key, (din, dout), jnp.float32),
            jnp.zeros((1, dout), jnp.float32))


def _init_attn(key, D):
    ks = jax.random.split(key, 4)
    scale = 1.0 / math.sqrt(HEAD_DIM)
    q_w, q_b = _dense(ks[0], D, D)
    k_w, k_b = _dense(ks[1], D, D)
    v_w, v_b = _dense(ks[2], D, D)
    o_w, o_b = _dense(ks[3], D, D)
    # Fused Q|K|V weight (D, 3D); Q part pre-scaled so the kernel never scales.
    qkv_w = jnp.concatenate([q_w * scale, k_w, v_w], axis=1)
    qkv_b = jnp.concatenate([q_b * scale, k_b, v_b], axis=1)
    return dict(qkv_w=qkv_w.astype(jnp.bfloat16), qkv_b=qkv_b,
                o_w=o_w.astype(jnp.bfloat16), o_b=o_b,
                ln_g=jnp.ones((1, D), jnp.float32),
                ln_b=jnp.zeros((1, D), jnp.float32))


def _init_ffn(key, D, I):
    k1, k2 = jax.random.split(key)
    i_w, i_b = _dense(k1, D, I)
    o_w, o_b = _dense(k2, I, D)
    return dict(i_w=i_w.astype(jnp.bfloat16), i_b=i_b,
                o_w=o_w.astype(jnp.bfloat16), o_b=o_b,
                ln_g=jnp.ones((1, D), jnp.float32),
                ln_b=jnp.zeros((1, D), jnp.float32))


def init_params(key):
    keys = iter(jax.random.split(key, 64))
    nk = lambda: next(keys)
    p = {}
    p["word_emb"] = 0.02 * jax.random.normal(nk(), (VOCAB, HIDDEN), jnp.float32)
    p["pos_emb"] = 0.02 * jax.random.normal(nk(), (MAX_POS, HIDDEN), jnp.float32)
    p["type_emb"] = 0.02 * jax.random.normal(nk(), (TYPE_VOCAB, HIDDEN),
                                             jnp.float32)
    p["emb_ln_g"] = jnp.ones((1, HIDDEN), jnp.float32)
    p["emb_ln_b"] = jnp.zeros((1, HIDDEN), jnp.float32)
    vw, vb = _dense(nk(), VIS_FEAT_DIM, HIDDEN)
    p["visn_fc_w"], p["visn_fc_b"] = vw.astype(jnp.bfloat16), vb
    p["visn_ln_g"] = jnp.ones((1, HIDDEN), jnp.float32)
    p["visn_ln_b"] = jnp.zeros((1, HIDDEN), jnp.float32)
    bw, bb = _dense(nk(), VIS_POS_DIM, HIDDEN)
    p["box_fc_w"], p["box_fc_b"] = bw.astype(jnp.bfloat16), bb
    p["box_ln_g"] = jnp.ones((1, HIDDEN), jnp.float32)
    p["box_ln_b"] = jnp.zeros((1, HIDDEN), jnp.float32)
    p["l_layers"] = [dict(att=_init_attn(nk(), HIDDEN),
                          ffn=_init_ffn(nk(), HIDDEN, INTER))
                     for _ in range(L_LAYERS)]
    p["r_layers"] = [dict(att=_init_attn(nk(), HIDDEN),
                          ffn=_init_ffn(nk(), HIDDEN, INTER))
                     for _ in range(R_LAYERS)]
    p["x_layers"] = [dict(cross=_init_attn(nk(), HIDDEN),
                          lang_self=_init_attn(nk(), HIDDEN),
                          visn_self=_init_attn(nk(), HIDDEN),
                          lang_ffn=_init_ffn(nk(), HIDDEN, INTER),
                          visn_ffn=_init_ffn(nk(), HIDDEN, INTER))
                     for _ in range(X_LAYERS)]
    pw, pb = _dense(nk(), HIDDEN, HIDDEN)
    p["pool_w"], p["pool_b"] = pw.astype(jnp.bfloat16), pb
    return p


# ----------------------------- full forward ---------------------------------
def lxrt_encoder_forward(params, input_ids, segment_ids, input_mask,
                         visual_feats, visual_pos, visual_attention_mask=None):
    """mode='x': returns the cross-modality pooled feature (B, HIDDEN)."""
    B, S = input_ids.shape
    V = visual_feats.shape[1]

    # --- BERT embeddings (table lookups stay as XLA gathers) ---
    pos_ids = jnp.arange(S)
    emb = (jnp.take(params["word_emb"], input_ids, axis=0)
           + jnp.take(params["pos_emb"], pos_ids, axis=0)[None, :, :]
           + jnp.take(params["type_emb"], segment_ids, axis=0))
    emb2d = emb.reshape(B * S, HIDDEN).astype(jnp.float32)

    # additive attention-mask biases, as in BERT ((1 - mask) * -10000)
    lang_bias = (1.0 - input_mask.astype(jnp.float32)) * -10000.0   # (B, S)
    if visual_attention_mask is None:
        visn_bias = jnp.zeros((B, V), jnp.float32)
    else:
        visn_bias = (1.0 - visual_attention_mask.astype(jnp.float32)) * -10000.0

    feats2d = visual_feats.reshape(B * V, VIS_FEAT_DIM).astype(jnp.float32)
    pos2d = visual_pos.reshape(B * V, VIS_POS_DIM).astype(jnp.float32)

    # Everything except the embedding tables goes into the one fused kernel.
    kparams = {k: v for k, v in params.items()
               if k not in ("word_emb", "pos_emb", "type_emb")}
    leaves, treedef = jax.tree_util.tree_flatten(kparams)

    operands = (emb2d, feats2d, pos2d, lang_bias, visn_bias, *leaves)
    n_in = len(operands)
    bytes_accessed = int(sum(a.size * a.dtype.itemsize for a in operands)
                         + B * HIDDEN * 4)

    kernel = _make_forward_kernel(treedef, B, S, V)
    return pl.pallas_call(
        kernel,
        out_shape=jax.ShapeDtypeStruct((B, HIDDEN), jnp.float32),
        in_specs=[pl.BlockSpec(memory_space=pltpu.MemorySpace.VMEM)] * n_in,
        out_specs=pl.BlockSpec(memory_space=pltpu.MemorySpace.VMEM),
        compiler_params=pltpu.CompilerParams(
            vmem_limit_bytes=32 * 1024 * 1024),
        cost_estimate=pl.CostEstimate(
            flops=_flops_estimate(B, S, V),
            transcendentals=_transcendentals_estimate(B, S, V),
            bytes_accessed=bytes_accessed),
    )(*operands)


# ----------------------------- main ------------------------------------------
if __name__ == "__main__":
    key = jax.random.PRNGKey(0)
    kp, k1, k2, k3 = jax.random.split(key, 4)
    params = init_params(kp)

    B, S, V = 2, 8, 4
    # pre-tokenized inputs (see TODO at top of file)
    input_ids = jax.random.randint(k1, (B, S), 0, VOCAB, dtype=jnp.int32)
    segment_ids = jnp.zeros((B, S), jnp.int32)
    input_mask = jnp.ones((B, S), jnp.int32).at[1, 6:].set(0)   # pad tail of ex 1
    visual_feats = jax.random.normal(k2, (B, V, VIS_FEAT_DIM), jnp.float32)
    visual_pos = jax.random.uniform(k3, (B, V, VIS_POS_DIM), jnp.float32)

    forward = jax.jit(lxrt_encoder_forward)
    pooled = forward(params, input_ids, segment_ids, input_mask,
                     visual_feats, visual_pos)
    jax.block_until_ready(pooled)
    assert pooled.shape == (B, HIDDEN) and pooled.dtype == jnp.float32
    assert bool(jnp.all(jnp.isfinite(pooled)))
    print("KERNEL_OK")
</pallas_src>

<mosaic_0001>
module attributes {stable_mosaic.version = 11 : i64} {
  func.func @kernel(%arg0: memref<16x64xf32, #tpu.memory_space<vmem>>, %arg1: memref<8x16xf32, #tpu.memory_space<vmem>>, %arg2: memref<8x4xf32, #tpu.memory_space<vmem>>, %arg3: memref<2x8xf32, #tpu.memory_space<vmem>>, %arg4: memref<2x4xf32, #tpu.memory_space<vmem>>, %arg5: memref<1x64xf32, #tpu.memory_space<vmem>>, %arg6: memref<4x64xbf16, #tpu.memory_space<vmem>>, %arg7: memref<1x64xf32, #tpu.memory_space<vmem>>, %arg8: memref<1x64xf32, #tpu.memory_space<vmem>>, %arg9: memref<1x64xf32, #tpu.memory_space<vmem>>, %arg10: memref<1x64xf32, #tpu.memory_space<vmem>>, %arg11: memref<1x64xf32, #tpu.memory_space<vmem>>, %arg12: memref<1x64xf32, #tpu.memory_space<vmem>>, %arg13: memref<1x64xf32, #tpu.memory_space<vmem>>, %arg14: memref<64x64xbf16, #tpu.memory_space<vmem>>, %arg15: memref<1x192xf32, #tpu.memory_space<vmem>>, %arg16: memref<64x192xbf16, #tpu.memory_space<vmem>>, %arg17: memref<1x128xf32, #tpu.memory_space<vmem>>, %arg18: memref<64x128xbf16, #tpu.memory_space<vmem>>, %arg19: memref<1x64xf32, #tpu.memory_space<vmem>>, %arg20: memref<1x64xf32, #tpu.memory_space<vmem>>, %arg21: memref<1x64xf32, #tpu.memory_space<vmem>>, %arg22: memref<128x64xbf16, #tpu.memory_space<vmem>>, %arg23: memref<1x64xf32, #tpu.memory_space<vmem>>, %arg24: memref<64x64xbf16, #tpu.memory_space<vmem>>, %arg25: memref<1x64xf32, #tpu.memory_space<vmem>>, %arg26: memref<1x64xf32, #tpu.memory_space<vmem>>, %arg27: memref<1x64xf32, #tpu.memory_space<vmem>>, %arg28: memref<64x64xbf16, #tpu.memory_space<vmem>>, %arg29: memref<1x192xf32, #tpu.memory_space<vmem>>, %arg30: memref<64x192xbf16, #tpu.memory_space<vmem>>, %arg31: memref<1x128xf32, #tpu.memory_space<vmem>>, %arg32: memref<64x128xbf16, #tpu.memory_space<vmem>>, %arg33: memref<1x64xf32, #tpu.memory_space<vmem>>, %arg34: memref<1x64xf32, #tpu.memory_space<vmem>>, %arg35: memref<1x64xf32, #tpu.memory_space<vmem>>, %arg36: memref<128x64xbf16, #tpu.memory_space<vmem>>, %arg37: memref<1x64xf32, #tpu.memory_space<vmem>>, %arg38: memref<16x64xbf16, #tpu.memory_space<vmem>>, %arg39: memref<1x64xf32, #tpu.memory_space<vmem>>, %arg40: memref<1x64xf32, #tpu.memory_space<vmem>>, %arg41: memref<1x64xf32, #tpu.memory_space<vmem>>, %arg42: memref<1x64xf32, #tpu.memory_space<vmem>>, %arg43: memref<1x64xf32, #tpu.memory_space<vmem>>, %arg44: memref<64x64xbf16, #tpu.memory_space<vmem>>, %arg45: memref<1x192xf32, #tpu.memory_space<vmem>>, %arg46: memref<64x192xbf16, #tpu.memory_space<vmem>>, %arg47: memref<1x128xf32, #tpu.memory_space<vmem>>, %arg48: memref<64x128xbf16, #tpu.memory_space<vmem>>, %arg49: memref<1x64xf32, #tpu.memory_space<vmem>>, %arg50: memref<1x64xf32, #tpu.memory_space<vmem>>, %arg51: memref<1x64xf32, #tpu.memory_space<vmem>>, %arg52: memref<128x64xbf16, #tpu.memory_space<vmem>>, %arg53: memref<1x64xf32, #tpu.memory_space<vmem>>, %arg54: memref<1x64xf32, #tpu.memory_space<vmem>>, %arg55: memref<1x64xf32, #tpu.memory_space<vmem>>, %arg56: memref<64x64xbf16, #tpu.memory_space<vmem>>, %arg57: memref<1x192xf32, #tpu.memory_space<vmem>>, %arg58: memref<64x192xbf16, #tpu.memory_space<vmem>>, %arg59: memref<1x128xf32, #tpu.memory_space<vmem>>, %arg60: memref<64x128xbf16, #tpu.memory_space<vmem>>, %arg61: memref<1x64xf32, #tpu.memory_space<vmem>>, %arg62: memref<1x64xf32, #tpu.memory_space<vmem>>, %arg63: memref<1x64xf32, #tpu.memory_space<vmem>>, %arg64: memref<128x64xbf16, #tpu.memory_space<vmem>>, %arg65: memref<1x64xf32, #tpu.memory_space<vmem>>, %arg66: memref<1x64xf32, #tpu.memory_space<vmem>>, %arg67: memref<1x64xf32, #tpu.memory_space<vmem>>, %arg68: memref<64x64xbf16, #tpu.memory_space<vmem>>, %arg69: memref<1x192xf32, #tpu.memory_space<vmem>>, %arg70: memref<64x192xbf16, #tpu.memory_space<vmem>>, %arg71: memref<2x64xf32, #tpu.memory_space<vmem>>) attributes {dimension_semantics = [], scalar_prefetch = 0 : i64, scratch_operands = 0 : i64, tpu.core_type = #tpu.core_type<tc>} {
    %c0 = arith.constant 0 : index
    %c0_0 = arith.constant 0 : index
    %0 = vector.load %arg3[%c0, %c0_0] : memref<2x8xf32, #tpu.memory_space<vmem>>, vector<2x8xf32>
    %c0_1 = arith.constant 0 : index
    %c0_2 = arith.constant 0 : index
    %1 = vector.load %arg4[%c0_1, %c0_2] : memref<2x4xf32, #tpu.memory_space<vmem>>, vector<2x4xf32>
    %c0_3 = arith.constant 0 : index
    %c0_4 = arith.constant 0 : index
    %2 = vector.load %arg0[%c0_3, %c0_4] : memref<16x64xf32, #tpu.memory_space<vmem>>, vector<16x64xf32>
    %c0_5 = arith.constant 0 : index
    %c0_6 = arith.constant 0 : index
    %3 = vector.load %arg10[%c0_5, %c0_6] : memref<1x64xf32, #tpu.memory_space<vmem>>, vector<1x64xf32>
    %c0_7 = arith.constant 0 : index
    %c0_8 = arith.constant 0 : index
    %4 = vector.load %arg9[%c0_7, %c0_8] : memref<1x64xf32, #tpu.memory_space<vmem>>, vector<1x64xf32>
    %cst = arith.constant dense<0.000000e+00> : vector<16xf32>
    %5 = vector.multi_reduction <add>, %2, %cst [1] : vector<16x64xf32> to vector<16xf32>
    %6 = vector.shape_cast %5 : vector<16xf32> to vector<16x1xf32>
    %cst_9 = arith.constant 6.400000e+01 : f32
    %7 = vector.broadcast %cst_9 : f32 to vector<16x1xf32>
    %8 = arith.divf %6, %7 : vector<16x1xf32>
    %9 = vector.broadcast %8 : vector<16x1xf32> to vector<16x64xf32>
    %10 = arith.subf %2, %9 : vector<16x64xf32>
    %11 = vector.broadcast %8 : vector<16x1xf32> to vector<16x64xf32>
    %12 = arith.subf %2, %11 : vector<16x64xf32>
    %13 = arith.mulf %10, %12 : vector<16x64xf32>
    %cst_10 = arith.constant dense<0.000000e+00> : vector<16xf32>
    %14 = vector.multi_reduction <add>, %13, %cst_10 [1] : vector<16x64xf32> to vector<16xf32>
    %15 = vector.shape_cast %14 : vector<16xf32> to vector<16x1xf32>
    %cst_11 = arith.constant 6.400000e+01 : f32
    %16 = vector.broadcast %cst_11 : f32 to vector<16x1xf32>
    %17 = arith.divf %15, %16 : vector<16x1xf32>
    %18 = vector.broadcast %8 : vector<16x1xf32> to vector<16x64xf32>
    %19 = arith.subf %2, %18 : vector<16x64xf32>
    %cst_12 = arith.constant 9.99999996E-13 : f32
    %20 = vector.broadcast %cst_12 : f32 to vector<16x1xf32>
    %21 = arith.addf %17, %20 : vector<16x1xf32>
    %22 = math.rsqrt %21 : vector<16x1xf32>
    %23 = vector.broadcast %22 : vector<16x1xf32> to vector<16x64xf32>
    %24 = arith.mulf %19, %23 : vector<16x64xf32>
    %25 = vector.broadcast %3 : vector<1x64xf32> to vector<16x64xf32>
    %26 = arith.mulf %24, %25 : vector<16x64xf32>
    %27 = vector.broadcast %4 : vector<1x64xf32> to vector<16x64xf32>
    %28 = arith.addf %26, %27 : vector<16x64xf32>
    %c0_13 = arith.constant 0 : index
    %c0_14 = arith.constant 0 : index
    %29 = vector.load %arg1[%c0_13, %c0_14] : memref<8x16xf32, #tpu.memory_space<vmem>>, vector<8x16xf32>
    %c0_15 = arith.constant 0 : index
    %c0_16 = arith.constant 0 : index
    %30 = vector.load %arg2[%c0_15, %c0_16] : memref<8x4xf32, #tpu.memory_space<vmem>>, vector<8x4xf32>
    %c0_17 = arith.constant 0 : index
    %c0_18 = arith.constant 0 : index
    %31 = vector.load %arg38[%c0_17, %c0_18] : memref<16x64xbf16, #tpu.memory_space<vmem>>, vector<16x64xbf16>
    %c0_19 = arith.constant 0 : index
    %c0_20 = arith.constant 0 : index
    %32 = vector.load %arg37[%c0_19, %c0_20] : memref<1x64xf32, #tpu.memory_space<vmem>>, vector<1x64xf32>
    %33 = arith.truncf %29 : vector<8x16xf32> to vector<8x16xbf16>
    %cst_21 = arith.constant dense<0.000000e+00> : vector<8x64xf32>
    %34 = tpu.matmul %33, %31, %cst_21 {dimension_numbers = #tpu.dot_dimension_numbers<[1], [0], [0], [1], [0, 0, 1, 1], [], []>} : vector<8x16xbf16>, vector<16x64xbf16>, vector<8x64xf32> -> vector<8x64xf32>
    %35 = vector.broadcast %32 : vector<1x64xf32> to vector<8x64xf32>
    %36 = arith.addf %34, %35 : vector<8x64xf32>
    %c0_22 = arith.constant 0 : index
    %c0_23 = arith.constant 0 : index
    %37 = vector.load %arg40[%c0_22, %c0_23] : memref<1x64xf32, #tpu.memory_space<vmem>>, vector<1x64xf32>
    %c0_24 = arith.constant 0 : index
    %c0_25 = arith.constant 0 : index
    %38 = vector.load %arg39[%c0_24, %c0_25] : memref<1x64xf32, #tpu.memory_space<vmem>>, vector<1x64xf32>
    %cst_26 = arith.constant dense<0.000000e+00> : vector<8xf32>
    %39 = vector.multi_reduction <add>, %36, %cst_26 [1] : vector<8x64xf32> to vector<8xf32>
    %40 = vector.shape_cast %39 : vector<8xf32> to vector<8x1xf32>
    %cst_27 = arith.constant 6.400000e+01 : f32
    %41 = vector.broadcast %cst_27 : f32 to vector<8x1xf32>
    %42 = arith.divf %40, %41 : vector<8x1xf32>
    %43 = vector.broadcast %42 : vector<8x1xf32> to vector<8x64xf32>
    %44 = arith.subf %36, %43 : vector<8x64xf32>
    %45 = vector.broadcast %42 : vector<8x1xf32> to vector<8x64xf32>
    %46 = arith.subf %36, %45 : vector<8x64xf32>
    %47 = arith.mulf %44, %46 : vector<8x64xf32>
    %cst_28 = arith.constant dense<0.000000e+00> : vector<8xf32>
    %48 = vector.multi_reduction <add>, %47, %cst_28 [1] : vector<8x64xf32> to vector<8xf32>
    %49 = vector.shape_cast %48 : vector<8xf32> to vector<8x1xf32>
    %cst_29 = arith.constant 6.400000e+01 : f32
    %50 = vector.broadcast %cst_29 : f32 to vector<8x1xf32>
    %51 = arith.divf %49, %50 : vector<8x1xf32>
    %52 = vector.broadcast %42 : vector<8x1xf32> to vector<8x64xf32>
    %53 = arith.subf %36, %52 : vector<8x64xf32>
    %cst_30 = arith.constant 9.99999996E-13 : f32
    %54 = vector.broadcast %cst_30 : f32 to vector<8x1xf32>
    %55 = arith.addf %51, %54 : vector<8x1xf32>
    %56 = math.rsqrt %55 : vector<8x1xf32>
    %57 = vector.broadcast %56 : vector<8x1xf32> to vector<8x64xf32>
    %58 = arith.mulf %53, %57 : vector<8x64xf32>
    %59 = vector.broadcast %37 : vector<1x64xf32> to vector<8x64xf32>
    %60 = arith.mulf %58, %59 : vector<8x64xf32>
    %61 = vector.broadcast %38 : vector<1x64xf32> to vector<8x64xf32>
    %62 = arith.addf %60, %61 : vector<8x64xf32>
    %c0_31 = arith.constant 0 : index
    %c0_32 = arith.constant 0 : index
    %63 = vector.load %arg6[%c0_31, %c0_32] : memref<4x64xbf16, #tpu.memory_space<vmem>>, vector<4x64xbf16>
    %c0_33 = arith.constant 0 : index
    %c0_34 = arith.constant 0 : index
    %64 = vector.load %arg5[%c0_33, %c0_34] : memref<1x64xf32, #tpu.memory_space<vmem>>, vector<1x64xf32>
    %65 = arith.truncf %30 : vector<8x4xf32> to vector<8x4xbf16>
    %cst_35 = arith.constant dense<0.000000e+00> : vector<8x64xf32>
    %66 = tpu.matmul %65, %63, %cst_35 {dimension_numbers = #tpu.dot_dimension_numbers<[1], [0], [0], [1], [0, 0, 1, 1], [], []>} : vector<8x4xbf16>, vector<4x64xbf16>, vector<8x64xf32> -> vector<8x64xf32>
    %67 = vector.broadcast %64 : vector<1x64xf32> to vector<8x64xf32>
    %68 = arith.addf %66, %67 : vector<8x64xf32>
    %c0_36 = arith.constant 0 : index
    %c0_37 = arith.constant 0 : index
    %69 = vector.load %arg8[%c0_36, %c0_37] : memref<1x64xf32, #tpu.memory_space<vmem>>, vector<1x64xf32>
    %c0_38 = arith.constant 0 : index
    %c0_39 = arith.constant 0 : index
    %70 = vector.load %arg7[%c0_38, %c0_39] : memref<1x64xf32, #tpu.memory_space<vmem>>, vector<1x64xf32>
    %cst_40 = arith.constant dense<0.000000e+00> : vector<8xf32>
    %71 = vector.multi_reduction <add>, %68, %cst_40 [1] : vector<8x64xf32> to vector<8xf32>
    %72 = vector.shape_cast %71 : vector<8xf32> to vector<8x1xf32>
    %cst_41 = arith.constant 6.400000e+01 : f32
    %73 = vector.broadcast %cst_41 : f32 to vector<8x1xf32>
    %74 = arith.divf %72, %73 : vector<8x1xf32>
    %75 = vector.broadcast %74 : vector<8x1xf32> to vector<8x64xf32>
    %76 = arith.subf %68, %75 : vector<8x64xf32>
    %77 = vector.broadcast %74 : vector<8x1xf32> to vector<8x64xf32>
    %78 = arith.subf %68, %77 : vector<8x64xf32>
    %79 = arith.mulf %76, %78 : vector<8x64xf32>
    %cst_42 = arith.constant dense<0.000000e+00> : vector<8xf32>
    %80 = vector.multi_reduction <add>, %79, %cst_42 [1] : vector<8x64xf32> to vector<8xf32>
    %81 = vector.shape_cast %80 : vector<8xf32> to vector<8x1xf32>
    %cst_43 = arith.constant 6.400000e+01 : f32
    %82 = vector.broadcast %cst_43 : f32 to vector<8x1xf32>
    %83 = arith.divf %81, %82 : vector<8x1xf32>
    %84 = vector.broadcast %74 : vector<8x1xf32> to vector<8x64xf32>
    %85 = arith.subf %68, %84 : vector<8x64xf32>
    %cst_44 = arith.constant 9.99999996E-13 : f32
    %86 = vector.broadcast %cst_44 : f32 to vector<8x1xf32>
    %87 = arith.addf %83, %86 : vector<8x1xf32>
    %88 = math.rsqrt %87 : vector<8x1xf32>
    %89 = vector.broadcast %88 : vector<8x1xf32> to vector<8x64xf32>
    %90 = arith.mulf %85, %89 : vector<8x64xf32>
    %91 = vector.broadcast %69 : vector<1x64xf32> to vector<8x64xf32>
    %92 = arith.mulf %90, %91 : vector<8x64xf32>
    %93 = vector.broadcast %70 : vector<1x64xf32> to vector<8x64xf32>
    %94 = arith.addf %92, %93 : vector<8x64xf32>
    %95 = arith.addf %62, %94 : vector<8x64xf32>
    %cst_45 = arith.constant 5.000000e-01 : f32
    %96 = vector.broadcast %cst_45 : f32 to vector<8x64xf32>
    %97 = arith.mulf %95, %96 : vector<8x64xf32>
    %c0_46 = arith.constant 0 : index
    %c0_47 = arith.constant 0 : index
    %98 = vector.load %arg16[%c0_46, %c0_47] : memref<64x192xbf16, #tpu.memory_space<vmem>>, vector<64x192xbf16>
    %c0_48 = arith.constant 0 : index
    %c0_49 = arith.constant 0 : index
    %99 = vector.load %arg15[%c0_48, %c0_49] : memref<1x192xf32, #tpu.memory_space<vmem>>, vector<1x192xf32>
    %100 = arith.truncf %28 : vector<16x64xf32> to vector<16x64xbf16>
    %cst_50 = arith.constant dense<0.000000e+00> : vector<16x192xf32>
    %101 = tpu.matmul %100, %98, %cst_50 {dimension_numbers = #tpu.dot_dimension_numbers<[1], [0], [0], [1], [0, 0, 1, 1], [], []>} : vector<16x64xbf16>, vector<64x192xbf16>, vector<16x192xf32> -> vector<16x192xf32>
    %102 = vector.broadcast %99 : vector<1x192xf32> to vector<16x192xf32>
    %103 = arith.addf %101, %102 : vector<16x192xf32>
    %104 = vector.extract_strided_slice %103 {offsets = [0, 0], sizes = [16, 64], strides = [1, 1]} : vector<16x192xf32> to vector<16x64xf32>
    %105 = vector.extract_strided_slice %103 {offsets = [0, 64], sizes = [16, 64], strides = [1, 1]} : vector<16x192xf32> to vector<16x64xf32>
    %106 = vector.extract_strided_slice %103 {offsets = [0, 128], sizes = [16, 64], strides = [1, 1]} : vector<16x192xf32> to vector<16x64xf32>
    %107 = vector.shape_cast %104 : vector<16x64xf32> to vector<2x8x64xf32>
    %108 = arith.truncf %107 : vector<2x8x64xf32> to vector<2x8x64xbf16>
    %109 = vector.shape_cast %105 : vector<16x64xf32> to vector<2x8x64xf32>
    %110 = arith.truncf %109 : vector<2x8x64xf32> to vector<2x8x64xbf16>
    %111 = vector.shape_cast %106 : vector<16x64xf32> to vector<2x8x64xf32>
    %112 = arith.truncf %111 : vector<2x8x64xf32> to vector<2x8x64xbf16>
    %113 = vector.shape_cast %0 : vector<2x8xf32> to vector<2x1x8xf32>
    %114 = vector.extract_strided_slice %108 {offsets = [0, 0, 0], sizes = [2, 8, 16], strides = [1, 1, 1]} : vector<2x8x64xbf16> to vector<2x8x16xbf16>
    %115 = vector.extract_strided_slice %110 {offsets = [0, 0, 0], sizes = [2, 8, 16], strides = [1, 1, 1]} : vector<2x8x64xbf16> to vector<2x8x16xbf16>
    "tpu.trace_start"() <{level = 10 : i32, message = "bqd,bkd->bqk"}> : () -> ()
    %cst_51 = arith.constant dense<0.000000e+00> : vector<2x8x8xf32>
    %116 = tpu.matmul %114, %115, %cst_51 {dimension_numbers = #tpu.dot_dimension_numbers<[2], [2], [1], [1], [0, 0, 0, 1, 1, 1], [0], [0]>} : vector<2x8x16xbf16>, vector<2x8x16xbf16>, vector<2x8x8xf32> -> vector<2x8x8xf32>
    "tpu.trace_stop"() : () -> ()
    %117 = vector.broadcast %113 : vector<2x1x8xf32> to vector<2x8x8xf32>
    %118 = arith.addf %116, %117 : vector<2x8x8xf32>
    %cst_52 = arith.constant dense<0xFF800000> : vector<2x8xf32>
    %119 = vector.multi_reduction <maximumf>, %118, %cst_52 [2] : vector<2x8x8xf32> to vector<2x8xf32>
    %120 = vector.shape_cast %119 : vector<2x8xf32> to vector<2x8x1xf32>
    %121 = vector.broadcast %120 : vector<2x8x1xf32> to vector<2x8x8xf32>
    %122 = arith.subf %118, %121 : vector<2x8x8xf32>
    %123 = math.exp %122 : vector<2x8x8xf32>
    %cst_53 = arith.constant dense<0.000000e+00> : vector<2x8xf32>
    %124 = vector.multi_reduction <add>, %123, %cst_53 [2] : vector<2x8x8xf32> to vector<2x8xf32>
    %125 = vector.shape_cast %124 : vector<2x8xf32> to vector<2x8x1xf32>
    %126 = tpu.reciprocal %125 {approx = true} : vector<2x8x1xf32> -> vector<2x8x1xf32>
    %127 = vector.broadcast %126 : vector<2x8x1xf32> to vector<2x8x8xf32>
    %128 = arith.mulf %123, %127 : vector<2x8x8xf32>
    %129 = arith.truncf %128 : vector<2x8x8xf32> to vector<2x8x8xbf16>
    %130 = vector.extract_strided_slice %112 {offsets = [0, 0, 0], sizes = [2, 8, 16], strides = [1, 1, 1]} : vector<2x8x64xbf16> to vector<2x8x16xbf16>
    "tpu.trace_start"() <{level = 10 : i32, message = "bqk,bkd->bqd"}> : () -> ()
    %cst_54 = arith.constant dense<0.000000e+00> : vector<2x8x16xf32>
    %131 = tpu.matmul %129, %130, %cst_54 {dimension_numbers = #tpu.dot_dimension_numbers<[2], [1], [1], [2], [0, 0, 0, 1, 1, 2], [0], [0]>} : vector<2x8x8xbf16>, vector<2x8x16xbf16>, vector<2x8x16xf32> -> vector<2x8x16xf32>
    "tpu.trace_stop"() : () -> ()
    %132 = vector.extract_strided_slice %108 {offsets = [0, 0, 16], sizes = [2, 8, 16], strides = [1, 1, 1]} : vector<2x8x64xbf16> to vector<2x8x16xbf16>
    %133 = vector.extract_strided_slice %110 {offsets = [0, 0, 16], sizes = [2, 8, 16], strides = [1, 1, 1]} : vector<2x8x64xbf16> to vector<2x8x16xbf16>
    "tpu.trace_start"() <{level = 10 : i32, message = "bqd,bkd->bqk"}> : () -> ()
    %cst_55 = arith.constant dense<0.000000e+00> : vector<2x8x8xf32>
    %134 = tpu.matmul %132, %133, %cst_55 {dimension_numbers = #tpu.dot_dimension_numbers<[2], [2], [1], [1], [0, 0, 0, 1, 1, 1], [0], [0]>} : vector<2x8x16xbf16>, vector<2x8x16xbf16>, vector<2x8x8xf32> -> vector<2x8x8xf32>
    "tpu.trace_stop"() : () -> ()
    %135 = vector.broadcast %113 : vector<2x1x8xf32> to vector<2x8x8xf32>
    %136 = arith.addf %134, %135 : vector<2x8x8xf32>
    %cst_56 = arith.constant dense<0xFF800000> : vector<2x8xf32>
    %137 = vector.multi_reduction <maximumf>, %136, %cst_56 [2] : vector<2x8x8xf32> to vector<2x8xf32>
    %138 = vector.shape_cast %137 : vector<2x8xf32> to vector<2x8x1xf32>
    %139 = vector.broadcast %138 : vector<2x8x1xf32> to vector<2x8x8xf32>
    %140 = arith.subf %136, %139 : vector<2x8x8xf32>
    %141 = math.exp %140 : vector<2x8x8xf32>
    %cst_57 = arith.constant dense<0.000000e+00> : vector<2x8xf32>
    %142 = vector.multi_reduction <add>, %141, %cst_57 [2] : vector<2x8x8xf32> to vector<2x8xf32>
    %143 = vector.shape_cast %142 : vector<2x8xf32> to vector<2x8x1xf32>
    %144 = tpu.reciprocal %143 {approx = true} : vector<2x8x1xf32> -> vector<2x8x1xf32>
    %145 = vector.broadcast %144 : vector<2x8x1xf32> to vector<2x8x8xf32>
    %146 = arith.mulf %141, %145 : vector<2x8x8xf32>
    %147 = arith.truncf %146 : vector<2x8x8xf32> to vector<2x8x8xbf16>
    %148 = vector.extract_strided_slice %112 {offsets = [0, 0, 16], sizes = [2, 8, 16], strides = [1, 1, 1]} : vector<2x8x64xbf16> to vector<2x8x16xbf16>
    "tpu.trace_start"() <{level = 10 : i32, message = "bqk,bkd->bqd"}> : () -> ()
    %cst_58 = arith.constant dense<0.000000e+00> : vector<2x8x16xf32>
    %149 = tpu.matmul %147, %148, %cst_58 {dimension_numbers = #tpu.dot_dimension_numbers<[2], [1], [1], [2], [0, 0, 0, 1, 1, 2], [0], [0]>} : vector<2x8x8xbf16>, vector<2x8x16xbf16>, vector<2x8x16xf32> -> vector<2x8x16xf32>
    "tpu.trace_stop"() : () -> ()
    %150 = vector.extract_strided_slice %108 {offsets = [0, 0, 32], sizes = [2, 8, 16], strides = [1, 1, 1]} : vector<2x8x64xbf16> to vector<2x8x16xbf16>
    %151 = vector.extract_strided_slice %110 {offsets = [0, 0, 32], sizes = [2, 8, 16], strides = [1, 1, 1]} : vector<2x8x64xbf16> to vector<2x8x16xbf16>
    "tpu.trace_start"() <{level = 10 : i32, message = "bqd,bkd->bqk"}> : () -> ()
    %cst_59 = arith.constant dense<0.000000e+00> : vector<2x8x8xf32>
    %152 = tpu.matmul %150, %151, %cst_59 {dimension_numbers = #tpu.dot_dimension_numbers<[2], [2], [1], [1], [0, 0, 0, 1, 1, 1], [0], [0]>} : vector<2x8x16xbf16>, vector<2x8x16xbf16>, vector<2x8x8xf32> -> vector<2x8x8xf32>
    "tpu.trace_stop"() : () -> ()
    %153 = vector.broadcast %113 : vector<2x1x8xf32> to vector<2x8x8xf32>
    %154 = arith.addf %152, %153 : vector<2x8x8xf32>
    %cst_60 = arith.constant dense<0xFF800000> : vector<2x8xf32>
    %155 = vector.multi_reduction <maximumf>, %154, %cst_60 [2] : vector<2x8x8xf32> to vector<2x8xf32>
    %156 = vector.shape_cast %155 : vector<2x8xf32> to vector<2x8x1xf32>
    %157 = vector.broadcast %156 : vector<2x8x1xf32> to vector<2x8x8xf32>
    %158 = arith.subf %154, %157 : vector<2x8x8xf32>
    %159 = math.exp %158 : vector<2x8x8xf32>
    %cst_61 = arith.constant dense<0.000000e+00> : vector<2x8xf32>
    %160 = vector.multi_reduction <add>, %159, %cst_61 [2] : vector<2x8x8xf32> to vector<2x8xf32>
    %161 = vector.shape_cast %160 : vector<2x8xf32> to vector<2x8x1xf32>
    %162 = tpu.reciprocal %161 {approx = true} : vector<2x8x1xf32> -> vector<2x8x1xf32>
    %163 = vector.broadcast %162 : vector<2x8x1xf32> to vector<2x8x8xf32>
    %164 = arith.mulf %159, %163 : vector<2x8x8xf32>
    %165 = arith.truncf %164 : vector<2x8x8xf32> to vector<2x8x8xbf16>
    %166 = vector.extract_strided_slice %112 {offsets = [0, 0, 32], sizes = [2, 8, 16], strides = [1, 1, 1]} : vector<2x8x64xbf16> to vector<2x8x16xbf16>
    "tpu.trace_start"() <{level = 10 : i32, message = "bqk,bkd->bqd"}> : () -> ()
    %cst_62 = arith.constant dense<0.000000e+00> : vector<2x8x16xf32>
    %167 = tpu.matmul %165, %166, %cst_62 {dimension_numbers = #tpu.dot_dimension_numbers<[2], [1], [1], [2], [0, 0, 0, 1, 1, 2], [0], [0]>} : vector<2x8x8xbf16>, vector<2x8x16xbf16>, vector<2x8x16xf32> -> vector<2x8x16xf32>
    "tpu.trace_stop"() : () -> ()
    %168 = vector.extract_strided_slice %108 {offsets = [0, 0, 48], sizes = [2, 8, 16], strides = [1, 1, 1]} : vector<2x8x64xbf16> to vector<2x8x16xbf16>
    %169 = vector.extract_strided_slice %110 {offsets = [0, 0, 48], sizes = [2, 8, 16], strides = [1, 1, 1]} : vector<2x8x64xbf16> to vector<2x8x16xbf16>
    "tpu.trace_start"() <{level = 10 : i32, message = "bqd,bkd->bqk"}> : () -> ()
    %cst_63 = arith.constant dense<0.000000e+00> : vector<2x8x8xf32>
    %170 = tpu.matmul %168, %169, %cst_63 {dimension_numbers = #tpu.dot_dimension_numbers<[2], [2], [1], [1], [0, 0, 0, 1, 1, 1], [0], [0]>} : vector<2x8x16xbf16>, vector<2x8x16xbf16>, vector<2x8x8xf32> -> vector<2x8x8xf32>
    "tpu.trace_stop"() : () -> ()
    %171 = vector.broadcast %113 : vector<2x1x8xf32> to vector<2x8x8xf32>
    %172 = arith.addf %170, %171 : vector<2x8x8xf32>
    %cst_64 = arith.constant dense<0xFF800000> : vector<2x8xf32>
    %173 = vector.multi_reduction <maximumf>, %172, %cst_64 [2] : vector<2x8x8xf32> to vector<2x8xf32>
    %174 = vector.shape_cast %173 : vector<2x8xf32> to vector<2x8x1xf32>
    %175 = vector.broadcast %174 : vector<2x8x1xf32> to vector<2x8x8xf32>
    %176 = arith.subf %172, %175 : vector<2x8x8xf32>
    %177 = math.exp %176 : vector<2x8x8xf32>
    %cst_65 = arith.constant dense<0.000000e+00> : vector<2x8xf32>
    %178 = vector.multi_reduction <add>, %177, %cst_65 [2] : vector<2x8x8xf32> to vector<2x8xf32>
    %179 = vector.shape_cast %178 : vector<2x8xf32> to vector<2x8x1xf32>
    %180 = tpu.reciprocal %179 {approx = true} : vector<2x8x1xf32> -> vector<2x8x1xf32>
    %181 = vector.broadcast %180 : vector<2x8x1xf32> to vector<2x8x8xf32>
    %182 = arith.mulf %177, %181 : vector<2x8x8xf32>
    %183 = arith.truncf %182 : vector<2x8x8xf32> to vector<2x8x8xbf16>
    %184 = vector.extract_strided_slice %112 {offsets = [0, 0, 48], sizes = [2, 8, 16], strides = [1, 1, 1]} : vector<2x8x64xbf16> to vector<2x8x16xbf16>
    "tpu.trace_start"() <{level = 10 : i32, message = "bqk,bkd->bqd"}> : () -> ()
    %cst_66 = arith.constant dense<0.000000e+00> : vector<2x8x16xf32>
    %185 = tpu.matmul %183, %184, %cst_66 {dimension_numbers = #tpu.dot_dimension_numbers<[2], [1], [1], [2], [0, 0, 0, 1, 1, 2], [0], [0]>} : vector<2x8x8xbf16>, vector<2x8x16xbf16>, vector<2x8x16xf32> -> vector<2x8x16xf32>
    "tpu.trace_stop"() : () -> ()
    %186 = tpu.concatenate %131, %149, %167, %185 in 2 : vector<2x8x16xf32>, vector<2x8x16xf32>, vector<2x8x16xf32>, vector<2x8x16xf32> -> vector<2x8x64xf32>
    %187 = vector.shape_cast %186 : vector<2x8x64xf32> to vector<16x64xf32>
    %c0_67 = arith.constant 0 : index
    %c0_68 = arith.constant 0 : index
    %188 = vector.load %arg14[%c0_67, %c0_68] : memref<64x64xbf16, #tpu.memory_space<vmem>>, vector<64x64xbf16>
    %c0_69 = arith.constant 0 : index
    %c0_70 = arith.constant 0 : index
    %189 = vector.load %arg13[%c0_69, %c0_70] : memref<1x64xf32, #tpu.memory_space<vmem>>, vector<1x64xf32>
    %190 = arith.truncf %187 : vector<16x64xf32> to vector<16x64xbf16>
    %cst_71 = arith.constant dense<0.000000e+00> : vector<16x64xf32>
    %191 = tpu.matmul %190, %188, %cst_71 {dimension_numbers = #tpu.dot_dimension_numbers<[1], [0], [0], [1], [0, 0, 1, 1], [], []>} : vector<16x64xbf16>, vector<64x64xbf16>, vector<16x64xf32> -> vector<16x64xf32>
    %192 = vector.broadcast %189 : vector<1x64xf32> to vector<16x64xf32>
    %193 = arith.addf %191, %192 : vector<16x64xf32>
    %194 = arith.addf %193, %28 : vector<16x64xf32>
    %c0_72 = arith.constant 0 : index
    %c0_73 = arith.constant 0 : index
    %195 = vector.load %arg12[%c0_72, %c0_73] : memref<1x64xf32, #tpu.memory_space<vmem>>, vector<1x64xf32>
    %c0_74 = arith.constant 0 : index
    %c0_75 = arith.constant 0 : index
    %196 = vector.load %arg11[%c0_74, %c0_75] : memref<1x64xf32, #tpu.memory_space<vmem>>, vector<1x64xf32>
    %cst_76 = arith.constant dense<0.000000e+00> : vector<16xf32>
    %197 = vector.multi_reduction <add>, %194, %cst_76 [1] : vector<16x64xf32> to vector<16xf32>
    %198 = vector.shape_cast %197 : vector<16xf32> to vector<16x1xf32>
    %cst_77 = arith.constant 6.400000e+01 : f32
    %199 = vector.broadcast %cst_77 : f32 to vector<16x1xf32>
    %200 = arith.divf %198, %199 : vector<16x1xf32>
    %201 = vector.broadcast %200 : vector<16x1xf32> to vector<16x64xf32>
    %202 = arith.subf %194, %201 : vector<16x64xf32>
    %203 = vector.broadcast %200 : vector<16x1xf32> to vector<16x64xf32>
    %204 = arith.subf %194, %203 : vector<16x64xf32>
    %205 = arith.mulf %202, %204 : vector<16x64xf32>
    %cst_78 = arith.constant dense<0.000000e+00> : vector<16xf32>
    %206 = vector.multi_reduction <add>, %205, %cst_78 [1] : vector<16x64xf32> to vector<16xf32>
    %207 = vector.shape_cast %206 : vector<16xf32> to vector<16x1xf32>
    %cst_79 = arith.constant 6.400000e+01 : f32
    %208 = vector.broadcast %cst_79 : f32 to vector<16x1xf32>
    %209 = arith.divf %207, %208 : vector<16x1xf32>
    %210 = vector.broadcast %200 : vector<16x1xf32> to vector<16x64xf32>
    %211 = arith.subf %194, %210 : vector<16x64xf32>
    %cst_80 = arith.constant 9.99999996E-13 : f32
    %212 = vector.broadcast %cst_80 : f32 to vector<16x1xf32>
    %213 = arith.addf %209, %212 : vector<16x1xf32>
    %214 = math.rsqrt %213 : vector<16x1xf32>
    %215 = vector.broadcast %214 : vector<16x1xf32> to vector<16x64xf32>
    %216 = arith.mulf %211, %215 : vector<16x64xf32>
    %217 = vector.broadcast %195 : vector<1x64xf32> to vector<16x64xf32>
    %218 = arith.mulf %216, %217 : vector<16x64xf32>
    %219 = vector.broadcast %196 : vector<1x64xf32> to vector<16x64xf32>
    %220 = arith.addf %218, %219 : vector<16x64xf32>
    %c0_81 = arith.constant 0 : index
    %c0_82 = arith.constant 0 : index
    %221 = vector.load %arg18[%c0_81, %c0_82] : memref<64x128xbf16, #tpu.memory_space<vmem>>, vector<64x128xbf16>
    %c0_83 = arith.constant 0 : index
    %c0_84 = arith.constant 0 : index
    %222 = vector.load %arg17[%c0_83, %c0_84] : memref<1x128xf32, #tpu.memory_space<vmem>>, vector<1x128xf32>
    %223 = arith.truncf %220 : vector<16x64xf32> to vector<16x64xbf16>
    %cst_85 = arith.constant dense<0.000000e+00> : vector<16x128xf32>
    %224 = tpu.matmul %223, %221, %cst_85 {dimension_numbers = #tpu.dot_dimension_numbers<[1], [0], [0], [1], [0, 0, 1, 1], [], []>} : vector<16x64xbf16>, vector<64x128xbf16>, vector<16x128xf32> -> vector<16x128xf32>
    %225 = vector.broadcast %222 : vector<1x128xf32> to vector<16x128xf32>
    %226 = arith.addf %224, %225 : vector<16x128xf32>
    %cst_86 = arith.constant 5.000000e-01 : f32
    %227 = vector.broadcast %cst_86 : f32 to vector<16x128xf32>
    %228 = arith.mulf %227, %226 : vector<16x128xf32>
    %cst_87 = arith.constant 4.471500e-02 : f32
    %229 = vector.broadcast %cst_87 : f32 to vector<16x128xf32>
    %230 = arith.mulf %229, %226 : vector<16x128xf32>
    %231 = arith.mulf %230, %226 : vector<16x128xf32>
    %232 = arith.mulf %231, %226 : vector<16x128xf32>
    %233 = arith.addf %226, %232 : vector<16x128xf32>
    %cst_88 = arith.constant 0.797884583 : f32
    %234 = vector.broadcast %cst_88 : f32 to vector<16x128xf32>
    %235 = arith.mulf %234, %233 : vector<16x128xf32>
    %236 = math.tanh %235 : vector<16x128xf32>
    %cst_89 = arith.constant 1.000000e+00 : f32
    %237 = vector.broadcast %cst_89 : f32 to vector<16x128xf32>
    %238 = arith.addf %237, %236 : vector<16x128xf32>
    %239 = arith.mulf %228, %238 : vector<16x128xf32>
    %c0_90 = arith.constant 0 : index
    %c0_91 = arith.constant 0 : index
    %240 = vector.load %arg22[%c0_90, %c0_91] : memref<128x64xbf16, #tpu.memory_space<vmem>>, vector<128x64xbf16>
    %c0_92 = arith.constant 0 : index
    %c0_93 = arith.constant 0 : index
    %241 = vector.load %arg21[%c0_92, %c0_93] : memref<1x64xf32, #tpu.memory_space<vmem>>, vector<1x64xf32>
    %242 = arith.truncf %239 : vector<16x128xf32> to vector<16x128xbf16>
    %cst_94 = arith.constant dense<0.000000e+00> : vector<16x64xf32>
    %243 = tpu.matmul %242, %240, %cst_94 {dimension_numbers = #tpu.dot_dimension_numbers<[1], [0], [0], [1], [0, 0, 1, 1], [], []>} : vector<16x128xbf16>, vector<128x64xbf16>, vector<16x64xf32> -> vector<16x64xf32>
    %244 = vector.broadcast %241 : vector<1x64xf32> to vector<16x64xf32>
    %245 = arith.addf %243, %244 : vector<16x64xf32>
    %246 = arith.addf %245, %220 : vector<16x64xf32>
    %c0_95 = arith.constant 0 : index
    %c0_96 = arith.constant 0 : index
    %247 = vector.load %arg20[%c0_95, %c0_96] : memref<1x64xf32, #tpu.memory_space<vmem>>, vector<1x64xf32>
    %c0_97 = arith.constant 0 : index
    %c0_98 = arith.constant 0 : index
    %248 = vector.load %arg19[%c0_97, %c0_98] : memref<1x64xf32, #tpu.memory_space<vmem>>, vector<1x64xf32>
    %cst_99 = arith.constant dense<0.000000e+00> : vector<16xf32>
    %249 = vector.multi_reduction <add>, %246, %cst_99 [1] : vector<16x64xf32> to vector<16xf32>
    %250 = vector.shape_cast %249 : vector<16xf32> to vector<16x1xf32>
    %cst_100 = arith.constant 6.400000e+01 : f32
    %251 = vector.broadcast %cst_100 : f32 to vector<16x1xf32>
    %252 = arith.divf %250, %251 : vector<16x1xf32>
    %253 = vector.broadcast %252 : vector<16x1xf32> to vector<16x64xf32>
    %254 = arith.subf %246, %253 : vector<16x64xf32>
    %255 = vector.broadcast %252 : vector<16x1xf32> to vector<16x64xf32>
    %256 = arith.subf %246, %255 : vector<16x64xf32>
    %257 = arith.mulf %254, %256 : vector<16x64xf32>
    %cst_101 = arith.constant dense<0.000000e+00> : vector<16xf32>
    %258 = vector.multi_reduction <add>, %257, %cst_101 [1] : vector<16x64xf32> to vector<16xf32>
    %259 = vector.shape_cast %258 : vector<16xf32> to vector<16x1xf32>
    %cst_102 = arith.constant 6.400000e+01 : f32
    %260 = vector.broadcast %cst_102 : f32 to vector<16x1xf32>
    %261 = arith.divf %259, %260 : vector<16x1xf32>
    %262 = vector.broadcast %252 : vector<16x1xf32> to vector<16x64xf32>
    %263 = arith.subf %246, %262 : vector<16x64xf32>
    %cst_103 = arith.constant 9.99999996E-13 : f32
    %264 = vector.broadcast %cst_103 : f32 to vector<16x1xf32>
    %265 = arith.addf %261, %264 : vector<16x1xf32>
    %266 = math.rsqrt %265 : vector<16x1xf32>
    %267 = vector.broadcast %266 : vector<16x1xf32> to vector<16x64xf32>
    %268 = arith.mulf %263, %267 : vector<16x64xf32>
    %269 = vector.broadcast %247 : vector<1x64xf32> to vector<16x64xf32>
    %270 = arith.mulf %268, %269 : vector<16x64xf32>
    %271 = vector.broadcast %248 : vector<1x64xf32> to vector<16x64xf32>
    %272 = arith.addf %270, %271 : vector<16x64xf32>
    %c0_104 = arith.constant 0 : index
    %c0_105 = arith.constant 0 : index
    %273 = vector.load %arg30[%c0_104, %c0_105] : memref<64x192xbf16, #tpu.memory_space<vmem>>, vector<64x192xbf16>
    %c0_106 = arith.constant 0 : index
    %c0_107 = arith.constant 0 : index
    %274 = vector.load %arg29[%c0_106, %c0_107] : memref<1x192xf32, #tpu.memory_space<vmem>>, vector<1x192xf32>
    %275 = arith.truncf %97 : vector<8x64xf32> to vector<8x64xbf16>
    %cst_108 = arith.constant dense<0.000000e+00> : vector<8x192xf32>
    %276 = tpu.matmul %275, %273, %cst_108 {dimension_numbers = #tpu.dot_dimension_numbers<[1], [0], [0], [1], [0, 0, 1, 1], [], []>} : vector<8x64xbf16>, vector<64x192xbf16>, vector<8x192xf32> -> vector<8x192xf32>
    %277 = vector.broadcast %274 : vector<1x192xf32> to vector<8x192xf32>
    %278 = arith.addf %276, %277 : vector<8x192xf32>
    %279 = vector.extract_strided_slice %278 {offsets = [0, 0], sizes = [8, 64], strides = [1, 1]} : vector<8x192xf32> to vector<8x64xf32>
    %280 = vector.extract_strided_slice %278 {offsets = [0, 64], sizes = [8, 64], strides = [1, 1]} : vector<8x192xf32> to vector<8x64xf32>
    %281 = vector.extract_strided_slice %278 {offsets = [0, 128], sizes = [8, 64], strides = [1, 1]} : vector<8x192xf32> to vector<8x64xf32>
    %282 = vector.shape_cast %279 : vector<8x64xf32> to vector<2x4x64xf32>
    %283 = arith.truncf %282 : vector<2x4x64xf32> to vector<2x4x64xbf16>
    %284 = vector.shape_cast %280 : vector<8x64xf32> to vector<2x4x64xf32>
    %285 = arith.truncf %284 : vector<2x4x64xf32> to vector<2x4x64xbf16>
    %286 = vector.shape_cast %281 : vector<8x64xf32> to vector<2x4x64xf32>
    %287 = arith.truncf %286 : vector<2x4x64xf32> to vector<2x4x64xbf16>
    %288 = vector.shape_cast %1 : vector<2x4xf32> to vector<2x1x4xf32>
    %289 = vector.extract_strided_slice %283 {offsets = [0, 0, 0], sizes = [2, 4, 16], strides = [1, 1, 1]} : vector<2x4x64xbf16> to vector<2x4x16xbf16>
    %290 = vector.extract_strided_slice %285 {offsets = [0, 0, 0], sizes = [2, 4, 16], strides = [1, 1, 1]} : vector<2x4x64xbf16> to vector<2x4x16xbf16>
    "tpu.trace_start"() <{level = 10 : i32, message = "bqd,bkd->bqk"}> : () -> ()
    %cst_109 = arith.constant dense<0.000000e+00> : vector<2x4x4xf32>
    %291 = tpu.matmul %289, %290, %cst_109 {dimension_numbers = #tpu.dot_dimension_numbers<[2], [2], [1], [1], [0, 0, 0, 1, 1, 1], [0], [0]>} : vector<2x4x16xbf16>, vector<2x4x16xbf16>, vector<2x4x4xf32> -> vector<2x4x4xf32>
    "tpu.trace_stop"() : () -> ()
    %292 = vector.broadcast %288 : vector<2x1x4xf32> to vector<2x4x4xf32>
    %293 = arith.addf %291, %292 : vector<2x4x4xf32>
    %cst_110 = arith.constant dense<0xFF800000> : vector<2x4xf32>
    %294 = vector.multi_reduction <maximumf>, %293, %cst_110 [2] : vector<2x4x4xf32> to vector<2x4xf32>
    %295 = vector.shape_cast %294 : vector<2x4xf32> to vector<2x4x1xf32>
    %296 = vector.broadcast %295 : vector<2x4x1xf32> to vector<2x4x4xf32>
    %297 = arith.subf %293, %296 : vector<2x4x4xf32>
    %298 = math.exp %297 : vector<2x4x4xf32>
    %cst_111 = arith.constant dense<0.000000e+00> : vector<2x4xf32>
    %299 = vector.multi_reduction <add>, %298, %cst_111 [2] : vector<2x4x4xf32> to vector<2x4xf32>
    %300 = vector.shape_cast %299 : vector<2x4xf32> to vector<2x4x1xf32>
    %301 = tpu.reciprocal %300 {approx = true} : vector<2x4x1xf32> -> vector<2x4x1xf32>
    %302 = vector.broadcast %301 : vector<2x4x1xf32> to vector<2x4x4xf32>
    %303 = arith.mulf %298, %302 : vector<2x4x4xf32>
    %304 = arith.truncf %303 : vector<2x4x4xf32> to vector<2x4x4xbf16>
    %305 = vector.extract_strided_slice %287 {offsets = [0, 0, 0], sizes = [2, 4, 16], strides = [1, 1, 1]} : vector<2x4x64xbf16> to vector<2x4x16xbf16>
    "tpu.trace_start"() <{level = 10 : i32, message = "bqk,bkd->bqd"}> : () -> ()
    %cst_112 = arith.constant dense<0.000000e+00> : vector<2x4x16xf32>
    %306 = tpu.matmul %304, %305, %cst_112 {dimension_numbers = #tpu.dot_dimension_numbers<[2], [1], [1], [2], [0, 0, 0, 1, 1, 2], [0], [0]>} : vector<2x4x4xbf16>, vector<2x4x16xbf16>, vector<2x4x16xf32> -> vector<2x4x16xf32>
    "tpu.trace_stop"() : () -> ()
    %307 = vector.extract_strided_slice %283 {offsets = [0, 0, 16], sizes = [2, 4, 16], strides = [1, 1, 1]} : vector<2x4x64xbf16> to vector<2x4x16xbf16>
    %308 = vector.extract_strided_slice %285 {offsets = [0, 0, 16], sizes = [2, 4, 16], strides = [1, 1, 1]} : vector<2x4x64xbf16> to vector<2x4x16xbf16>
    "tpu.trace_start"() <{level = 10 : i32, message = "bqd,bkd->bqk"}> : () -> ()
    %cst_113 = arith.constant dense<0.000000e+00> : vector<2x4x4xf32>
    %309 = tpu.matmul %307, %308, %cst_113 {dimension_numbers = #tpu.dot_dimension_numbers<[2], [2], [1], [1], [0, 0, 0, 1, 1, 1], [0], [0]>} : vector<2x4x16xbf16>, vector<2x4x16xbf16>, vector<2x4x4xf32> -> vector<2x4x4xf32>
    "tpu.trace_stop"() : () -> ()
    %310 = vector.broadcast %288 : vector<2x1x4xf32> to vector<2x4x4xf32>
    %311 = arith.addf %309, %310 : vector<2x4x4xf32>
    %cst_114 = arith.constant dense<0xFF800000> : vector<2x4xf32>
    %312 = vector.multi_reduction <maximumf>, %311, %cst_114 [2] : vector<2x4x4xf32> to vector<2x4xf32>
    %313 = vector.shape_cast %312 : vector<2x4xf32> to vector<2x4x1xf32>
    %314 = vector.broadcast %313 : vector<2x4x1xf32> to vector<2x4x4xf32>
    %315 = arith.subf %311, %314 : vector<2x4x4xf32>
    %316 = math.exp %315 : vector<2x4x4xf32>
    %cst_115 = arith.constant dense<0.000000e+00> : vector<2x4xf32>
    %317 = vector.multi_reduction <add>, %316, %cst_115 [2] : vector<2x4x4xf32> to vector<2x4xf32>
    %318 = vector.shape_cast %317 : vector<2x4xf32> to vector<2x4x1xf32>
    %319 = tpu.reciprocal %318 {approx = true} : vector<2x4x1xf32> -> vector<2x4x1xf32>
    %320 = vector.broadcast %319 : vector<2x4x1xf32> to vector<2x4x4xf32>
    %321 = arith.mulf %316, %320 : vector<2x4x4xf32>
    %322 = arith.truncf %321 : vector<2x4x4xf32> to vector<2x4x4xbf16>
    %323 = vector.extract_strided_slice %287 {offsets = [0, 0, 16], sizes = [2, 4, 16], strides = [1, 1, 1]} : vector<2x4x64xbf16> to vector<2x4x16xbf16>
    "tpu.trace_start"() <{level = 10 : i32, message = "bqk,bkd->bqd"}> : () -> ()
    %cst_116 = arith.constant dense<0.000000e+00> : vector<2x4x16xf32>
    %324 = tpu.matmul %322, %323, %cst_116 {dimension_numbers = #tpu.dot_dimension_numbers<[2], [1], [1], [2], [0, 0, 0, 1, 1, 2], [0], [0]>} : vector<2x4x4xbf16>, vector<2x4x16xbf16>, vector<2x4x16xf32> -> vector<2x4x16xf32>
    "tpu.trace_stop"() : () -> ()
    %325 = vector.extract_strided_slice %283 {offsets = [0, 0, 32], sizes = [2, 4, 16], strides = [1, 1, 1]} : vector<2x4x64xbf16> to vector<2x4x16xbf16>
    %326 = vector.extract_strided_slice %285 {offsets = [0, 0, 32], sizes = [2, 4, 16], strides = [1, 1, 1]} : vector<2x4x64xbf16> to vector<2x4x16xbf16>
    "tpu.trace_start"() <{level = 10 : i32, message = "bqd,bkd->bqk"}> : () -> ()
    %cst_117 = arith.constant dense<0.000000e+00> : vector<2x4x4xf32>
    %327 = tpu.matmul %325, %326, %cst_117 {dimension_numbers = #tpu.dot_dimension_numbers<[2], [2], [1], [1], [0, 0, 0, 1, 1, 1], [0], [0]>} : vector<2x4x16xbf16>, vector<2x4x16xbf16>, vector<2x4x4xf32> -> vector<2x4x4xf32>
    "tpu.trace_stop"() : () -> ()
    %328 = vector.broadcast %288 : vector<2x1x4xf32> to vector<2x4x4xf32>
    %329 = arith.addf %327, %328 : vector<2x4x4xf32>
    %cst_118 = arith.constant dense<0xFF800000> : vector<2x4xf32>
    %330 = vector.multi_reduction <maximumf>, %329, %cst_118 [2] : vector<2x4x4xf32> to vector<2x4xf32>
    %331 = vector.shape_cast %330 : vector<2x4xf32> to vector<2x4x1xf32>
    %332 = vector.broadcast %331 : vector<2x4x1xf32> to vector<2x4x4xf32>
    %333 = arith.subf %329, %332 : vector<2x4x4xf32>
    %334 = math.exp %333 : vector<2x4x4xf32>
    %cst_119 = arith.constant dense<0.000000e+00> : vector<2x4xf32>
    %335 = vector.multi_reduction <add>, %334, %cst_119 [2] : vector<2x4x4xf32> to vector<2x4xf32>
    %336 = vector.shape_cast %335 : vector<2x4xf32> to vector<2x4x1xf32>
    %337 = tpu.reciprocal %336 {approx = true} : vector<2x4x1xf32> -> vector<2x4x1xf32>
    %338 = vector.broadcast %337 : vector<2x4x1xf32> to vector<2x4x4xf32>
    %339 = arith.mulf %334, %338 : vector<2x4x4xf32>
    %340 = arith.truncf %339 : vector<2x4x4xf32> to vector<2x4x4xbf16>
    %341 = vector.extract_strided_slice %287 {offsets = [0, 0, 32], sizes = [2, 4, 16], strides = [1, 1, 1]} : vector<2x4x64xbf16> to vector<2x4x16xbf16>
    "tpu.trace_start"() <{level = 10 : i32, message = "bqk,bkd->bqd"}> : () -> ()
    %cst_120 = arith.constant dense<0.000000e+00> : vector<2x4x16xf32>
    %342 = tpu.matmul %340, %341, %cst_120 {dimension_numbers = #tpu.dot_dimension_numbers<[2], [1], [1], [2], [0, 0, 0, 1, 1, 2], [0], [0]>} : vector<2x4x4xbf16>, vector<2x4x16xbf16>, vector<2x4x16xf32> -> vector<2x4x16xf32>
    "tpu.trace_stop"() : () -> ()
    %343 = vector.extract_strided_slice %283 {offsets = [0, 0, 48], sizes = [2, 4, 16], strides = [1, 1, 1]} : vector<2x4x64xbf16> to vector<2x4x16xbf16>
    %344 = vector.extract_strided_slice %285 {offsets = [0, 0, 48], sizes = [2, 4, 16], strides = [1, 1, 1]} : vector<2x4x64xbf16> to vector<2x4x16xbf16>
    "tpu.trace_start"() <{level = 10 : i32, message = "bqd,bkd->bqk"}> : () -> ()
    %cst_121 = arith.constant dense<0.000000e+00> : vector<2x4x4xf32>
    %345 = tpu.matmul %343, %344, %cst_121 {dimension_numbers = #tpu.dot_dimension_numbers<[2], [2], [1], [1], [0, 0, 0, 1, 1, 1], [0], [0]>} : vector<2x4x16xbf16>, vector<2x4x16xbf16>, vector<2x4x4xf32> -> vector<2x4x4xf32>
    "tpu.trace_stop"() : () -> ()
    %346 = vector.broadcast %288 : vector<2x1x4xf32> to vector<2x4x4xf32>
    %347 = arith.addf %345, %346 : vector<2x4x4xf32>
    %cst_122 = arith.constant dense<0xFF800000> : vector<2x4xf32>
    %348 = vector.multi_reduction <maximumf>, %347, %cst_122 [2] : vector<2x4x4xf32> to vector<2x4xf32>
    %349 = vector.shape_cast %348 : vector<2x4xf32> to vector<2x4x1xf32>
    %350 = vector.broadcast %349 : vector<2x4x1xf32> to vector<2x4x4xf32>
    %351 = arith.subf %347, %350 : vector<2x4x4xf32>
    %352 = math.exp %351 : vector<2x4x4xf32>
    %cst_123 = arith.constant dense<0.000000e+00> : vector<2x4xf32>
    %353 = vector.multi_reduction <add>, %352, %cst_123 [2] : vector<2x4x4xf32> to vector<2x4xf32>
    %354 = vector.shape_cast %353 : vector<2x4xf32> to vector<2x4x1xf32>
    %355 = tpu.reciprocal %354 {approx = true} : vector<2x4x1xf32> -> vector<2x4x1xf32>
    %356 = vector.broadcast %355 : vector<2x4x1xf32> to vector<2x4x4xf32>
    %357 = arith.mulf %352, %356 : vector<2x4x4xf32>
    %358 = arith.truncf %357 : vector<2x4x4xf32> to vector<2x4x4xbf16>
    %359 = vector.extract_strided_slice %287 {offsets = [0, 0, 48], sizes = [2, 4, 16], strides = [1, 1, 1]} : vector<2x4x64xbf16> to vector<2x4x16xbf16>
    "tpu.trace_start"() <{level = 10 : i32, message = "bqk,bkd->bqd"}> : () -> ()
    %cst_124 = arith.constant dense<0.000000e+00> : vector<2x4x16xf32>
    %360 = tpu.matmul %358, %359, %cst_124 {dimension_numbers = #tpu.dot_dimension_numbers<[2], [1], [1], [2], [0, 0, 0, 1, 1, 2], [0], [0]>} : vector<2x4x4xbf16>, vector<2x4x16xbf16>, vector<2x4x16xf32> -> vector<2x4x16xf32>
    "tpu.trace_stop"() : () -> ()
    %361 = tpu.concatenate %306, %324, %342, %360 in 2 : vector<2x4x16xf32>, vector<2x4x16xf32>, vector<2x4x16xf32>, vector<2x4x16xf32> -> vector<2x4x64xf32>
    %362 = vector.shape_cast %361 : vector<2x4x64xf32> to vector<8x64xf32>
    %c0_125 = arith.constant 0 : index
    %c0_126 = arith.constant 0 : index
    %363 = vector.load %arg28[%c0_125, %c0_126] : memref<64x64xbf16, #tpu.memory_space<vmem>>, vector<64x64xbf16>
    %c0_127 = arith.constant 0 : index
    %c0_128 = arith.constant 0 : index
    %364 = vector.load %arg27[%c0_127, %c0_128] : memref<1x64xf32, #tpu.memory_space<vmem>>, vector<1x64xf32>
    %365 = arith.truncf %362 : vector<8x64xf32> to vector<8x64xbf16>
    %cst_129 = arith.constant dense<0.000000e+00> : vector<8x64xf32>
    %366 = tpu.matmul %365, %363, %cst_129 {dimension_numbers = #tpu.dot_dimension_numbers<[1], [0], [0], [1], [0, 0, 1, 1], [], []>} : vector<8x64xbf16>, vector<64x64xbf16>, vector<8x64xf32> -> vector<8x64xf32>
    %367 = vector.broadcast %364 : vector<1x64xf32> to vector<8x64xf32>
    %368 = arith.addf %366, %367 : vector<8x64xf32>
    %369 = arith.addf %368, %97 : vector<8x64xf32>
    %c0_130 = arith.constant 0 : index
    %c0_131 = arith.constant 0 : index
    %370 = vector.load %arg26[%c0_130, %c0_131] : memref<1x64xf32, #tpu.memory_space<vmem>>, vector<1x64xf32>
    %c0_132 = arith.constant 0 : index
    %c0_133 = arith.constant 0 : index
    %371 = vector.load %arg25[%c0_132, %c0_133] : memref<1x64xf32, #tpu.memory_space<vmem>>, vector<1x64xf32>
    %cst_134 = arith.constant dense<0.000000e+00> : vector<8xf32>
    %372 = vector.multi_reduction <add>, %369, %cst_134 [1] : vector<8x64xf32> to vector<8xf32>
    %373 = vector.shape_cast %372 : vector<8xf32> to vector<8x1xf32>
    %cst_135 = arith.constant 6.400000e+01 : f32
    %374 = vector.broadcast %cst_135 : f32 to vector<8x1xf32>
    %375 = arith.divf %373, %374 : vector<8x1xf32>
    %376 = vector.broadcast %375 : vector<8x1xf32> to vector<8x64xf32>
    %377 = arith.subf %369, %376 : vector<8x64xf32>
    %378 = vector.broadcast %375 : vector<8x1xf32> to vector<8x64xf32>
    %379 = arith.subf %369, %378 : vector<8x64xf32>
    %380 = arith.mulf %377, %379 : vector<8x64xf32>
    %cst_136 = arith.constant dense<0.000000e+00> : vector<8xf32>
    %381 = vector.multi_reduction <add>, %380, %cst_136 [1] : vector<8x64xf32> to vector<8xf32>
    %382 = vector.shape_cast %381 : vector<8xf32> to vector<8x1xf32>
    %cst_137 = arith.constant 6.400000e+01 : f32
    %383 = vector.broadcast %cst_137 : f32 to vector<8x1xf32>
    %384 = arith.divf %382, %383 : vector<8x1xf32>
    %385 = vector.broadcast %375 : vector<8x1xf32> to vector<8x64xf32>
    %386 = arith.subf %369, %385 : vector<8x64xf32>
    %cst_138 = arith.constant 9.99999996E-13 : f32
    %387 = vector.broadcast %cst_138 : f32 to vector<8x1xf32>
    %388 = arith.addf %384, %387 : vector<8x1xf32>
    %389 = math.rsqrt %388 : vector<8x1xf32>
    %390 = vector.broadcast %389 : vector<8x1xf32> to vector<8x64xf32>
    %391 = arith.mulf %386, %390 : vector<8x64xf32>
    %392 = vector.broadcast %370 : vector<1x64xf32> to vector<8x64xf32>
    %393 = arith.mulf %391, %392 : vector<8x64xf32>
    %394 = vector.broadcast %371 : vector<1x64xf32> to vector<8x64xf32>
    %395 = arith.addf %393, %394 : vector<8x64xf32>
    %c0_139 = arith.constant 0 : index
    %c0_140 = arith.constant 0 : index
    %396 = vector.load %arg32[%c0_139, %c0_140] : memref<64x128xbf16, #tpu.memory_space<vmem>>, vector<64x128xbf16>
    %c0_141 = arith.constant 0 : index
    %c0_142 = arith.constant 0 : index
    %397 = vector.load %arg31[%c0_141, %c0_142] : memref<1x128xf32, #tpu.memory_space<vmem>>, vector<1x128xf32>
    %398 = arith.truncf %395 : vector<8x64xf32> to vector<8x64xbf16>
    %cst_143 = arith.constant dense<0.000000e+00> : vector<8x128xf32>
    %399 = tpu.matmul %398, %396, %cst_143 {dimension_numbers = #tpu.dot_dimension_numbers<[1], [0], [0], [1], [0, 0, 1, 1], [], []>} : vector<8x64xbf16>, vector<64x128xbf16>, vector<8x128xf32> -> vector<8x128xf32>
    %400 = vector.broadcast %397 : vector<1x128xf32> to vector<8x128xf32>
    %401 = arith.addf %399, %400 : vector<8x128xf32>
    %cst_144 = arith.constant 5.000000e-01 : f32
    %402 = vector.broadcast %cst_144 : f32 to vector<8x128xf32>
    %403 = arith.mulf %402, %401 : vector<8x128xf32>
    %cst_145 = arith.constant 4.471500e-02 : f32
    %404 = vector.broadcast %cst_145 : f32 to vector<8x128xf32>
    %405 = arith.mulf %404, %401 : vector<8x128xf32>
    %406 = arith.mulf %405, %401 : vector<8x128xf32>
    %407 = arith.mulf %406, %401 : vector<8x128xf32>
    %408 = arith.addf %401, %407 : vector<8x128xf32>
    %cst_146 = arith.constant 0.797884583 : f32
    %409 = vector.broadcast %cst_146 : f32 to vector<8x128xf32>
    %410 = arith.mulf %409, %408 : vector<8x128xf32>
    %411 = math.tanh %410 : vector<8x128xf32>
    %cst_147 = arith.constant 1.000000e+00 : f32
    %412 = vector.broadcast %cst_147 : f32 to vector<8x128xf32>
    %413 = arith.addf %412, %411 : vector<8x128xf32>
    %414 = arith.mulf %403, %413 : vector<8x128xf32>
    %c0_148 = arith.constant 0 : index
    %c0_149 = arith.constant 0 : index
    %415 = vector.load %arg36[%c0_148, %c0_149] : memref<128x64xbf16, #tpu.memory_space<vmem>>, vector<128x64xbf16>
    %c0_150 = arith.constant 0 : index
    %c0_151 = arith.constant 0 : index
    %416 = vector.load %arg35[%c0_150, %c0_151] : memref<1x64xf32, #tpu.memory_space<vmem>>, vector<1x64xf32>
    %417 = arith.truncf %414 : vector<8x128xf32> to vector<8x128xbf16>
    %cst_152 = arith.constant dense<0.000000e+00> : vector<8x64xf32>
    %418 = tpu.matmul %417, %415, %cst_152 {dimension_numbers = #tpu.dot_dimension_numbers<[1], [0], [0], [1], [0, 0, 1, 1], [], []>} : vector<8x128xbf16>, vector<128x64xbf16>, vector<8x64xf32> -> vector<8x64xf32>
    %419 = vector.broadcast %416 : vector<1x64xf32> to vector<8x64xf32>
    %420 = arith.addf %418, %419 : vector<8x64xf32>
    %421 = arith.addf %420, %395 : vector<8x64xf32>
    %c0_153 = arith.constant 0 : index
    %c0_154 = arith.constant 0 : index
    %422 = vector.load %arg34[%c0_153, %c0_154] : memref<1x64xf32, #tpu.memory_space<vmem>>, vector<1x64xf32>
    %c0_155 = arith.constant 0 : index
    %c0_156 = arith.constant 0 : index
    %423 = vector.load %arg33[%c0_155, %c0_156] : memref<1x64xf32, #tpu.memory_space<vmem>>, vector<1x64xf32>
    %cst_157 = arith.constant dense<0.000000e+00> : vector<8xf32>
    %424 = vector.multi_reduction <add>, %421, %cst_157 [1] : vector<8x64xf32> to vector<8xf32>
    %425 = vector.shape_cast %424 : vector<8xf32> to vector<8x1xf32>
    %cst_158 = arith.constant 6.400000e+01 : f32
    %426 = vector.broadcast %cst_158 : f32 to vector<8x1xf32>
    %427 = arith.divf %425, %426 : vector<8x1xf32>
    %428 = vector.broadcast %427 : vector<8x1xf32> to vector<8x64xf32>
    %429 = arith.subf %421, %428 : vector<8x64xf32>
    %430 = vector.broadcast %427 : vector<8x1xf32> to vector<8x64xf32>
    %431 = arith.subf %421, %430 : vector<8x64xf32>
    %432 = arith.mulf %429, %431 : vector<8x64xf32>
    %cst_159 = arith.constant dense<0.000000e+00> : vector<8xf32>
    %433 = vector.multi_reduction <add>, %432, %cst_159 [1] : vector<8x64xf32> to vector<8xf32>
    %434 = vector.shape_cast %433 : vector<8xf32> to vector<8x1xf32>
    %cst_160 = arith.constant 6.400000e+01 : f32
    %435 = vector.broadcast %cst_160 : f32 to vector<8x1xf32>
    %436 = arith.divf %434, %435 : vector<8x1xf32>
    %437 = vector.broadcast %427 : vector<8x1xf32> to vector<8x64xf32>
    %438 = arith.subf %421, %437 : vector<8x64xf32>
    %cst_161 = arith.constant 9.99999996E-13 : f32
    %439 = vector.broadcast %cst_161 : f32 to vector<8x1xf32>
    %440 = arith.addf %436, %439 : vector<8x1xf32>
    %441 = math.rsqrt %440 : vector<8x1xf32>
    %442 = vector.broadcast %441 : vector<8x1xf32> to vector<8x64xf32>
    %443 = arith.mulf %438, %442 : vector<8x64xf32>
    %444 = vector.broadcast %422 : vector<1x64xf32> to vector<8x64xf32>
    %445 = arith.mulf %443, %444 : vector<8x64xf32>
    %446 = vector.broadcast %423 : vector<1x64xf32> to vector<8x64xf32>
    %447 = arith.addf %445, %446 : vector<8x64xf32>
    %448 = tpu.concatenate %272, %447 in 0 : vector<16x64xf32>, vector<8x64xf32> -> vector<24x64xf32>
    %c0_162 = arith.constant 0 : index
    %c0_163 = arith.constant 0 : index
    %449 = vector.load %arg46[%c0_162, %c0_163] : memref<64x192xbf16, #tpu.memory_space<vmem>>, vector<64x192xbf16>
    %c0_164 = arith.constant 0 : index
    %c0_165 = arith.constant 0 : index
    %450 = vector.load %arg45[%c0_164, %c0_165] : memref<1x192xf32, #tpu.memory_space<vmem>>, vector<1x192xf32>
    %451 = arith.truncf %448 : vector<24x64xf32> to vector<24x64xbf16>
    %cst_166 = arith.constant dense<0.000000e+00> : vector<24x192xf32>
    %452 = tpu.matmul %451, %449, %cst_166 {dimension_numbers = #tpu.dot_dimension_numbers<[1], [0], [0], [1], [0, 0, 1, 1], [], []>} : vector<24x64xbf16>, vector<64x192xbf16>, vector<24x192xf32> -> vector<24x192xf32>
    %453 = vector.broadcast %450 : vector<1x192xf32> to vector<24x192xf32>
    %454 = arith.addf %452, %453 : vector<24x192xf32>
    %455 = vector.extract_strided_slice %454 {offsets = [0, 0], sizes = [16, 64], strides = [1, 1]} : vector<24x192xf32> to vector<16x64xf32>
    %456 = vector.extract_strided_slice %454 {offsets = [16, 64], sizes = [8, 64], strides = [1, 1]} : vector<24x192xf32> to vector<8x64xf32>
    %457 = vector.extract_strided_slice %454 {offsets = [16, 128], sizes = [8, 64], strides = [1, 1]} : vector<24x192xf32> to vector<8x64xf32>
    %458 = vector.shape_cast %455 : vector<16x64xf32> to vector<2x8x64xf32>
    %459 = arith.truncf %458 : vector<2x8x64xf32> to vector<2x8x64xbf16>
    %460 = vector.shape_cast %456 : vector<8x64xf32> to vector<2x4x64xf32>
    %461 = arith.truncf %460 : vector<2x4x64xf32> to vector<2x4x64xbf16>
    %462 = vector.shape_cast %457 : vector<8x64xf32> to vector<2x4x64xf32>
    %463 = arith.truncf %462 : vector<2x4x64xf32> to vector<2x4x64xbf16>
    %464 = vector.shape_cast %1 : vector<2x4xf32> to vector<2x1x4xf32>
    %465 = vector.extract_strided_slice %459 {offsets = [0, 0, 0], sizes = [2, 8, 16], strides = [1, 1, 1]} : vector<2x8x64xbf16> to vector<2x8x16xbf16>
    %466 = vector.extract_strided_slice %461 {offsets = [0, 0, 0], sizes = [2, 4, 16], strides = [1, 1, 1]} : vector<2x4x64xbf16> to vector<2x4x16xbf16>
    "tpu.trace_start"() <{level = 10 : i32, message = "bqd,bkd->bqk"}> : () -> ()
    %cst_167 = arith.constant dense<0.000000e+00> : vector<2x8x4xf32>
    %467 = tpu.matmul %465, %466, %cst_167 {dimension_numbers = #tpu.dot_dimension_numbers<[2], [2], [1], [1], [0, 0, 0, 1, 1, 1], [0], [0]>} : vector<2x8x16xbf16>, vector<2x4x16xbf16>, vector<2x8x4xf32> -> vector<2x8x4xf32>
    "tpu.trace_stop"() : () -> ()
    %468 = vector.broadcast %464 : vector<2x1x4xf32> to vector<2x8x4xf32>
    %469 = arith.addf %467, %468 : vector<2x8x4xf32>
    %cst_168 = arith.constant dense<0xFF800000> : vector<2x8xf32>
    %470 = vector.multi_reduction <maximumf>, %469, %cst_168 [2] : vector<2x8x4xf32> to vector<2x8xf32>
    %471 = vector.shape_cast %470 : vector<2x8xf32> to vector<2x8x1xf32>
    %472 = vector.broadcast %471 : vector<2x8x1xf32> to vector<2x8x4xf32>
    %473 = arith.subf %469, %472 : vector<2x8x4xf32>
    %474 = math.exp %473 : vector<2x8x4xf32>
    %cst_169 = arith.constant dense<0.000000e+00> : vector<2x8xf32>
    %475 = vector.multi_reduction <add>, %474, %cst_169 [2] : vector<2x8x4xf32> to vector<2x8xf32>
    %476 = vector.shape_cast %475 : vector<2x8xf32> to vector<2x8x1xf32>
    %477 = tpu.reciprocal %476 {approx = true} : vector<2x8x1xf32> -> vector<2x8x1xf32>
    %478 = vector.broadcast %477 : vector<2x8x1xf32> to vector<2x8x4xf32>
    %479 = arith.mulf %474, %478 : vector<2x8x4xf32>
    %480 = arith.truncf %479 : vector<2x8x4xf32> to vector<2x8x4xbf16>
    %481 = vector.extract_strided_slice %463 {offsets = [0, 0, 0], sizes = [2, 4, 16], strides = [1, 1, 1]} : vector<2x4x64xbf16> to vector<2x4x16xbf16>
    "tpu.trace_start"() <{level = 10 : i32, message = "bqk,bkd->bqd"}> : () -> ()
    %cst_170 = arith.constant dense<0.000000e+00> : vector<2x8x16xf32>
    %482 = tpu.matmul %480, %481, %cst_170 {dimension_numbers = #tpu.dot_dimension_numbers<[2], [1], [1], [2], [0, 0, 0, 1, 1, 2], [0], [0]>} : vector<2x8x4xbf16>, vector<2x4x16xbf16>, vector<2x8x16xf32> -> vector<2x8x16xf32>
    "tpu.trace_stop"() : () -> ()
    %483 = vector.extract_strided_slice %459 {offsets = [0, 0, 16], sizes = [2, 8, 16], strides = [1, 1, 1]} : vector<2x8x64xbf16> to vector<2x8x16xbf16>
    %484 = vector.extract_strided_slice %461 {offsets = [0, 0, 16], sizes = [2, 4, 16], strides = [1, 1, 1]} : vector<2x4x64xbf16> to vector<2x4x16xbf16>
    "tpu.trace_start"() <{level = 10 : i32, message = "bqd,bkd->bqk"}> : () -> ()
    %cst_171 = arith.constant dense<0.000000e+00> : vector<2x8x4xf32>
    %485 = tpu.matmul %483, %484, %cst_171 {dimension_numbers = #tpu.dot_dimension_numbers<[2], [2], [1], [1], [0, 0, 0, 1, 1, 1], [0], [0]>} : vector<2x8x16xbf16>, vector<2x4x16xbf16>, vector<2x8x4xf32> -> vector<2x8x4xf32>
    "tpu.trace_stop"() : () -> ()
    %486 = vector.broadcast %464 : vector<2x1x4xf32> to vector<2x8x4xf32>
    %487 = arith.addf %485, %486 : vector<2x8x4xf32>
    %cst_172 = arith.constant dense<0xFF800000> : vector<2x8xf32>
    %488 = vector.multi_reduction <maximumf>, %487, %cst_172 [2] : vector<2x8x4xf32> to vector<2x8xf32>
    %489 = vector.shape_cast %488 : vector<2x8xf32> to vector<2x8x1xf32>
    %490 = vector.broadcast %489 : vector<2x8x1xf32> to vector<2x8x4xf32>
    %491 = arith.subf %487, %490 : vector<2x8x4xf32>
    %492 = math.exp %491 : vector<2x8x4xf32>
    %cst_173 = arith.constant dense<0.000000e+00> : vector<2x8xf32>
    %493 = vector.multi_reduction <add>, %492, %cst_173 [2] : vector<2x8x4xf32> to vector<2x8xf32>
    %494 = vector.shape_cast %493 : vector<2x8xf32> to vector<2x8x1xf32>
    %495 = tpu.reciprocal %494 {approx = true} : vector<2x8x1xf32> -> vector<2x8x1xf32>
    %496 = vector.broadcast %495 : vector<2x8x1xf32> to vector<2x8x4xf32>
    %497 = arith.mulf %492, %496 : vector<2x8x4xf32>
    %498 = arith.truncf %497 : vector<2x8x4xf32> to vector<2x8x4xbf16>
    %499 = vector.extract_strided_slice %463 {offsets = [0, 0, 16], sizes = [2, 4, 16], strides = [1, 1, 1]} : vector<2x4x64xbf16> to vector<2x4x16xbf16>
    "tpu.trace_start"() <{level = 10 : i32, message = "bqk,bkd->bqd"}> : () -> ()
    %cst_174 = arith.constant dense<0.000000e+00> : vector<2x8x16xf32>
    %500 = tpu.matmul %498, %499, %cst_174 {dimension_numbers = #tpu.dot_dimension_numbers<[2], [1], [1], [2], [0, 0, 0, 1, 1, 2], [0], [0]>} : vector<2x8x4xbf16>, vector<2x4x16xbf16>, vector<2x8x16xf32> -> vector<2x8x16xf32>
    "tpu.trace_stop"() : () -> ()
    %501 = vector.extract_strided_slice %459 {offsets = [0, 0, 32], sizes = [2, 8, 16], strides = [1, 1, 1]} : vector<2x8x64xbf16> to vector<2x8x16xbf16>
    %502 = vector.extract_strided_slice %461 {offsets = [0, 0, 32], sizes = [2, 4, 16], strides = [1, 1, 1]} : vector<2x4x64xbf16> to vector<2x4x16xbf16>
    "tpu.trace_start"() <{level = 10 : i32, message = "bqd,bkd->bqk"}> : () -> ()
    %cst_175 = arith.constant dense<0.000000e+00> : vector<2x8x4xf32>
    %503 = tpu.matmul %501, %502, %cst_175 {dimension_numbers = #tpu.dot_dimension_numbers<[2], [2], [1], [1], [0, 0, 0, 1, 1, 1], [0], [0]>} : vector<2x8x16xbf16>, vector<2x4x16xbf16>, vector<2x8x4xf32> -> vector<2x8x4xf32>
    "tpu.trace_stop"() : () -> ()
    %504 = vector.broadcast %464 : vector<2x1x4xf32> to vector<2x8x4xf32>
    %505 = arith.addf %503, %504 : vector<2x8x4xf32>
    %cst_176 = arith.constant dense<0xFF800000> : vector<2x8xf32>
    %506 = vector.multi_reduction <maximumf>, %505, %cst_176 [2] : vector<2x8x4xf32> to vector<2x8xf32>
    %507 = vector.shape_cast %506 : vector<2x8xf32> to vector<2x8x1xf32>
    %508 = vector.broadcast %507 : vector<2x8x1xf32> to vector<2x8x4xf32>
    %509 = arith.subf %505, %508 : vector<2x8x4xf32>
    %510 = math.exp %509 : vector<2x8x4xf32>
    %cst_177 = arith.constant dense<0.000000e+00> : vector<2x8xf32>
    %511 = vector.multi_reduction <add>, %510, %cst_177 [2] : vector<2x8x4xf32> to vector<2x8xf32>
    %512 = vector.shape_cast %511 : vector<2x8xf32> to vector<2x8x1xf32>
    %513 = tpu.reciprocal %512 {approx = true} : vector<2x8x1xf32> -> vector<2x8x1xf32>
    %514 = vector.broadcast %513 : vector<2x8x1xf32> to vector<2x8x4xf32>
    %515 = arith.mulf %510, %514 : vector<2x8x4xf32>
    %516 = arith.truncf %515 : vector<2x8x4xf32> to vector<2x8x4xbf16>
    %517 = vector.extract_strided_slice %463 {offsets = [0, 0, 32], sizes = [2, 4, 16], strides = [1, 1, 1]} : vector<2x4x64xbf16> to vector<2x4x16xbf16>
    "tpu.trace_start"() <{level = 10 : i32, message = "bqk,bkd->bqd"}> : () -> ()
    %cst_178 = arith.constant dense<0.000000e+00> : vector<2x8x16xf32>
    %518 = tpu.matmul %516, %517, %cst_178 {dimension_numbers = #tpu.dot_dimension_numbers<[2], [1], [1], [2], [0, 0, 0, 1, 1, 2], [0], [0]>} : vector<2x8x4xbf16>, vector<2x4x16xbf16>, vector<2x8x16xf32> -> vector<2x8x16xf32>
    "tpu.trace_stop"() : () -> ()
    %519 = vector.extract_strided_slice %459 {offsets = [0, 0, 48], sizes = [2, 8, 16], strides = [1, 1, 1]} : vector<2x8x64xbf16> to vector<2x8x16xbf16>
    %520 = vector.extract_strided_slice %461 {offsets = [0, 0, 48], sizes = [2, 4, 16], strides = [1, 1, 1]} : vector<2x4x64xbf16> to vector<2x4x16xbf16>
    "tpu.trace_start"() <{level = 10 : i32, message = "bqd,bkd->bqk"}> : () -> ()
    %cst_179 = arith.constant dense<0.000000e+00> : vector<2x8x4xf32>
    %521 = tpu.matmul %519, %520, %cst_179 {dimension_numbers = #tpu.dot_dimension_numbers<[2], [2], [1], [1], [0, 0, 0, 1, 1, 1], [0], [0]>} : vector<2x8x16xbf16>, vector<2x4x16xbf16>, vector<2x8x4xf32> -> vector<2x8x4xf32>
    "tpu.trace_stop"() : () -> ()
    %522 = vector.broadcast %464 : vector<2x1x4xf32> to vector<2x8x4xf32>
    %523 = arith.addf %521, %522 : vector<2x8x4xf32>
    %cst_180 = arith.constant dense<0xFF800000> : vector<2x8xf32>
    %524 = vector.multi_reduction <maximumf>, %523, %cst_180 [2] : vector<2x8x4xf32> to vector<2x8xf32>
    %525 = vector.shape_cast %524 : vector<2x8xf32> to vector<2x8x1xf32>
    %526 = vector.broadcast %525 : vector<2x8x1xf32> to vector<2x8x4xf32>
    %527 = arith.subf %523, %526 : vector<2x8x4xf32>
    %528 = math.exp %527 : vector<2x8x4xf32>
    %cst_181 = arith.constant dense<0.000000e+00> : vector<2x8xf32>
    %529 = vector.multi_reduction <add>, %528, %cst_181 [2] : vector<2x8x4xf32> to vector<2x8xf32>
    %530 = vector.shape_cast %529 : vector<2x8xf32> to vector<2x8x1xf32>
    %531 = tpu.reciprocal %530 {approx = true} : vector<2x8x1xf32> -> vector<2x8x1xf32>
    %532 = vector.broadcast %531 : vector<2x8x1xf32> to vector<2x8x4xf32>
    %533 = arith.mulf %528, %532 : vector<2x8x4xf32>
    %534 = arith.truncf %533 : vector<2x8x4xf32> to vector<2x8x4xbf16>
    %535 = vector.extract_strided_slice %463 {offsets = [0, 0, 48], sizes = [2, 4, 16], strides = [1, 1, 1]} : vector<2x4x64xbf16> to vector<2x4x16xbf16>
    "tpu.trace_start"() <{level = 10 : i32, message = "bqk,bkd->bqd"}> : () -> ()
    %cst_182 = arith.constant dense<0.000000e+00> : vector<2x8x16xf32>
    %536 = tpu.matmul %534, %535, %cst_182 {dimension_numbers = #tpu.dot_dimension_numbers<[2], [1], [1], [2], [0, 0, 0, 1, 1, 2], [0], [0]>} : vector<2x8x4xbf16>, vector<2x4x16xbf16>, vector<2x8x16xf32> -> vector<2x8x16xf32>
    "tpu.trace_stop"() : () -> ()
    %537 = tpu.concatenate %482, %500, %518, %536 in 2 : vector<2x8x16xf32>, vector<2x8x16xf32>, vector<2x8x16xf32>, vector<2x8x16xf32> -> vector<2x8x64xf32>
    %538 = vector.shape_cast %537 : vector<2x8x64xf32> to vector<16x64xf32>
    %c0_183 = arith.constant 0 : index
    %c0_184 = arith.constant 0 : index
    %539 = vector.load %arg44[%c0_183, %c0_184] : memref<64x64xbf16, #tpu.memory_space<vmem>>, vector<64x64xbf16>
    %c0_185 = arith.constant 0 : index
    %c0_186 = arith.constant 0 : index
    %540 = vector.load %arg43[%c0_185, %c0_186] : memref<1x64xf32, #tpu.memory_space<vmem>>, vector<1x64xf32>
    %541 = arith.truncf %538 : vector<16x64xf32> to vector<16x64xbf16>
    %cst_187 = arith.constant dense<0.000000e+00> : vector<16x64xf32>
    %542 = tpu.matmul %541, %539, %cst_187 {dimension_numbers = #tpu.dot_dimension_numbers<[1], [0], [0], [1], [0, 0, 1, 1], [], []>} : vector<16x64xbf16>, vector<64x64xbf16>, vector<16x64xf32> -> vector<16x64xf32>
    %543 = vector.broadcast %540 : vector<1x64xf32> to vector<16x64xf32>
    %544 = arith.addf %542, %543 : vector<16x64xf32>
    %545 = arith.addf %544, %272 : vector<16x64xf32>
    %c0_188 = arith.constant 0 : index
    %c0_189 = arith.constant 0 : index
    %546 = vector.load %arg42[%c0_188, %c0_189] : memref<1x64xf32, #tpu.memory_space<vmem>>, vector<1x64xf32>
    %c0_190 = arith.constant 0 : index
    %c0_191 = arith.constant 0 : index
    %547 = vector.load %arg41[%c0_190, %c0_191] : memref<1x64xf32, #tpu.memory_space<vmem>>, vector<1x64xf32>
    %cst_192 = arith.constant dense<0.000000e+00> : vector<16xf32>
    %548 = vector.multi_reduction <add>, %545, %cst_192 [1] : vector<16x64xf32> to vector<16xf32>
    %549 = vector.shape_cast %548 : vector<16xf32> to vector<16x1xf32>
    %cst_193 = arith.constant 6.400000e+01 : f32
    %550 = vector.broadcast %cst_193 : f32 to vector<16x1xf32>
    %551 = arith.divf %549, %550 : vector<16x1xf32>
    %552 = vector.broadcast %551 : vector<16x1xf32> to vector<16x64xf32>
    %553 = arith.subf %545, %552 : vector<16x64xf32>
    %554 = vector.broadcast %551 : vector<16x1xf32> to vector<16x64xf32>
    %555 = arith.subf %545, %554 : vector<16x64xf32>
    %556 = arith.mulf %553, %555 : vector<16x64xf32>
    %cst_194 = arith.constant dense<0.000000e+00> : vector<16xf32>
    %557 = vector.multi_reduction <add>, %556, %cst_194 [1] : vector<16x64xf32> to vector<16xf32>
    %558 = vector.shape_cast %557 : vector<16xf32> to vector<16x1xf32>
    %cst_195 = arith.constant 6.400000e+01 : f32
    %559 = vector.broadcast %cst_195 : f32 to vector<16x1xf32>
    %560 = arith.divf %558, %559 : vector<16x1xf32>
    %561 = vector.broadcast %551 : vector<16x1xf32> to vector<16x64xf32>
    %562 = arith.subf %545, %561 : vector<16x64xf32>
    %cst_196 = arith.constant 9.99999996E-13 : f32
    %563 = vector.broadcast %cst_196 : f32 to vector<16x1xf32>
    %564 = arith.addf %560, %563 : vector<16x1xf32>
    %565 = math.rsqrt %564 : vector<16x1xf32>
    %566 = vector.broadcast %565 : vector<16x1xf32> to vector<16x64xf32>
    %567 = arith.mulf %562, %566 : vector<16x64xf32>
    %568 = vector.broadcast %546 : vector<1x64xf32> to vector<16x64xf32>
    %569 = arith.mulf %567, %568 : vector<16x64xf32>
    %570 = vector.broadcast %547 : vector<1x64xf32> to vector<16x64xf32>
    %571 = arith.addf %569, %570 : vector<16x64xf32>
    %c0_197 = arith.constant 0 : index
    %c0_198 = arith.constant 0 : index
    %572 = vector.load %arg58[%c0_197, %c0_198] : memref<64x192xbf16, #tpu.memory_space<vmem>>, vector<64x192xbf16>
    %c0_199 = arith.constant 0 : index
    %c0_200 = arith.constant 0 : index
    %573 = vector.load %arg57[%c0_199, %c0_200] : memref<1x192xf32, #tpu.memory_space<vmem>>, vector<1x192xf32>
    %574 = arith.truncf %571 : vector<16x64xf32> to vector<16x64xbf16>
    %cst_201 = arith.constant dense<0.000000e+00> : vector<16x192xf32>
    %575 = tpu.matmul %574, %572, %cst_201 {dimension_numbers = #tpu.dot_dimension_numbers<[1], [0], [0], [1], [0, 0, 1, 1], [], []>} : vector<16x64xbf16>, vector<64x192xbf16>, vector<16x192xf32> -> vector<16x192xf32>
    %576 = vector.broadcast %573 : vector<1x192xf32> to vector<16x192xf32>
    %577 = arith.addf %575, %576 : vector<16x192xf32>
    %578 = vector.extract_strided_slice %577 {offsets = [0, 0], sizes = [16, 64], strides = [1, 1]} : vector<16x192xf32> to vector<16x64xf32>
    %579 = vector.extract_strided_slice %577 {offsets = [0, 64], sizes = [16, 64], strides = [1, 1]} : vector<16x192xf32> to vector<16x64xf32>
    %580 = vector.extract_strided_slice %577 {offsets = [0, 128], sizes = [16, 64], strides = [1, 1]} : vector<16x192xf32> to vector<16x64xf32>
    %581 = vector.shape_cast %578 : vector<16x64xf32> to vector<2x8x64xf32>
    %582 = arith.truncf %581 : vector<2x8x64xf32> to vector<2x8x64xbf16>
    %583 = vector.shape_cast %579 : vector<16x64xf32> to vector<2x8x64xf32>
    %584 = arith.truncf %583 : vector<2x8x64xf32> to vector<2x8x64xbf16>
    %585 = vector.shape_cast %580 : vector<16x64xf32> to vector<2x8x64xf32>
    %586 = arith.truncf %585 : vector<2x8x64xf32> to vector<2x8x64xbf16>
    %587 = vector.shape_cast %0 : vector<2x8xf32> to vector<2x1x8xf32>
    %588 = vector.extract_strided_slice %582 {offsets = [0, 0, 0], sizes = [2, 8, 16], strides = [1, 1, 1]} : vector<2x8x64xbf16> to vector<2x8x16xbf16>
    %589 = vector.extract_strided_slice %584 {offsets = [0, 0, 0], sizes = [2, 8, 16], strides = [1, 1, 1]} : vector<2x8x64xbf16> to vector<2x8x16xbf16>
    "tpu.trace_start"() <{level = 10 : i32, message = "bqd,bkd->bqk"}> : () -> ()
    %cst_202 = arith.constant dense<0.000000e+00> : vector<2x8x8xf32>
    %590 = tpu.matmul %588, %589, %cst_202 {dimension_numbers = #tpu.dot_dimension_numbers<[2], [2], [1], [1], [0, 0, 0, 1, 1, 1], [0], [0]>} : vector<2x8x16xbf16>, vector<2x8x16xbf16>, vector<2x8x8xf32> -> vector<2x8x8xf32>
    "tpu.trace_stop"() : () -> ()
    %591 = vector.broadcast %587 : vector<2x1x8xf32> to vector<2x8x8xf32>
    %592 = arith.addf %590, %591 : vector<2x8x8xf32>
    %cst_203 = arith.constant dense<0xFF800000> : vector<2x8xf32>
    %593 = vector.multi_reduction <maximumf>, %592, %cst_203 [2] : vector<2x8x8xf32> to vector<2x8xf32>
    %594 = vector.shape_cast %593 : vector<2x8xf32> to vector<2x8x1xf32>
    %595 = vector.broadcast %594 : vector<2x8x1xf32> to vector<2x8x8xf32>
    %596 = arith.subf %592, %595 : vector<2x8x8xf32>
    %597 = math.exp %596 : vector<2x8x8xf32>
    %cst_204 = arith.constant dense<0.000000e+00> : vector<2x8xf32>
    %598 = vector.multi_reduction <add>, %597, %cst_204 [2] : vector<2x8x8xf32> to vector<2x8xf32>
    %599 = vector.shape_cast %598 : vector<2x8xf32> to vector<2x8x1xf32>
    %600 = tpu.reciprocal %599 {approx = true} : vector<2x8x1xf32> -> vector<2x8x1xf32>
    %601 = vector.broadcast %600 : vector<2x8x1xf32> to vector<2x8x8xf32>
    %602 = arith.mulf %597, %601 : vector<2x8x8xf32>
    %603 = arith.truncf %602 : vector<2x8x8xf32> to vector<2x8x8xbf16>
    %604 = vector.extract_strided_slice %586 {offsets = [0, 0, 0], sizes = [2, 8, 16], strides = [1, 1, 1]} : vector<2x8x64xbf16> to vector<2x8x16xbf16>
    "tpu.trace_start"() <{level = 10 : i32, message = "bqk,bkd->bqd"}> : () -> ()
    %cst_205 = arith.constant dense<0.000000e+00> : vector<2x8x16xf32>
    %605 = tpu.matmul %603, %604, %cst_205 {dimension_numbers = #tpu.dot_dimension_numbers<[2], [1], [1], [2], [0, 0, 0, 1, 1, 2], [0], [0]>} : vector<2x8x8xbf16>, vector<2x8x16xbf16>, vector<2x8x16xf32> -> vector<2x8x16xf32>
    "tpu.trace_stop"() : () -> ()
    %606 = vector.extract_strided_slice %582 {offsets = [0, 0, 16], sizes = [2, 8, 16], strides = [1, 1, 1]} : vector<2x8x64xbf16> to vector<2x8x16xbf16>
    %607 = vector.extract_strided_slice %584 {offsets = [0, 0, 16], sizes = [2, 8, 16], strides = [1, 1, 1]} : vector<2x8x64xbf16> to vector<2x8x16xbf16>
    "tpu.trace_start"() <{level = 10 : i32, message = "bqd,bkd->bqk"}> : () -> ()
    %cst_206 = arith.constant dense<0.000000e+00> : vector<2x8x8xf32>
    %608 = tpu.matmul %606, %607, %cst_206 {dimension_numbers = #tpu.dot_dimension_numbers<[2], [2], [1], [1], [0, 0, 0, 1, 1, 1], [0], [0]>} : vector<2x8x16xbf16>, vector<2x8x16xbf16>, vector<2x8x8xf32> -> vector<2x8x8xf32>
    "tpu.trace_stop"() : () -> ()
    %609 = vector.broadcast %587 : vector<2x1x8xf32> to vector<2x8x8xf32>
    %610 = arith.addf %608, %609 : vector<2x8x8xf32>
    %cst_207 = arith.constant dense<0xFF800000> : vector<2x8xf32>
    %611 = vector.multi_reduction <maximumf>, %610, %cst_207 [2] : vector<2x8x8xf32> to vector<2x8xf32>
    %612 = vector.shape_cast %611 : vector<2x8xf32> to vector<2x8x1xf32>
    %613 = vector.broadcast %612 : vector<2x8x1xf32> to vector<2x8x8xf32>
    %614 = arith.subf %610, %613 : vector<2x8x8xf32>
    %615 = math.exp %614 : vector<2x8x8xf32>
    %cst_208 = arith.constant dense<0.000000e+00> : vector<2x8xf32>
    %616 = vector.multi_reduction <add>, %615, %cst_208 [2] : vector<2x8x8xf32> to vector<2x8xf32>
    %617 = vector.shape_cast %616 : vector<2x8xf32> to vector<2x8x1xf32>
    %618 = tpu.reciprocal %617 {approx = true} : vector<2x8x1xf32> -> vector<2x8x1xf32>
    %619 = vector.broadcast %618 : vector<2x8x1xf32> to vector<2x8x8xf32>
    %620 = arith.mulf %615, %619 : vector<2x8x8xf32>
    %621 = arith.truncf %620 : vector<2x8x8xf32> to vector<2x8x8xbf16>
    %622 = vector.extract_strided_slice %586 {offsets = [0, 0, 16], sizes = [2, 8, 16], strides = [1, 1, 1]} : vector<2x8x64xbf16> to vector<2x8x16xbf16>
    "tpu.trace_start"() <{level = 10 : i32, message = "bqk,bkd->bqd"}> : () -> ()
    %cst_209 = arith.constant dense<0.000000e+00> : vector<2x8x16xf32>
    %623 = tpu.matmul %621, %622, %cst_209 {dimension_numbers = #tpu.dot_dimension_numbers<[2], [1], [1], [2], [0, 0, 0, 1, 1, 2], [0], [0]>} : vector<2x8x8xbf16>, vector<2x8x16xbf16>, vector<2x8x16xf32> -> vector<2x8x16xf32>
    "tpu.trace_stop"() : () -> ()
    %624 = vector.extract_strided_slice %582 {offsets = [0, 0, 32], sizes = [2, 8, 16], strides = [1, 1, 1]} : vector<2x8x64xbf16> to vector<2x8x16xbf16>
    %625 = vector.extract_strided_slice %584 {offsets = [0, 0, 32], sizes = [2, 8, 16], strides = [1, 1, 1]} : vector<2x8x64xbf16> to vector<2x8x16xbf16>
    "tpu.trace_start"() <{level = 10 : i32, message = "bqd,bkd->bqk"}> : () -> ()
    %cst_210 = arith.constant dense<0.000000e+00> : vector<2x8x8xf32>
    %626 = tpu.matmul %624, %625, %cst_210 {dimension_numbers = #tpu.dot_dimension_numbers<[2], [2], [1], [1], [0, 0, 0, 1, 1, 1], [0], [0]>} : vector<2x8x16xbf16>, vector<2x8x16xbf16>, vector<2x8x8xf32> -> vector<2x8x8xf32>
    "tpu.trace_stop"() : () -> ()
    %627 = vector.broadcast %587 : vector<2x1x8xf32> to vector<2x8x8xf32>
    %628 = arith.addf %626, %627 : vector<2x8x8xf32>
    %cst_211 = arith.constant dense<0xFF800000> : vector<2x8xf32>
    %629 = vector.multi_reduction <maximumf>, %628, %cst_211 [2] : vector<2x8x8xf32> to vector<2x8xf32>
    %630 = vector.shape_cast %629 : vector<2x8xf32> to vector<2x8x1xf32>
    %631 = vector.broadcast %630 : vector<2x8x1xf32> to vector<2x8x8xf32>
    %632 = arith.subf %628, %631 : vector<2x8x8xf32>
    %633 = math.exp %632 : vector<2x8x8xf32>
    %cst_212 = arith.constant dense<0.000000e+00> : vector<2x8xf32>
    %634 = vector.multi_reduction <add>, %633, %cst_212 [2] : vector<2x8x8xf32> to vector<2x8xf32>
    %635 = vector.shape_cast %634 : vector<2x8xf32> to vector<2x8x1xf32>
    %636 = tpu.reciprocal %635 {approx = true} : vector<2x8x1xf32> -> vector<2x8x1xf32>
    %637 = vector.broadcast %636 : vector<2x8x1xf32> to vector<2x8x8xf32>
    %638 = arith.mulf %633, %637 : vector<2x8x8xf32>
    %639 = arith.truncf %638 : vector<2x8x8xf32> to vector<2x8x8xbf16>
    %640 = vector.extract_strided_slice %586 {offsets = [0, 0, 32], sizes = [2, 8, 16], strides = [1, 1, 1]} : vector<2x8x64xbf16> to vector<2x8x16xbf16>
    "tpu.trace_start"() <{level = 10 : i32, message = "bqk,bkd->bqd"}> : () -> ()
    %cst_213 = arith.constant dense<0.000000e+00> : vector<2x8x16xf32>
    %641 = tpu.matmul %639, %640, %cst_213 {dimension_numbers = #tpu.dot_dimension_numbers<[2], [1], [1], [2], [0, 0, 0, 1, 1, 2], [0], [0]>} : vector<2x8x8xbf16>, vector<2x8x16xbf16>, vector<2x8x16xf32> -> vector<2x8x16xf32>
    "tpu.trace_stop"() : () -> ()
    %642 = vector.extract_strided_slice %582 {offsets = [0, 0, 48], sizes = [2, 8, 16], strides = [1, 1, 1]} : vector<2x8x64xbf16> to vector<2x8x16xbf16>
    %643 = vector.extract_strided_slice %584 {offsets = [0, 0, 48], sizes = [2, 8, 16], strides = [1, 1, 1]} : vector<2x8x64xbf16> to vector<2x8x16xbf16>
    "tpu.trace_start"() <{level = 10 : i32, message = "bqd,bkd->bqk"}> : () -> ()
    %cst_214 = arith.constant dense<0.000000e+00> : vector<2x8x8xf32>
    %644 = tpu.matmul %642, %643, %cst_214 {dimension_numbers = #tpu.dot_dimension_numbers<[2], [2], [1], [1], [0, 0, 0, 1, 1, 1], [0], [0]>} : vector<2x8x16xbf16>, vector<2x8x16xbf16>, vector<2x8x8xf32> -> vector<2x8x8xf32>
    "tpu.trace_stop"() : () -> ()
    %645 = vector.broadcast %587 : vector<2x1x8xf32> to vector<2x8x8xf32>
    %646 = arith.addf %644, %645 : vector<2x8x8xf32>
    %cst_215 = arith.constant dense<0xFF800000> : vector<2x8xf32>
    %647 = vector.multi_reduction <maximumf>, %646, %cst_215 [2] : vector<2x8x8xf32> to vector<2x8xf32>
    %648 = vector.shape_cast %647 : vector<2x8xf32> to vector<2x8x1xf32>
    %649 = vector.broadcast %648 : vector<2x8x1xf32> to vector<2x8x8xf32>
    %650 = arith.subf %646, %649 : vector<2x8x8xf32>
    %651 = math.exp %650 : vector<2x8x8xf32>
    %cst_216 = arith.constant dense<0.000000e+00> : vector<2x8xf32>
    %652 = vector.multi_reduction <add>, %651, %cst_216 [2] : vector<2x8x8xf32> to vector<2x8xf32>
    %653 = vector.shape_cast %652 : vector<2x8xf32> to vector<2x8x1xf32>
    %654 = tpu.reciprocal %653 {approx = true} : vector<2x8x1xf32> -> vector<2x8x1xf32>
    %655 = vector.broadcast %654 : vector<2x8x1xf32> to vector<2x8x8xf32>
    %656 = arith.mulf %651, %655 : vector<2x8x8xf32>
    %657 = arith.truncf %656 : vector<2x8x8xf32> to vector<2x8x8xbf16>
    %658 = vector.extract_strided_slice %586 {offsets = [0, 0, 48], sizes = [2, 8, 16], strides = [1, 1, 1]} : vector<2x8x64xbf16> to vector<2x8x16xbf16>
    "tpu.trace_start"() <{level = 10 : i32, message = "bqk,bkd->bqd"}> : () -> ()
    %cst_217 = arith.constant dense<0.000000e+00> : vector<2x8x16xf32>
    %659 = tpu.matmul %657, %658, %cst_217 {dimension_numbers = #tpu.dot_dimension_numbers<[2], [1], [1], [2], [0, 0, 0, 1, 1, 2], [0], [0]>} : vector<2x8x8xbf16>, vector<2x8x16xbf16>, vector<2x8x16xf32> -> vector<2x8x16xf32>
    "tpu.trace_stop"() : () -> ()
    %660 = tpu.concatenate %605, %623, %641, %659 in 2 : vector<2x8x16xf32>, vector<2x8x16xf32>, vector<2x8x16xf32>, vector<2x8x16xf32> -> vector<2x8x64xf32>
    %661 = vector.shape_cast %660 : vector<2x8x64xf32> to vector<16x64xf32>
    %c0_218 = arith.constant 0 : index
    %c0_219 = arith.constant 0 : index
    %662 = vector.load %arg56[%c0_218, %c0_219] : memref<64x64xbf16, #tpu.memory_space<vmem>>, vector<64x64xbf16>
    %c0_220 = arith.constant 0 : index
    %c0_221 = arith.constant 0 : index
    %663 = vector.load %arg55[%c0_220, %c0_221] : memref<1x64xf32, #tpu.memory_space<vmem>>, vector<1x64xf32>
    %664 = arith.truncf %661 : vector<16x64xf32> to vector<16x64xbf16>
    %cst_222 = arith.constant dense<0.000000e+00> : vector<16x64xf32>
    %665 = tpu.matmul %664, %662, %cst_222 {dimension_numbers = #tpu.dot_dimension_numbers<[1], [0], [0], [1], [0, 0, 1, 1], [], []>} : vector<16x64xbf16>, vector<64x64xbf16>, vector<16x64xf32> -> vector<16x64xf32>
    %666 = vector.broadcast %663 : vector<1x64xf32> to vector<16x64xf32>
    %667 = arith.addf %665, %666 : vector<16x64xf32>
    %668 = arith.addf %667, %571 : vector<16x64xf32>
    %c0_223 = arith.constant 0 : index
    %c0_224 = arith.constant 0 : index
    %669 = vector.load %arg54[%c0_223, %c0_224] : memref<1x64xf32, #tpu.memory_space<vmem>>, vector<1x64xf32>
    %c0_225 = arith.constant 0 : index
    %c0_226 = arith.constant 0 : index
    %670 = vector.load %arg53[%c0_225, %c0_226] : memref<1x64xf32, #tpu.memory_space<vmem>>, vector<1x64xf32>
    %cst_227 = arith.constant dense<0.000000e+00> : vector<16xf32>
    %671 = vector.multi_reduction <add>, %668, %cst_227 [1] : vector<16x64xf32> to vector<16xf32>
    %672 = vector.shape_cast %671 : vector<16xf32> to vector<16x1xf32>
    %cst_228 = arith.constant 6.400000e+01 : f32
    %673 = vector.broadcast %cst_228 : f32 to vector<16x1xf32>
    %674 = arith.divf %672, %673 : vector<16x1xf32>
    %675 = vector.broadcast %674 : vector<16x1xf32> to vector<16x64xf32>
    %676 = arith.subf %668, %675 : vector<16x64xf32>
    %677 = vector.broadcast %674 : vector<16x1xf32> to vector<16x64xf32>
    %678 = arith.subf %668, %677 : vector<16x64xf32>
    %679 = arith.mulf %676, %678 : vector<16x64xf32>
    %cst_229 = arith.constant dense<0.000000e+00> : vector<16xf32>
    %680 = vector.multi_reduction <add>, %679, %cst_229 [1] : vector<16x64xf32> to vector<16xf32>
    %681 = vector.shape_cast %680 : vector<16xf32> to vector<16x1xf32>
    %cst_230 = arith.constant 6.400000e+01 : f32
    %682 = vector.broadcast %cst_230 : f32 to vector<16x1xf32>
    %683 = arith.divf %681, %682 : vector<16x1xf32>
    %684 = vector.broadcast %674 : vector<16x1xf32> to vector<16x64xf32>
    %685 = arith.subf %668, %684 : vector<16x64xf32>
    %cst_231 = arith.constant 9.99999996E-13 : f32
    %686 = vector.broadcast %cst_231 : f32 to vector<16x1xf32>
    %687 = arith.addf %683, %686 : vector<16x1xf32>
    %688 = math.rsqrt %687 : vector<16x1xf32>
    %689 = vector.broadcast %688 : vector<16x1xf32> to vector<16x64xf32>
    %690 = arith.mulf %685, %689 : vector<16x64xf32>
    %691 = vector.broadcast %669 : vector<1x64xf32> to vector<16x64xf32>
    %692 = arith.mulf %690, %691 : vector<16x64xf32>
    %693 = vector.broadcast %670 : vector<1x64xf32> to vector<16x64xf32>
    %694 = arith.addf %692, %693 : vector<16x64xf32>
    %c0_232 = arith.constant 0 : index
    %c0_233 = arith.constant 0 : index
    %695 = vector.load %arg48[%c0_232, %c0_233] : memref<64x128xbf16, #tpu.memory_space<vmem>>, vector<64x128xbf16>
    %c0_234 = arith.constant 0 : index
    %c0_235 = arith.constant 0 : index
    %696 = vector.load %arg47[%c0_234, %c0_235] : memref<1x128xf32, #tpu.memory_space<vmem>>, vector<1x128xf32>
    %697 = arith.truncf %694 : vector<16x64xf32> to vector<16x64xbf16>
    %cst_236 = arith.constant dense<0.000000e+00> : vector<16x128xf32>
    %698 = tpu.matmul %697, %695, %cst_236 {dimension_numbers = #tpu.dot_dimension_numbers<[1], [0], [0], [1], [0, 0, 1, 1], [], []>} : vector<16x64xbf16>, vector<64x128xbf16>, vector<16x128xf32> -> vector<16x128xf32>
    %699 = vector.broadcast %696 : vector<1x128xf32> to vector<16x128xf32>
    %700 = arith.addf %698, %699 : vector<16x128xf32>
    %cst_237 = arith.constant 5.000000e-01 : f32
    %701 = vector.broadcast %cst_237 : f32 to vector<16x128xf32>
    %702 = arith.mulf %701, %700 : vector<16x128xf32>
    %cst_238 = arith.constant 4.471500e-02 : f32
    %703 = vector.broadcast %cst_238 : f32 to vector<16x128xf32>
    %704 = arith.mulf %703, %700 : vector<16x128xf32>
    %705 = arith.mulf %704, %700 : vector<16x128xf32>
    %706 = arith.mulf %705, %700 : vector<16x128xf32>
    %707 = arith.addf %700, %706 : vector<16x128xf32>
    %cst_239 = arith.constant 0.797884583 : f32
    %708 = vector.broadcast %cst_239 : f32 to vector<16x128xf32>
    %709 = arith.mulf %708, %707 : vector<16x128xf32>
    %710 = math.tanh %709 : vector<16x128xf32>
    %cst_240 = arith.constant 1.000000e+00 : f32
    %711 = vector.broadcast %cst_240 : f32 to vector<16x128xf32>
    %712 = arith.addf %711, %710 : vector<16x128xf32>
    %713 = arith.mulf %702, %712 : vector<16x128xf32>
    %c0_241 = arith.constant 0 : index
    %c0_242 = arith.constant 0 : index
    %714 = vector.load %arg52[%c0_241, %c0_242] : memref<128x64xbf16, #tpu.memory_space<vmem>>, vector<128x64xbf16>
    %c0_243 = arith.constant 0 : index
    %c0_244 = arith.constant 0 : index
    %715 = vector.load %arg51[%c0_243, %c0_244] : memref<1x64xf32, #tpu.memory_space<vmem>>, vector<1x64xf32>
    %716 = arith.truncf %713 : vector<16x128xf32> to vector<16x128xbf16>
    %cst_245 = arith.constant dense<0.000000e+00> : vector<16x64xf32>
    %717 = tpu.matmul %716, %714, %cst_245 {dimension_numbers = #tpu.dot_dimension_numbers<[1], [0], [0], [1], [0, 0, 1, 1], [], []>} : vector<16x128xbf16>, vector<128x64xbf16>, vector<16x64xf32> -> vector<16x64xf32>
    %718 = vector.broadcast %715 : vector<1x64xf32> to vector<16x64xf32>
    %719 = arith.addf %717, %718 : vector<16x64xf32>
    %720 = arith.addf %719, %694 : vector<16x64xf32>
    %c0_246 = arith.constant 0 : index
    %c0_247 = arith.constant 0 : index
    %721 = vector.load %arg50[%c0_246, %c0_247] : memref<1x64xf32, #tpu.memory_space<vmem>>, vector<1x64xf32>
    %c0_248 = arith.constant 0 : index
    %c0_249 = arith.constant 0 : index
    %722 = vector.load %arg49[%c0_248, %c0_249] : memref<1x64xf32, #tpu.memory_space<vmem>>, vector<1x64xf32>
    %cst_250 = arith.constant dense<0.000000e+00> : vector<16xf32>
    %723 = vector.multi_reduction <add>, %720, %cst_250 [1] : vector<16x64xf32> to vector<16xf32>
    %724 = vector.shape_cast %723 : vector<16xf32> to vector<16x1xf32>
    %cst_251 = arith.constant 6.400000e+01 : f32
    %725 = vector.broadcast %cst_251 : f32 to vector<16x1xf32>
    %726 = arith.divf %724, %725 : vector<16x1xf32>
    %727 = vector.broadcast %726 : vector<16x1xf32> to vector<16x64xf32>
    %728 = arith.subf %720, %727 : vector<16x64xf32>
    %729 = vector.broadcast %726 : vector<16x1xf32> to vector<16x64xf32>
    %730 = arith.subf %720, %729 : vector<16x64xf32>
    %731 = arith.mulf %728, %730 : vector<16x64xf32>
    %cst_252 = arith.constant dense<0.000000e+00> : vector<16xf32>
    %732 = vector.multi_reduction <add>, %731, %cst_252 [1] : vector<16x64xf32> to vector<16xf32>
    %733 = vector.shape_cast %732 : vector<16xf32> to vector<16x1xf32>
    %cst_253 = arith.constant 6.400000e+01 : f32
    %734 = vector.broadcast %cst_253 : f32 to vector<16x1xf32>
    %735 = arith.divf %733, %734 : vector<16x1xf32>
    %736 = vector.broadcast %726 : vector<16x1xf32> to vector<16x64xf32>
    %737 = arith.subf %720, %736 : vector<16x64xf32>
    %cst_254 = arith.constant 9.99999996E-13 : f32
    %738 = vector.broadcast %cst_254 : f32 to vector<16x1xf32>
    %739 = arith.addf %735, %738 : vector<16x1xf32>
    %740 = math.rsqrt %739 : vector<16x1xf32>
    %741 = vector.broadcast %740 : vector<16x1xf32> to vector<16x64xf32>
    %742 = arith.mulf %737, %741 : vector<16x64xf32>
    %743 = vector.broadcast %721 : vector<1x64xf32> to vector<16x64xf32>
    %744 = arith.mulf %742, %743 : vector<16x64xf32>
    %745 = vector.broadcast %722 : vector<1x64xf32> to vector<16x64xf32>
    %746 = arith.addf %744, %745 : vector<16x64xf32>
    %747 = vector.shape_cast %746 : vector<16x64xf32> to vector<2x8x64xf32>
    %748 = vector.extract_strided_slice %747 {offsets = [0, 0, 0], sizes = [2, 1, 64], strides = [1, 1, 1]} : vector<2x8x64xf32> to vector<2x1x64xf32>
    %749 = vector.shape_cast %748 : vector<2x1x64xf32> to vector<2x64xf32>
    %c0_255 = arith.constant 0 : index
    %c0_256 = arith.constant 0 : index
    %750 = vector.load %arg24[%c0_255, %c0_256] : memref<64x64xbf16, #tpu.memory_space<vmem>>, vector<64x64xbf16>
    %c0_257 = arith.constant 0 : index
    %c0_258 = arith.constant 0 : index
    %751 = vector.load %arg23[%c0_257, %c0_258] : memref<1x64xf32, #tpu.memory_space<vmem>>, vector<1x64xf32>
    %752 = arith.truncf %749 : vector<2x64xf32> to vector<2x64xbf16>
    %cst_259 = arith.constant dense<0.000000e+00> : vector<2x64xf32>
    %753 = tpu.matmul %752, %750, %cst_259 {dimension_numbers = #tpu.dot_dimension_numbers<[1], [0], [0], [1], [0, 0, 1, 1], [], []>} : vector<2x64xbf16>, vector<64x64xbf16>, vector<2x64xf32> -> vector<2x64xf32>
    %754 = vector.broadcast %751 : vector<1x64xf32> to vector<2x64xf32>
    %755 = arith.addf %753, %754 : vector<2x64xf32>
    %756 = math.tanh %755 : vector<2x64xf32>
    %c0_260 = arith.constant 0 : index
    %c0_261 = arith.constant 0 : index
    %757 = vector.load %arg71[%c0_260, %c0_261] : memref<2x64xf32, #tpu.memory_space<vmem>>, vector<2x64xf32>
    tpu.vector_store %arg71[%c0_260, %c0_261], %756 {strides = array<i32>} : memref<2x64xf32, #tpu.memory_space<vmem>>, vector<2x64xf32>,
    return
  }
}

</mosaic_0001>

<llo_original>
// kernel: lxrt_encoder_forward.1
$region0: #{lxrt_encoder_forward.1}
  #allocation0 [shape = 'u32[]', space=smem, size = 0x4, offset = 0x4, fixed_abs, tag = 'smem constant byte address 0x4 - core index']
  #allocation1 [shape = 'u32[144,128]{1,0:T(1,128)}', space=vmem, size = 0x12000, scoped, tag = 'internal scratch']
  %s0 = inlined_call_operand.smem [shape: u32[72], index: -1, kind: input, shape index: {}]
  %s1 = sld [smem:[%s0]]
  %s2 = scalar_lea.smem %s0, 1
  %s3 = sld [smem:[%s2]]
  %s4 = scalar_lea.smem %s0, 2
  %s5 = sld [smem:[%s4]]
  %s6 = scalar_lea.smem %s0, 3
  %s7 = sld [smem:[%s6]]
  %s8 = scalar_lea.smem %s0, 4
  %s9 = sld [smem:[%s8]]
  %s10 = scalar_lea.smem %s0, 5
  %s11 = sld [smem:[%s10]]
  %s12 = scalar_lea.smem %s0, 6
  %s13 = sld [smem:[%s12]]
  %s14 = scalar_lea.smem %s0, 7
  %s15 = sld [smem:[%s14]]
  %s16 = scalar_lea.smem %s0, 8
  %s17 = sld [smem:[%s16]]
  %s18 = scalar_lea.smem %s0, 9
  %s19 = sld [smem:[%s18]]
  %s20 = scalar_lea.smem %s0, 10
  %s21 = sld [smem:[%s20]]
  %s22 = scalar_lea.smem %s0, 11
  %s23 = sld [smem:[%s22]]
  %s24 = scalar_lea.smem %s0, 12
  %s25 = sld [smem:[%s24]]
  %s26 = scalar_lea.smem %s0, 13
  %s27 = sld [smem:[%s26]]
  %s28 = scalar_lea.smem %s0, 14
  %s29 = sld [smem:[%s28]]
  %s30 = scalar_lea.smem %s0, 15
  %s31 = sld [smem:[%s30]]
  %s32 = scalar_lea.smem %s0, 16
  %s33 = sld [smem:[%s32]]
  %s34 = scalar_lea.smem %s0, 17
  %s35 = sld [smem:[%s34]]
  %s36 = scalar_lea.smem %s0, 18
  %s37 = sld [smem:[%s36]]
  %s38 = scalar_lea.smem %s0, 19
  %s39 = sld [smem:[%s38]]
  %s40 = scalar_lea.smem %s0, 20
  %s41 = sld [smem:[%s40]]
  %s42 = scalar_lea.smem %s0, 21
  %s43 = sld [smem:[%s42]]
  %s44 = scalar_lea.smem %s0, 22
  %s45 = sld [smem:[%s44]]
  %s46 = scalar_lea.smem %s0, 23
  %s47 = sld [smem:[%s46]]
  %s48 = scalar_lea.smem %s0, 24
  %s49 = sld [smem:[%s48]]
  %s50 = scalar_lea.smem %s0, 25
  %s51 = sld [smem:[%s50]]
  %s52 = scalar_lea.smem %s0, 26
  %s53 = sld [smem:[%s52]]
  %s54 = scalar_lea.smem %s0, 27
  %s55 = sld [smem:[%s54]]
  %s56 = scalar_lea.smem %s0, 28
  %s57 = sld [smem:[%s56]]
  %s58 = scalar_lea.smem %s0, 29
  %s59 = sld [smem:[%s58]]
  %s60 = scalar_lea.smem %s0, 30
  %s61 = sld [smem:[%s60]]
  %s62 = scalar_lea.smem %s0, 31
  %s63 = sld [smem:[%s62]]
  %s64 = scalar_lea.smem %s0, 32
  %s65 = sld [smem:[%s64]]
  %s66 = scalar_lea.smem %s0, 33
  %s67 = sld [smem:[%s66]]
  %s68 = scalar_lea.smem %s0, 34
  %s69 = sld [smem:[%s68]]
  %s70 = scalar_lea.smem %s0, 35
  %s71 = sld [smem:[%s70]]
  %s72 = scalar_lea.smem %s0, 36
  %s73 = sld [smem:[%s72]]
  %s74 = scalar_lea.smem %s0, 37
  %s75 = sld [smem:[%s74]]
  %s76 = scalar_lea.smem %s0, 38
  %s77 = sld [smem:[%s76]]
  %s78 = scalar_lea.smem %s0, 39
  %s79 = sld [smem:[%s78]]
  %s80 = scalar_lea.smem %s0, 40
  %s81 = sld [smem:[%s80]]
  %s82 = scalar_lea.smem %s0, 41
  %s83 = sld [smem:[%s82]]
  %s84 = scalar_lea.smem %s0, 42
  %s85 = sld [smem:[%s84]]
  %s86 = scalar_lea.smem %s0, 43
  %s87 = sld [smem:[%s86]]
  %s88 = scalar_lea.smem %s0, 44
  %s89 = sld [smem:[%s88]]
  %s90 = scalar_lea.smem %s0, 45
  %s91 = sld [smem:[%s90]]
  %s92 = scalar_lea.smem %s0, 46
  %s93 = sld [smem:[%s92]]
  %s94 = scalar_lea.smem %s0, 47
  %s95 = sld [smem:[%s94]]
  %s96 = scalar_lea.smem %s0, 48
  %s97 = sld [smem:[%s96]]
  %s98 = scalar_lea.smem %s0, 49
  %s99 = sld [smem:[%s98]]
  %s100 = scalar_lea.smem %s0, 50
  %s101 = sld [smem:[%s100]]
  %s102 = scalar_lea.smem %s0, 51
  %s103 = sld [smem:[%s102]]
  %s104 = scalar_lea.smem %s0, 52
  %s105 = sld [smem:[%s104]]
  %s106 = scalar_lea.smem %s0, 53
  %s107 = sld [smem:[%s106]]
  %s108 = scalar_lea.smem %s0, 54
  %s109 = sld [smem:[%s108]]
  %s110 = scalar_lea.smem %s0, 55
  %s111 = sld [smem:[%s110]]
  %s112 = scalar_lea.smem %s0, 56
  %s113 = sld [smem:[%s112]]
  %s114 = scalar_lea.smem %s0, 57
  %s115 = sld [smem:[%s114]]
  %s116 = scalar_lea.smem %s0, 58
  %s117 = sld [smem:[%s116]]
  %s118 = scalar_lea.smem %s0, 59
  %s119 = sld [smem:[%s118]]
  %s120 = scalar_lea.smem %s0, 60
  %s121 = sld [smem:[%s120]]
  %s122 = scalar_lea.smem %s0, 61
  %s123 = sld [smem:[%s122]]
  %s124 = scalar_lea.smem %s0, 62
  %s125 = sld [smem:[%s124]]
  %s126 = scalar_lea.smem %s0, 63
  %s127 = sld [smem:[%s126]]
  %s128 = scalar_lea.smem %s0, 64
  %s129 = sld [smem:[%s128]]
  %s130 = scalar_lea.smem %s0, 65
  %s131 = sld [smem:[%s130]]
  %s132 = scalar_lea.smem %s0, 66
  %s133 = sld [smem:[%s132]]
  %s134 = scalar_lea.smem %s0, 67
  %s135 = sld [smem:[%s134]]
  %s136 = scalar_lea.smem %s0, 68
  %s137 = sld [smem:[%s136]]
  %s138 = scalar_lea.smem %s0, 69
  %s139 = sld [smem:[%s138]]
  %s140 = scalar_lea.smem %s0, 70
  %s141 = sld [smem:[%s140]]
  %s142 = scalar_lea.smem %s0, 71
  %s143 = sld [smem:[%s142]]
  %s144 = sld [smem:[#allocation0]]
  $region422: #{lxrt_encoder_forward.1} parent=0
    _
  %s146 = ssub.s32 1, %s144
  %s147 = scalar_select 0, %s146, %s144
  $region1: #{lxrt_encoder_forward.1} parent=0
    #allocation2 [shape = 'u8[512]{0}', space=vmem, size = 0x400, scoped, tag = 'input window, operand 17, single buffered']
    #allocation3 [shape = 's32[1]{0}', space=sflag, size = 0x4, scoped, tag = 'scoped memory for lxrt_encoder_forward.1']
    #allocation4 [shape = 's32[1]{0}', space=sflag, size = 0x4, scoped, tag = 'scoped memory for lxrt_encoder_forward.1']
    #allocation5 [shape = 'u8[512]{0}', space=vmem, size = 0x400, scoped, tag = 'input window, operand 19, single buffered']
    #allocation6 [shape = 's32[1]{0}', space=sflag, size = 0x4, scoped, tag = 'scoped memory for lxrt_encoder_forward.1']
    #allocation7 [shape = 'u8[512]{0}', space=vmem, size = 0x400, scoped, tag = 'input window, operand 20, single buffered']
    #allocation8 [shape = 'u8[512]{0}', space=vmem, size = 0x400, scoped, tag = 'input window, operand 21, single buffered']
    #allocation9 [shape = 's32[1]{0}', space=sflag, size = 0x4, scoped, tag = 'scoped memory for lxrt_encoder_forward.1']
    #allocation10 [shape = 'u8[512]{0}', space=vmem, size = 0x400, scoped, tag = 'input window, operand 23, single buffered']
    #allocation11 [shape = 'u8[512]{0}', space=vmem, size = 0x400, scoped, tag = 'input window, operand 25, single buffered']
    #allocation12 [shape = 's32[1]{0}', space=sflag, size = 0x4, scoped, tag = 'scoped memory for lxrt_encoder_forward.1']
    #allocation13 [shape = 'u8[512]{0}', space=vmem, size = 0x400, scoped, tag = 'input window, operand 26, single buffered']
    #allocation14 [shape = 'u8[512]{0}', space=vmem, size = 0x400, scoped, tag = 'input window, operand 27, single buffered']
    #allocation15 [shape = 's32[1]{0}', space=sflag, size = 0x4, scoped, tag = 'scoped memory for lxrt_encoder_forward.1']
    #allocation16 [shape = 'u8[512]{0}', space=vmem, size = 0x400, scoped, tag = 'input window, operand 31, single buffered']
    #allocation17 [shape = 'u8[512]{0}', space=vmem, size = 0x400, scoped, tag = 'input window, operand 33, single buffered']
    #allocation18 [shape = 's32[1]{0}', space=sflag, size = 0x4, scoped, tag = 'scoped memory for lxrt_encoder_forward.1']
    #allocation19 [shape = 'u8[512]{0}', space=vmem, size = 0x400, scoped, tag = 'input window, operand 34, single buffered']
    #allocation20 [shape = 'u8[512]{0}', space=vmem, size = 0x400, scoped, tag = 'input window, operand 35, single buffered']
    #allocation21 [shape = 's32[1]{0}', space=sflag, size = 0x4, scoped, tag = 'scoped memory for lxrt_encoder_forward.1']
    #allocation22 [shape = 'u8[512]{0}', space=vmem, size = 0x400, scoped, tag = 'input window, operand 37, single buffered']
    #allocation23 [shape = 'u8[512]{0}', space=vmem, size = 0x400, scoped, tag = 'input window, operand 39, single buffered']
    #allocation24 [shape = 's32[1]{0}', space=sflag, size = 0x4, scoped, tag = 'scoped memory for lxrt_encoder_forward.1']
    #allocation25 [shape = 'u8[512]{0}', space=vmem, size = 0x400, scoped, tag = 'input window, operand 40, single buffered']
    #allocation26 [shape = 'u8[512]{0}', space=vmem, size = 0x400, scoped, tag = 'input window, operand 41, single buffered']
    #allocation27 [shape = 's32[1]{0}', space=sflag, size = 0x4, scoped, tag = 'scoped memory for lxrt_encoder_forward.1']
    #allocation28 [shape = 'u8[512]{0}', space=vmem, size = 0x400, scoped, tag = 'input window, operand 42, single buffered']
    #allocation29 [shape = 'u8[512]{0}', space=vmem, size = 0x400, scoped, tag = 'input window, operand 43, single buffered']
    #allocation30 [shape = 's32[1]{0}', space=sflag, size = 0x4, scoped, tag = 'scoped memory for lxrt_encoder_forward.1']
    #allocation31 [shape = 'u8[512]{0}', space=vmem, size = 0x400, scoped, tag = 'input window, operand 47, single buffered']
    #allocation32 [shape = 'u8[512]{0}', space=vmem, size = 0x400, scoped, tag = 'input window, operand 49, single buffered']
    #allocation33 [shape = 's32[1]{0}', space=sflag, size = 0x4, scoped, tag = 'scoped memory for lxrt_encoder_forward.1']
    #allocation34 [shape = 'u8[512]{0}', space=vmem, size = 0x400, scoped, tag = 'input window, operand 50, single buffered']
    #allocation35 [shape = 'u8[512]{0}', space=vmem, size = 0x400, scoped, tag = 'input window, operand 51, single buffered']
    #allocation36 [shape = 's32[1]{0}', space=sflag, size = 0x4, scoped, tag = 'scoped memory for lxrt_encoder_forward.1']
    #allocation37 [shape = 'u8[512]{0}', space=vmem, size = 0x400, scoped, tag = 'input window, operand 53, single buffered']
    #allocation38 [shape = 'u8[512]{0}', space=vmem, size = 0x400, scoped, tag = 'input window, operand 54, single buffered']
    #allocation39 [shape = 's32[1]{0}', space=sflag, size = 0x4, scoped, tag = 'scoped memory for lxrt_encoder_forward.1']
    #allocation40 [shape = 'u8[512]{0}', space=vmem, size = 0x400, scoped, tag = 'input window, operand 55, single buffered']
    #allocation41 [shape = 'u8[512]{0}', space=vmem, size = 0x400, scoped, tag = 'input window, operand 59, single buffered']
    #allocation42 [shape = 's32[1]{0}', space=sflag, size = 0x4, scoped, tag = 'scoped memory for lxrt_encoder_forward.1']
    #allocation43 [shape = 'u8[512]{0}', space=vmem, size = 0x400, scoped, tag = 'input window, operand 61, single buffered']
    #allocation44 [shape = 'u8[512]{0}', space=vmem, size = 0x400, scoped, tag = 'input window, operand 62, single buffered']
    #allocation45 [shape = 's32[1]{0}', space=sflag, size = 0x4, scoped, tag = 'scoped memory for lxrt_encoder_forward.1']
    #allocation46 [shape = 'u8[512]{0}', space=vmem, size = 0x400, scoped, tag = 'input window, operand 63, single buffered']
    #allocation47 [shape = 'u8[512]{0}', space=vmem, size = 0x400, scoped, tag = 'input window, operand 65, single buffered']
    #allocation48 [shape = 's32[1]{0}', space=sflag, size = 0x4, scoped, tag = 'scoped memory for lxrt_encoder_forward.1']
    #allocation49 [shape = 'u8[512]{0}', space=vmem, size = 0x400, scoped, tag = 'input window, operand 66, single buffered']
    #allocation50 [shape = 'u8[512]{0}', space=vmem, size = 0x400, scoped, tag = 'input window, operand 67, single buffered']
    #allocation51 [shape = 's32[1]{0}', space=sflag, size = 0x4, scoped, tag = 'scoped memory for lxrt_encoder_forward.1']
    #allocation52 [shape = 'u8[1024]{0}', space=vmem, size = 0x400, scoped, tag = 'output window, operand 0, single buffered']
    %148 = vsyncpa [#allocation3], 0
    %149 = vsyncpa [#allocation6], 0
    %150 = vsyncpa [#allocation9], 0
    %151 = vsyncpa [#allocation12], 0
    %152 = vsyncpa [#allocation15], 0
    %153 = vsyncpa [#allocation18], 0
    %154 = vsyncpa [#allocation21], 0
    %155 = vsyncpa [#allocation24], 0
    %156 = vsyncpa [#allocation27], 0
    %157 = vsyncpa [#allocation30], 0
    %158 = vsyncpa [#allocation33], 0
    %159 = vsyncpa [#allocation36], 0
    %160 = vsyncpa [#allocation39], 0
    %161 = vsyncpa [#allocation42], 0
    %162 = vsyncpa [#allocation45], 0
    %163 = vsyncpa [#allocation48], 0
    %164 = vsyncpa [#allocation51], 0
    %165 = vsyncpa [#allocation4], 0
    // Predicated region
    $region2: #{lxrt_encoder_forward.1} parent=1 // pred_check
      _
    $region3: #{lxrt_encoder_forward.1} parent=1 // pred_check_branch
      %167 = sbr.rel (0) target = $region5
    $region4: #{lxrt_encoder_forward.1} parent=1 // pred_region
      _
    $region5: #{lxrt_encoder_forward.1} parent=1 // pred_fallthru
      _
    // Predicated region
    $region6: #{lxrt_encoder_forward.1} parent=1 // pred_check
      _
    $region7: #{lxrt_encoder_forward.1} parent=1 // pred_check_branch
      %169 = sbr.rel (0) target = $region9
    $region8: #{lxrt_encoder_forward.1} parent=1 // pred_region
      _
    $region9: #{lxrt_encoder_forward.1} parent=1 // pred_fallthru
      _
    // Predicated region
    $region10: #{lxrt_encoder_forward.1} parent=1 // pred_check
      _
    $region11: #{lxrt_encoder_forward.1} parent=1 // pred_check_branch
      %171 = sbr.rel (0) target = $region13
    $region12: #{lxrt_encoder_forward.1} parent=1 // pred_region
      _
    $region13: #{lxrt_encoder_forward.1} parent=1 // pred_fallthru
      _
    // Predicated region
    $region14: #{lxrt_encoder_forward.1} parent=1 // pred_check
      _
    $region15: #{lxrt_encoder_forward.1} parent=1 // pred_check_branch
      %173 = sbr.rel (0) target = $region17
    $region16: #{lxrt_encoder_forward.1} parent=1 // pred_region
      _
    $region17: #{lxrt_encoder_forward.1} parent=1 // pred_fallthru
      _
    // Predicated region
    $region18: #{lxrt_encoder_forward.1} parent=1 // pred_check
      _
    $region19: #{lxrt_encoder_forward.1} parent=1 // pred_check_branch
      %175 = sbr.rel (0) target = $region21
    $region20: #{lxrt_encoder_forward.1} parent=1 // pred_region
      _
    $region21: #{lxrt_encoder_forward.1} parent=1 // pred_fallthru
      _
    // Predicated region
    $region22: #{lxrt_encoder_forward.1} parent=1 // pred_check
      _
    $region23: #{lxrt_encoder_forward.1} parent=1 // pred_check_branch
      %177 = sbr.rel (0) target = $region25
    $region24: #{lxrt_encoder_forward.1} parent=1 // pred_region
      _
    $region25: #{lxrt_encoder_forward.1} parent=1 // pred_fallthru
      _
    // Predicated region
    $region26: #{lxrt_encoder_forward.1} parent=1 // pred_check
      _
    $region27: #{lxrt_encoder_forward.1} parent=1 // pred_check_branch
      %179 = sbr.rel (0) target = $region29
    $region28: #{lxrt_encoder_forward.1} parent=1 // pred_region
      _
    $region29: #{lxrt_encoder_forward.1} parent=1 // pred_fallthru
      _
    // Predicated region
    $region30: #{lxrt_encoder_forward.1} parent=1 // pred_check
      _
    $region31: #{lxrt_encoder_forward.1} parent=1 // pred_check_branch
      %181 = sbr.rel (0) target = $region33
    $region32: #{lxrt_encoder_forward.1} parent=1 // pred_region
      _
    $region33: #{lxrt_encoder_forward.1} parent=1 // pred_fallthru
      _
    // Predicated region
    $region34: #{lxrt_encoder_forward.1} parent=1 // pred_check
      _
    $region35: #{lxrt_encoder_forward.1} parent=1 // pred_check_branch
      %183 = sbr.rel (0) target = $region37
    $region36: #{lxrt_encoder_forward.1} parent=1 // pred_region
      _
    $region37: #{lxrt_encoder_forward.1} parent=1 // pred_fallthru
      _
    // Predicated region
    $region38: #{lxrt_encoder_forward.1} parent=1 // pred_check
      _
    $region39: #{lxrt_encoder_forward.1} parent=1 // pred_check_branch
      %185 = sbr.rel (0) target = $region41
    $region40: #{lxrt_encoder_forward.1} parent=1 // pred_region
      _
    $region41: #{lxrt_encoder_forward.1} parent=1 // pred_fallthru
      _
    // Predicated region
    $region42: #{lxrt_encoder_forward.1} parent=1 // pred_check
      _
    $region43: #{lxrt_encoder_forward.1} parent=1 // pred_check_branch
      %187 = sbr.rel (0) target = $region45
    $region44: #{lxrt_encoder_forward.1} parent=1 // pred_region
      _
    $region45: #{lxrt_encoder_forward.1} parent=1 // pred_fallthru
      _
    // Predicated region
    $region46: #{lxrt_encoder_forward.1} parent=1 // pred_check
      _
    $region47: #{lxrt_encoder_forward.1} parent=1 // pred_check_branch
      %189 = sbr.rel (0) target = $region49
    $region48: #{lxrt_encoder_forward.1} parent=1 // pred_region
      _
    $region49: #{lxrt_encoder_forward.1} parent=1 // pred_fallthru
      _
    // Predicated region
    $region50: #{lxrt_encoder_forward.1} parent=1 // pred_check
      _
    $region51: #{lxrt_encoder_forward.1} parent=1 // pred_check_branch
      %191 = sbr.rel (0) target = $region53
    $region52: #{lxrt_encoder_forward.1} parent=1 // pred_region
      _
    $region53: #{lxrt_encoder_forward.1} parent=1 // pred_fallthru
      _
    // Predicated region
    $region54: #{lxrt_encoder_forward.1} parent=1 // pred_check
      _
    $region55: #{lxrt_encoder_forward.1} parent=1 // pred_check_branch
      %193 = sbr.rel (0) target = $region57
    $region56: #{lxrt_encoder_forward.1} parent=1 // pred_region
      _
    $region57: #{lxrt_encoder_forward.1} parent=1 // pred_fallthru
      _
    // Predicated region
    $region58: #{lxrt_encoder_forward.1} parent=1 // pred_check
      _
    $region59: #{lxrt_encoder_forward.1} parent=1 // pred_check_branch
      %195 = sbr.rel (0) target = $region61
    $region60: #{lxrt_encoder_forward.1} parent=1 // pred_region
      _
    $region61: #{lxrt_encoder_forward.1} parent=1 // pred_fallthru
      _
    // Predicated region
    $region62: #{lxrt_encoder_forward.1} parent=1 // pred_check
      _
    $region63: #{lxrt_encoder_forward.1} parent=1 // pred_check_branch
      %197 = sbr.rel (0) target = $region65
    $region64: #{lxrt_encoder_forward.1} parent=1 // pred_region
      _
    $region65: #{lxrt_encoder_forward.1} parent=1 // pred_fallthru
      _
    // Predicated region
    $region66: #{lxrt_encoder_forward.1} parent=1 // pred_check
      _
    $region67: #{lxrt_encoder_forward.1} parent=1 // pred_check_branch
      %199 = sbr.rel (0) target = $region69
    $region68: #{lxrt_encoder_forward.1} parent=1 // pred_region
      _
    $region69: #{lxrt_encoder_forward.1} parent=1 // pred_fallthru
      _
    // Predicated region
    $region70: #{lxrt_encoder_forward.1} parent=1 // pred_check
      _
    $region71: #{lxrt_encoder_forward.1} parent=1 // pred_check_branch
      %201 = sbr.rel (0) target = $region73
    $region72: #{lxrt_encoder_forward.1} parent=1 // pred_region
      %s203 = ssub.s32 16, 16
      %204 = vsyncadd [#allocation3], %s203
      %s206 = sshll.u32 [#allocation2], 4
      %s207 = int_to_ptr.vmem [resolvable:$true] %s206
      %209 = dma.hbm_to_vmem [thread:$0]  %s35, 16, %s207, [#allocation3]
    $region73: #{lxrt_encoder_forward.1} parent=1 // pred_fallthru
      _
    // Predicated region
    $region74: #{lxrt_encoder_forward.1} parent=1 // pred_check
      _
    $region75: #{lxrt_encoder_forward.1} parent=1 // pred_check_branch
      %211 = sbr.rel (0) target = $region77
    $region76: #{lxrt_encoder_forward.1} parent=1 // pred_region
      _
    $region77: #{lxrt_encoder_forward.1} parent=1 // pred_fallthru
      _
    // Predicated region
    $region78: #{lxrt_encoder_forward.1} parent=1 // pred_check
      _
    $region79: #{lxrt_encoder_forward.1} parent=1 // pred_check_branch
      %213 = sbr.rel (0) target = $region81
    $region80: #{lxrt_encoder_forward.1} parent=1 // pred_region
      %s215 = ssub.s32 16, 16
      %216 = vsyncadd [#allocation6], %s215
      %s218 = sshll.u32 [#allocation5], 4
      %s219 = int_to_ptr.vmem [resolvable:$true] %s218
      %221 = dma.hbm_to_vmem [thread:$0]  %s39, 16, %s219, [#allocation6]
    $region81: #{lxrt_encoder_forward.1} parent=1 // pred_fallthru
      _
    // Predicated region
    $region82: #{lxrt_encoder_forward.1} parent=1 // pred_check
      _
    $region83: #{lxrt_encoder_forward.1} parent=1 // pred_check_branch
      %223 = sbr.rel (0) target = $region85
    $region84: #{lxrt_encoder_forward.1} parent=1 // pred_region
      %s225 = ssub.s32 16, 16
      %226 = vsyncadd [#allocation6], %s225
      %s228 = sshll.u32 [#allocation7], 4
      %s229 = int_to_ptr.vmem [resolvable:$true] %s228
      %231 = dma.hbm_to_vmem [thread:$0]  %s41, 16, %s229, [#allocation6]
    $region85: #{lxrt_encoder_forward.1} parent=1 // pred_fallthru
      _
    // Predicated region
    $region86: #{lxrt_encoder_forward.1} parent=1 // pred_check
      _
    $region87: #{lxrt_encoder_forward.1} parent=1 // pred_check_branch
      %233 = sbr.rel (0) target = $region89
    $region88: #{lxrt_encoder_forward.1} parent=1 // pred_region
      %s235 = ssub.s32 16, 16
      %236 = vsyncadd [#allocation9], %s235
      %s238 = sshll.u32 [#allocation8], 4
      %s239 = int_to_ptr.vmem [resolvable:$true] %s238
      %241 = dma.hbm_to_vmem [thread:$0]  %s43, 16, %s239, [#allocation9]
    $region89: #{lxrt_encoder_forward.1} parent=1 // pred_fallthru
      _
    // Predicated region
    $region90: #{lxrt_encoder_forward.1} parent=1 // pred_check
      _
    $region91: #{lxrt_encoder_forward.1} parent=1 // pred_check_branch
      %243 = sbr.rel (0) target = $region93
    $region92: #{lxrt_encoder_forward.1} parent=1 // pred_region
      _
    $region93: #{lxrt_encoder_forward.1} parent=1 // pred_fallthru
      _
    // Predicated region
    $region94: #{lxrt_encoder_forward.1} parent=1 // pred_check
      _
    $region95: #{lxrt_encoder_forward.1} parent=1 // pred_check_branch
      %245 = sbr.rel (0) target = $region97
    $region96: #{lxrt_encoder_forward.1} parent=1 // pred_region
      %s247 = ssub.s32 16, 16
      %248 = vsyncadd [#allocation9], %s247
      %s250 = sshll.u32 [#allocation10], 4
      %s251 = int_to_ptr.vmem [resolvable:$true] %s250
      %253 = dma.hbm_to_vmem [thread:$0]  %s47, 16, %s251, [#allocation9]
    $region97: #{lxrt_encoder_forward.1} parent=1 // pred_fallthru
      _
    // Predicated region
    $region98: #{lxrt_encoder_forward.1} parent=1 // pred_check
      _
    $region99: #{lxrt_encoder_forward.1} parent=1 // pred_check_branch
      %255 = sbr.rel (0) target = $region101
    $region100: #{lxrt_encoder_forward.1} parent=1 // pred_region
      _
    $region101: #{lxrt_encoder_forward.1} parent=1 // pred_fallthru
      _
    // Predicated region
    $region102: #{lxrt_encoder_forward.1} parent=1 // pred_check
      _
    $region103: #{lxrt_encoder_forward.1} parent=1 // pred_check_branch
      %257 = sbr.rel (0) target = $region105
    $region104: #{lxrt_encoder_forward.1} parent=1 // pred_region
      %s259 = ssub.s32 16, 16
      %260 = vsyncadd [#allocation12], %s259
      %s262 = sshll.u32 [#allocation11], 4
      %s263 = int_to_ptr.vmem [resolvable:$true] %s262
      %265 = dma.hbm_to_vmem [thread:$0]  %s51, 16, %s263, [#allocation12]
    $region105: #{lxrt_encoder_forward.1} parent=1 // pred_fallthru
      _
    // Predicated region
    $region106: #{lxrt_encoder_forward.1} parent=1 // pred_check
      _
    $region107: #{lxrt_encoder_forward.1} parent=1 // pred_check_branch
      %267 = sbr.rel (0) target = $region109
    $region108: #{lxrt_encoder_forward.1} parent=1 // pred_region
      %s269 = ssub.s32 16, 16
      %270 = vsyncadd [#allocation12], %s269
      %s272 = sshll.u32 [#allocation13], 4
      %s273 = int_to_ptr.vmem [resolvable:$true] %s272
      %275 = dma.hbm_to_vmem [thread:$0]  %s53, 16, %s273, [#allocation12]
    $region109: #{lxrt_encoder_forward.1} parent=1 // pred_fallthru
      _
    // Predicated region
    $region110: #{lxrt_encoder_forward.1} parent=1 // pred_check
      _
    $region111: #{lxrt_encoder_forward.1} parent=1 // pred_check_branch
      %277 = sbr.rel (0) target = $region113
    $region112: #{lxrt_encoder_forward.1} parent=1 // pred_region
      %s279 = ssub.s32 16, 16
      %280 = vsyncadd [#allocation15], %s279
      %s282 = sshll.u32 [#allocation14], 4
      %s283 = int_to_ptr.vmem [resolvable:$true] %s282
      %285 = dma.hbm_to_vmem [thread:$0]  %s55, 16, %s283, [#allocation15]
    $region113: #{lxrt_encoder_forward.1} parent=1 // pred_fallthru
      _
    // Predicated region
    $region114: #{lxrt_encoder_forward.1} parent=1 // pred_check
      _
    $region115: #{lxrt_encoder_forward.1} parent=1 // pred_check_branch
      %287 = sbr.rel (0) target = $region117
    $region116: #{lxrt_encoder_forward.1} parent=1 // pred_region
      _
    $region117: #{lxrt_encoder_forward.1} parent=1 // pred_fallthru
      _
    // Predicated region
    $region118: #{lxrt_encoder_forward.1} parent=1 // pred_check
      _
    $region119: #{lxrt_encoder_forward.1} parent=1 // pred_check_branch
      %289 = sbr.rel (0) target = $region121
    $region120: #{lxrt_encoder_forward.1} parent=1 // pred_region
      _
    $region121: #{lxrt_encoder_forward.1} parent=1 // pred_fallthru
      _
    // Predicated region
    $region122: #{lxrt_encoder_forward.1} parent=1 // pred_check
      _
    $region123: #{lxrt_encoder_forward.1} parent=1 // pred_check_branch
      %291 = sbr.rel (0) target = $region125
    $region124: #{lxrt_encoder_forward.1} parent=1 // pred_region
      _
    $region125: #{lxrt_encoder_forward.1} parent=1 // pred_fallthru
      _
    // Predicated region
    $region126: #{lxrt_encoder_forward.1} parent=1 // pred_check
      _
    $region127: #{lxrt_encoder_forward.1} parent=1 // pred_check_branch
      %293 = sbr.rel (0) target = $region129
    $region128: #{lxrt_encoder_forward.1} parent=1 // pred_region
      %s295 = ssub.s32 16, 16
      %296 = vsyncadd [#allocation15], %s295
      %s298 = sshll.u32 [#allocation16], 4
      %s299 = int_to_ptr.vmem [resolvable:$true] %s298
      %301 = dma.hbm_to_vmem [thread:$0]  %s63, 16, %s299, [#allocation15]
    $region129: #{lxrt_encoder_forward.1} parent=1 // pred_fallthru
      _
    // Predicated region
    $region130: #{lxrt_encoder_forward.1} parent=1 // pred_check
      _
    $region131: #{lxrt_encoder_forward.1} parent=1 // pred_check_branch
      %303 = sbr.rel (0) target = $region133
    $region132: #{lxrt_encoder_forward.1} parent=1 // pred_region
      _
    $region133: #{lxrt_encoder_forward.1} parent=1 // pred_fallthru
      _
    // Predicated region
    $region134: #{lxrt_encoder_forward.1} parent=1 // pred_check
      _
    $region135: #{lxrt_encoder_forward.1} parent=1 // pred_check_branch
      %305 = sbr.rel (0) target = $region137
    $region136: #{lxrt_encoder_forward.1} parent=1 // pred_region
      %s307 = ssub.s32 16, 16
      %308 = vsyncadd [#allocation18], %s307
      %s310 = sshll.u32 [#allocation17], 4
      %s311 = int_to_ptr.vmem [resolvable:$true] %s310
      %313 = dma.hbm_to_vmem [thread:$0]  %s67, 16, %s311, [#allocation18]
    $region137: #{lxrt_encoder_forward.1} parent=1 // pred_fallthru
      _
    // Predicated region
    $region138: #{lxrt_encoder_forward.1} parent=1 // pred_check
      _
    $region139: #{lxrt_encoder_forward.1} parent=1 // pred_check_branch
      %315 = sbr.rel (0) target = $region141
    $region140: #{lxrt_encoder_forward.1} parent=1 // pred_region
      %s317 = ssub.s32 16, 16
      %318 = vsyncadd [#allocation18], %s317
      %s320 = sshll.u32 [#allocation19], 4
      %s321 = int_to_ptr.vmem [resolvable:$true] %s320
      %323 = dma.hbm_to_vmem [thread:$0]  %s69, 16, %s321, [#allocation18]
    $region141: #{lxrt_encoder_forward.1} parent=1 // pred_fallthru
      _
    // Predicated region
    $region142: #{lxrt_encoder_forward.1} parent=1 // pred_check
      _
    $region143: #{lxrt_encoder_forward.1} parent=1 // pred_check_branch
      %325 = sbr.rel (0) target = $region145
    $region144: #{lxrt_encoder_forward.1} parent=1 // pred_region
      %s327 = ssub.s32 16, 16
      %328 = vsyncadd [#allocation21], %s327
      %s330 = sshll.u32 [#allocation20], 4
      %s331 = int_to_ptr.vmem [resolvable:$true] %s330
      %333 = dma.hbm_to_vmem [thread:$0]  %s71, 16, %s331, [#allocation21]
    $region145: #{lxrt_encoder_forward.1} parent=1 // pred_fallthru
      _
    // Predicated region
    $region146: #{lxrt_encoder_forward.1} parent=1 // pred_check
      _
    $region147: #{lxrt_encoder_forward.1} parent=1 // pred_check_branch
      %335 = sbr.rel (0) target = $region149
    $region148: #{lxrt_encoder_forward.1} parent=1 // pred_region
      _
    $region149: #{lxrt_encoder_forward.1} parent=1 // pred_fallthru
      _
    // Predicated region
    $region150: #{lxrt_encoder_forward.1} parent=1 // pred_check
      _
    $region151: #{lxrt_encoder_forward.1} parent=1 // pred_check_branch
      %337 = sbr.rel (0) target = $region153
    $region152: #{lxrt_encoder_forward.1} parent=1 // pred_region
      %s339 = ssub.s32 16, 16
      %340 = vsyncadd [#allocation21], %s339
      %s342 = sshll.u32 [#allocation22], 4
      %s343 = int_to_ptr.vmem [resolvable:$true] %s342
      %345 = dma.hbm_to_vmem [thread:$0]  %s75, 16, %s343, [#allocation21]
    $region153: #{lxrt_encoder_forward.1} parent=1 // pred_fallthru
      _
    // Predicated region
    $region154: #{lxrt_encoder_forward.1} parent=1 // pred_check
      _
    $region155: #{lxrt_encoder_forward.1} parent=1 // pred_check_branch
      %347 = sbr.rel (0) target = $region157
    $region156: #{lxrt_encoder_forward.1} parent=1 // pred_region
      _
    $region157: #{lxrt_encoder_forward.1} parent=1 // pred_fallthru
      _
    // Predicated region
    $region158: #{lxrt_encoder_forward.1} parent=1 // pred_check
      _
    $region159: #{lxrt_encoder_forward.1} parent=1 // pred_check_branch
      %349 = sbr.rel (0) target = $region161
    $region160: #{lxrt_encoder_forward.1} parent=1 // pred_region
      %s351 = ssub.s32 16, 16
      %352 = vsyncadd [#allocation24], %s351
      %s354 = sshll.u32 [#allocation23], 4
      %s355 = int_to_ptr.vmem [resolvable:$true] %s354
      %357 = dma.hbm_to_vmem [thread:$0]  %s79, 16, %s355, [#allocation24]
    $region161: #{lxrt_encoder_forward.1} parent=1 // pred_fallthru
      _
    // Predicated region
    $region162: #{lxrt_encoder_forward.1} parent=1 // pred_check
      _
    $region163: #{lxrt_encoder_forward.1} parent=1 // pred_check_branch
      %359 = sbr.rel (0) target = $region165
    $region164: #{lxrt_encoder_forward.1} parent=1 // pred_region
      %s361 = ssub.s32 16, 16
      %362 = vsyncadd [#allocation24], %s361
      %s364 = sshll.u32 [#allocation25], 4
      %s365 = int_to_ptr.vmem [resolvable:$true] %s364
      %367 = dma.hbm_to_vmem [thread:$0]  %s81, 16, %s365, [#allocation24]
    $region165: #{lxrt_encoder_forward.1} parent=1 // pred_fallthru
      _
    // Predicated region
    $region166: #{lxrt_encoder_forward.1} parent=1 // pred_check
      _
    $region167: #{lxrt_encoder_forward.1} parent=1 // pred_check_branch
      %369 = sbr.rel (0) target = $region169
    $region168: #{lxrt_encoder_forward.1} parent=1 // pred_region
      %s371 = ssub.s32 16, 16
      %372 = vsyncadd [#allocation27], %s371
      %s374 = sshll.u32 [#allocation26], 4
      %s375 = int_to_ptr.vmem [resolvable:$true] %s374
      %377 = dma.hbm_to_vmem [thread:$0]  %s83, 16, %s375, [#allocation27]
    $region169: #{lxrt_encoder_forward.1} parent=1 // pred_fallthru
      _
    // Predicated region
    $region170: #{lxrt_encoder_forward.1} parent=1 // pred_check
      _
    $region171: #{lxrt_encoder_forward.1} parent=1 // pred_check_branch
      %379 = sbr.rel (0) target = $region173
    $region172: #{lxrt_encoder_forward.1} parent=1 // pred_region
      %s381 = ssub.s32 16, 16
      %382 = vsyncadd [#allocation27], %s381
      %s384 = sshll.u32 [#allocation28], 4
      %s385 = int_to_ptr.vmem [resolvable:$true] %s384
      %387 = dma.hbm_to_vmem [thread:$0]  %s85, 16, %s385, [#allocation27]
    $region173: #{lxrt_encoder_forward.1} parent=1 // pred_fallthru
      _
    // Predicated region
    $region174: #{lxrt_encoder_forward.1} parent=1 // pred_check
      _
    $region175: #{lxrt_encoder_forward.1} parent=1 // pred_check_branch
      %389 = sbr.rel (0) target = $region177
    $region176: #{lxrt_encoder_forward.1} parent=1 // pred_region
      %s391 = ssub.s32 16, 16
      %392 = vsyncadd [#allocation30], %s391
      %s394 = sshll.u32 [#allocation29], 4
      %s395 = int_to_ptr.vmem [resolvable:$true] %s394
      %397 = dma.hbm_to_vmem [thread:$0]  %s87, 16, %s395, [#allocation30]
    $region177: #{lxrt_encoder_forward.1} parent=1 // pred_fallthru
      _
    // Predicated region
    $region178: #{lxrt_encoder_forward.1} parent=1 // pred_check
      _
    $region179: #{lxrt_encoder_forward.1} parent=1 // pred_check_branch
      %399 = sbr.rel (0) target = $region181
    $region180: #{lxrt_encoder_forward.1} parent=1 // pred_region
      _
    $region181: #{lxrt_encoder_forward.1} parent=1 // pred_fallthru
      _
    // Predicated region
    $region182: #{lxrt_encoder_forward.1} parent=1 // pred_check
      _
    $region183: #{lxrt_encoder_forward.1} parent=1 // pred_check_branch
      %401 = sbr.rel (0) target = $region185
    $region184: #{lxrt_encoder_forward.1} parent=1 // pred_region
      _
    $region185: #{lxrt_encoder_forward.1} parent=1 // pred_fallthru
      _
    // Predicated region
    $region186: #{lxrt_encoder_forward.1} parent=1 // pred_check
      _
    $region187: #{lxrt_encoder_forward.1} parent=1 // pred_check_branch
      %403 = sbr.rel (0) target = $region189
    $region188: #{lxrt_encoder_forward.1} parent=1 // pred_region
      _
    $region189: #{lxrt_encoder_forward.1} parent=1 // pred_fallthru
      _
    // Predicated region
    $region190: #{lxrt_encoder_forward.1} parent=1 // pred_check
      _
    $region191: #{lxrt_encoder_forward.1} parent=1 // pred_check_branch
      %405 = sbr.rel (0) target = $region193
    $region192: #{lxrt_encoder_forward.1} parent=1 // pred_region
      %s407 = ssub.s32 16, 16
      %408 = vsyncadd [#allocation30], %s407
      %s410 = sshll.u32 [#allocation31], 4
      %s411 = int_to_ptr.vmem [resolvable:$true] %s410
      %413 = dma.hbm_to_vmem [thread:$0]  %s95, 16, %s411, [#allocation30]
    $region193: #{lxrt_encoder_forward.1} parent=1 // pred_fallthru
      _
    // Predicated region
    $region194: #{lxrt_encoder_forward.1} parent=1 // pred_check
      _
    $region195: #{lxrt_encoder_forward.1} parent=1 // pred_check_branch
      %415 = sbr.rel (0) target = $region197
    $region196: #{lxrt_encoder_forward.1} parent=1 // pred_region
      _
    $region197: #{lxrt_encoder_forward.1} parent=1 // pred_fallthru
      _
    // Predicated region
    $region198: #{lxrt_encoder_forward.1} parent=1 // pred_check
      _
    $region199: #{lxrt_encoder_forward.1} parent=1 // pred_check_branch
      %417 = sbr.rel (0) target = $region201
    $region200: #{lxrt_encoder_forward.1} parent=1 // pred_region
      %s419 = ssub.s32 16, 16
      %420 = vsyncadd [#allocation33], %s419
      %s422 = sshll.u32 [#allocation32], 4
      %s423 = int_to_ptr.vmem [resolvable:$true] %s422
      %425 = dma.hbm_to_vmem [thread:$0]  %s99, 16, %s423, [#allocation33]
    $region201: #{lxrt_encoder_forward.1} parent=1 // pred_fallthru
      _
    // Predicated region
    $region202: #{lxrt_encoder_forward.1} parent=1 // pred_check
      _
    $region203: #{lxrt_encoder_forward.1} parent=1 // pred_check_branch
      %427 = sbr.rel (0) target = $region205
    $region204: #{lxrt_encoder_forward.1} parent=1 // pred_region
      %s429 = ssub.s32 16, 16
      %430 = vsyncadd [#allocation33], %s429
      %s432 = sshll.u32 [#allocation34], 4
      %s433 = int_to_ptr.vmem [resolvable:$true] %s432
      %435 = dma.hbm_to_vmem [thread:$0]  %s101, 16, %s433, [#allocation33]
    $region205: #{lxrt_encoder_forward.1} parent=1 // pred_fallthru
      _
    // Predicated region
    $region206: #{lxrt_encoder_forward.1} parent=1 // pred_check
      _
    $region207: #{lxrt_encoder_forward.1} parent=1 // pred_check_branch
      %437 = sbr.rel (0) target = $region209
    $region208: #{lxrt_encoder_forward.1} parent=1 // pred_region
      %s439 = ssub.s32 16, 16
      %440 = vsyncadd [#allocation36], %s439
      %s442 = sshll.u32 [#allocation35], 4
      %s443 = int_to_ptr.vmem [resolvable:$true] %s442
      %445 = dma.hbm_to_vmem [thread:$0]  %s103, 16, %s443, [#allocation36]
    $region209: #{lxrt_encoder_forward.1} parent=1 // pred_fallthru
      _
    // Predicated region
    $region210: #{lxrt_encoder_forward.1} parent=1 // pred_check
      _
    $region211: #{lxrt_encoder_forward.1} parent=1 // pred_check_branch
      %447 = sbr.rel (0) target = $region213
    $region212: #{lxrt_encoder_forward.1} parent=1 // pred_region
      _
    $region213: #{lxrt_encoder_forward.1} parent=1 // pred_fallthru
      _
    // Predicated region
    $region214: #{lxrt_encoder_forward.1} parent=1 // pred_check
      _
    $region215: #{lxrt_encoder_forward.1} parent=1 // pred_check_branch
      %449 = sbr.rel (0) target = $region217
    $region216: #{lxrt_encoder_forward.1} parent=1 // pred_region
      %s451 = ssub.s32 16, 16
      %452 = vsyncadd [#allocation36], %s451
      %s454 = sshll.u32 [#allocation37], 4
      %s455 = int_to_ptr.vmem [resolvable:$true] %s454
      %457 = dma.hbm_to_vmem [thread:$0]  %s107, 16, %s455, [#allocation36]
    $region217: #{lxrt_encoder_forward.1} parent=1 // pred_fallthru
      _
    // Predicated region
    $region218: #{lxrt_encoder_forward.1} parent=1 // pred_check
      _
    $region219: #{lxrt_encoder_forward.1} parent=1 // pred_check_branch
      %459 = sbr.rel (0) target = $region221
    $region220: #{lxrt_encoder_forward.1} parent=1 // pred_region
      %s461 = ssub.s32 16, 16
      %462 = vsyncadd [#allocation39], %s461
      %s464 = sshll.u32 [#allocation38], 4
      %s465 = int_to_ptr.vmem [resolvable:$true] %s464
      %467 = dma.hbm_to_vmem [thread:$0]  %s109, 16, %s465, [#allocation39]
    $region221: #{lxrt_encoder_forward.1} parent=1 // pred_fallthru
      _
    // Predicated region
    $region222: #{lxrt_encoder_forward.1} parent=1 // pred_check
      _
    $region223: #{lxrt_encoder_forward.1} parent=1 // pred_check_branch
      %469 = sbr.rel (0) target = $region225
    $region224: #{lxrt_encoder_forward.1} parent=1 // pred_region
      %s471 = ssub.s32 16, 16
      %472 = vsyncadd [#allocation39], %s471
      %s474 = sshll.u32 [#allocation40], 4
      %s475 = int_to_ptr.vmem [resolvable:$true] %s474
      %477 = dma.hbm_to_vmem [thread:$0]  %s111, 16, %s475, [#allocation39]
    $region225: #{lxrt_encoder_forward.1} parent=1 // pred_fallthru
      _
    // Predicated region
    $region226: #{lxrt_encoder_forward.1} parent=1 // pred_check
      _
    $region227: #{lxrt_encoder_forward.1} parent=1 // pred_check_branch
      %479 = sbr.rel (0) target = $region229
    $region228: #{lxrt_encoder_forward.1} parent=1 // pred_region
      _
    $region229: #{lxrt_encoder_forward.1} parent=1 // pred_fallthru
      _
    // Predicated region
    $region230: #{lxrt_encoder_forward.1} parent=1 // pred_check
      _
    $region231: #{lxrt_encoder_forward.1} parent=1 // pred_check_branch
      %481 = sbr.rel (0) target = $region233
    $region232: #{lxrt_encoder_forward.1} parent=1 // pred_region
      _
    $region233: #{lxrt_encoder_forward.1} parent=1 // pred_fallthru
      _
    // Predicated region
    $region234: #{lxrt_encoder_forward.1} parent=1 // pred_check
      _
    $region235: #{lxrt_encoder_forward.1} parent=1 // pred_check_branch
      %483 = sbr.rel (0) target = $region237
    $region236: #{lxrt_encoder_forward.1} parent=1 // pred_region
      _
    $region237: #{lxrt_encoder_forward.1} parent=1 // pred_fallthru
      _
    // Predicated region
    $region238: #{lxrt_encoder_forward.1} parent=1 // pred_check
      _
    $region239: #{lxrt_encoder_forward.1} parent=1 // pred_check_branch
      %485 = sbr.rel (0) target = $region241
    $region240: #{lxrt_encoder_forward.1} parent=1 // pred_region
      %s487 = ssub.s32 16, 16
      %488 = vsyncadd [#allocation42], %s487
      %s490 = sshll.u32 [#allocation41], 4
      %s491 = int_to_ptr.vmem [resolvable:$true] %s490
      %493 = dma.hbm_to_vmem [thread:$0]  %s119, 16, %s491, [#allocation42]
    $region241: #{lxrt_encoder_forward.1} parent=1 // pred_fallthru
      _
    // Predicated region
    $region242: #{lxrt_encoder_forward.1} parent=1 // pred_check
      _
    $region243: #{lxrt_encoder_forward.1} parent=1 // pred_check_branch
      %495 = sbr.rel (0) target = $region245
    $region244: #{lxrt_encoder_forward.1} parent=1 // pred_region
      _
    $region245: #{lxrt_encoder_forward.1} parent=1 // pred_fallthru
      _
    // Predicated region
    $region246: #{lxrt_encoder_forward.1} parent=1 // pred_check
      _
    $region247: #{lxrt_encoder_forward.1} parent=1 // pred_check_branch
      %497 = sbr.rel (0) target = $region249
    $region248: #{lxrt_encoder_forward.1} parent=1 // pred_region
      %s499 = ssub.s32 16, 16
      %500 = vsyncadd [#allocation42], %s499
      %s502 = sshll.u32 [#allocation43], 4
      %s503 = int_to_ptr.vmem [resolvable:$true] %s502
      %505 = dma.hbm_to_vmem [thread:$0]  %s123, 16, %s503, [#allocation42]
    $region249: #{lxrt_encoder_forward.1} parent=1 // pred_fallthru
      _
    // Predicated region
    $region250: #{lxrt_encoder_forward.1} parent=1 // pred_check
      _
    $region251: #{lxrt_encoder_forward.1} parent=1 // pred_check_branch
      %507 = sbr.rel (0) target = $region253
    $region252: #{lxrt_encoder_forward.1} parent=1 // pred_region
      %s509 = ssub.s32 16, 16
      %510 = vsyncadd [#allocation45], %s509
      %s512 = sshll.u32 [#allocation44], 4
      %s513 = int_to_ptr.vmem [resolvable:$true] %s512
      %515 = dma.hbm_to_vmem [thread:$0]  %s125, 16, %s513, [#allocation45]
    $region253: #{lxrt_encoder_forward.1} parent=1 // pred_fallthru
      _
    // Predicated region
    $region254: #{lxrt_encoder_forward.1} parent=1 // pred_check
      _
    $region255: #{lxrt_encoder_forward.1} parent=1 // pred_check_branch
      %517 = sbr.rel (0) target = $region257
    $region256: #{lxrt_encoder_forward.1} parent=1 // pred_region
      %s519 = ssub.s32 16, 16
      %520 = vsyncadd [#allocation45], %s519
      %s522 = sshll.u32 [#allocation46], 4
      %s523 = int_to_ptr.vmem [resolvable:$true] %s522
      %525 = dma.hbm_to_vmem [thread:$0]  %s127, 16, %s523, [#allocation45]
    $region257: #{lxrt_encoder_forward.1} parent=1 // pred_fallthru
      _
    // Predicated region
    $region258: #{lxrt_encoder_forward.1} parent=1 // pred_check
      _
    $region259: #{lxrt_encoder_forward.1} parent=1 // pred_check_branch
      %527 = sbr.rel (0) target = $region261
    $region260: #{lxrt_encoder_forward.1} parent=1 // pred_region
      _
    $region261: #{lxrt_encoder_forward.1} parent=1 // pred_fallthru
      _
    // Predicated region
    $region262: #{lxrt_encoder_forward.1} parent=1 // pred_check
      _
    $region263: #{lxrt_encoder_forward.1} parent=1 // pred_check_branch
      %529 = sbr.rel (0) target = $region265
    $region264: #{lxrt_encoder_forward.1} parent=1 // pred_region
      %s531 = ssub.s32 16, 16
      %532 = vsyncadd [#allocation48], %s531
      %s534 = sshll.u32 [#allocation47], 4
      %s535 = int_to_ptr.vmem [resolvable:$true] %s534
      %537 = dma.hbm_to_vmem [thread:$0]  %s131, 16, %s535, [#allocation48]
    $region265: #{lxrt_encoder_forward.1} parent=1 // pred_fallthru
      _
    // Predicated region
    $region266: #{lxrt_encoder_forward.1} parent=1 // pred_check
      _
    $region267: #{lxrt_encoder_forward.1} parent=1 // pred_check_branch
      %539 = sbr.rel (0) target = $region269
    $region268: #{lxrt_encoder_forward.1} parent=1 // pred_region
      %s541 = ssub.s32 16, 16
      %542 = vsyncadd [#allocation48], %s541
      %s544 = sshll.u32 [#allocation49], 4
      %s545 = int_to_ptr.vmem [resolvable:$true] %s544
      %547 = dma.hbm_to_vmem [thread:$0]  %s133, 16, %s545, [#allocation48]
    $region269: #{lxrt_encoder_forward.1} parent=1 // pred_fallthru
      _
    // Predicated region
    $region270: #{lxrt_encoder_forward.1} parent=1 // pred_check
      _
    $region271: #{lxrt_encoder_forward.1} parent=1 // pred_check_branch
      %549 = sbr.rel (0) target = $region273
    $region272: #{lxrt_encoder_forward.1} parent=1 // pred_region
      %s551 = ssub.s32 16, 16
      %552 = vsyncadd [#allocation51], %s551
      %s554 = sshll.u32 [#allocation50], 4
      %s555 = int_to_ptr.vmem [resolvable:$true] %s554
      %557 = dma.hbm_to_vmem [thread:$0]  %s135, 16, %s555, [#allocation51]
    $region273: #{lxrt_encoder_forward.1} parent=1 // pred_fallthru
      _
    // Predicated region
    $region274: #{lxrt_encoder_forward.1} parent=1 // pred_check
      _
    $region275: #{lxrt_encoder_forward.1} parent=1 // pred_check_branch
      %559 = sbr.rel (0) target = $region277
    $region276: #{lxrt_encoder_forward.1} parent=1 // pred_region
      _
    $region277: #{lxrt_encoder_forward.1} parent=1 // pred_fallthru
      _
    // Predicated region
    $region278: #{lxrt_encoder_forward.1} parent=1 // pred_check
      _
    $region279: #{lxrt_encoder_forward.1} parent=1 // pred_check_branch
      %561 = sbr.rel (0) target = $region281
    $region280: #{lxrt_encoder_forward.1} parent=1 // pred_region
      _
    $region281: #{lxrt_encoder_forward.1} parent=1 // pred_fallthru
      _
    // Predicated region
    $region282: #{lxrt_encoder_forward.1} parent=1 // pred_check
      _
    $region283: #{lxrt_encoder_forward.1} parent=1 // pred_check_branch
      %563 = sbr.rel (0) target = $region285
    $region284: #{lxrt_encoder_forward.1} parent=1 // pred_region
      _
    $region285: #{lxrt_encoder_forward.1} parent=1 // pred_fallthru
      _
    // Predicated region
    $region286: #{lxrt_encoder_forward.1} parent=1 // pred_check
      _
    $region287: #{lxrt_encoder_forward.1} parent=1 // pred_check_branch
      %565 = sbr.rel (0) target = $region289
    $region288: #{lxrt_encoder_forward.1} parent=1 // pred_region
      %566 = dma.done [#allocation3], 16
    $region289: #{lxrt_encoder_forward.1} parent=1 // pred_fallthru
      _
    // Predicated region
    $region290: #{lxrt_encoder_forward.1} parent=1 // pred_check
      _
    $region291: #{lxrt_encoder_forward.1} parent=1 // pred_check_branch
      %568 = sbr.rel (0) target = $region293
    $region292: #{lxrt_encoder_forward.1} parent=1 // pred_region
      %569 = dma.done [#allocation6], 16
    $region293: #{lxrt_encoder_forward.1} parent=1 // pred_fallthru
      _
    // Predicated region
    $region294: #{lxrt_encoder_forward.1} parent=1 // pred_check
      _
    $region295: #{lxrt_encoder_forward.1} parent=1 // pred_check_branch
      %571 = sbr.rel (0) target = $region297
    $region296: #{lxrt_encoder_forward.1} parent=1 // pred_region
      %572 = dma.done [#allocation6], 16
    $region297: #{lxrt_encoder_forward.1} parent=1 // pred_fallthru
      _
    // Predicated region
    $region298: #{lxrt_encoder_forward.1} parent=1 // pred_check
      _
    $region299: #{lxrt_encoder_forward.1} parent=1 // pred_check_branch
      %574 = sbr.rel (0) target = $region301
    $region300: #{lxrt_encoder_forward.1} parent=1 // pred_region
      %575 = dma.done [#allocation9], 16
    $region301: #{lxrt_encoder_forward.1} parent=1 // pred_fallthru
      _
    // Predicated region
    $region302: #{lxrt_encoder_forward.1} parent=1 // pred_check
      _
    $region303: #{lxrt_encoder_forward.1} parent=1 // pred_check_branch
      %577 = sbr.rel (0) target = $region305
    $region304: #{lxrt_encoder_forward.1} parent=1 // pred_region
      %578 = dma.done [#allocation9], 16
    $region305: #{lxrt_encoder_forward.1} parent=1 // pred_fallthru
      _
    // Predicated region
    $region306: #{lxrt_encoder_forward.1} parent=1 // pred_check
      _
    $region307: #{lxrt_encoder_forward.1} parent=1 // pred_check_branch
      %580 = sbr.rel (0) target = $region309
    $region308: #{lxrt_encoder_forward.1} parent=1 // pred_region
      %581 = dma.done [#allocation12], 16
    $region309: #{lxrt_encoder_forward.1} parent=1 // pred_fallthru
      _
    // Predicated region
    $region310: #{lxrt_encoder_forward.1} parent=1 // pred_check
      _
    $region311: #{lxrt_encoder_forward.1} parent=1 // pred_check_branch
      %583 = sbr.rel (0) target = $region313
    $region312: #{lxrt_encoder_forward.1} parent=1 // pred_region
      %584 = dma.done [#allocation12], 16
    $region313: #{lxrt_encoder_forward.1} parent=1 // pred_fallthru
      _
    // Predicated region
    $region314: #{lxrt_encoder_forward.1} parent=1 // pred_check
      _
    $region315: #{lxrt_encoder_forward.1} parent=1 // pred_check_branch
      %586 = sbr.rel (0) target = $region317
    $region316: #{lxrt_encoder_forward.1} parent=1 // pred_region
      %587 = dma.done [#allocation15], 16
    $region317: #{lxrt_encoder_forward.1} parent=1 // pred_fallthru
      _
    // Predicated region
    $region318: #{lxrt_encoder_forward.1} parent=1 // pred_check
      _
    $region319: #{lxrt_encoder_forward.1} parent=1 // pred_check_branch
      %589 = sbr.rel (0) target = $region321
    $region320: #{lxrt_encoder_forward.1} parent=1 // pred_region
      %590 = dma.done [#allocation15], 16
    $region321: #{lxrt_encoder_forward.1} parent=1 // pred_fallthru
      _
    // Predicated region
    $region322: #{lxrt_encoder_forward.1} parent=1 // pred_check
      _
    $region323: #{lxrt_encoder_forward.1} parent=1 // pred_check_branch
      %592 = sbr.rel (0) target = $region325
    $region324: #{lxrt_encoder_forward.1} parent=1 // pred_region
      %593 = dma.done [#allocation18], 16
    $region325: #{lxrt_encoder_forward.1} parent=1 // pred_fallthru
      _
    // Predicated region
    $region326: #{lxrt_encoder_forward.1} parent=1 // pred_check
      _
    $region327: #{lxrt_encoder_forward.1} parent=1 // pred_check_branch
      %595 = sbr.rel (0) target = $region329
    $region328: #{lxrt_encoder_forward.1} parent=1 // pred_region
      %596 = dma.done [#allocation18], 16
    $region329: #{lxrt_encoder_forward.1} parent=1 // pred_fallthru
      _
    // Predicated region
    $region330: #{lxrt_encoder_forward.1} parent=1 // pred_check
      _
    $region331: #{lxrt_encoder_forward.1} parent=1 // pred_check_branch
      %598 = sbr.rel (0) target = $region333
    $region332: #{lxrt_encoder_forward.1} parent=1 // pred_region
      %599 = dma.done [#allocation21], 16
    $region333: #{lxrt_encoder_forward.1} parent=1 // pred_fallthru
      _
    // Predicated region
    $region334: #{lxrt_encoder_forward.1} parent=1 // pred_check
      _
    $region335: #{lxrt_encoder_forward.1} parent=1 // pred_check_branch
      %601 = sbr.rel (0) target = $region337
    $region336: #{lxrt_encoder_forward.1} parent=1 // pred_region
      %602 = dma.done [#allocation21], 16
    $region337: #{lxrt_encoder_forward.1} parent=1 // pred_fallthru
      _
    // Predicated region
    $region338: #{lxrt_encoder_forward.1} parent=1 // pred_check
      _
    $region339: #{lxrt_encoder_forward.1} parent=1 // pred_check_branch
      %604 = sbr.rel (0) target = $region341
    $region340: #{lxrt_encoder_forward.1} parent=1 // pred_region
      %605 = dma.done [#allocation24], 16
    $region341: #{lxrt_encoder_forward.1} parent=1 // pred_fallthru
      _
    // Predicated region
    $region342: #{lxrt_encoder_forward.1} parent=1 // pred_check
      _
    $region343: #{lxrt_encoder_forward.1} parent=1 // pred_check_branch
      %607 = sbr.rel (0) target = $region345
    $region344: #{lxrt_encoder_forward.1} parent=1 // pred_region
      %608 = dma.done [#allocation24], 16
    $region345: #{lxrt_encoder_forward.1} parent=1 // pred_fallthru
      _
    // Predicated region
    $region346: #{lxrt_encoder_forward.1} parent=1 // pred_check
      _
    $region347: #{lxrt_encoder_forward.1} parent=1 // pred_check_branch
      %610 = sbr.rel (0) target = $region349
    $region348: #{lxrt_encoder_forward.1} parent=1 // pred_region
      %611 = dma.done [#allocation27], 16
    $region349: #{lxrt_encoder_forward.1} parent=1 // pred_fallthru
      _
    // Predicated region
    $region350: #{lxrt_encoder_forward.1} parent=1 // pred_check
      _
    $region351: #{lxrt_encoder_forward.1} parent=1 // pred_check_branch
      %613 = sbr.rel (0) target = $region353
    $region352: #{lxrt_encoder_forward.1} parent=1 // pred_region
      %614 = dma.done [#allocation27], 16
    $region353: #{lxrt_encoder_forward.1} parent=1 // pred_fallthru
      _
    // Predicated region
    $region354: #{lxrt_encoder_forward.1} parent=1 // pred_check
      _
    $region355: #{lxrt_encoder_forward.1} parent=1 // pred_check_branch
      %616 = sbr.rel (0) target = $region357
    $region356: #{lxrt_encoder_forward.1} parent=1 // pred_region
      %617 = dma.done [#allocation30], 16
    $region357: #{lxrt_encoder_forward.1} parent=1 // pred_fallthru
      _
    // Predicated region
    $region358: #{lxrt_encoder_forward.1} parent=1 // pred_check
      _
    $region359: #{lxrt_encoder_forward.1} parent=1 // pred_check_branch
      %619 = sbr.rel (0) target = $region361
    $region360: #{lxrt_encoder_forward.1} parent=1 // pred_region
      %620 = dma.done [#allocation30], 16
    $region361: #{lxrt_encoder_forward.1} parent=1 // pred_fallthru
      _
    // Predicated region
    $region362: #{lxrt_encoder_forward.1} parent=1 // pred_check
      _
    $region363: #{lxrt_encoder_forward.1} parent=1 // pred_check_branch
      %622 = sbr.rel (0) target = $region365
    $region364: #{lxrt_encoder_forward.1} parent=1 // pred_region
      %623 = dma.done [#allocation33], 16
    $region365: #{lxrt_encoder_forward.1} parent=1 // pred_fallthru
      _
    // Predicated region
    $region366: #{lxrt_encoder_forward.1} parent=1 // pred_check
      _
    $region367: #{lxrt_encoder_forward.1} parent=1 // pred_check_branch
      %625 = sbr.rel (0) target = $region369
    $region368: #{lxrt_encoder_forward.1} parent=1 // pred_region
      %626 = dma.done [#allocation33], 16
    $region369: #{lxrt_encoder_forward.1} parent=1 // pred_fallthru
      _
    // Predicated region
    $region370: #{lxrt_encoder_forward.1} parent=1 // pred_check
      _
    $region371: #{lxrt_encoder_forward.1} parent=1 // pred_check_branch
      %628 = sbr.rel (0) target = $region373
    $region372: #{lxrt_encoder_forward.1} parent=1 // pred_region
      %629 = dma.done [#allocation36], 16
    $region373: #{lxrt_encoder_forward.1} parent=1 // pred_fallthru
      _
    // Predicated region
    $region374: #{lxrt_encoder_forward.1} parent=1 // pred_check
      _
    $region375: #{lxrt_encoder_forward.1} parent=1 // pred_check_branch
      %631 = sbr.rel (0) target = $region377
    $region376: #{lxrt_encoder_forward.1} parent=1 // pred_region
      %632 = dma.done [#allocation36], 16
    $region377: #{lxrt_encoder_forward.1} parent=1 // pred_fallthru
      _
    // Predicated region
    $region378: #{lxrt_encoder_forward.1} parent=1 // pred_check
      _
    $region379: #{lxrt_encoder_forward.1} parent=1 // pred_check_branch
      %634 = sbr.rel (0) target = $region381
    $region380: #{lxrt_encoder_forward.1} parent=1 // pred_region
      %635 = dma.done [#allocation39], 16
    $region381: #{lxrt_encoder_forward.1} parent=1 // pred_fallthru
      _
    // Predicated region
    $region382: #{lxrt_encoder_forward.1} parent=1 // pred_check
      _
    $region383: #{lxrt_encoder_forward.1} parent=1 // pred_check_branch
      %637 = sbr.rel (0) target = $region385
    $region384: #{lxrt_encoder_forward.1} parent=1 // pred_region
      %638 = dma.done [#allocation39], 16
    $region385: #{lxrt_encoder_forward.1} parent=1 // pred_fallthru
      _
    // Predicated region
    $region386: #{lxrt_encoder_forward.1} parent=1 // pred_check
      _
    $region387: #{lxrt_encoder_forward.1} parent=1 // pred_check_branch
      %640 = sbr.rel (0) target = $region389
    $region388: #{lxrt_encoder_forward.1} parent=1 // pred_region
      %641 = dma.done [#allocation42], 16
    $region389: #{lxrt_encoder_forward.1} parent=1 // pred_fallthru
      _
    // Predicated region
    $region390: #{lxrt_encoder_forward.1} parent=1 // pred_check
      _
    $region391: #{lxrt_encoder_forward.1} parent=1 // pred_check_branch
      %643 = sbr.rel (0) target = $region393
    $region392: #{lxrt_encoder_forward.1} parent=1 // pred_region
      %644 = dma.done [#allocation42], 16
    $region393: #{lxrt_encoder_forward.1} parent=1 // pred_fallthru
      _
    // Predicated region
    $region394: #{lxrt_encoder_forward.1} parent=1 // pred_check
      _
    $region395: #{lxrt_encoder_forward.1} parent=1 // pred_check_branch
      %646 = sbr.rel (0) target = $region397
    $region396: #{lxrt_encoder_forward.1} parent=1 // pred_region
      %647 = dma.done [#allocation45], 16
    $region397: #{lxrt_encoder_forward.1} parent=1 // pred_fallthru
      _
    // Predicated region
    $region398: #{lxrt_encoder_forward.1} parent=1 // pred_check
      _
    $region399: #{lxrt_encoder_forward.1} parent=1 // pred_check_branch
      %649 = sbr.rel (0) target = $region401
    $region400: #{lxrt_encoder_forward.1} parent=1 // pred_region
      %650 = dma.done [#allocation45], 16
    $region401: #{lxrt_encoder_forward.1} parent=1 // pred_fallthru
      _
    // Predicated region
    $region402: #{lxrt_encoder_forward.1} parent=1 // pred_check
      _
    $region403: #{lxrt_encoder_forward.1} parent=1 // pred_check_branch
      %652 = sbr.rel (0) target = $region405
    $region404: #{lxrt_encoder_forward.1} parent=1 // pred_region
      %653 = dma.done [#allocation48], 16
    $region405: #{lxrt_encoder_forward.1} parent=1 // pred_fallthru
      _
    // Predicated region
    $region406: #{lxrt_encoder_forward.1} parent=1 // pred_check
      _
    $region407: #{lxrt_encoder_forward.1} parent=1 // pred_check_branch
      %655 = sbr.rel (0) target = $region409
    $region408: #{lxrt_encoder_forward.1} parent=1 // pred_region
      %656 = dma.done [#allocation48], 16
    $region409: #{lxrt_encoder_forward.1} parent=1 // pred_fallthru
      _
    // Predicated region
    $region410: #{lxrt_encoder_forward.1} parent=1 // pred_check
      _
    $region411: #{lxrt_encoder_forward.1} parent=1 // pred_check_branch
      %658 = sbr.rel (0) target = $region413
    $region412: #{lxrt_encoder_forward.1} parent=1 // pred_region
      %659 = dma.done [#allocation51], 16
    $region413: #{lxrt_encoder_forward.1} parent=1 // pred_fallthru
      _
    %v661 = vld [vmem:[%s7] sm:$0x3]
    %v662 = vld [vmem:[%s9] sm:$0x3]
    %v663 = vld [vmem:[%s1] sm:$0xff]
    %v664 = vld [vmem:[%s1 + $0x8] sm:$0xff]
    %v665 = vld [vmem:[%s21] sm:$0x1]
    %v666 = vld [vmem:[%s19] sm:$0x1]
    %vm667 = vcmask 523264
    %v668 = vsel %vm667, %v663, 0.0
    %669 = vadd.xlane.f32.xlu0 %v668
    %v670 = vpop.xlane.xlu0 %669
    %v671 = vsel %vm667, %v664, 0.0
    %672 = vadd.xlane.f32.xlu0 %v671
    %v673 = vpop.xlane.xlu0 %672
    %v674 = vrcp.pop 64.0
    %v675 = vmul.f32 %v670, %v674
    %v676 = vmul.f32 %v673, %v674
    %v677 = vsub.f32 %v663, %v675
    %v678 = vsub.f32 %v664, %v676
    %v679 = vmul.f32 %v677, %v677
    %v680 = vmul.f32 %v678, %v678
    %v681 = vsel %vm667, %v679, 0.0
    %682 = vadd.xlane.f32.xlu0 %v681
    %v683 = vpop.xlane.xlu0 %682
    %v684 = vsel %vm667, %v680, 0.0
    %685 = vadd.xlane.f32.xlu0 %v684
    %v686 = vpop.xlane.xlu0 %685
    %v687 = vmul.f32 %v683, %v674
    %v688 = vmul.f32 %v686, %v674
    %v689 = vadd.f32 %v687, 1e-12
    %v690 = vadd.f32 %v688, 1e-12
    %v691 = vrsqrt.pop %v689
    %v692 = vrsqrt.pop %v690
    %v693 = vmul.f32 %v677, %v691
    %v694 = vmul.f32 %v678, %v692
    %v696 = vlaneseq
    %v697 = vshrl.u32 %v696, 7
    %v698 = vsub.s32 0, %v697
    %v699 = vrot.slane %v665, %v698
    %v701 = vmul.f32 %v693, %v699
    %v702 = vmul.f32 %v694, %v699
    %v704 = vlaneseq
    %v705 = vshrl.u32 %v704, 7
    %v706 = vsub.s32 0, %v705
    %v707 = vrot.slane %v666, %v706
    %v709 = vadd.f32 %v701, %v707
    %v710 = vadd.f32 %v702, %v707
    %v711 = vld [vmem:[%s3] sm:$0xff]
    %v712 = vld [vmem:[%s5] sm:$0xff]
    %v713 = vld [vmem:[%s77] sm:$0xf]
    %v714 = vld [vmem:[%s77 + $0x4] sm:$0xf]
    %v715 = vld [vmem:[#allocation22] sm:$0x1]
    %v716 = vpack.c.bf16 %v711, %v711
    %v718 = vlaneseq
    %v719 = vshrl.u32 %v718, 7
    %v720 = vsub.s32 0, %v719
    %v721 = vrot.slane %v715, %v720
    %v725 = vunpack.c.l.b16 %v713
    %v726 = vunpack.c.l.b16 %v714
    %v727 = vpack.c.b16 %v726, %v725
    %vm729 = vcmask 130048
    %v731 = vsel %vm729, %v716, 0
    %733 = vmatprep.subr.bf16.mxu0 0
    %734 = vmatpush1.bf16.msra.mxu0 %v727
    %735 = vmatprep.subr.bf16.mxu0 0
    %736 = vmatpush1.bf16.msra.mxu0 0
    %737 = vmatprep.subr.bf16.mxu0 0
    %738 = vmatpush1.bf16.msra.mxu0 0
    %739 = vmatprep.subr.bf16.mxu0 0
    %740 = vmatpush1.bf16.msra.mxu0 0
    %741 = vmatprep.subr.bf16.mxu0 0
    %742 = vmatpush1.bf16.msra.mxu0 0
    %743 = vmatprep.subr.bf16.mxu0 0
    %744 = vmatpush1.bf16.msra.mxu0 0
    %745 = vmatprep.subr.bf16.mxu0 0
    %746 = vmatpush1.bf16.msra.mxu0 0
    %747 = vmatprep.subr.bf16.mxu0 0
    %748 = vmatpush1.bf16.msra.mxu0 0
    %749 = vmatprep.subr.bf16.mxu0 0
    %750 = vmatpush1.bf16.msra.mxu0 0
    %751 = vmatprep.subr.bf16.mxu0 0
    %752 = vmatpush1.bf16.msra.mxu0 0
    %753 = vmatprep.subr.bf16.mxu0 0
    %754 = vmatpush1.bf16.msra.mxu0 0
    %755 = vmatprep.subr.bf16.mxu0 0
    %756 = vmatpush1.bf16.msra.mxu0 0
    %757 = vmatprep.subr.bf16.mxu0 0
    %758 = vmatpush1.bf16.msra.mxu0 0
    %759 = vmatprep.subr.bf16.mxu0 0
    %760 = vmatpush1.bf16.msra.mxu0 0
    %761 = vmatprep.subr.bf16.mxu0 0
    %762 = vmatpush1.bf16.msra.mxu0 0
    %763 = vmatprep.subr.bf16.mxu0 0
    %764 = vmatpush1.bf16.msra.mxu0 0
    %765 = vmatprep.mubr.bf16.mxu0 0
    %766 = vmatmul.mubr.bf16.gmra.mrb[0].mxu0 %v731
    %v767 = vpop.f32.mrb[0].mxu0
    %v768 = vadd.f32 %v721, %v767
    %v769 = vpop.f32.mrb[0].mxu0
    %v770 = vpop.f32.mrb[0].mxu0
    %v771 = vpop.f32.mrb[0].mxu0
    %772 = vdwg.mxu0
    %v773 = vld [vmem:[#allocation25] sm:$0x1]
    %v774 = vld [vmem:[#allocation23] sm:$0x1]
    %v775 = vsel %vm667, %v768, 0.0
    %776 = vadd.xlane.f32.xlu0 %v775
    %v777 = vpop.xlane.xlu0 %776
    %v778 = vmul.f32 %v777, %v674
    %v779 = vsub.f32 %v768, %v778
    %v780 = vmul.f32 %v779, %v779
    %v781 = vsel %vm667, %v780, 0.0
    %782 = vadd.xlane.f32.xlu0 %v781
    %v783 = vpop.xlane.xlu0 %782
    %v784 = vmul.f32 %v783, %v674
    %v785 = vadd.f32 %v784, 1e-12
    %v786 = vrsqrt.pop %v785
    %v787 = vmul.f32 %v779, %v786
    %v789 = vlaneseq
    %v790 = vshrl.u32 %v789, 7
    %v791 = vsub.s32 0, %v790
    %v792 = vrot.slane %v773, %v791
    %v794 = vmul.f32 %v787, %v792
    %v796 = vlaneseq
    %v797 = vshrl.u32 %v796, 7
    %v798 = vsub.s32 0, %v797
    %v799 = vrot.slane %v774, %v798
    %v801 = vadd.f32 %v794, %v799
    %v802 = vld [vmem:[%s13] sm:$0x3]
    %v803 = vld [vmem:[%s11] sm:$0x1]
    %v804 = vpack.c.bf16 %v712, %v712
    %v806 = vlaneseq
    %v807 = vshrl.u32 %v806, 7
    %v808 = vsub.s32 0, %v807
    %v809 = vrot.slane %v803, %v808
    %vm811 = vcmask 31744
    %v813 = vsel %vm811, %v804, 0
    %vm815 = vcmask 1041408
    %v817 = vsel %vm815, %v802, 0
    %819 = vmatprep.subr.bf16.mxu0 0
    %820 = vmatpush1.bf16.msra.mxu0 %v817
    %821 = vmatprep.subr.bf16.mxu0 0
    %822 = vmatpush1.bf16.msra.mxu0 0
    %823 = vmatprep.subr.bf16.mxu0 0
    %824 = vmatpush1.bf16.msra.mxu0 0
    %825 = vmatprep.subr.bf16.mxu0 0
    %826 = vmatpush1.bf16.msra.mxu0 0
    %827 = vmatprep.subr.bf16.mxu0 0
    %828 = vmatpush1.bf16.msra.mxu0 0
    %829 = vmatprep.subr.bf16.mxu0 0
    %830 = vmatpush1.bf16.msra.mxu0 0
    %831 = vmatprep.subr.bf16.mxu0 0
    %832 = vmatpush1.bf16.msra.mxu0 0
    %833 = vmatprep.subr.bf16.mxu0 0
    %834 = vmatpush1.bf16.msra.mxu0 0
    %835 = vmatprep.subr.bf16.mxu0 0
    %836 = vmatpush1.bf16.msra.mxu0 0
    %837 = vmatprep.subr.bf16.mxu0 0
    %838 = vmatpush1.bf16.msra.mxu0 0
    %839 = vmatprep.subr.bf16.mxu0 0
    %840 = vmatpush1.bf16.msra.mxu0 0
    %841 = vmatprep.subr.bf16.mxu0 0
    %842 = vmatpush1.bf16.msra.mxu0 0
    %843 = vmatprep.subr.bf16.mxu0 0
    %844 = vmatpush1.bf16.msra.mxu0 0
    %845 = vmatprep.subr.bf16.mxu0 0
    %846 = vmatpush1.bf16.msra.mxu0 0
    %847 = vmatprep.subr.bf16.mxu0 0
    %848 = vmatpush1.bf16.msra.mxu0 0
    %849 = vmatprep.subr.bf16.mxu0 0
    %850 = vmatpush1.bf16.msra.mxu0 0
    %851 = vmatprep.mubr.bf16.mxu0 0
    %852 = vmatmul.mubr.bf16.gmra.mrb[0].mxu0 %v813
    %v853 = vpop.f32.mrb[0].mxu0
    %v854 = vadd.f32 %v809, %v853
    %v855 = vpop.f32.mrb[0].mxu0
    %v856 = vpop.f32.mrb[0].mxu0
    %v857 = vpop.f32.mrb[0].mxu0
    %858 = vdwg.mxu0
    %v859 = vld [vmem:[%s17] sm:$0x1]
    %v860 = vld [vmem:[%s15] sm:$0x1]
    %v861 = vsel %vm667, %v854, 0.0
    %862 = vadd.xlane.f32.xlu0 %v861
    %v863 = vpop.xlane.xlu0 %862
    %v864 = vmul.f32 %v863, %v674
    %v865 = vsub.f32 %v854, %v864
    %v866 = vmul.f32 %v865, %v865
    %v867 = vsel %vm667, %v866, 0.0
    %868 = vadd.xlane.f32.xlu0 %v867
    %v869 = vpop.xlane.xlu0 %868
    %v870 = vmul.f32 %v869, %v674
    %v871 = vadd.f32 %v870, 1e-12
    %v872 = vrsqrt.pop %v871
    %v873 = vmul.f32 %v865, %v872
    %v875 = vlaneseq
    %v876 = vshrl.u32 %v875, 7
    %v877 = vsub.s32 0, %v876
    %v878 = vrot.slane %v859, %v877
    %v880 = vmul.f32 %v873, %v878
    %v882 = vlaneseq
    %v883 = vshrl.u32 %v882, 7
    %v884 = vsub.s32 0, %v883
    %v885 = vrot.slane %v860, %v884
    %v887 = vadd.f32 %v880, %v885
    %v888 = vadd.f32 %v801, %v887
    %v889 = vmul.f32 %v888, 0.5
    %v890 = vld [vmem:[%s33] sm:$0xff]
    %v891 = vld [vmem:[%s33 + $0x8] sm:$0xff]
    %v892 = vld [vmem:[%s33 + $0x10] sm:$0xff]
    %v893 = vld [vmem:[%s33 + $0x18] sm:$0xff]
    %v894 = vld [vmem:[%s33 + $0x20] sm:$0xff]
    %v895 = vld [vmem:[%s33 + $0x28] sm:$0xff]
    %v896 = vld [vmem:[%s33 + $0x30] sm:$0xff]
    %v897 = vld [vmem:[%s33 + $0x38] sm:$0xff]
    %v898 = vld [vmem:[%s31] sm:$0x3]
    %v899 = vpack.c.bf16 %v710, %v709
    %v901 = vlaneseq
    %v902 = vshrl.u32 %v901, 7
    %v903 = vsub.s32 0, %v902
    %v904 = vrot.slane %v898, %v903
    %v905 = vlaneseq
    %v906 = vshrl.u32 %v905, 7
    %v907 = vsub.s32 1, %v906
    %v908 = vrot.slane %v898, %v907
    %v919 = vunpack.c.l.b16 %v890
    %v920 = vunpack.c.h.b16 %v890
    %v921 = vunpack.c.l.b16 %v891
    %v922 = vunpack.c.h.b16 %v891
    %v923 = vunpack.c.l.b16 %v892
    %v924 = vunpack.c.h.b16 %v892
    %v925 = vunpack.c.l.b16 %v893
    %v926 = vunpack.c.h.b16 %v893
    %v927 = vunpack.c.l.b16 %v894
    %v928 = vunpack.c.h.b16 %v894
    %v929 = vunpack.c.l.b16 %v895
    %v930 = vunpack.c.h.b16 %v895
    %v931 = vunpack.c.l.b16 %v896
    %v932 = vunpack.c.h.b16 %v896
    %v933 = vunpack.c.l.b16 %v897
    %v934 = vunpack.c.h.b16 %v897
    %v935 = vpack.c.b16 %v921, %v919
    %v936 = vpack.c.b16 %v922, %v920
    %v937 = vpack.c.b16 %v925, %v923
    %v938 = vpack.c.b16 %v926, %v924
    %v939 = vpack.c.b16 %v929, %v927
    %v940 = vpack.c.b16 %v930, %v928
    %v941 = vpack.c.b16 %v933, %v931
    %v942 = vpack.c.b16 %v934, %v932
    %v952 = vsel %vm667, %v899, 0
    %954 = vmatprep.subr.bf16.mxu0 %v936
    %955 = vmatpush1.bf16.msra.mxu0 %v935
    %956 = vmatprep.subr.bf16.mxu0 %v938
    %957 = vmatpush1.bf16.msra.mxu0 %v937
    %958 = vmatprep.subr.bf16.mxu0 %v940
    %959 = vmatpush1.bf16.msra.mxu0 %v939
    %960 = vmatprep.subr.bf16.mxu0 %v942
    %961 = vmatpush1.bf16.msra.mxu0 %v941
    %962 = vmatprep.subr.bf16.mxu0 0
    %963 = vmatpush1.bf16.msra.mxu0 0
    %964 = vmatprep.subr.bf16.mxu0 0
    %965 = vmatpush1.bf16.msra.mxu0 0
    %966 = vmatprep.subr.bf16.mxu0 0
    %967 = vmatpush1.bf16.msra.mxu0 0
    %968 = vmatprep.subr.bf16.mxu0 0
    %969 = vmatpush1.bf16.msra.mxu0 0
    %970 = vmatprep.subr.bf16.mxu0 0
    %971 = vmatpush1.bf16.msra.mxu0 0
    %972 = vmatprep.subr.bf16.mxu0 0
    %973 = vmatpush1.bf16.msra.mxu0 0
    %974 = vmatprep.subr.bf16.mxu0 0
    %975 = vmatpush1.bf16.msra.mxu0 0
    %976 = vmatprep.subr.bf16.mxu0 0
    %977 = vmatpush1.bf16.msra.mxu0 0
    %978 = vmatprep.subr.bf16.mxu0 0
    %979 = vmatpush1.bf16.msra.mxu0 0
    %980 = vmatprep.subr.bf16.mxu0 0
    %981 = vmatpush1.bf16.msra.mxu0 0
    %982 = vmatprep.subr.bf16.mxu0 0
    %983 = vmatpush1.bf16.msra.mxu0 0
    %984 = vmatprep.subr.bf16.mxu0 0
    %985 = vmatpush1.bf16.msra.mxu0 0
    %986 = vmatprep.mubr.bf16.mxu0 0
    %987 = vmatmul.mubr.bf16.gmra.mrb[0].mxu0 %v952
    %v988 = vpop.f32.mrb[0].mxu0
    %v989 = vadd.f32 %v904, %v988
    %v990 = vpop.f32.mrb[0].mxu0
    %v991 = vadd.f32 %v908, %v990
    %v992 = vpop.f32.mrb[0].mxu0
    %v993 = vadd.f32 %v904, %v992
    %v994 = vpop.f32.mrb[0].mxu0
    %v995 = vadd.f32 %v908, %v994
    %996 = vdwg.mxu0
    %v997 = vpack.c.bf16 %v989, %v989
    %v998 = vpack.c.bf16 %v993, %v993
    %v999 = vpack.c.bf16 %v991, %v991
    %v1000 = vpack.c.bf16 %v995, %v995
    %v1003 = vunpack.c.l.s4 1966171168
    %v1004 = vunpack.c.0.s8 %v1003
    %v1005 = vlaneseq
    %v1006 = vshrl.u32 %v1005, 7
    %v1007 = vsub.s32 %v1004, %v1006
    %v1008 = vrot.slane %v661, %v1007
    %v1009 = vcombine.high %v1008, %v1008
    %v1011 = vunpack.c.l.s4 1966171168
    %v1012 = vunpack.c.0.s8 %v1011
    %v1013 = vlaneseq
    %v1014 = vshrl.u32 %v1013, 7
    %v1015 = vsub.s32 %v1012, %v1014
    %v1016 = vrot.slane %v1008, %v1015
    %v1018 = vunpack.c.l.s4 1966171168
    %v1019 = vunpack.c.0.s8 %v1018
    %v1020 = vlaneseq
    %v1021 = vshrl.u32 %v1020, 7
    %v1022 = vsub.s32 %v1019, %v1021
    %v1023 = vrot.slane %v1009, %v1022
    %v1024 = vlaneseq
    %v1025 = vshrl.u32 %v1024, 7
    %v1026 = vsub.s32 0, %v1025
    %v1027 = vrot.slane %v1016, %v1026
    %v1028 = vlaneseq
    %v1029 = vshrl.u32 %v1028, 7
    %v1030 = vsub.s32 0, %v1029
    %v1031 = vrot.slane %v1023, %v1030
    %1035 = vrot.lane.b32.xlu0 %v997, 64
    %v1036 = vpop.permute.xlu0 %1035
    %v1038 = vsel %vm729, %v997, 0
    %v1041 = vsel %vm729, %v1036, 0
    %1043 = vmatprep.subr.bf16.mxu0 0
    %1044 = vmatpush1.bf16.xpose.msra.mxu0 %v1041
    %1045 = vmatprep.subr.bf16.mxu0 0
    %1046 = vmatpush1.bf16.xpose.msra.mxu0 0
    %1047 = vmatprep.subr.bf16.mxu0 0
    %1048 = vmatpush1.bf16.xpose.msra.mxu0 0
    %1049 = vmatprep.subr.bf16.mxu0 0
    %1050 = vmatpush1.bf16.xpose.msra.mxu0 0
    %1051 = vmatprep.subr.bf16.mxu0 0
    %1052 = vmatpush1.bf16.xpose.msra.mxu0 0
    %1053 = vmatprep.subr.bf16.mxu0 0
    %1054 = vmatpush1.bf16.xpose.msra.mxu0 0
    %1055 = vmatprep.subr.bf16.mxu0 0
    %1056 = vmatpush1.bf16.xpose.msra.mxu0 0
    %1057 = vmatprep.subr.bf16.mxu0 0
    %1058 = vmatpush1.bf16.xpose.msra.mxu0 0
    %1059 = vmatprep.subr.bf16.mxu0 0
    %1060 = vmatpush1.bf16.xpose.msra.mxu0 0
    %1061 = vmatprep.subr.bf16.mxu0 0
    %1062 = vmatpush1.bf16.xpose.msra.mxu0 0
    %1063 = vmatprep.subr.bf16.mxu0 0
    %1064 = vmatpush1.bf16.xpose.msra.mxu0 0
    %1065 = vmatprep.subr.bf16.mxu0 0
    %1066 = vmatpush1.bf16.xpose.msra.mxu0 0
    %1067 = vmatprep.subr.bf16.mxu0 0
    %1068 = vmatpush1.bf16.xpose.msra.mxu0 0
    %1069 = vmatprep.subr.bf16.mxu0 0
    %1070 = vmatpush1.bf16.xpose.msra.mxu0 0
    %1071 = vmatprep.subr.bf16.mxu0 0
    %1072 = vmatpush1.bf16.xpose.msra.mxu0 0
    %1073 = vmatprep.subr.bf16.mxu0 0
    %1074 = vmatpush1.bf16.xpose.msra.mxu0 0
    %1075 = vmatprep.mubr.bf16.mxu0 0
    %1076 = vmatmul.mubr.bf16.gmra.mrb[0].mxu0 %v1038
    %v1077 = vpop.f32.mrb[0].mxu0
    %v1078 = vadd.f32 %v1027, %v1077
    %v1079 = vpop.f32.mrb[0].mxu0
    %v1080 = vpop.f32.mrb[0].mxu0
    %v1081 = vpop.f32.mrb[0].mxu0
    %1082 = vdwg.mxu0
    %1084 = vrot.lane.b32.xlu0 %v998, 64
    %v1085 = vpop.permute.xlu0 %1084
    %v1087 = vsel %vm729, %v998, 0
    %v1090 = vsel %vm729, %v1085, 0
    %1092 = vmatprep.subr.bf16.mxu0 0
    %1093 = vmatpush1.bf16.xpose.msra.mxu0 %v1090
    %1094 = vmatprep.subr.bf16.mxu0 0
    %1095 = vmatpush1.bf16.xpose.msra.mxu0 0
    %1096 = vmatprep.subr.bf16.mxu0 0
    %1097 = vmatpush1.bf16.xpose.msra.mxu0 0
    %1098 = vmatprep.subr.bf16.mxu0 0
    %1099 = vmatpush1.bf16.xpose.msra.mxu0 0
    %1100 = vmatprep.subr.bf16.mxu0 0
    %1101 = vmatpush1.bf16.xpose.msra.mxu0 0
    %1102 = vmatprep.subr.bf16.mxu0 0
    %1103 = vmatpush1.bf16.xpose.msra.mxu0 0
    %1104 = vmatprep.subr.bf16.mxu0 0
    %1105 = vmatpush1.bf16.xpose.msra.mxu0 0
    %1106 = vmatprep.subr.bf16.mxu0 0
    %1107 = vmatpush1.bf16.xpose.msra.mxu0 0
    %1108 = vmatprep.subr.bf16.mxu0 0
    %1109 = vmatpush1.bf16.xpose.msra.mxu0 0
    %1110 = vmatprep.subr.bf16.mxu0 0
    %1111 = vmatpush1.bf16.xpose.msra.mxu0 0
    %1112 = vmatprep.subr.bf16.mxu0 0
    %1113 = vmatpush1.bf16.xpose.msra.mxu0 0
    %1114 = vmatprep.subr.bf16.mxu0 0
    %1115 = vmatpush1.bf16.xpose.msra.mxu0 0
    %1116 = vmatprep.subr.bf16.mxu0 0
    %1117 = vmatpush1.bf16.xpose.msra.mxu0 0
    %1118 = vmatprep.subr.bf16.mxu0 0
    %1119 = vmatpush1.bf16.xpose.msra.mxu0 0
    %1120 = vmatprep.subr.bf16.mxu0 0
    %1121 = vmatpush1.bf16.xpose.msra.mxu0 0
    %1122 = vmatprep.subr.bf16.mxu0 0
    %1123 = vmatpush1.bf16.xpose.msra.mxu0 0
    %1124 = vmatprep.mubr.bf16.mxu0 0
    %1125 = vmatmul.mubr.bf16.gmra.mrb[0].mxu0 %v1087
    %v1126 = vpop.f32.mrb[0].mxu0
    %v1127 = vadd.f32 %v1031, %v1126
    %v1128 = vpop.f32.mrb[0].mxu0
    %v1129 = vpop.f32.mrb[0].mxu0
    %v1130 = vpop.f32.mrb[0].mxu0
    %1131 = vdwg.mxu0
    %vm1132 = vcmask 64512
    %v1133 = vsel %vm1132, %v1078, -inf
    %1134 = vmax.xlane.f32.xlu0 %v1133
    %v1135 = vpop.xlane.xlu0 %1134
    %v1136 = vsel %vm1132, %v1127, -inf
    %1137 = vmax.xlane.f32.xlu0 %v1136
    %v1138 = vpop.xlane.xlu0 %1137
    %v1139 = vsub.f32 %v1078, %v1135
    %v1140 = vsub.f32 %v1127, %v1138
    %v1141 = vmul.f32 %v1139, 1.442695
    %v1142 = vpow.pop %v1141
    %v1143 = vmul.f32 %v1140, 1.442695
    %v1144 = vpow.pop %v1143
    %v1145 = vsel %vm1132, %v1142, 0.0
    %1146 = vadd.xlane.f32.xlu0 %v1145
    %v1147 = vpop.xlane.xlu0 %1146
    %v1148 = vsel %vm1132, %v1144, 0.0
    %1149 = vadd.xlane.f32.xlu0 %v1148
    %v1150 = vpop.xlane.xlu0 %1149
    %v1151 = vrcp.pop %v1147
    %v1152 = vrcp.pop %v1150
    %v1153 = vmul.f32 %v1142, %v1151
    %v1154 = vmul.f32 %v1144, %v1152
    %v1155 = vpack.c.bf16 %v1153, %v1153
    %v1156 = vpack.c.bf16 %v1154, %v1154
    %v1158 = vsel %vm1132, %v1155, 0
    %vm1160 = vcmask 1043456
    %v1162 = vsel %vm1160, %v999, 0
    %1164 = vmatprep.subr.bf16.mxu0 0
    %1165 = vmatpush1.bf16.msra.mxu0 %v1162
    %1166 = vmatprep.subr.bf16.mxu0 0
    %1167 = vmatpush1.bf16.msra.mxu0 0
    %1168 = vmatprep.subr.bf16.mxu0 0
    %1169 = vmatpush1.bf16.msra.mxu0 0
    %1170 = vmatprep.subr.bf16.mxu0 0
    %1171 = vmatpush1.bf16.msra.mxu0 0
    %1172 = vmatprep.subr.bf16.mxu0 0
    %1173 = vmatpush1.bf16.msra.mxu0 0
    %1174 = vmatprep.subr.bf16.mxu0 0
    %1175 = vmatpush1.bf16.msra.mxu0 0
    %1176 = vmatprep.subr.bf16.mxu0 0
    %1177 = vmatpush1.bf16.msra.mxu0 0
    %1178 = vmatprep.subr.bf16.mxu0 0
    %1179 = vmatpush1.bf16.msra.mxu0 0
    %1180 = vmatprep.subr.bf16.mxu0 0
    %1181 = vmatpush1.bf16.msra.mxu0 0
    %1182 = vmatprep.subr.bf16.mxu0 0
    %1183 = vmatpush1.bf16.msra.mxu0 0
    %1184 = vmatprep.subr.bf16.mxu0 0
    %1185 = vmatpush1.bf16.msra.mxu0 0
    %1186 = vmatprep.subr.bf16.mxu0 0
    %1187 = vmatpush1.bf16.msra.mxu0 0
    %1188 = vmatprep.subr.bf16.mxu0 0
    %1189 = vmatpush1.bf16.msra.mxu0 0
    %1190 = vmatprep.subr.bf16.mxu0 0
    %1191 = vmatpush1.bf16.msra.mxu0 0
    %1192 = vmatprep.subr.bf16.mxu0 0
    %1193 = vmatpush1.bf16.msra.mxu0 0
    %1194 = vmatprep.subr.bf16.mxu0 0
    %1195 = vmatpush1.bf16.msra.mxu0 0
    %1196 = vmatprep.mubr.bf16.mxu0 0
    %1197 = vmatmul.mubr.bf16.gmra.mrb[0].mxu0 %v1158
    %v1198 = vpop.f32.mrb[0].mxu0
    %v1199 = vadd.f32 0.0, %v1198
    %v1200 = vpop.f32.mrb[0].mxu0
    %v1201 = vpop.f32.mrb[0].mxu0
    %v1202 = vpop.f32.mrb[0].mxu0
    %1203 = vdwg.mxu0
    %v1205 = vsel %vm1132, %v1156, 0
    %v1208 = vsel %vm1160, %v1000, 0
    %1210 = vmatprep.subr.bf16.mxu0 0
    %1211 = vmatpush1.bf16.msra.mxu0 %v1208
    %1212 = vmatprep.subr.bf16.mxu0 0
    %1213 = vmatpush1.bf16.msra.mxu0 0
    %1214 = vmatprep.subr.bf16.mxu0 0
    %1215 = vmatpush1.bf16.msra.mxu0 0
    %1216 = vmatprep.subr.bf16.mxu0 0
    %1217 = vmatpush1.bf16.msra.mxu0 0
    %1218 = vmatprep.subr.bf16.mxu0 0
    %1219 = vmatpush1.bf16.msra.mxu0 0
    %1220 = vmatprep.subr.bf16.mxu0 0
    %1221 = vmatpush1.bf16.msra.mxu0 0
    %1222 = vmatprep.subr.bf16.mxu0 0
    %1223 = vmatpush1.bf16.msra.mxu0 0
    %1224 = vmatprep.subr.bf16.mxu0 0
    %1225 = vmatpush1.bf16.msra.mxu0 0
    %1226 = vmatprep.subr.bf16.mxu0 0
    %1227 = vmatpush1.bf16.msra.mxu0 0
    %1228 = vmatprep.subr.bf16.mxu0 0
    %1229 = vmatpush1.bf16.msra.mxu0 0
    %1230 = vmatprep.subr.bf16.mxu0 0
    %1231 = vmatpush1.bf16.msra.mxu0 0
    %1232 = vmatprep.subr.bf16.mxu0 0
    %1233 = vmatpush1.bf16.msra.mxu0 0
    %1234 = vmatprep.subr.bf16.mxu0 0
    %1235 = vmatpush1.bf16.msra.mxu0 0
    %1236 = vmatprep.subr.bf16.mxu0 0
    %1237 = vmatpush1.bf16.msra.mxu0 0
    %1238 = vmatprep.subr.bf16.mxu0 0
    %1239 = vmatpush1.bf16.msra.mxu0 0
    %1240 = vmatprep.subr.bf16.mxu0 0
    %1241 = vmatpush1.bf16.msra.mxu0 0
    %1242 = vmatprep.mubr.bf16.mxu0 0
    %1243 = vmatmul.mubr.bf16.gmra.mrb[0].mxu0 %v1205
    %v1244 = vpop.f32.mrb[0].mxu0
    %v1245 = vadd.f32 0.0, %v1244
    %v1246 = vpop.f32.mrb[0].mxu0
    %v1247 = vpop.f32.mrb[0].mxu0
    %v1248 = vpop.f32.mrb[0].mxu0
    %1249 = vdwg.mxu0
    %1250 = vrot.lane.b32.xlu0 %v997, 112
    %v1251 = vpop.permute.xlu0 %1250
    %1252 = vrot.lane.b32.xlu0 %v997, 48
    %v1253 = vpop.permute.xlu0 %1252
    %v1255 = vsel %vm729, %v1251, 0
    %v1258 = vsel %vm729, %v1253, 0
    %1260 = vmatprep.subr.bf16.mxu0 0
    %1261 = vmatpush1.bf16.xpose.msra.mxu0 %v1258
    %1262 = vmatprep.subr.bf16.mxu0 0
    %1263 = vmatpush1.bf16.xpose.msra.mxu0 0
    %1264 = vmatprep.subr.bf16.mxu0 0
    %1265 = vmatpush1.bf16.xpose.msra.mxu0 0
    %1266 = vmatprep.subr.bf16.mxu0 0
    %1267 = vmatpush1.bf16.xpose.msra.mxu0 0
    %1268 = vmatprep.subr.bf16.mxu0 0
    %1269 = vmatpush1.bf16.xpose.msra.mxu0 0
    %1270 = vmatprep.subr.bf16.mxu0 0
    %1271 = vmatpush1.bf16.xpose.msra.mxu0 0
    %1272 = vmatprep.subr.bf16.mxu0 0
    %1273 = vmatpush1.bf16.xpose.msra.mxu0 0
    %1274 = vmatprep.subr.bf16.mxu0 0
    %1275 = vmatpush1.bf16.xpose.msra.mxu0 0
    %1276 = vmatprep.subr.bf16.mxu0 0
    %1277 = vmatpush1.bf16.xpose.msra.mxu0 0
    %1278 = vmatprep.subr.bf16.mxu0 0
    %1279 = vmatpush1.bf16.xpose.msra.mxu0 0
    %1280 = vmatprep.subr.bf16.mxu0 0
    %1281 = vmatpush1.bf16.xpose.msra.mxu0 0
    %1282 = vmatprep.subr.bf16.mxu0 0
    %1283 = vmatpush1.bf16.xpose.msra.mxu0 0
    %1284 = vmatprep.subr.bf16.mxu0 0
    %1285 = vmatpush1.bf16.xpose.msra.mxu0 0
    %1286 = vmatprep.subr.bf16.mxu0 0
    %1287 = vmatpush1.bf16.xpose.msra.mxu0 0
    %1288 = vmatprep.subr.bf16.mxu0 0
    %1289 = vmatpush1.bf16.xpose.msra.mxu0 0
    %1290 = vmatprep.subr.bf16.mxu0 0
    %1291 = vmatpush1.bf16.xpose.msra.mxu0 0
    %1292 = vmatprep.mubr.bf16.mxu0 0
    %1293 = vmatmul.mubr.bf16.gmra.mrb[0].mxu0 %v1255
    %v1294 = vpop.f32.mrb[0].mxu0
    %v1295 = vadd.f32 %v1027, %v1294
    %v1296 = vpop.f32.mrb[0].mxu0
    %v1297 = vpop.f32.mrb[0].mxu0
    %v1298 = vpop.f32.mrb[0].mxu0
    %1299 = vdwg.mxu0
    %1300 = vrot.lane.b32.xlu0 %v998, 112
    %v1301 = vpop.permute.xlu0 %1300
    %1302 = vrot.lane.b32.xlu0 %v998, 48
    %v1303 = vpop.permute.xlu0 %1302
    %v1305 = vsel %vm729, %v1301, 0
    %v1308 = vsel %vm729, %v1303, 0
    %1310 = vmatprep.subr.bf16.mxu0 0
    %1311 = vmatpush1.bf16.xpose.msra.mxu0 %v1308
    %1312 = vmatprep.subr.bf16.mxu0 0
    %1313 = vmatpush1.bf16.xpose.msra.mxu0 0
    %1314 = vmatprep.subr.bf16.mxu0 0
    %1315 = vmatpush1.bf16.xpose.msra.mxu0 0
    %1316 = vmatprep.subr.bf16.mxu0 0
    %1317 = vmatpush1.bf16.xpose.msra.mxu0 0
    %1318 = vmatprep.subr.bf16.mxu0 0
    %1319 = vmatpush1.bf16.xpose.msra.mxu0 0
    %1320 = vmatprep.subr.bf16.mxu0 0
    %1321 = vmatpush1.bf16.xpose.msra.mxu0 0
    %1322 = vmatprep.subr.bf16.mxu0 0
    %1323 = vmatpush1.bf16.xpose.msra.mxu0 0
    %1324 = vmatprep.subr.bf16.mxu0 0
    %1325 = vmatpush1.bf16.xpose.msra.mxu0 0
    %1326 = vmatprep.subr.bf16.mxu0 0
    %1327 = vmatpush1.bf16.xpose.msra.mxu0 0
    %1328 = vmatprep.subr.bf16.mxu0 0
    %1329 = vmatpush1.bf16.xpose.msra.mxu0 0
    %1330 = vmatprep.subr.bf16.mxu0 0
    %1331 = vmatpush1.bf16.xpose.msra.mxu0 0
    %1332 = vmatprep.subr.bf16.mxu0 0
    %1333 = vmatpush1.bf16.xpose.msra.mxu0 0
    %1334 = vmatprep.subr.bf16.mxu0 0
    %1335 = vmatpush1.bf16.xpose.msra.mxu0 0
    %1336 = vmatprep.subr.bf16.mxu0 0
    %1337 = vmatpush1.bf16.xpose.msra.mxu0 0
    %1338 = vmatprep.subr.bf16.mxu0 0
    %1339 = vmatpush1.bf16.xpose.msra.mxu0 0
    %1340 = vmatprep.subr.bf16.mxu0 0
    %1341 = vmatpush1.bf16.xpose.msra.mxu0 0
    %1342 = vmatprep.mubr.bf16.mxu0 0
    %1343 = vmatmul.mubr.bf16.gmra.mrb[0].mxu0 %v1305
    %v1344 = vpop.f32.mrb[0].mxu0
    %v1345 = vadd.f32 %v1031, %v1344
    %v1346 = vpop.f32.mrb[0].mxu0
    %v1347 = vpop.f32.mrb[0].mxu0
    %v1348 = vpop.f32.mrb[0].mxu0
    %1349 = vdwg.mxu0
    %v1350 = vsel %vm1132, %v1295, -inf
    %1351 = vmax.xlane.f32.xlu0 %v1350
    %v1352 = vpop.xlane.xlu0 %1351
    %v1353 = vsel %vm1132, %v1345, -inf
    %1354 = vmax.xlane.f32.xlu0 %v1353
    %v1355 = vpop.xlane.xlu0 %1354
    %v1356 = vsub.f32 %v1295, %v1352
    %v1357 = vsub.f32 %v1345, %v1355
    %v1358 = vmul.f32 %v1356, 1.442695
    %v1359 = vpow.pop %v1358
    %v1360 = vmul.f32 %v1357, 1.442695
    %v1361 = vpow.pop %v1360
    %v1362 = vsel %vm1132, %v1359, 0.0
    %1363 = vadd.xlane.f32.xlu0 %v1362
    %v1364 = vpop.xlane.xlu0 %1363
    %v1365 = vsel %vm1132, %v1361, 0.0
    %1366 = vadd.xlane.f32.xlu0 %v1365
    %v1367 = vpop.xlane.xlu0 %1366
    %v1368 = vrcp.pop %v1364
    %v1369 = vrcp.pop %v1367
    %v1370 = vmul.f32 %v1359, %v1368
    %v1371 = vmul.f32 %v1361, %v1369
    %v1372 = vpack.c.bf16 %v1370, %v1370
    %v1373 = vpack.c.bf16 %v1371, %v1371
    %1375 = vrot.lane.b32.xlu0 %v999, 112
    %v1376 = vpop.permute.xlu0 %1375
    %v1378 = vsel %vm1132, %v1372, 0
    %v1381 = vsel %vm1160, %v1376, 0
    %1383 = vmatprep.subr.bf16.mxu0 0
    %1384 = vmatpush1.bf16.msra.mxu0 %v1381
    %1385 = vmatprep.subr.bf16.mxu0 0
    %1386 = vmatpush1.bf16.msra.mxu0 0
    %1387 = vmatprep.subr.bf16.mxu0 0
    %1388 = vmatpush1.bf16.msra.mxu0 0
    %1389 = vmatprep.subr.bf16.mxu0 0
    %1390 = vmatpush1.bf16.msra.mxu0 0
    %1391 = vmatprep.subr.bf16.mxu0 0
    %1392 = vmatpush1.bf16.msra.mxu0 0
    %1393 = vmatprep.subr.bf16.mxu0 0
    %1394 = vmatpush1.bf16.msra.mxu0 0
    %1395 = vmatprep.subr.bf16.mxu0 0
    %1396 = vmatpush1.bf16.msra.mxu0 0
    %1397 = vmatprep.subr.bf16.mxu0 0
    %1398 = vmatpush1.bf16.msra.mxu0 0
    %1399 = vmatprep.subr.bf16.mxu0 0
    %1400 = vmatpush1.bf16.msra.mxu0 0
    %1401 = vmatprep.subr.bf16.mxu0 0
    %1402 = vmatpush1.bf16.msra.mxu0 0
    %1403 = vmatprep.subr.bf16.mxu0 0
    %1404 = vmatpush1.bf16.msra.mxu0 0
    %1405 = vmatprep.subr.bf16.mxu0 0
    %1406 = vmatpush1.bf16.msra.mxu0 0
    %1407 = vmatprep.subr.bf16.mxu0 0
    %1408 = vmatpush1.bf16.msra.mxu0 0
    %1409 = vmatprep.subr.bf16.mxu0 0
    %1410 = vmatpush1.bf16.msra.mxu0 0
    %1411 = vmatprep.subr.bf16.mxu0 0
    %1412 = vmatpush1.bf16.msra.mxu0 0
    %1413 = vmatprep.subr.bf16.mxu0 0
    %1414 = vmatpush1.bf16.msra.mxu0 0
    %1415 = vmatprep.mubr.bf16.mxu0 0
    %1416 = vmatmul.mubr.bf16.gmra.mrb[0].mxu0 %v1378
    %v1417 = vpop.f32.mrb[0].mxu0
    %v1418 = vadd.f32 0.0, %v1417
    %v1419 = vpop.f32.mrb[0].mxu0
    %v1420 = vpop.f32.mrb[0].mxu0
    %v1421 = vpop.f32.mrb[0].mxu0
    %1422 = vdwg.mxu0
    %1424 = vrot.lane.b32.xlu0 %v1000, 112
    %v1425 = vpop.permute.xlu0 %1424
    %v1427 = vsel %vm1132, %v1373, 0
    %v1430 = vsel %vm1160, %v1425, 0
    %1432 = vmatprep.subr.bf16.mxu0 0
    %1433 = vmatpush1.bf16.msra.mxu0 %v1430
    %1434 = vmatprep.subr.bf16.mxu0 0
    %1435 = vmatpush1.bf16.msra.mxu0 0
    %1436 = vmatprep.subr.bf16.mxu0 0
    %1437 = vmatpush1.bf16.msra.mxu0 0
    %1438 = vmatprep.subr.bf16.mxu0 0
    %1439 = vmatpush1.bf16.msra.mxu0 0
    %1440 = vmatprep.subr.bf16.mxu0 0
    %1441 = vmatpush1.bf16.msra.mxu0 0
    %1442 = vmatprep.subr.bf16.mxu0 0
    %1443 = vmatpush1.bf16.msra.mxu0 0
    %1444 = vmatprep.subr.bf16.mxu0 0
    %1445 = vmatpush1.bf16.msra.mxu0 0
    %1446 = vmatprep.subr.bf16.mxu0 0
    %1447 = vmatpush1.bf16.msra.mxu0 0
    %1448 = vmatprep.subr.bf16.mxu0 0
    %1449 = vmatpush1.bf16.msra.mxu0 0
    %1450 = vmatprep.subr.bf16.mxu0 0
    %1451 = vmatpush1.bf16.msra.mxu0 0
    %1452 = vmatprep.subr.bf16.mxu0 0
    %1453 = vmatpush1.bf16.msra.mxu0 0
    %1454 = vmatprep.subr.bf16.mxu0 0
    %1455 = vmatpush1.bf16.msra.mxu0 0
    %1456 = vmatprep.subr.bf16.mxu0 0
    %1457 = vmatpush1.bf16.msra.mxu0 0
    %1458 = vmatprep.subr.bf16.mxu0 0
    %1459 = vmatpush1.bf16.msra.mxu0 0
    %1460 = vmatprep.subr.bf16.mxu0 0
    %1461 = vmatpush1.bf16.msra.mxu0 0
    %1462 = vmatprep.subr.bf16.mxu0 0
    %1463 = vmatpush1.bf16.msra.mxu0 0
    %1464 = vmatprep.mubr.bf16.mxu0 0
    %1465 = vmatmul.mubr.bf16.gmra.mrb[0].mxu0 %v1427
    %v1466 = vpop.f32.mrb[0].mxu0
    %v1467 = vadd.f32 0.0, %v1466
    %v1468 = vpop.f32.mrb[0].mxu0
    %v1469 = vpop.f32.mrb[0].mxu0
    %v1470 = vpop.f32.mrb[0].mxu0
    %1471 = vdwg.mxu0
    %1472 = vrot.lane.b32.xlu0 %v997, 96
    %v1473 = vpop.permute.xlu0 %1472
    %1474 = vrot.lane.b32.xlu0 %v997, 32
    %v1475 = vpop.permute.xlu0 %1474
    %v1477 = vsel %vm729, %v1473, 0
    %v1480 = vsel %vm729, %v1475, 0
    %1482 = vmatprep.subr.bf16.mxu0 0
    %1483 = vmatpush1.bf16.xpose.msra.mxu0 %v1480
    %1484 = vmatprep.subr.bf16.mxu0 0
    %1485 = vmatpush1.bf16.xpose.msra.mxu0 0
    %1486 = vmatprep.subr.bf16.mxu0 0
    %1487 = vmatpush1.bf16.xpose.msra.mxu0 0
    %1488 = vmatprep.subr.bf16.mxu0 0
    %1489 = vmatpush1.bf16.xpose.msra.mxu0 0
    %1490 = vmatprep.subr.bf16.mxu0 0
    %1491 = vmatpush1.bf16.xpose.msra.mxu0 0
    %1492 = vmatprep.subr.bf16.mxu0 0
    %1493 = vmatpush1.bf16.xpose.msra.mxu0 0
    %1494 = vmatprep.subr.bf16.mxu0 0
    %1495 = vmatpush1.bf16.xpose.msra.mxu0 0
    %1496 = vmatprep.subr.bf16.mxu0 0
    %1497 = vmatpush1.bf16.xpose.msra.mxu0 0
    %1498 = vmatprep.subr.bf16.mxu0 0
    %1499 = vmatpush1.bf16.xpose.msra.mxu0 0
    %1500 = vmatprep.subr.bf16.mxu0 0
    %1501 = vmatpush1.bf16.xpose.msra.mxu0 0
    %1502 = vmatprep.subr.bf16.mxu0 0
    %1503 = vmatpush1.bf16.xpose.msra.mxu0 0
    %1504 = vmatprep.subr.bf16.mxu0 0
    %1505 = vmatpush1.bf16.xpose.msra.mxu0 0
    %1506 = vmatprep.subr.bf16.mxu0 0
    %1507 = vmatpush1.bf16.xpose.msra.mxu0 0
    %1508 = vmatprep.subr.bf16.mxu0 0
    %1509 = vmatpush1.bf16.xpose.msra.mxu0 0
    %1510 = vmatprep.subr.bf16.mxu0 0
    %1511 = vmatpush1.bf16.xpose.msra.mxu0 0
    %1512 = vmatprep.subr.bf16.mxu0 0
    %1513 = vmatpush1.bf16.xpose.msra.mxu0 0
    %1514 = vmatprep.mubr.bf16.mxu0 0
    %1515 = vmatmul.mubr.bf16.gmra.mrb[0].mxu0 %v1477
    %v1516 = vpop.f32.mrb[0].mxu0
    %v1517 = vadd.f32 %v1027, %v1516
    %v1518 = vpop.f32.mrb[0].mxu0
    %v1519 = vpop.f32.mrb[0].mxu0
    %v1520 = vpop.f32.mrb[0].mxu0
    %1521 = vdwg.mxu0
    %1522 = vrot.lane.b32.xlu0 %v998, 96
    %v1523 = vpop.permute.xlu0 %1522
    %1524 = vrot.lane.b32.xlu0 %v998, 32
    %v1525 = vpop.permute.xlu0 %1524
    %v1527 = vsel %vm729, %v1523, 0
    %v1530 = vsel %vm729, %v1525, 0
    %1532 = vmatprep.subr.bf16.mxu0 0
    %1533 = vmatpush1.bf16.xpose.msra.mxu0 %v1530
    %1534 = vmatprep.subr.bf16.mxu0 0
    %1535 = vmatpush1.bf16.xpose.msra.mxu0 0
    %1536 = vmatprep.subr.bf16.mxu0 0
    %1537 = vmatpush1.bf16.xpose.msra.mxu0 0
    %1538 = vmatprep.subr.bf16.mxu0 0
    %1539 = vmatpush1.bf16.xpose.msra.mxu0 0
    %1540 = vmatprep.subr.bf16.mxu0 0
    %1541 = vmatpush1.bf16.xpose.msra.mxu0 0
    %1542 = vmatprep.subr.bf16.mxu0 0
    %1543 = vmatpush1.bf16.xpose.msra.mxu0 0
    %1544 = vmatprep.subr.bf16.mxu0 0
    %1545 = vmatpush1.bf16.xpose.msra.mxu0 0
    %1546 = vmatprep.subr.bf16.mxu0 0
    %1547 = vmatpush1.bf16.xpose.msra.mxu0 0
    %1548 = vmatprep.subr.bf16.mxu0 0
    %1549 = vmatpush1.bf16.xpose.msra.mxu0 0
    %1550 = vmatprep.subr.bf16.mxu0 0
    %1551 = vmatpush1.bf16.xpose.msra.mxu0 0
    %1552 = vmatprep.subr.bf16.mxu0 0
    %1553 = vmatpush1.bf16.xpose.msra.mxu0 0
    %1554 = vmatprep.subr.bf16.mxu0 0
    %1555 = vmatpush1.bf16.xpose.msra.mxu0 0
    %1556 = vmatprep.subr.bf16.mxu0 0
    %1557 = vmatpush1.bf16.xpose.msra.mxu0 0
    %1558 = vmatprep.subr.bf16.mxu0 0
    %1559 = vmatpush1.bf16.xpose.msra.mxu0 0
    %1560 = vmatprep.subr.bf16.mxu0 0
    %1561 = vmatpush1.bf16.xpose.msra.mxu0 0
    %1562 = vmatprep.subr.bf16.mxu0 0
    %1563 = vmatpush1.bf16.xpose.msra.mxu0 0
    %1564 = vmatprep.mubr.bf16.mxu0 0
    %1565 = vmatmul.mubr.bf16.gmra.mrb[0].mxu0 %v1527
    %v1566 = vpop.f32.mrb[0].mxu0
    %v1567 = vadd.f32 %v1031, %v1566
    %v1568 = vpop.f32.mrb[0].mxu0
    %v1569 = vpop.f32.mrb[0].mxu0
    %v1570 = vpop.f32.mrb[0].mxu0
    %1571 = vdwg.mxu0
    %v1572 = vsel %vm1132, %v1517, -inf
    %1573 = vmax.xlane.f32.xlu0 %v1572
    %v1574 = vpop.xlane.xlu0 %1573
    %v1575 = vsel %vm1132, %v1567, -inf
    %1576 = vmax.xlane.f32.xlu0 %v1575
    %v1577 = vpop.xlane.xlu0 %1576
    %v1578 = vsub.f32 %v1517, %v1574
    %v1579 = vsub.f32 %v1567, %v1577
    %v1580 = vmul.f32 %v1578, 1.442695
    %v1581 = vpow.pop %v1580
    %v1582 = vmul.f32 %v1579, 1.442695
    %v1583 = vpow.pop %v1582
    %v1584 = vsel %vm1132, %v1581, 0.0
    %1585 = vadd.xlane.f32.xlu0 %v1584
    %v1586 = vpop.xlane.xlu0 %1585
    %v1587 = vsel %vm1132, %v1583, 0.0
    %1588 = vadd.xlane.f32.xlu0 %v1587
    %v1589 = vpop.xlane.xlu0 %1588
    %v1590 = vrcp.pop %v1586
    %v1591 = vrcp.pop %v1589
    %v1592 = vmul.f32 %v1581, %v1590
    %v1593 = vmul.f32 %v1583, %v1591
    %v1594 = vpack.c.bf16 %v1592, %v1592
    %v1595 = vpack.c.bf16 %v1593, %v1593
    %1596 = vrot.lane.b32.xlu0 %v999, 96
    %v1597 = vpop.permute.xlu0 %1596
    %v1599 = vsel %vm1132, %v1594, 0
    %v1602 = vsel %vm1160, %v1597, 0
    %1604 = vmatprep.subr.bf16.mxu0 0
    %1605 = vmatpush1.bf16.msra.mxu0 %v1602
    %1606 = vmatprep.subr.bf16.mxu0 0
    %1607 = vmatpush1.bf16.msra.mxu0 0
    %1608 = vmatprep.subr.bf16.mxu0 0
    %1609 = vmatpush1.bf16.msra.mxu0 0
    %1610 = vmatprep.subr.bf16.mxu0 0
    %1611 = vmatpush1.bf16.msra.mxu0 0
    %1612 = vmatprep.subr.bf16.mxu0 0
    %1613 = vmatpush1.bf16.msra.mxu0 0
    %1614 = vmatprep.subr.bf16.mxu0 0
    %1615 = vmatpush1.bf16.msra.mxu0 0
    %1616 = vmatprep.subr.bf16.mxu0 0
    %1617 = vmatpush1.bf16.msra.mxu0 0
    %1618 = vmatprep.subr.bf16.mxu0 0
    %1619 = vmatpush1.bf16.msra.mxu0 0
    %1620 = vmatprep.subr.bf16.mxu0 0
    %1621 = vmatpush1.bf16.msra.mxu0 0
    %1622 = vmatprep.subr.bf16.mxu0 0
    %1623 = vmatpush1.bf16.msra.mxu0 0
    %1624 = vmatprep.subr.bf16.mxu0 0
    %1625 = vmatpush1.bf16.msra.mxu0 0
    %1626 = vmatprep.subr.bf16.mxu0 0
    %1627 = vmatpush1.bf16.msra.mxu0 0
    %1628 = vmatprep.subr.bf16.mxu0 0
    %1629 = vmatpush1.bf16.msra.mxu0 0
    %1630 = vmatprep.subr.bf16.mxu0 0
    %1631 = vmatpush1.bf16.msra.mxu0 0
    %1632 = vmatprep.subr.bf16.mxu0 0
    %1633 = vmatpush1.bf16.msra.mxu0 0
    %1634 = vmatprep.subr.bf16.mxu0 0
    %1635 = vmatpush1.bf16.msra.mxu0 0
    %1636 = vmatprep.mubr.bf16.mxu0 0
    %1637 = vmatmul.mubr.bf16.gmra.mrb[0].mxu0 %v1599
    %v1638 = vpop.f32.mrb[0].mxu0
    %v1639 = vadd.f32 0.0, %v1638
    %v1640 = vpop.f32.mrb[0].mxu0
    %v1641 = vpop.f32.mrb[0].mxu0
    %v1642 = vpop.f32.mrb[0].mxu0
    %1643 = vdwg.mxu0
    %1644 = vrot.lane.b32.xlu0 %v1000, 96
    %v1645 = vpop.permute.xlu0 %1644
    %v1647 = vsel %vm1132, %v1595, 0
    %v1650 = vsel %vm1160, %v1645, 0
    %1652 = vmatprep.subr.bf16.mxu0 0
    %1653 = vmatpush1.bf16.msra.mxu0 %v1650
    %1654 = vmatprep.subr.bf16.mxu0 0
    %1655 = vmatpush1.bf16.msra.mxu0 0
    %1656 = vmatprep.subr.bf16.mxu0 0
    %1657 = vmatpush1.bf16.msra.mxu0 0
    %1658 = vmatprep.subr.bf16.mxu0 0
    %1659 = vmatpush1.bf16.msra.mxu0 0
    %1660 = vmatprep.subr.bf16.mxu0 0
    %1661 = vmatpush1.bf16.msra.mxu0 0
    %1662 = vmatprep.subr.bf16.mxu0 0
    %1663 = vmatpush1.bf16.msra.mxu0 0
    %1664 = vmatprep.subr.bf16.mxu0 0
    %1665 = vmatpush1.bf16.msra.mxu0 0
    %1666 = vmatprep.subr.bf16.mxu0 0
    %1667 = vmatpush1.bf16.msra.mxu0 0
    %1668 = vmatprep.subr.bf16.mxu0 0
    %1669 = vmatpush1.bf16.msra.mxu0 0
    %1670 = vmatprep.subr.bf16.mxu0 0
    %1671 = vmatpush1.bf16.msra.mxu0 0
    %1672 = vmatprep.subr.bf16.mxu0 0
    %1673 = vmatpush1.bf16.msra.mxu0 0
    %1674 = vmatprep.subr.bf16.mxu0 0
    %1675 = vmatpush1.bf16.msra.mxu0 0
    %1676 = vmatprep.subr.bf16.mxu0 0
    %1677 = vmatpush1.bf16.msra.mxu0 0
    %1678 = vmatprep.subr.bf16.mxu0 0
    %1679 = vmatpush1.bf16.msra.mxu0 0
    %1680 = vmatprep.subr.bf16.mxu0 0
    %1681 = vmatpush1.bf16.msra.mxu0 0
    %1682 = vmatprep.subr.bf16.mxu0 0
    %1683 = vmatpush1.bf16.msra.mxu0 0
    %1684 = vmatprep.mubr.bf16.mxu0 0
    %1685 = vmatmul.mubr.bf16.gmra.mrb[0].mxu0 %v1647
    %v1686 = vpop.f32.mrb[0].mxu0
    %v1687 = vadd.f32 0.0, %v1686
    %v1688 = vpop.f32.mrb[0].mxu0
    %v1689 = vpop.f32.mrb[0].mxu0
    %v1690 = vpop.f32.mrb[0].mxu0
    %1691 = vdwg.mxu0
    %1692 = vrot.lane.b32.xlu0 %v997, 80
    %v1693 = vpop.permute.xlu0 %1692
    %1694 = vrot.lane.b32.xlu0 %v997, 16
    %v1695 = vpop.permute.xlu0 %1694
    %v1697 = vsel %vm729, %v1693, 0
    %v1700 = vsel %vm729, %v1695, 0
    %1702 = vmatprep.subr.bf16.mxu0 0
    %1703 = vmatpush1.bf16.xpose.msra.mxu0 %v1700
    %1704 = vmatprep.subr.bf16.mxu0 0
    %1705 = vmatpush1.bf16.xpose.msra.mxu0 0
    %1706 = vmatprep.subr.bf16.mxu0 0
    %1707 = vmatpush1.bf16.xpose.msra.mxu0 0
    %1708 = vmatprep.subr.bf16.mxu0 0
    %1709 = vmatpush1.bf16.xpose.msra.mxu0 0
    %1710 = vmatprep.subr.bf16.mxu0 0
    %1711 = vmatpush1.bf16.xpose.msra.mxu0 0
    %1712 = vmatprep.subr.bf16.mxu0 0
    %1713 = vmatpush1.bf16.xpose.msra.mxu0 0
    %1714 = vmatprep.subr.bf16.mxu0 0
    %1715 = vmatpush1.bf16.xpose.msra.mxu0 0
    %1716 = vmatprep.subr.bf16.mxu0 0
    %1717 = vmatpush1.bf16.xpose.msra.mxu0 0
    %1718 = vmatprep.subr.bf16.mxu0 0
    %1719 = vmatpush1.bf16.xpose.msra.mxu0 0
    %1720 = vmatprep.subr.bf16.mxu0 0
    %1721 = vmatpush1.bf16.xpose.msra.mxu0 0
    %1722 = vmatprep.subr.bf16.mxu0 0
    %1723 = vmatpush1.bf16.xpose.msra.mxu0 0
    %1724 = vmatprep.subr.bf16.mxu0 0
    %1725 = vmatpush1.bf16.xpose.msra.mxu0 0
    %1726 = vmatprep.subr.bf16.mxu0 0
    %1727 = vmatpush1.bf16.xpose.msra.mxu0 0
    %1728 = vmatprep.subr.bf16.mxu0 0
    %1729 = vmatpush1.bf16.xpose.msra.mxu0 0
    %1730 = vmatprep.subr.bf16.mxu0 0
    %1731 = vmatpush1.bf16.xpose.msra.mxu0 0
    %1732 = vmatprep.subr.bf16.mxu0 0
    %1733 = vmatpush1.bf16.xpose.msra.mxu0 0
    %1734 = vmatprep.mubr.bf16.mxu0 0
    %1735 = vmatmul.mubr.bf16.gmra.mrb[0].mxu0 %v1697
    %v1736 = vpop.f32.mrb[0].mxu0
    %v1737 = vadd.f32 %v1027, %v1736
    %v1738 = vpop.f32.mrb[0].mxu0
    %v1739 = vpop.f32.mrb[0].mxu0
    %v1740 = vpop.f32.mrb[0].mxu0
    %1741 = vdwg.mxu0
    %1742 = vrot.lane.b32.xlu0 %v998, 80
    %v1743 = vpop.permute.xlu0 %1742
    %1744 = vrot.lane.b32.xlu0 %v998, 16
    %v1745 = vpop.permute.xlu0 %1744
    %v1747 = vsel %vm729, %v1743, 0
    %v1750 = vsel %vm729, %v1745, 0
    %1752 = vmatprep.subr.bf16.mxu0 0
    %1753 = vmatpush1.bf16.xpose.msra.mxu0 %v1750
    %1754 = vmatprep.subr.bf16.mxu0 0
    %1755 = vmatpush1.bf16.xpose.msra.mxu0 0
    %1756 = vmatprep.subr.bf16.mxu0 0
    %1757 = vmatpush1.bf16.xpose.msra.mxu0 0
    %1758 = vmatprep.subr.bf16.mxu0 0
    %1759 = vmatpush1.bf16.xpose.msra.mxu0 0
    %1760 = vmatprep.subr.bf16.mxu0 0
    %1761 = vmatpush1.bf16.xpose.msra.mxu0 0
    %1762 = vmatprep.subr.bf16.mxu0 0
    %1763 = vmatpush1.bf16.xpose.msra.mxu0 0
    %1764 = vmatprep.subr.bf16.mxu0 0
    %1765 = vmatpush1.bf16.xpose.msra.mxu0 0
    %1766 = vmatprep.subr.bf16.mxu0 0
    %1767 = vmatpush1.bf16.xpose.msra.mxu0 0
    %1768 = vmatprep.subr.bf16.mxu0 0
    %1769 = vmatpush1.bf16.xpose.msra.mxu0 0
    %1770 = vmatprep.subr.bf16.mxu0 0
    %1771 = vmatpush1.bf16.xpose.msra.mxu0 0
    %1772 = vmatprep.subr.bf16.mxu0 0
    %1773 = vmatpush1.bf16.xpose.msra.mxu0 0
    %1774 = vmatprep.subr.bf16.mxu0 0
    %1775 = vmatpush1.bf16.xpose.msra.mxu0 0
    %1776 = vmatprep.subr.bf16.mxu0 0
    %1777 = vmatpush1.bf16.xpose.msra.mxu0 0
    %1778 = vmatprep.subr.bf16.mxu0 0
    %1779 = vmatpush1.bf16.xpose.msra.mxu0 0
    %1780 = vmatprep.subr.bf16.mxu0 0
    %1781 = vmatpush1.bf16.xpose.msra.mxu0 0
    %1782 = vmatprep.subr.bf16.mxu0 0
    %1783 = vmatpush1.bf16.xpose.msra.mxu0 0
    %1784 = vmatprep.mubr.bf16.mxu0 0
    %1785 = vmatmul.mubr.bf16.gmra.mrb[0].mxu0 %v1747
    %v1786 = vpop.f32.mrb[0].mxu0
    %v1787 = vadd.f32 %v1031, %v1786
    %v1788 = vpop.f32.mrb[0].mxu0
    %v1789 = vpop.f32.mrb[0].mxu0
    %v1790 = vpop.f32.mrb[0].mxu0
    %1791 = vdwg.mxu0
    %v1792 = vsel %vm1132, %v1737, -inf
    %1793 = vmax.xlane.f32.xlu0 %v1792
    %v1794 = vpop.xlane.xlu0 %1793
    %v1795 = vsel %vm1132, %v1787, -inf
    %1796 = vmax.xlane.f32.xlu0 %v1795
    %v1797 = vpop.xlane.xlu0 %1796
    %v1798 = vsub.f32 %v1737, %v1794
    %v1799 = vsub.f32 %v1787, %v1797
    %v1800 = vmul.f32 %v1798, 1.442695
    %v1801 = vpow.pop %v1800
    %v1802 = vmul.f32 %v1799, 1.442695
    %v1803 = vpow.pop %v1802
    %v1804 = vsel %vm1132, %v1801, 0.0
    %1805 = vadd.xlane.f32.xlu0 %v1804
    %v1806 = vpop.xlane.xlu0 %1805
    %v1807 = vsel %vm1132, %v1803, 0.0
    %1808 = vadd.xlane.f32.xlu0 %v1807
    %v1809 = vpop.xlane.xlu0 %1808
    %v1810 = vrcp.pop %v1806
    %v1811 = vrcp.pop %v1809
    %v1812 = vmul.f32 %v1801, %v1810
    %v1813 = vmul.f32 %v1803, %v1811
    %v1814 = vpack.c.bf16 %v1812, %v1812
    %v1815 = vpack.c.bf16 %v1813, %v1813
    %1816 = vrot.lane.b32.xlu0 %v999, 80
    %v1817 = vpop.permute.xlu0 %1816
    %v1819 = vsel %vm1132, %v1814, 0
    %v1822 = vsel %vm1160, %v1817, 0
    %1824 = vmatprep.subr.bf16.mxu0 0
    %1825 = vmatpush1.bf16.msra.mxu0 %v1822
    %1826 = vmatprep.subr.bf16.mxu0 0
    %1827 = vmatpush1.bf16.msra.mxu0 0
    %1828 = vmatprep.subr.bf16.mxu0 0
    %1829 = vmatpush1.bf16.msra.mxu0 0
    %1830 = vmatprep.subr.bf16.mxu0 0
    %1831 = vmatpush1.bf16.msra.mxu0 0
    %1832 = vmatprep.subr.bf16.mxu0 0
    %1833 = vmatpush1.bf16.msra.mxu0 0
    %1834 = vmatprep.subr.bf16.mxu0 0
    %1835 = vmatpush1.bf16.msra.mxu0 0
    %1836 = vmatprep.subr.bf16.mxu0 0
    %1837 = vmatpush1.bf16.msra.mxu0 0
    %1838 = vmatprep.subr.bf16.mxu0 0
    %1839 = vmatpush1.bf16.msra.mxu0 0
    %1840 = vmatprep.subr.bf16.mxu0 0
    %1841 = vmatpush1.bf16.msra.mxu0 0
    %1842 = vmatprep.subr.bf16.mxu0 0
    %1843 = vmatpush1.bf16.msra.mxu0 0
    %1844 = vmatprep.subr.bf16.mxu0 0
    %1845 = vmatpush1.bf16.msra.mxu0 0
    %1846 = vmatprep.subr.bf16.mxu0 0
    %1847 = vmatpush1.bf16.msra.mxu0 0
    %1848 = vmatprep.subr.bf16.mxu0 0
    %1849 = vmatpush1.bf16.msra.mxu0 0
    %1850 = vmatprep.subr.bf16.mxu0 0
    %1851 = vmatpush1.bf16.msra.mxu0 0
    %1852 = vmatprep.subr.bf16.mxu0 0
    %1853 = vmatpush1.bf16.msra.mxu0 0
    %1854 = vmatprep.subr.bf16.mxu0 0
    %1855 = vmatpush1.bf16.msra.mxu0 0
    %1856 = vmatprep.mubr.bf16.mxu0 0
    %1857 = vmatmul.mubr.bf16.gmra.mrb[0].mxu0 %v1819
    %v1858 = vpop.f32.mrb[0].mxu0
    %v1859 = vadd.f32 0.0, %v1858
    %v1860 = vpop.f32.mrb[0].mxu0
    %v1861 = vpop.f32.mrb[0].mxu0
    %v1862 = vpop.f32.mrb[0].mxu0
    %1863 = vdwg.mxu0
    %1864 = vrot.lane.b32.xlu0 %v1000, 80
    %v1865 = vpop.permute.xlu0 %1864
    %v1867 = vsel %vm1132, %v1815, 0
    %v1870 = vsel %vm1160, %v1865, 0
    %1872 = vmatprep.subr.bf16.mxu0 0
    %1873 = vmatpush1.bf16.msra.mxu0 %v1870
    %1874 = vmatprep.subr.bf16.mxu0 0
    %1875 = vmatpush1.bf16.msra.mxu0 0
    %1876 = vmatprep.subr.bf16.mxu0 0
    %1877 = vmatpush1.bf16.msra.mxu0 0
    %1878 = vmatprep.subr.bf16.mxu0 0
    %1879 = vmatpush1.bf16.msra.mxu0 0
    %1880 = vmatprep.subr.bf16.mxu0 0
    %1881 = vmatpush1.bf16.msra.mxu0 0
    %1882 = vmatprep.subr.bf16.mxu0 0
    %1883 = vmatpush1.bf16.msra.mxu0 0
    %1884 = vmatprep.subr.bf16.mxu0 0
    %1885 = vmatpush1.bf16.msra.mxu0 0
    %1886 = vmatprep.subr.bf16.mxu0 0
    %1887 = vmatpush1.bf16.msra.mxu0 0
    %1888 = vmatprep.subr.bf16.mxu0 0
    %1889 = vmatpush1.bf16.msra.mxu0 0
    %1890 = vmatprep.subr.bf16.mxu0 0
    %1891 = vmatpush1.bf16.msra.mxu0 0
    %1892 = vmatprep.subr.bf16.mxu0 0
    %1893 = vmatpush1.bf16.msra.mxu0 0
    %1894 = vmatprep.subr.bf16.mxu0 0
    %1895 = vmatpush1.bf16.msra.mxu0 0
    %1896 = vmatprep.subr.bf16.mxu0 0
    %1897 = vmatpush1.bf16.msra.mxu0 0
    %1898 = vmatprep.subr.bf16.mxu0 0
    %1899 = vmatpush1.bf16.msra.mxu0 0
    %1900 = vmatprep.subr.bf16.mxu0 0
    %1901 = vmatpush1.bf16.msra.mxu0 0
    %1902 = vmatprep.subr.bf16.mxu0 0
    %1903 = vmatpush1.bf16.msra.mxu0 0
    %1904 = vmatprep.mubr.bf16.mxu0 0
    %1905 = vmatmul.mubr.bf16.gmra.mrb[0].mxu0 %v1867
    %v1906 = vpop.f32.mrb[0].mxu0
    %v1907 = vadd.f32 0.0, %v1906
    %v1908 = vpop.f32.mrb[0].mxu0
    %v1909 = vpop.f32.mrb[0].mxu0
    %v1910 = vpop.f32.mrb[0].mxu0
    %1911 = vdwg.mxu0
    %1914 = vrot.lane.b32.xlu0 %v1418, 16
    %v1915 = vpop.permute.xlu0 %1914
    %1916 = vrot.lane.b32.xlu0 %v1467, 16
    %v1917 = vpop.permute.xlu0 %1916
    %1922 = vrot.lane.b32.xlu0 %v1639, 32
    %v1923 = vpop.permute.xlu0 %1922
    %1924 = vrot.lane.b32.xlu0 %v1687, 32
    %v1925 = vpop.permute.xlu0 %1924
    %1930 = vrot.lane.b32.xlu0 %v1859, 48
    %v1931 = vpop.permute.xlu0 %1930
    %1932 = vrot.lane.b32.xlu0 %v1907, 48
    %v1933 = vpop.permute.xlu0 %1932
    %v1936 = vsel %vm729, %v1199, %v1915
    %v1937 = vsel %vm729, %v1245, %v1917
    %vm1938 = vcmask 261120
    %v1939 = vsel %vm1938, %v1936, %v1923
    %v1940 = vsel %vm1938, %v1937, %v1925
    %vm1941 = vcmask 392192
    %v1942 = vsel %vm1941, %v1939, %v1931
    %v1943 = vsel %vm1941, %v1940, %v1933
    %v1944 = vld [vmem:[%s29] sm:$0xf]
    %v1945 = vld [vmem:[%s29 + $0x4] sm:$0xf]
    %v1946 = vld [vmem:[%s29 + $0x8] sm:$0xf]
    %v1947 = vld [vmem:[%s29 + $0xc] sm:$0xf]
    %v1948 = vld [vmem:[%s29 + $0x10] sm:$0xf]
    %v1949 = vld [vmem:[%s29 + $0x14] sm:$0xf]
    %v1950 = vld [vmem:[%s29 + $0x18] sm:$0xf]
    %v1951 = vld [vmem:[%s29 + $0x1c] sm:$0xf]
    %v1952 = vld [vmem:[%s27] sm:$0x1]
    %v1953 = vpack.c.bf16 %v1943, %v1942
    %v1955 = vlaneseq
    %v1956 = vshrl.u32 %v1955, 7
    %v1957 = vsub.s32 0, %v1956
    %v1958 = vrot.slane %v1952, %v1957
    %v1968 = vunpack.c.l.b16 %v1944
    %v1969 = vunpack.c.l.b16 %v1945
    %v1970 = vunpack.c.l.b16 %v1946
    %v1971 = vunpack.c.l.b16 %v1947
    %v1972 = vunpack.c.l.b16 %v1948
    %v1973 = vunpack.c.l.b16 %v1949
    %v1974 = vunpack.c.l.b16 %v1950
    %v1975 = vunpack.c.l.b16 %v1951
    %v1976 = vpack.c.b16 %v1969, %v1968
    %v1977 = vpack.c.b16 %v1971, %v1970
    %v1978 = vpack.c.b16 %v1973, %v1972
    %v1979 = vpack.c.b16 %v1975, %v1974
    %v1985 = vsel %vm667, %v1953, 0
    %1987 = vmatprep.subr.bf16.mxu0 0
    %1988 = vmatpush1.bf16.msra.mxu0 %v1976
    %1989 = vmatprep.subr.bf16.mxu0 0
    %1990 = vmatpush1.bf16.msra.mxu0 %v1977
    %1991 = vmatprep.subr.bf16.mxu0 0
    %1992 = vmatpush1.bf16.msra.mxu0 %v1978
    %1993 = vmatprep.subr.bf16.mxu0 0
    %1994 = vmatpush1.bf16.msra.mxu0 %v1979
    %1995 = vmatprep.subr.bf16.mxu0 0
    %1996 = vmatpush1.bf16.msra.mxu0 0
    %1997 = vmatprep.subr.bf16.mxu0 0
    %1998 = vmatpush1.bf16.msra.mxu0 0
    %1999 = vmatprep.subr.bf16.mxu0 0
    %2000 = vmatpush1.bf16.msra.mxu0 0
    %2001 = vmatprep.subr.bf16.mxu0 0
    %2002 = vmatpush1.bf16.msra.mxu0 0
    %2003 = vmatprep.subr.bf16.mxu0 0
    %2004 = vmatpush1.bf16.msra.mxu0 0
    %2005 = vmatprep.subr.bf16.mxu0 0
    %2006 = vmatpush1.bf16.msra.mxu0 0
    %2007 = vmatprep.subr.bf16.mxu0 0
    %2008 = vmatpush1.bf16.msra.mxu0 0
    %2009 = vmatprep.subr.bf16.mxu0 0
    %2010 = vmatpush1.bf16.msra.mxu0 0
    %2011 = vmatprep.subr.bf16.mxu0 0
    %2012 = vmatpush1.bf16.msra.mxu0 0
    %2013 = vmatprep.subr.bf16.mxu0 0
    %2014 = vmatpush1.bf16.msra.mxu0 0
    %2015 = vmatprep.subr.bf16.mxu0 0
    %2016 = vmatpush1.bf16.msra.mxu0 0
    %2017 = vmatprep.subr.bf16.mxu0 0
    %2018 = vmatpush1.bf16.msra.mxu0 0
    %2019 = vmatprep.mubr.bf16.mxu0 0
    %2020 = vmatmul.mubr.bf16.gmra.mrb[0].mxu0 %v1985
    %v2021 = vpop.f32.mrb[0].mxu0
    %v2022 = vadd.f32 %v1958, %v2021
    %v2023 = vpop.f32.mrb[0].mxu0
    %v2024 = vpop.f32.mrb[0].mxu0
    %v2025 = vadd.f32 %v1958, %v2024
    %v2026 = vpop.f32.mrb[0].mxu0
    %2027 = vdwg.mxu0
    %v2028 = vadd.f32 %v2022, %v709
    %v2029 = vadd.f32 %v2025, %v710
    %v2030 = vld [vmem:[%s25] sm:$0x1]
    %v2031 = vld [vmem:[%s23] sm:$0x1]
    %v2032 = vsel %vm667, %v2028, 0.0
    %2033 = vadd.xlane.f32.xlu0 %v2032
    %v2034 = vpop.xlane.xlu0 %2033
    %v2035 = vsel %vm667, %v2029, 0.0
    %2036 = vadd.xlane.f32.xlu0 %v2035
    %v2037 = vpop.xlane.xlu0 %2036
    %v2038 = vmul.f32 %v2034, %v674
    %v2039 = vmul.f32 %v2037, %v674
    %v2040 = vsub.f32 %v2028, %v2038
    %v2041 = vsub.f32 %v2029, %v2039
    %v2042 = vmul.f32 %v2040, %v2040
    %v2043 = vmul.f32 %v2041, %v2041
    %v2044 = vsel %vm667, %v2042, 0.0
    %2045 = vadd.xlane.f32.xlu0 %v2044
    %v2046 = vpop.xlane.xlu0 %2045
    %v2047 = vsel %vm667, %v2043, 0.0
    %2048 = vadd.xlane.f32.xlu0 %v2047
    %v2049 = vpop.xlane.xlu0 %2048
    %v2050 = vmul.f32 %v2046, %v674
    %v2051 = vmul.f32 %v2049, %v674
    %v2052 = vadd.f32 %v2050, 1e-12
    %v2053 = vadd.f32 %v2051, 1e-12
    %v2054 = vrsqrt.pop %v2052
    %v2055 = vrsqrt.pop %v2053
    %v2056 = vmul.f32 %v2040, %v2054
    %v2057 = vmul.f32 %v2041, %v2055
    %v2059 = vlaneseq
    %v2060 = vshrl.u32 %v2059, 7
    %v2061 = vsub.s32 0, %v2060
    %v2062 = vrot.slane %v2030, %v2061
    %v2064 = vmul.f32 %v2056, %v2062
    %v2065 = vmul.f32 %v2057, %v2062
    %v2067 = vlaneseq
    %v2068 = vshrl.u32 %v2067, 7
    %v2069 = vsub.s32 0, %v2068
    %v2070 = vrot.slane %v2031, %v2069
    %v2072 = vadd.f32 %v2064, %v2070
    %v2073 = vadd.f32 %v2065, %v2070
    %v2074 = vld [vmem:[%s37] sm:$0xf]
    %v2075 = vld [vmem:[%s37 + $0x4] sm:$0xf]
    %v2076 = vld [vmem:[%s37 + $0x8] sm:$0xf]
    %v2077 = vld [vmem:[%s37 + $0xc] sm:$0xf]
    %v2078 = vld [vmem:[%s37 + $0x10] sm:$0xf]
    %v2079 = vld [vmem:[%s37 + $0x14] sm:$0xf]
    %v2080 = vld [vmem:[%s37 + $0x18] sm:$0xf]
    %v2081 = vld [vmem:[%s37 + $0x1c] sm:$0xf]
    %v2082 = vld [vmem:[#allocation2] sm:$0x1]
    %v2083 = vpack.c.bf16 %v2073, %v2072
    %v2085 = vlaneseq
    %v2086 = vshrl.u32 %v2085, 7
    %v2087 = vsub.s32 0, %v2086
    %v2088 = vrot.slane %v2082, %v2087
    %v2098 = vunpack.c.l.b16 %v2074
    %v2099 = vunpack.c.l.b16 %v2075
    %v2100 = vunpack.c.l.b16 %v2076
    %v2101 = vunpack.c.l.b16 %v2077
    %v2102 = vunpack.c.l.b16 %v2078
    %v2103 = vunpack.c.l.b16 %v2079
    %v2104 = vunpack.c.l.b16 %v2080
    %v2105 = vunpack.c.l.b16 %v2081
    %v2106 = vpack.c.b16 %v2099, %v2098
    %v2107 = vpack.c.b16 %v2101, %v2100
    %v2108 = vpack.c.b16 %v2103, %v2102
    %v2109 = vpack.c.b16 %v2105, %v2104
    %v2115 = vsel %vm667, %v2083, 0
    %2117 = vmatprep.subr.bf16.mxu0 0
    %2118 = vmatpush1.bf16.msra.mxu0 %v2106
    %2119 = vmatprep.subr.bf16.mxu0 0
    %2120 = vmatpush1.bf16.msra.mxu0 %v2107
    %2121 = vmatprep.subr.bf16.mxu0 0
    %2122 = vmatpush1.bf16.msra.mxu0 %v2108
    %2123 = vmatprep.subr.bf16.mxu0 0
    %2124 = vmatpush1.bf16.msra.mxu0 %v2109
    %2125 = vmatprep.subr.bf16.mxu0 0
    %2126 = vmatpush1.bf16.msra.mxu0 0
    %2127 = vmatprep.subr.bf16.mxu0 0
    %2128 = vmatpush1.bf16.msra.mxu0 0
    %2129 = vmatprep.subr.bf16.mxu0 0
    %2130 = vmatpush1.bf16.msra.mxu0 0
    %2131 = vmatprep.subr.bf16.mxu0 0
    %2132 = vmatpush1.bf16.msra.mxu0 0
    %2133 = vmatprep.subr.bf16.mxu0 0
    %2134 = vmatpush1.bf16.msra.mxu0 0
    %2135 = vmatprep.subr.bf16.mxu0 0
    %2136 = vmatpush1.bf16.msra.mxu0 0
    %2137 = vmatprep.subr.bf16.mxu0 0
    %2138 = vmatpush1.bf16.msra.mxu0 0
    %2139 = vmatprep.subr.bf16.mxu0 0
    %2140 = vmatpush1.bf16.msra.mxu0 0
    %2141 = vmatprep.subr.bf16.mxu0 0
    %2142 = vmatpush1.bf16.msra.mxu0 0
    %2143 = vmatprep.subr.bf16.mxu0 0
    %2144 = vmatpush1.bf16.msra.mxu0 0
    %2145 = vmatprep.subr.bf16.mxu0 0
    %2146 = vmatpush1.bf16.msra.mxu0 0
    %2147 = vmatprep.subr.bf16.mxu0 0
    %2148 = vmatpush1.bf16.msra.mxu0 0
    %2149 = vmatprep.mubr.bf16.mxu0 0
    %2150 = vmatmul.mubr.bf16.gmra.mrb[0].mxu0 %v2115
    %v2151 = vpop.f32.mrb[0].mxu0
    %v2152 = vadd.f32 %v2088, %v2151
    %v2153 = vpop.f32.mrb[0].mxu0
    %v2154 = vpop.f32.mrb[0].mxu0
    %v2155 = vadd.f32 %v2088, %v2154
    %v2156 = vpop.f32.mrb[0].mxu0
    %2157 = vdwg.mxu0
    %v2158 = vmul.f32 %v2152, 0.5
    %v2159 = vmul.f32 %v2155, 0.5
    %v2160 = vmul.f32 %v2152, 0.044715
    %v2161 = vmul.f32 %v2155, 0.044715
    %v2162 = vmul.f32 %v2160, %v2152
    %v2163 = vmul.f32 %v2161, %v2155
    %v2164 = vmul.f32 %v2162, %v2152
    %v2165 = vmul.f32 %v2163, %v2155
    %v2166 = vadd.f32 %v2152, %v2164
    %v2167 = vadd.f32 %v2155, %v2165
    %v2168 = vmul.f32 %v2166, 0.7978846
    %v2169 = vmul.f32 %v2167, 0.7978846
    %v2170 = vtanh.pop %v2168
    %v2171 = vtanh.pop %v2169
    %v2172 = vadd.f32 %v2170, 1.0
    %v2173 = vadd.f32 %v2171, 1.0
    %v2174 = vmul.f32 %v2158, %v2172
    %v2175 = vmul.f32 %v2159, %v2173
    %v2176 = vld [vmem:[%s45] sm:$0xf]
    %v2177 = vld [vmem:[%s45 + $0x4] sm:$0xf]
    %v2178 = vld [vmem:[%s45 + $0x8] sm:$0xf]
    %v2179 = vld [vmem:[%s45 + $0xc] sm:$0xf]
    %v2180 = vld [vmem:[%s45 + $0x10] sm:$0xf]
    %v2181 = vld [vmem:[%s45 + $0x14] sm:$0xf]
    %v2182 = vld [vmem:[%s45 + $0x18] sm:$0xf]
    %v2183 = vld [vmem:[%s45 + $0x1c] sm:$0xf]
    %v2184 = vld [vmem:[%s45 + $0x20] sm:$0xf]
    %v2185 = vld [vmem:[%s45 + $0x24] sm:$0xf]
    %v2186 = vld [vmem:[%s45 + $0x28] sm:$0xf]
    %v2187 = vld [vmem:[%s45 + $0x2c] sm:$0xf]
    %v2188 = vld [vmem:[%s45 + $0x30] sm:$0xf]
    %v2189 = vld [vmem:[%s45 + $0x34] sm:$0xf]
    %v2190 = vld [vmem:[%s45 + $0x38] sm:$0xf]
    %v2191 = vld [vmem:[%s45 + $0x3c] sm:$0xf]
    %v2192 = vld [vmem:[#allocation8] sm:$0x1]
    %v2193 = vpack.c.bf16 %v2175, %v2174
    %v2195 = vlaneseq
    %v2196 = vshrl.u32 %v2195, 7
    %v2197 = vsub.s32 0, %v2196
    %v2198 = vrot.slane %v2192, %v2197
    %v2216 = vunpack.c.l.b16 %v2176
    %v2217 = vunpack.c.l.b16 %v2177
    %v2218 = vunpack.c.l.b16 %v2178
    %v2219 = vunpack.c.l.b16 %v2179
    %v2220 = vunpack.c.l.b16 %v2180
    %v2221 = vunpack.c.l.b16 %v2181
    %v2222 = vunpack.c.l.b16 %v2182
    %v2223 = vunpack.c.l.b16 %v2183
    %v2224 = vunpack.c.l.b16 %v2184
    %v2225 = vunpack.c.l.b16 %v2185
    %v2226 = vunpack.c.l.b16 %v2186
    %v2227 = vunpack.c.l.b16 %v2187
    %v2228 = vunpack.c.l.b16 %v2188
    %v2229 = vunpack.c.l.b16 %v2189
    %v2230 = vunpack.c.l.b16 %v2190
    %v2231 = vunpack.c.l.b16 %v2191
    %v2232 = vpack.c.b16 %v2217, %v2216
    %v2233 = vpack.c.b16 %v2219, %v2218
    %v2234 = vpack.c.b16 %v2221, %v2220
    %v2235 = vpack.c.b16 %v2223, %v2222
    %v2236 = vpack.c.b16 %v2225, %v2224
    %v2237 = vpack.c.b16 %v2227, %v2226
    %v2238 = vpack.c.b16 %v2229, %v2228
    %v2239 = vpack.c.b16 %v2231, %v2230
    %2248 = vmatprep.subr.bf16.mxu0 0
    %2249 = vmatpush1.bf16.msra.mxu0 %v2232
    %2250 = vmatprep.subr.bf16.mxu0 0
    %2251 = vmatpush1.bf16.msra.mxu0 %v2233
    %2252 = vmatprep.subr.bf16.mxu0 0
    %2253 = vmatpush1.bf16.msra.mxu0 %v2234
    %2254 = vmatprep.subr.bf16.mxu0 0
    %2255 = vmatpush1.bf16.msra.mxu0 %v2235
    %2256 = vmatprep.subr.bf16.mxu0 0
    %2257 = vmatpush1.bf16.msra.mxu0 %v2236
    %2258 = vmatprep.subr.bf16.mxu0 0
    %2259 = vmatpush1.bf16.msra.mxu0 %v2237
    %2260 = vmatprep.subr.bf16.mxu0 0
    %2261 = vmatpush1.bf16.msra.mxu0 %v2238
    %2262 = vmatprep.subr.bf16.mxu0 0
    %2263 = vmatpush1.bf16.msra.mxu0 %v2239
    %2264 = vmatprep.subr.bf16.mxu0 0
    %2265 = vmatpush1.bf16.msra.mxu0 0
    %2266 = vmatprep.subr.bf16.mxu0 0
    %2267 = vmatpush1.bf16.msra.mxu0 0
    %2268 = vmatprep.subr.bf16.mxu0 0
    %2269 = vmatpush1.bf16.msra.mxu0 0
    %2270 = vmatprep.subr.bf16.mxu0 0
    %2271 = vmatpush1.bf16.msra.mxu0 0
    %2272 = vmatprep.subr.bf16.mxu0 0
    %2273 = vmatpush1.bf16.msra.mxu0 0
    %2274 = vmatprep.subr.bf16.mxu0 0
    %2275 = vmatpush1.bf16.msra.mxu0 0
    %2276 = vmatprep.subr.bf16.mxu0 0
    %2277 = vmatpush1.bf16.msra.mxu0 0
    %2278 = vmatprep.subr.bf16.mxu0 0
    %2279 = vmatpush1.bf16.msra.mxu0 0
    %2280 = vmatprep.mubr.bf16.mxu0 0
    %2281 = vmatmul.mubr.bf16.gmra.mrb[0].mxu0 %v2193
    %v2282 = vpop.f32.mrb[0].mxu0
    %v2283 = vadd.f32 %v2198, %v2282
    %v2284 = vpop.f32.mrb[0].mxu0
    %v2285 = vpop.f32.mrb[0].mxu0
    %v2286 = vadd.f32 %v2198, %v2285
    %v2287 = vpop.f32.mrb[0].mxu0
    %2288 = vdwg.mxu0
    %v2289 = vadd.f32 %v2283, %v2072
    %v2290 = vadd.f32 %v2286, %v2073
    %v2291 = vld [vmem:[#allocation7] sm:$0x1]
    %v2292 = vld [vmem:[#allocation5] sm:$0x1]
    %v2293 = vsel %vm667, %v2289, 0.0
    %2294 = vadd.xlane.f32.xlu0 %v2293
    %v2295 = vpop.xlane.xlu0 %2294
    %v2296 = vsel %vm667, %v2290, 0.0
    %2297 = vadd.xlane.f32.xlu0 %v2296
    %v2298 = vpop.xlane.xlu0 %2297
    %v2299 = vmul.f32 %v2295, %v674
    %v2300 = vmul.f32 %v2298, %v674
    %v2301 = vsub.f32 %v2289, %v2299
    %v2302 = vsub.f32 %v2290, %v2300
    %v2303 = vmul.f32 %v2301, %v2301
    %v2304 = vmul.f32 %v2302, %v2302
    %v2305 = vsel %vm667, %v2303, 0.0
    %2306 = vadd.xlane.f32.xlu0 %v2305
    %v2307 = vpop.xlane.xlu0 %2306
    %v2308 = vsel %vm667, %v2304, 0.0
    %2309 = vadd.xlane.f32.xlu0 %v2308
    %v2310 = vpop.xlane.xlu0 %2309
    %v2311 = vmul.f32 %v2307, %v674
    %v2312 = vmul.f32 %v2310, %v674
    %v2313 = vadd.f32 %v2311, 1e-12
    %v2314 = vadd.f32 %v2312, 1e-12
    %v2315 = vrsqrt.pop %v2313
    %v2316 = vrsqrt.pop %v2314
    %v2317 = vmul.f32 %v2301, %v2315
    %v2318 = vmul.f32 %v2302, %v2316
    %v2320 = vlaneseq
    %v2321 = vshrl.u32 %v2320, 7
    %v2322 = vsub.s32 0, %v2321
    %v2323 = vrot.slane %v2291, %v2322
    %v2325 = vmul.f32 %v2317, %v2323
    %v2326 = vmul.f32 %v2318, %v2323
    %v2328 = vlaneseq
    %v2329 = vshrl.u32 %v2328, 7
    %v2330 = vsub.s32 0, %v2329
    %v2331 = vrot.slane %v2292, %v2330
    %v2333 = vadd.f32 %v2325, %v2331
    %v2334 = vadd.f32 %v2326, %v2331
    %v2335 = vld [vmem:[%s61] sm:$0xff]
    %v2336 = vld [vmem:[%s61 + $0x8] sm:$0xff]
    %v2337 = vld [vmem:[%s61 + $0x10] sm:$0xff]
    %v2338 = vld [vmem:[%s61 + $0x18] sm:$0xff]
    %v2339 = vld [vmem:[%s61 + $0x20] sm:$0xff]
    %v2340 = vld [vmem:[%s61 + $0x28] sm:$0xff]
    %v2341 = vld [vmem:[%s61 + $0x30] sm:$0xff]
    %v2342 = vld [vmem:[%s61 + $0x38] sm:$0xff]
    %v2343 = vld [vmem:[%s59] sm:$0x3]
    %v2344 = vpack.c.bf16 %v889, %v889
    %v2346 = vlaneseq
    %v2347 = vshrl.u32 %v2346, 7
    %v2348 = vsub.s32 0, %v2347
    %v2349 = vrot.slane %v2343, %v2348
    %v2350 = vlaneseq
    %v2351 = vshrl.u32 %v2350, 7
    %v2352 = vsub.s32 1, %v2351
    %v2353 = vrot.slane %v2343, %v2352
    %v2364 = vunpack.c.l.b16 %v2335
    %v2365 = vunpack.c.h.b16 %v2335
    %v2366 = vunpack.c.l.b16 %v2336
    %v2367 = vunpack.c.h.b16 %v2336
    %v2368 = vunpack.c.l.b16 %v2337
    %v2369 = vunpack.c.h.b16 %v2337
    %v2370 = vunpack.c.l.b16 %v2338
    %v2371 = vunpack.c.h.b16 %v2338
    %v2372 = vunpack.c.l.b16 %v2339
    %v2373 = vunpack.c.h.b16 %v2339
    %v2374 = vunpack.c.l.b16 %v2340
    %v2375 = vunpack.c.h.b16 %v2340
    %v2376 = vunpack.c.l.b16 %v2341
    %v2377 = vunpack.c.h.b16 %v2341
    %v2378 = vunpack.c.l.b16 %v2342
    %v2379 = vunpack.c.h.b16 %v2342
    %v2380 = vpack.c.b16 %v2366, %v2364
    %v2381 = vpack.c.b16 %v2367, %v2365
    %v2382 = vpack.c.b16 %v2370, %v2368
    %v2383 = vpack.c.b16 %v2371, %v2369
    %v2384 = vpack.c.b16 %v2374, %v2372
    %v2385 = vpack.c.b16 %v2375, %v2373
    %v2386 = vpack.c.b16 %v2378, %v2376
    %v2387 = vpack.c.b16 %v2379, %v2377
    %v2397 = vsel %vm667, %v2344, 0
    %2399 = vmatprep.subr.bf16.mxu0 %v2381
    %2400 = vmatpush1.bf16.msra.mxu0 %v2380
    %2401 = vmatprep.subr.bf16.mxu0 %v2383
    %2402 = vmatpush1.bf16.msra.mxu0 %v2382
    %2403 = vmatprep.subr.bf16.mxu0 %v2385
    %2404 = vmatpush1.bf16.msra.mxu0 %v2384
    %2405 = vmatprep.subr.bf16.mxu0 %v2387
    %2406 = vmatpush1.bf16.msra.mxu0 %v2386
    %2407 = vmatprep.subr.bf16.mxu0 0
    %2408 = vmatpush1.bf16.msra.mxu0 0
    %2409 = vmatprep.subr.bf16.mxu0 0
    %2410 = vmatpush1.bf16.msra.mxu0 0
    %2411 = vmatprep.subr.bf16.mxu0 0
    %2412 = vmatpush1.bf16.msra.mxu0 0
    %2413 = vmatprep.subr.bf16.mxu0 0
    %2414 = vmatpush1.bf16.msra.mxu0 0
    %2415 = vmatprep.subr.bf16.mxu0 0
    %2416 = vmatpush1.bf16.msra.mxu0 0
    %2417 = vmatprep.subr.bf16.mxu0 0
    %2418 = vmatpush1.bf16.msra.mxu0 0
    %2419 = vmatprep.subr.bf16.mxu0 0
    %2420 = vmatpush1.bf16.msra.mxu0 0
    %2421 = vmatprep.subr.bf16.mxu0 0
    %2422 = vmatpush1.bf16.msra.mxu0 0
    %2423 = vmatprep.subr.bf16.mxu0 0
    %2424 = vmatpush1.bf16.msra.mxu0 0
    %2425 = vmatprep.subr.bf16.mxu0 0
    %2426 = vmatpush1.bf16.msra.mxu0 0
    %2427 = vmatprep.subr.bf16.mxu0 0
    %2428 = vmatpush1.bf16.msra.mxu0 0
    %2429 = vmatprep.subr.bf16.mxu0 0
    %2430 = vmatpush1.bf16.msra.mxu0 0
    %2431 = vmatprep.mubr.bf16.mxu0 0
    %2432 = vmatmul.mubr.bf16.gmra.mrb[0].mxu0 %v2397
    %v2433 = vpop.f32.mrb[0].mxu0
    %v2434 = vadd.f32 %v2349, %v2433
    %v2435 = vpop.f32.mrb[0].mxu0
    %v2436 = vadd.f32 %v2353, %v2435
    %v2437 = vpop.f32.mrb[0].mxu0
    %v2438 = vpop.f32.mrb[0].mxu0
    %2439 = vdwg.mxu0
    %v2441 = vcombine.high %v2434, %v2434
    %v2443 = vpack.c.bf16 %v2434, %v2434
    %v2444 = vpack.c.bf16 %v2441, %v2441
    %v2446 = vcombine.high %v2436, %v2436
    %v2448 = vpack.c.bf16 %v2436, %v2436
    %v2449 = vpack.c.bf16 %v2446, %v2446
    %v2452 = vunpack.c.l.s4 1966171168
    %v2453 = vunpack.c.0.s8 %v2452
    %v2454 = vlaneseq
    %v2455 = vshrl.u32 %v2454, 7
    %v2456 = vsub.s32 %v2453, %v2455
    %v2457 = vrot.slane %v662, %v2456
    %v2458 = vcombine.high %v2457, %v2457
    %v2460 = vunpack.c.l.s4 1966171168
    %v2461 = vunpack.c.0.s8 %v2460
    %v2462 = vlaneseq
    %v2463 = vshrl.u32 %v2462, 7
    %v2464 = vsub.s32 %v2461, %v2463
    %v2465 = vrot.slane %v2457, %v2464
    %v2467 = vunpack.c.l.s4 1966171168
    %v2468 = vunpack.c.0.s8 %v2467
    %v2469 = vlaneseq
    %v2470 = vshrl.u32 %v2469, 7
    %v2471 = vsub.s32 %v2468, %v2470
    %v2472 = vrot.slane %v2458, %v2471
    %v2473 = vlaneseq
    %v2474 = vshrl.u32 %v2473, 7
    %v2475 = vsub.s32 0, %v2474
    %v2476 = vrot.slane %v2465, %v2475
    %v2477 = vlaneseq
    %v2478 = vshrl.u32 %v2477, 7
    %v2479 = vsub.s32 0, %v2478
    %v2480 = vrot.slane %v2472, %v2479
    %2484 = vrot.lane.b32.xlu0 %v2443, 64
    %v2485 = vpop.permute.xlu0 %2484
    %v2487 = vsel %vm729, %v2443, 0
    %v2490 = vsel %vm729, %v2485, 0
    %2492 = vmatprep.subr.bf16.mxu0 0
    %2493 = vmatpush1.bf16.xpose.msra.mxu0 %v2490
    %2494 = vmatprep.subr.bf16.mxu0 0
    %2495 = vmatpush1.bf16.xpose.msra.mxu0 0
    %2496 = vmatprep.subr.bf16.mxu0 0
    %2497 = vmatpush1.bf16.xpose.msra.mxu0 0
    %2498 = vmatprep.subr.bf16.mxu0 0
    %2499 = vmatpush1.bf16.xpose.msra.mxu0 0
    %2500 = vmatprep.subr.bf16.mxu0 0
    %2501 = vmatpush1.bf16.xpose.msra.mxu0 0
    %2502 = vmatprep.subr.bf16.mxu0 0
    %2503 = vmatpush1.bf16.xpose.msra.mxu0 0
    %2504 = vmatprep.subr.bf16.mxu0 0
    %2505 = vmatpush1.bf16.xpose.msra.mxu0 0
    %2506 = vmatprep.subr.bf16.mxu0 0
    %2507 = vmatpush1.bf16.xpose.msra.mxu0 0
    %2508 = vmatprep.subr.bf16.mxu0 0
    %2509 = vmatpush1.bf16.xpose.msra.mxu0 0
    %2510 = vmatprep.subr.bf16.mxu0 0
    %2511 = vmatpush1.bf16.xpose.msra.mxu0 0
    %2512 = vmatprep.subr.bf16.mxu0 0
    %2513 = vmatpush1.bf16.xpose.msra.mxu0 0
    %2514 = vmatprep.subr.bf16.mxu0 0
    %2515 = vmatpush1.bf16.xpose.msra.mxu0 0
    %2516 = vmatprep.subr.bf16.mxu0 0
    %2517 = vmatpush1.bf16.xpose.msra.mxu0 0
    %2518 = vmatprep.subr.bf16.mxu0 0
    %2519 = vmatpush1.bf16.xpose.msra.mxu0 0
    %2520 = vmatprep.subr.bf16.mxu0 0
    %2521 = vmatpush1.bf16.xpose.msra.mxu0 0
    %2522 = vmatprep.subr.bf16.mxu0 0
    %2523 = vmatpush1.bf16.xpose.msra.mxu0 0
    %2524 = vmatprep.mubr.bf16.mxu0 0
    %2525 = vmatmul.mubr.bf16.gmra.mrb[0].mxu0 %v2487
    %v2526 = vpop.f32.mrb[0].mxu0
    %v2527 = vadd.f32 %v2476, %v2526
    %v2528 = vpop.f32.mrb[0].mxu0
    %v2529 = vpop.f32.mrb[0].mxu0
    %v2530 = vpop.f32.mrb[0].mxu0
    %2531 = vdwg.mxu0
    %2533 = vrot.lane.b32.xlu0 %v2444, 64
    %v2534 = vpop.permute.xlu0 %2533
    %v2536 = vsel %vm729, %v2444, 0
    %v2539 = vsel %vm729, %v2534, 0
    %2541 = vmatprep.subr.bf16.mxu0 0
    %2542 = vmatpush1.bf16.xpose.msra.mxu0 %v2539
    %2543 = vmatprep.subr.bf16.mxu0 0
    %2544 = vmatpush1.bf16.xpose.msra.mxu0 0
    %2545 = vmatprep.subr.bf16.mxu0 0
    %2546 = vmatpush1.bf16.xpose.msra.mxu0 0
    %2547 = vmatprep.subr.bf16.mxu0 0
    %2548 = vmatpush1.bf16.xpose.msra.mxu0 0
    %2549 = vmatprep.subr.bf16.mxu0 0
    %2550 = vmatpush1.bf16.xpose.msra.mxu0 0
    %2551 = vmatprep.subr.bf16.mxu0 0
    %2552 = vmatpush1.bf16.xpose.msra.mxu0 0
    %2553 = vmatprep.subr.bf16.mxu0 0
    %2554 = vmatpush1.bf16.xpose.msra.mxu0 0
    %2555 = vmatprep.subr.bf16.mxu0 0
    %2556 = vmatpush1.bf16.xpose.msra.mxu0 0
    %2557 = vmatprep.subr.bf16.mxu0 0
    %2558 = vmatpush1.bf16.xpose.msra.mxu0 0
    %2559 = vmatprep.subr.bf16.mxu0 0
    %2560 = vmatpush1.bf16.xpose.msra.mxu0 0
    %2561 = vmatprep.subr.bf16.mxu0 0
    %2562 = vmatpush1.bf16.xpose.msra.mxu0 0
    %2563 = vmatprep.subr.bf16.mxu0 0
    %2564 = vmatpush1.bf16.xpose.msra.mxu0 0
    %2565 = vmatprep.subr.bf16.mxu0 0
    %2566 = vmatpush1.bf16.xpose.msra.mxu0 0
    %2567 = vmatprep.subr.bf16.mxu0 0
    %2568 = vmatpush1.bf16.xpose.msra.mxu0 0
    %2569 = vmatprep.subr.bf16.mxu0 0
    %2570 = vmatpush1.bf16.xpose.msra.mxu0 0
    %2571 = vmatprep.subr.bf16.mxu0 0
    %2572 = vmatpush1.bf16.xpose.msra.mxu0 0
    %2573 = vmatprep.mubr.bf16.mxu0 0
    %2574 = vmatmul.mubr.bf16.gmra.mrb[0].mxu0 %v2536
    %v2575 = vpop.f32.mrb[0].mxu0
    %v2576 = vadd.f32 %v2480, %v2575
    %v2577 = vpop.f32.mrb[0].mxu0
    %v2578 = vpop.f32.mrb[0].mxu0
    %v2579 = vpop.f32.mrb[0].mxu0
    %2580 = vdwg.mxu0
    %vm2581 = vcmask 27648
    %v2582 = vsel %vm2581, %v2527, -inf
    %2583 = vmax.xlane.f32.xlu0 %v2582
    %v2584 = vpop.xlane.xlu0 %2583
    %v2585 = vsel %vm2581, %v2576, -inf
    %2586 = vmax.xlane.f32.xlu0 %v2585
    %v2587 = vpop.xlane.xlu0 %2586
    %v2588 = vsub.f32 %v2527, %v2584
    %v2589 = vsub.f32 %v2576, %v2587
    %v2590 = vmul.f32 %v2588, 1.442695
    %v2591 = vpow.pop %v2590
    %v2592 = vmul.f32 %v2589, 1.442695
    %v2593 = vpow.pop %v2592
    %v2594 = vsel %vm2581, %v2591, 0.0
    %2595 = vadd.xlane.f32.xlu0 %v2594
    %v2596 = vpop.xlane.xlu0 %2595
    %v2597 = vsel %vm2581, %v2593, 0.0
    %2598 = vadd.xlane.f32.xlu0 %v2597
    %v2599 = vpop.xlane.xlu0 %2598
    %v2600 = vrcp.pop %v2596
    %v2601 = vrcp.pop %v2599
    %v2602 = vmul.f32 %v2591, %v2600
    %v2603 = vmul.f32 %v2593, %v2601
    %v2604 = vpack.c.bf16 %v2602, %v2602
    %v2605 = vpack.c.bf16 %v2603, %v2603
    %v2607 = vsel %vm811, %v2604, 0
    %v2610 = vsel %vm815, %v2448, 0
    %2612 = vmatprep.subr.bf16.mxu0 0
    %2613 = vmatpush1.bf16.msra.mxu0 %v2610
    %2614 = vmatprep.subr.bf16.mxu0 0
    %2615 = vmatpush1.bf16.msra.mxu0 0
    %2616 = vmatprep.subr.bf16.mxu0 0
    %2617 = vmatpush1.bf16.msra.mxu0 0
    %2618 = vmatprep.subr.bf16.mxu0 0
    %2619 = vmatpush1.bf16.msra.mxu0 0
    %2620 = vmatprep.subr.bf16.mxu0 0
    %2621 = vmatpush1.bf16.msra.mxu0 0
    %2622 = vmatprep.subr.bf16.mxu0 0
    %2623 = vmatpush1.bf16.msra.mxu0 0
    %2624 = vmatprep.subr.bf16.mxu0 0
    %2625 = vmatpush1.bf16.msra.mxu0 0
    %2626 = vmatprep.subr.bf16.mxu0 0
    %2627 = vmatpush1.bf16.msra.mxu0 0
    %2628 = vmatprep.subr.bf16.mxu0 0
    %2629 = vmatpush1.bf16.msra.mxu0 0
    %2630 = vmatprep.subr.bf16.mxu0 0
    %2631 = vmatpush1.bf16.msra.mxu0 0
    %2632 = vmatprep.subr.bf16.mxu0 0
    %2633 = vmatpush1.bf16.msra.mxu0 0
    %2634 = vmatprep.subr.bf16.mxu0 0
    %2635 = vmatpush1.bf16.msra.mxu0 0
    %2636 = vmatprep.subr.bf16.mxu0 0
    %2637 = vmatpush1.bf16.msra.mxu0 0
    %2638 = vmatprep.subr.bf16.mxu0 0
    %2639 = vmatpush1.bf16.msra.mxu0 0
    %2640 = vmatprep.subr.bf16.mxu0 0
    %2641 = vmatpush1.bf16.msra.mxu0 0
    %2642 = vmatprep.subr.bf16.mxu0 0
    %2643 = vmatpush1.bf16.msra.mxu0 0
    %2644 = vmatprep.mubr.bf16.mxu0 0
    %2645 = vmatmul.mubr.bf16.gmra.mrb[0].mxu0 %v2607
    %v2646 = vpop.f32.mrb[0].mxu0
    %v2647 = vadd.f32 0.0, %v2646
    %v2648 = vpop.f32.mrb[0].mxu0
    %v2649 = vpop.f32.mrb[0].mxu0
    %v2650 = vpop.f32.mrb[0].mxu0
    %2651 = vdwg.mxu0
    %v2653 = vsel %vm811, %v2605, 0
    %v2656 = vsel %vm815, %v2449, 0
    %2658 = vmatprep.subr.bf16.mxu0 0
    %2659 = vmatpush1.bf16.msra.mxu0 %v2656
    %2660 = vmatprep.subr.bf16.mxu0 0
    %2661 = vmatpush1.bf16.msra.mxu0 0
    %2662 = vmatprep.subr.bf16.mxu0 0
    %2663 = vmatpush1.bf16.msra.mxu0 0
    %2664 = vmatprep.subr.bf16.mxu0 0
    %2665 = vmatpush1.bf16.msra.mxu0 0
    %2666 = vmatprep.subr.bf16.mxu0 0
    %2667 = vmatpush1.bf16.msra.mxu0 0
    %2668 = vmatprep.subr.bf16.mxu0 0
    %2669 = vmatpush1.bf16.msra.mxu0 0
    %2670 = vmatprep.subr.bf16.mxu0 0
    %2671 = vmatpush1.bf16.msra.mxu0 0
    %2672 = vmatprep.subr.bf16.mxu0 0
    %2673 = vmatpush1.bf16.msra.mxu0 0
    %2674 = vmatprep.subr.bf16.mxu0 0
    %2675 = vmatpush1.bf16.msra.mxu0 0
    %2676 = vmatprep.subr.bf16.mxu0 0
    %2677 = vmatpush1.bf16.msra.mxu0 0
    %2678 = vmatprep.subr.bf16.mxu0 0
    %2679 = vmatpush1.bf16.msra.mxu0 0
    %2680 = vmatprep.subr.bf16.mxu0 0
    %2681 = vmatpush1.bf16.msra.mxu0 0
    %2682 = vmatprep.subr.bf16.mxu0 0
    %2683 = vmatpush1.bf16.msra.mxu0 0
    %2684 = vmatprep.subr.bf16.mxu0 0
    %2685 = vmatpush1.bf16.msra.mxu0 0
    %2686 = vmatprep.subr.bf16.mxu0 0
    %2687 = vmatpush1.bf16.msra.mxu0 0
    %2688 = vmatprep.subr.bf16.mxu0 0
    %2689 = vmatpush1.bf16.msra.mxu0 0
    %2690 = vmatprep.mubr.bf16.mxu0 0
    %2691 = vmatmul.mubr.bf16.gmra.mrb[0].mxu0 %v2653
    %v2692 = vpop.f32.mrb[0].mxu0
    %v2693 = vadd.f32 0.0, %v2692
    %v2694 = vpop.f32.mrb[0].mxu0
    %v2695 = vpop.f32.mrb[0].mxu0
    %v2696 = vpop.f32.mrb[0].mxu0
    %2697 = vdwg.mxu0
    %2698 = vrot.lane.b32.xlu0 %v2443, 112
    %v2699 = vpop.permute.xlu0 %2698
    %2700 = vrot.lane.b32.xlu0 %v2443, 48
    %v2701 = vpop.permute.xlu0 %2700
    %v2703 = vsel %vm729, %v2699, 0
    %v2706 = vsel %vm729, %v2701, 0
    %2708 = vmatprep.subr.bf16.mxu0 0
    %2709 = vmatpush1.bf16.xpose.msra.mxu0 %v2706
    %2710 = vmatprep.subr.bf16.mxu0 0
    %2711 = vmatpush1.bf16.xpose.msra.mxu0 0
    %2712 = vmatprep.subr.bf16.mxu0 0
    %2713 = vmatpush1.bf16.xpose.msra.mxu0 0
    %2714 = vmatprep.subr.bf16.mxu0 0
    %2715 = vmatpush1.bf16.xpose.msra.mxu0 0
    %2716 = vmatprep.subr.bf16.mxu0 0
    %2717 = vmatpush1.bf16.xpose.msra.mxu0 0
    %2718 = vmatprep.subr.bf16.mxu0 0
    %2719 = vmatpush1.bf16.xpose.msra.mxu0 0
    %2720 = vmatprep.subr.bf16.mxu0 0
    %2721 = vmatpush1.bf16.xpose.msra.mxu0 0
    %2722 = vmatprep.subr.bf16.mxu0 0
    %2723 = vmatpush1.bf16.xpose.msra.mxu0 0
    %2724 = vmatprep.subr.bf16.mxu0 0
    %2725 = vmatpush1.bf16.xpose.msra.mxu0 0
    %2726 = vmatprep.subr.bf16.mxu0 0
    %2727 = vmatpush1.bf16.xpose.msra.mxu0 0
    %2728 = vmatprep.subr.bf16.mxu0 0
    %2729 = vmatpush1.bf16.xpose.msra.mxu0 0
    %2730 = vmatprep.subr.bf16.mxu0 0
    %2731 = vmatpush1.bf16.xpose.msra.mxu0 0
    %2732 = vmatprep.subr.bf16.mxu0 0
    %2733 = vmatpush1.bf16.xpose.msra.mxu0 0
    %2734 = vmatprep.subr.bf16.mxu0 0
    %2735 = vmatpush1.bf16.xpose.msra.mxu0 0
    %2736 = vmatprep.subr.bf16.mxu0 0
    %2737 = vmatpush1.bf16.xpose.msra.mxu0 0
    %2738 = vmatprep.subr.bf16.mxu0 0
    %2739 = vmatpush1.bf16.xpose.msra.mxu0 0
    %2740 = vmatprep.mubr.bf16.mxu0 0
    %2741 = vmatmul.mubr.bf16.gmra.mrb[0].mxu0 %v2703
    %v2742 = vpop.f32.mrb[0].mxu0
    %v2743 = vadd.f32 %v2476, %v2742
    %v2744 = vpop.f32.mrb[0].mxu0
    %v2745 = vpop.f32.mrb[0].mxu0
    %v2746 = vpop.f32.mrb[0].mxu0
    %2747 = vdwg.mxu0
    %2748 = vrot.lane.b32.xlu0 %v2444, 112
    %v2749 = vpop.permute.xlu0 %2748
    %2750 = vrot.lane.b32.xlu0 %v2444, 48
    %v2751 = vpop.permute.xlu0 %2750
    %v2753 = vsel %vm729, %v2749, 0
    %v2756 = vsel %vm729, %v2751, 0
    %2758 = vmatprep.subr.bf16.mxu0 0
    %2759 = vmatpush1.bf16.xpose.msra.mxu0 %v2756
    %2760 = vmatprep.subr.bf16.mxu0 0
    %2761 = vmatpush1.bf16.xpose.msra.mxu0 0
    %2762 = vmatprep.subr.bf16.mxu0 0
    %2763 = vmatpush1.bf16.xpose.msra.mxu0 0
    %2764 = vmatprep.subr.bf16.mxu0 0
    %2765 = vmatpush1.bf16.xpose.msra.mxu0 0
    %2766 = vmatprep.subr.bf16.mxu0 0
    %2767 = vmatpush1.bf16.xpose.msra.mxu0 0
    %2768 = vmatprep.subr.bf16.mxu0 0
    %2769 = vmatpush1.bf16.xpose.msra.mxu0 0
    %2770 = vmatprep.subr.bf16.mxu0 0
    %2771 = vmatpush1.bf16.xpose.msra.mxu0 0
    %2772 = vmatprep.subr.bf16.mxu0 0
    %2773 = vmatpush1.bf16.xpose.msra.mxu0 0
    %2774 = vmatprep.subr.bf16.mxu0 0
    %2775 = vmatpush1.bf16.xpose.msra.mxu0 0
    %2776 = vmatprep.subr.bf16.mxu0 0
    %2777 = vmatpush1.bf16.xpose.msra.mxu0 0
    %2778 = vmatprep.subr.bf16.mxu0 0
    %2779 = vmatpush1.bf16.xpose.msra.mxu0 0
    %2780 = vmatprep.subr.bf16.mxu0 0
    %2781 = vmatpush1.bf16.xpose.msra.mxu0 0
    %2782 = vmatprep.subr.bf16.mxu0 0
    %2783 = vmatpush1.bf16.xpose.msra.mxu0 0
    %2784 = vmatprep.subr.bf16.mxu0 0
    %2785 = vmatpush1.bf16.xpose.msra.mxu0 0
    %2786 = vmatprep.subr.bf16.mxu0 0
    %2787 = vmatpush1.bf16.xpose.msra.mxu0 0
    %2788 = vmatprep.subr.bf16.mxu0 0
    %2789 = vmatpush1.bf16.xpose.msra.mxu0 0
    %2790 = vmatprep.mubr.bf16.mxu0 0
    %2791 = vmatmul.mubr.bf16.gmra.mrb[0].mxu0 %v2753
    %v2792 = vpop.f32.mrb[0].mxu0
    %v2793 = vadd.f32 %v2480, %v2792
    %v2794 = vpop.f32.mrb[0].mxu0
    %v2795 = vpop.f32.mrb[0].mxu0
    %v2796 = vpop.f32.mrb[0].mxu0
    %2797 = vdwg.mxu0
    %v2798 = vsel %vm2581, %v2743, -inf
    %2799 = vmax.xlane.f32.xlu0 %v2798
    %v2800 = vpop.xlane.xlu0 %2799
    %v2801 = vsel %vm2581, %v2793, -inf
    %2802 = vmax.xlane.f32.xlu0 %v2801
    %v2803 = vpop.xlane.xlu0 %2802
    %v2804 = vsub.f32 %v2743, %v2800
    %v2805 = vsub.f32 %v2793, %v2803
    %v2806 = vmul.f32 %v2804, 1.442695
    %v2807 = vpow.pop %v2806
    %v2808 = vmul.f32 %v2805, 1.442695
    %v2809 = vpow.pop %v2808
    %v2810 = vsel %vm2581, %v2807, 0.0
    %2811 = vadd.xlane.f32.xlu0 %v2810
    %v2812 = vpop.xlane.xlu0 %2811
    %v2813 = vsel %vm2581, %v2809, 0.0
    %2814 = vadd.xlane.f32.xlu0 %v2813
    %v2815 = vpop.xlane.xlu0 %2814
    %v2816 = vrcp.pop %v2812
    %v2817 = vrcp.pop %v2815
    %v2818 = vmul.f32 %v2807, %v2816
    %v2819 = vmul.f32 %v2809, %v2817
    %v2820 = vpack.c.bf16 %v2818, %v2818
    %v2821 = vpack.c.bf16 %v2819, %v2819
    %2823 = vrot.lane.b32.xlu0 %v2448, 112
    %v2824 = vpop.permute.xlu0 %2823
    %v2826 = vsel %vm811, %v2820, 0
    %v2829 = vsel %vm815, %v2824, 0
    %2831 = vmatprep.subr.bf16.mxu0 0
    %2832 = vmatpush1.bf16.msra.mxu0 %v2829
    %2833 = vmatprep.subr.bf16.mxu0 0
    %2834 = vmatpush1.bf16.msra.mxu0 0
    %2835 = vmatprep.subr.bf16.mxu0 0
    %2836 = vmatpush1.bf16.msra.mxu0 0
    %2837 = vmatprep.subr.bf16.mxu0 0
    %2838 = vmatpush1.bf16.msra.mxu0 0
    %2839 = vmatprep.subr.bf16.mxu0 0
    %2840 = vmatpush1.bf16.msra.mxu0 0
    %2841 = vmatprep.subr.bf16.mxu0 0
    %2842 = vmatpush1.bf16.msra.mxu0 0
    %2843 = vmatprep.subr.bf16.mxu0 0
    %2844 = vmatpush1.bf16.msra.mxu0 0
    %2845 = vmatprep.subr.bf16.mxu0 0
    %2846 = vmatpush1.bf16.msra.mxu0 0
    %2847 = vmatprep.subr.bf16.mxu0 0
    %2848 = vmatpush1.bf16.msra.mxu0 0
    %2849 = vmatprep.subr.bf16.mxu0 0
    %2850 = vmatpush1.bf16.msra.mxu0 0
    %2851 = vmatprep.subr.bf16.mxu0 0
    %2852 = vmatpush1.bf16.msra.mxu0 0
    %2853 = vmatprep.subr.bf16.mxu0 0
    %2854 = vmatpush1.bf16.msra.mxu0 0
    %2855 = vmatprep.subr.bf16.mxu0 0
    %2856 = vmatpush1.bf16.msra.mxu0 0
    %2857 = vmatprep.subr.bf16.mxu0 0
    %2858 = vmatpush1.bf16.msra.mxu0 0
    %2859 = vmatprep.subr.bf16.mxu0 0
    %2860 = vmatpush1.bf16.msra.mxu0 0
    %2861 = vmatprep.subr.bf16.mxu0 0
    %2862 = vmatpush1.bf16.msra.mxu0 0
    %2863 = vmatprep.mubr.bf16.mxu0 0
    %2864 = vmatmul.mubr.bf16.gmra.mrb[0].mxu0 %v2826
    %v2865 = vpop.f32.mrb[0].mxu0
    %v2866 = vadd.f32 0.0, %v2865
    %v2867 = vpop.f32.mrb[0].mxu0
    %v2868 = vpop.f32.mrb[0].mxu0
    %v2869 = vpop.f32.mrb[0].mxu0
    %2870 = vdwg.mxu0
    %2872 = vrot.lane.b32.xlu0 %v2449, 112
    %v2873 = vpop.permute.xlu0 %2872
    %v2875 = vsel %vm811, %v2821, 0
    %v2878 = vsel %vm815, %v2873, 0
    %2880 = vmatprep.subr.bf16.mxu0 0
    %2881 = vmatpush1.bf16.msra.mxu0 %v2878
    %2882 = vmatprep.subr.bf16.mxu0 0
    %2883 = vmatpush1.bf16.msra.mxu0 0
    %2884 = vmatprep.subr.bf16.mxu0 0
    %2885 = vmatpush1.bf16.msra.mxu0 0
    %2886 = vmatprep.subr.bf16.mxu0 0
    %2887 = vmatpush1.bf16.msra.mxu0 0
    %2888 = vmatprep.subr.bf16.mxu0 0
    %2889 = vmatpush1.bf16.msra.mxu0 0
    %2890 = vmatprep.subr.bf16.mxu0 0
    %2891 = vmatpush1.bf16.msra.mxu0 0
    %2892 = vmatprep.subr.bf16.mxu0 0
    %2893 = vmatpush1.bf16.msra.mxu0 0
    %2894 = vmatprep.subr.bf16.mxu0 0
    %2895 = vmatpush1.bf16.msra.mxu0 0
    %2896 = vmatprep.subr.bf16.mxu0 0
    %2897 = vmatpush1.bf16.msra.mxu0 0
    %2898 = vmatprep.subr.bf16.mxu0 0
    %2899 = vmatpush1.bf16.msra.mxu0 0
    %2900 = vmatprep.subr.bf16.mxu0 0
    %2901 = vmatpush1.bf16.msra.mxu0 0
    %2902 = vmatprep.subr.bf16.mxu0 0
    %2903 = vmatpush1.bf16.msra.mxu0 0
    %2904 = vmatprep.subr.bf16.mxu0 0
    %2905 = vmatpush1.bf16.msra.mxu0 0
    %2906 = vmatprep.subr.bf16.mxu0 0
    %2907 = vmatpush1.bf16.msra.mxu0 0
    %2908 = vmatprep.subr.bf16.mxu0 0
    %2909 = vmatpush1.bf16.msra.mxu0 0
    %2910 = vmatprep.subr.bf16.mxu0 0
    %2911 = vmatpush1.bf16.msra.mxu0 0
    %2912 = vmatprep.mubr.bf16.mxu0 0
    %2913 = vmatmul.mubr.bf16.gmra.mrb[0].mxu0 %v2875
    %v2914 = vpop.f32.mrb[0].mxu0
    %v2915 = vadd.f32 0.0, %v2914
    %v2916 = vpop.f32.mrb[0].mxu0
    %v2917 = vpop.f32.mrb[0].mxu0
    %v2918 = vpop.f32.mrb[0].mxu0
    %2919 = vdwg.mxu0
    %2920 = vrot.lane.b32.xlu0 %v2443, 96
    %v2921 = vpop.permute.xlu0 %2920
    %2922 = vrot.lane.b32.xlu0 %v2443, 32
    %v2923 = vpop.permute.xlu0 %2922
    %v2925 = vsel %vm729, %v2921, 0
    %v2928 = vsel %vm729, %v2923, 0
    %2930 = vmatprep.subr.bf16.mxu0 0
    %2931 = vmatpush1.bf16.xpose.msra.mxu0 %v2928
    %2932 = vmatprep.subr.bf16.mxu0 0
    %2933 = vmatpush1.bf16.xpose.msra.mxu0 0
    %2934 = vmatprep.subr.bf16.mxu0 0
    %2935 = vmatpush1.bf16.xpose.msra.mxu0 0
    %2936 = vmatprep.subr.bf16.mxu0 0
    %2937 = vmatpush1.bf16.xpose.msra.mxu0 0
    %2938 = vmatprep.subr.bf16.mxu0 0
    %2939 = vmatpush1.bf16.xpose.msra.mxu0 0
    %2940 = vmatprep.subr.bf16.mxu0 0
    %2941 = vmatpush1.bf16.xpose.msra.mxu0 0
    %2942 = vmatprep.subr.bf16.mxu0 0
    %2943 = vmatpush1.bf16.xpose.msra.mxu0 0
    %2944 = vmatprep.subr.bf16.mxu0 0
    %2945 = vmatpush1.bf16.xpose.msra.mxu0 0
    %2946 = vmatprep.subr.bf16.mxu0 0
    %2947 = vmatpush1.bf16.xpose.msra.mxu0 0
    %2948 = vmatprep.subr.bf16.mxu0 0
    %2949 = vmatpush1.bf16.xpose.msra.mxu0 0
    %2950 = vmatprep.subr.bf16.mxu0 0
    %2951 = vmatpush1.bf16.xpose.msra.mxu0 0
    %2952 = vmatprep.subr.bf16.mxu0 0
    %2953 = vmatpush1.bf16.xpose.msra.mxu0 0
    %2954 = vmatprep.subr.bf16.mxu0 0
    %2955 = vmatpush1.bf16.xpose.msra.mxu0 0
    %2956 = vmatprep.subr.bf16.mxu0 0
    %2957 = vmatpush1.bf16.xpose.msra.mxu0 0
    %2958 = vmatprep.subr.bf16.mxu0 0
    %2959 = vmatpush1.bf16.xpose.msra.mxu0 0
    %2960 = vmatprep.subr.bf16.mxu0 0
    %2961 = vmatpush1.bf16.xpose.msra.mxu0 0
    %2962 = vmatprep.mubr.bf16.mxu0 0
    %2963 = vmatmul.mubr.bf16.gmra.mrb[0].mxu0 %v2925
    %v2964 = vpop.f32.mrb[0].mxu0
    %v2965 = vadd.f32 %v2476, %v2964
    %v2966 = vpop.f32.mrb[0].mxu0
    %v2967 = vpop.f32.mrb[0].mxu0
    %v2968 = vpop.f32.mrb[0].mxu0
    %2969 = vdwg.mxu0
    %2970 = vrot.lane.b32.xlu0 %v2444, 96
    %v2971 = vpop.permute.xlu0 %2970
    %2972 = vrot.lane.b32.xlu0 %v2444, 32
    %v2973 = vpop.permute.xlu0 %2972
    %v2975 = vsel %vm729, %v2971, 0
    %v2978 = vsel %vm729, %v2973, 0
    %2980 = vmatprep.subr.bf16.mxu0 0
    %2981 = vmatpush1.bf16.xpose.msra.mxu0 %v2978
    %2982 = vmatprep.subr.bf16.mxu0 0
    %2983 = vmatpush1.bf16.xpose.msra.mxu0 0
    %2984 = vmatprep.subr.bf16.mxu0 0
    %2985 = vmatpush1.bf16.xpose.msra.mxu0 0
    %2986 = vmatprep.subr.bf16.mxu0 0
    %2987 = vmatpush1.bf16.xpose.msra.mxu0 0
    %2988 = vmatprep.subr.bf16.mxu0 0
    %2989 = vmatpush1.bf16.xpose.msra.mxu0 0
    %2990 = vmatprep.subr.bf16.mxu0 0
    %2991 = vmatpush1.bf16.xpose.msra.mxu0 0
    %2992 = vmatprep.subr.bf16.mxu0 0
    %2993 = vmatpush1.bf16.xpose.msra.mxu0 0
    %2994 = vmatprep.subr.bf16.mxu0 0
    %2995 = vmatpush1.bf16.xpose.msra.mxu0 0
    %2996 = vmatprep.subr.bf16.mxu0 0
    %2997 = vmatpush1.bf16.xpose.msra.mxu0 0
    %2998 = vmatprep.subr.bf16.mxu0 0
    %2999 = vmatpush1.bf16.xpose.msra.mxu0 0
    %3000 = vmatprep.subr.bf16.mxu0 0
    %3001 = vmatpush1.bf16.xpose.msra.mxu0 0
    %3002 = vmatprep.subr.bf16.mxu0 0
    %3003 = vmatpush1.bf16.xpose.msra.mxu0 0
    %3004 = vmatprep.subr.bf16.mxu0 0
    %3005 = vmatpush1.bf16.xpose.msra.mxu0 0
    %3006 = vmatprep.subr.bf16.mxu0 0
    %3007 = vmatpush1.bf16.xpose.msra.mxu0 0
    %3008 = vmatprep.subr.bf16.mxu0 0
    %3009 = vmatpush1.bf16.xpose.msra.mxu0 0
    %3010 = vmatprep.subr.bf16.mxu0 0
    %3011 = vmatpush1.bf16.xpose.msra.mxu0 0
    %3012 = vmatprep.mubr.bf16.mxu0 0
    %3013 = vmatmul.mubr.bf16.gmra.mrb[0].mxu0 %v2975
    %v3014 = vpop.f32.mrb[0].mxu0
    %v3015 = vadd.f32 %v2480, %v3014
    %v3016 = vpop.f32.mrb[0].mxu0
    %v3017 = vpop.f32.mrb[0].mxu0
    %v3018 = vpop.f32.mrb[0].mxu0
    %3019 = vdwg.mxu0
    %v3020 = vsel %vm2581, %v2965, -inf
    %3021 = vmax.xlane.f32.xlu0 %v3020
    %v3022 = vpop.xlane.xlu0 %3021
    %v3023 = vsel %vm2581, %v3015, -inf
    %3024 = vmax.xlane.f32.xlu0 %v3023
    %v3025 = vpop.xlane.xlu0 %3024
    %v3026 = vsub.f32 %v2965, %v3022
    %v3027 = vsub.f32 %v3015, %v3025
    %v3028 = vmul.f32 %v3026, 1.442695
    %v3029 = vpow.pop %v3028
    %v3030 = vmul.f32 %v3027, 1.442695
    %v3031 = vpow.pop %v3030
    %v3032 = vsel %vm2581, %v3029, 0.0
    %3033 = vadd.xlane.f32.xlu0 %v3032
    %v3034 = vpop.xlane.xlu0 %3033
    %v3035 = vsel %vm2581, %v3031, 0.0
    %3036 = vadd.xlane.f32.xlu0 %v3035
    %v3037 = vpop.xlane.xlu0 %3036
    %v3038 = vrcp.pop %v3034
    %v3039 = vrcp.pop %v3037
    %v3040 = vmul.f32 %v3029, %v3038
    %v3041 = vmul.f32 %v3031, %v3039
    %v3042 = vpack.c.bf16 %v3040, %v3040
    %v3043 = vpack.c.bf16 %v3041, %v3041
    %3044 = vrot.lane.b32.xlu0 %v2448, 96
    %v3045 = vpop.permute.xlu0 %3044
    %v3047 = vsel %vm811, %v3042, 0
    %v3050 = vsel %vm815, %v3045, 0
    %3052 = vmatprep.subr.bf16.mxu0 0
    %3053 = vmatpush1.bf16.msra.mxu0 %v3050
    %3054 = vmatprep.subr.bf16.mxu0 0
    %3055 = vmatpush1.bf16.msra.mxu0 0
    %3056 = vmatprep.subr.bf16.mxu0 0
    %3057 = vmatpush1.bf16.msra.mxu0 0
    %3058 = vmatprep.subr.bf16.mxu0 0
    %3059 = vmatpush1.bf16.msra.mxu0 0
    %3060 = vmatprep.subr.bf16.mxu0 0
    %3061 = vmatpush1.bf16.msra.mxu0 0
    %3062 = vmatprep.subr.bf16.mxu0 0
    %3063 = vmatpush1.bf16.msra.mxu0 0
    %3064 = vmatprep.subr.bf16.mxu0 0
    %3065 = vmatpush1.bf16.msra.mxu0 0
    %3066 = vmatprep.subr.bf16.mxu0 0
    %3067 = vmatpush1.bf16.msra.mxu0 0
    %3068 = vmatprep.subr.bf16.mxu0 0
    %3069 = vmatpush1.bf16.msra.mxu0 0
    %3070 = vmatprep.subr.bf16.mxu0 0
    %3071 = vmatpush1.bf16.msra.mxu0 0
    %3072 = vmatprep.subr.bf16.mxu0 0
    %3073 = vmatpush1.bf16.msra.mxu0 0
    %3074 = vmatprep.subr.bf16.mxu0 0
    %3075 = vmatpush1.bf16.msra.mxu0 0
    %3076 = vmatprep.subr.bf16.mxu0 0
    %3077 = vmatpush1.bf16.msra.mxu0 0
    %3078 = vmatprep.subr.bf16.mxu0 0
    %3079 = vmatpush1.bf16.msra.mxu0 0
    %3080 = vmatprep.subr.bf16.mxu0 0
    %3081 = vmatpush1.bf16.msra.mxu0 0
    %3082 = vmatprep.subr.bf16.mxu0 0
    %3083 = vmatpush1.bf16.msra.mxu0 0
    %3084 = vmatprep.mubr.bf16.mxu0 0
    %3085 = vmatmul.mubr.bf16.gmra.mrb[0].mxu0 %v3047
    %v3086 = vpop.f32.mrb[0].mxu0
    %v3087 = vadd.f32 0.0, %v3086
    %v3088 = vpop.f32.mrb[0].mxu0
    %v3089 = vpop.f32.mrb[0].mxu0
    %v3090 = vpop.f32.mrb[0].mxu0
    %3091 = vdwg.mxu0
    %3092 = vrot.lane.b32.xlu0 %v2449, 96
    %v3093 = vpop.permute.xlu0 %3092
    %v3095 = vsel %vm811, %v3043, 0
    %v3098 = vsel %vm815, %v3093, 0
    %3100 = vmatprep.subr.bf16.mxu0 0
    %3101 = vmatpush1.bf16.msra.mxu0 %v3098
    %3102 = vmatprep.subr.bf16.mxu0 0
    %3103 = vmatpush1.bf16.msra.mxu0 0
    %3104 = vmatprep.subr.bf16.mxu0 0
    %3105 = vmatpush1.bf16.msra.mxu0 0
    %3106 = vmatprep.subr.bf16.mxu0 0
    %3107 = vmatpush1.bf16.msra.mxu0 0
    %3108 = vmatprep.subr.bf16.mxu0 0
    %3109 = vmatpush1.bf16.msra.mxu0 0
    %3110 = vmatprep.subr.bf16.mxu0 0
    %3111 = vmatpush1.bf16.msra.mxu0 0
    %3112 = vmatprep.subr.bf16.mxu0 0
    %3113 = vmatpush1.bf16.msra.mxu0 0
    %3114 = vmatprep.subr.bf16.mxu0 0
    %3115 = vmatpush1.bf16.msra.mxu0 0
    %3116 = vmatprep.subr.bf16.mxu0 0
    %3117 = vmatpush1.bf16.msra.mxu0 0
    %3118 = vmatprep.subr.bf16.mxu0 0
    %3119 = vmatpush1.bf16.msra.mxu0 0
    %3120 = vmatprep.subr.bf16.mxu0 0
    %3121 = vmatpush1.bf16.msra.mxu0 0
    %3122 = vmatprep.subr.bf16.mxu0 0
    %3123 = vmatpush1.bf16.msra.mxu0 0
    %3124 = vmatprep.subr.bf16.mxu0 0
    %3125 = vmatpush1.bf16.msra.mxu0 0
    %3126 = vmatprep.subr.bf16.mxu0 0
    %3127 = vmatpush1.bf16.msra.mxu0 0
    %3128 = vmatprep.subr.bf16.mxu0 0
    %3129 = vmatpush1.bf16.msra.mxu0 0
    %3130 = vmatprep.subr.bf16.mxu0 0
    %3131 = vmatpush1.bf16.msra.mxu0 0
    %3132 = vmatprep.mubr.bf16.mxu0 0
    %3133 = vmatmul.mubr.bf16.gmra.mrb[0].mxu0 %v3095
    %v3134 = vpop.f32.mrb[0].mxu0
    %v3135 = vadd.f32 0.0, %v3134
    %v3136 = vpop.f32.mrb[0].mxu0
    %v3137 = vpop.f32.mrb[0].mxu0
    %v3138 = vpop.f32.mrb[0].mxu0
    %3139 = vdwg.mxu0
    %3140 = vrot.lane.b32.xlu0 %v2443, 80
    %v3141 = vpop.permute.xlu0 %3140
    %3142 = vrot.lane.b32.xlu0 %v2443, 16
    %v3143 = vpop.permute.xlu0 %3142
    %v3145 = vsel %vm729, %v3141, 0
    %v3148 = vsel %vm729, %v3143, 0
    %3150 = vmatprep.subr.bf16.mxu0 0
    %3151 = vmatpush1.bf16.xpose.msra.mxu0 %v3148
    %3152 = vmatprep.subr.bf16.mxu0 0
    %3153 = vmatpush1.bf16.xpose.msra.mxu0 0
    %3154 = vmatprep.subr.bf16.mxu0 0
    %3155 = vmatpush1.bf16.xpose.msra.mxu0 0
    %3156 = vmatprep.subr.bf16.mxu0 0
    %3157 = vmatpush1.bf16.xpose.msra.mxu0 0
    %3158 = vmatprep.subr.bf16.mxu0 0
    %3159 = vmatpush1.bf16.xpose.msra.mxu0 0
    %3160 = vmatprep.subr.bf16.mxu0 0
    %3161 = vmatpush1.bf16.xpose.msra.mxu0 0
    %3162 = vmatprep.subr.bf16.mxu0 0
    %3163 = vmatpush1.bf16.xpose.msra.mxu0 0
    %3164 = vmatprep.subr.bf16.mxu0 0
    %3165 = vmatpush1.bf16.xpose.msra.mxu0 0
    %3166 = vmatprep.subr.bf16.mxu0 0
    %3167 = vmatpush1.bf16.xpose.msra.mxu0 0
    %3168 = vmatprep.subr.bf16.mxu0 0
    %3169 = vmatpush1.bf16.xpose.msra.mxu0 0
    %3170 = vmatprep.subr.bf16.mxu0 0
    %3171 = vmatpush1.bf16.xpose.msra.mxu0 0
    %3172 = vmatprep.subr.bf16.mxu0 0
    %3173 = vmatpush1.bf16.xpose.msra.mxu0 0
    %3174 = vmatprep.subr.bf16.mxu0 0
    %3175 = vmatpush1.bf16.xpose.msra.mxu0 0
    %3176 = vmatprep.subr.bf16.mxu0 0
    %3177 = vmatpush1.bf16.xpose.msra.mxu0 0
    %3178 = vmatprep.subr.bf16.mxu0 0
    %3179 = vmatpush1.bf16.xpose.msra.mxu0 0
    %3180 = vmatprep.subr.bf16.mxu0 0
    %3181 = vmatpush1.bf16.xpose.msra.mxu0 0
    %3182 = vmatprep.mubr.bf16.mxu0 0
    %3183 = vmatmul.mubr.bf16.gmra.mrb[0].mxu0 %v3145
    %v3184 = vpop.f32.mrb[0].mxu0
    %v3185 = vadd.f32 %v2476, %v3184
    %v3186 = vpop.f32.mrb[0].mxu0
    %v3187 = vpop.f32.mrb[0].mxu0
    %v3188 = vpop.f32.mrb[0].mxu0
    %3189 = vdwg.mxu0
    %3190 = vrot.lane.b32.xlu0 %v2444, 80
    %v3191 = vpop.permute.xlu0 %3190
    %3192 = vrot.lane.b32.xlu0 %v2444, 16
    %v3193 = vpop.permute.xlu0 %3192
    %v3195 = vsel %vm729, %v3191, 0
    %v3198 = vsel %vm729, %v3193, 0
    %3200 = vmatprep.subr.bf16.mxu0 0
    %3201 = vmatpush1.bf16.xpose.msra.mxu0 %v3198
    %3202 = vmatprep.subr.bf16.mxu0 0
    %3203 = vmatpush1.bf16.xpose.msra.mxu0 0
    %3204 = vmatprep.subr.bf16.mxu0 0
    %3205 = vmatpush1.bf16.xpose.msra.mxu0 0
    %3206 = vmatprep.subr.bf16.mxu0 0
    %3207 = vmatpush1.bf16.xpose.msra.mxu0 0
    %3208 = vmatprep.subr.bf16.mxu0 0
    %3209 = vmatpush1.bf16.xpose.msra.mxu0 0
    %3210 = vmatprep.subr.bf16.mxu0 0
    %3211 = vmatpush1.bf16.xpose.msra.mxu0 0
    %3212 = vmatprep.subr.bf16.mxu0 0
    %3213 = vmatpush1.bf16.xpose.msra.mxu0 0
    %3214 = vmatprep.subr.bf16.mxu0 0
    %3215 = vmatpush1.bf16.xpose.msra.mxu0 0
    %3216 = vmatprep.subr.bf16.mxu0 0
    %3217 = vmatpush1.bf16.xpose.msra.mxu0 0
    %3218 = vmatprep.subr.bf16.mxu0 0
    %3219 = vmatpush1.bf16.xpose.msra.mxu0 0
    %3220 = vmatprep.subr.bf16.mxu0 0
    %3221 = vmatpush1.bf16.xpose.msra.mxu0 0
    %3222 = vmatprep.subr.bf16.mxu0 0
    %3223 = vmatpush1.bf16.xpose.msra.mxu0 0
    %3224 = vmatprep.subr.bf16.mxu0 0
    %3225 = vmatpush1.bf16.xpose.msra.mxu0 0
    %3226 = vmatprep.subr.bf16.mxu0 0
    %3227 = vmatpush1.bf16.xpose.msra.mxu0 0
    %3228 = vmatprep.subr.bf16.mxu0 0
    %3229 = vmatpush1.bf16.xpose.msra.mxu0 0
    %3230 = vmatprep.subr.bf16.mxu0 0
    %3231 = vmatpush1.bf16.xpose.msra.mxu0 0
    %3232 = vmatprep.mubr.bf16.mxu0 0
    %3233 = vmatmul.mubr.bf16.gmra.mrb[0].mxu0 %v3195
    %v3234 = vpop.f32.mrb[0].mxu0
    %v3235 = vadd.f32 %v2480, %v3234
    %v3236 = vpop.f32.mrb[0].mxu0
    %v3237 = vpop.f32.mrb[0].mxu0
    %v3238 = vpop.f32.mrb[0].mxu0
    %3239 = vdwg.mxu0
    %v3240 = vsel %vm2581, %v3185, -inf
    %3241 = vmax.xlane.f32.xlu0 %v3240
    %v3242 = vpop.xlane.xlu0 %3241
    %v3243 = vsel %vm2581, %v3235, -inf
    %3244 = vmax.xlane.f32.xlu0 %v3243
    %v3245 = vpop.xlane.xlu0 %3244
    %v3246 = vsub.f32 %v3185, %v3242
    %v3247 = vsub.f32 %v3235, %v3245
    %v3248 = vmul.f32 %v3246, 1.442695
    %v3249 = vpow.pop %v3248
    %v3250 = vmul.f32 %v3247, 1.442695
    %v3251 = vpow.pop %v3250
    %v3252 = vsel %vm2581, %v3249, 0.0
    %3253 = vadd.xlane.f32.xlu0 %v3252
    %v3254 = vpop.xlane.xlu0 %3253
    %v3255 = vsel %vm2581, %v3251, 0.0
    %3256 = vadd.xlane.f32.xlu0 %v3255
    %v3257 = vpop.xlane.xlu0 %3256
    %v3258 = vrcp.pop %v3254
    %v3259 = vrcp.pop %v3257
    %v3260 = vmul.f32 %v3249, %v3258
    %v3261 = vmul.f32 %v3251, %v3259
    %v3262 = vpack.c.bf16 %v3260, %v3260
    %v3263 = vpack.c.bf16 %v3261, %v3261
    %3264 = vrot.lane.b32.xlu0 %v2448, 80
    %v3265 = vpop.permute.xlu0 %3264
    %v3267 = vsel %vm811, %v3262, 0
    %v3270 = vsel %vm815, %v3265, 0
    %3272 = vmatprep.subr.bf16.mxu0 0
    %3273 = vmatpush1.bf16.msra.mxu0 %v3270
    %3274 = vmatprep.subr.bf16.mxu0 0
    %3275 = vmatpush1.bf16.msra.mxu0 0
    %3276 = vmatprep.subr.bf16.mxu0 0
    %3277 = vmatpush1.bf16.msra.mxu0 0
    %3278 = vmatprep.subr.bf16.mxu0 0
    %3279 = vmatpush1.bf16.msra.mxu0 0
    %3280 = vmatprep.subr.bf16.mxu0 0
    %3281 = vmatpush1.bf16.msra.mxu0 0
    %3282 = vmatprep.subr.bf16.mxu0 0
    %3283 = vmatpush1.bf16.msra.mxu0 0
    %3284 = vmatprep.subr.bf16.mxu0 0
    %3285 = vmatpush1.bf16.msra.mxu0 0
    %3286 = vmatprep.subr.bf16.mxu0 0
    %3287 = vmatpush1.bf16.msra.mxu0 0
    %3288 = vmatprep.subr.bf16.mxu0 0
    %3289 = vmatpush1.bf16.msra.mxu0 0
    %3290 = vmatprep.subr.bf16.mxu0 0
    %3291 = vmatpush1.bf16.msra.mxu0 0
    %3292 = vmatprep.subr.bf16.mxu0 0
    %3293 = vmatpush1.bf16.msra.mxu0 0
    %3294 = vmatprep.subr.bf16.mxu0 0
    %3295 = vmatpush1.bf16.msra.mxu0 0
    %3296 = vmatprep.subr.bf16.mxu0 0
    %3297 = vmatpush1.bf16.msra.mxu0 0
    %3298 = vmatprep.subr.bf16.mxu0 0
    %3299 = vmatpush1.bf16.msra.mxu0 0
    %3300 = vmatprep.subr.bf16.mxu0 0
    %3301 = vmatpush1.bf16.msra.mxu0 0
    %3302 = vmatprep.subr.bf16.mxu0 0
    %3303 = vmatpush1.bf16.msra.mxu0 0
    %3304 = vmatprep.mubr.bf16.mxu0 0
    %3305 = vmatmul.mubr.bf16.gmra.mrb[0].mxu0 %v3267
    %v3306 = vpop.f32.mrb[0].mxu0
    %v3307 = vadd.f32 0.0, %v3306
    %v3308 = vpop.f32.mrb[0].mxu0
    %v3309 = vpop.f32.mrb[0].mxu0
    %v3310 = vpop.f32.mrb[0].mxu0
    %3311 = vdwg.mxu0
    %3312 = vrot.lane.b32.xlu0 %v2449, 80
    %v3313 = vpop.permute.xlu0 %3312
    %v3315 = vsel %vm811, %v3263, 0
    %v3318 = vsel %vm815, %v3313, 0
    %3320 = vmatprep.subr.bf16.mxu0 0
    %3321 = vmatpush1.bf16.msra.mxu0 %v3318
    %3322 = vmatprep.subr.bf16.mxu0 0
    %3323 = vmatpush1.bf16.msra.mxu0 0
    %3324 = vmatprep.subr.bf16.mxu0 0
    %3325 = vmatpush1.bf16.msra.mxu0 0
    %3326 = vmatprep.subr.bf16.mxu0 0
    %3327 = vmatpush1.bf16.msra.mxu0 0
    %3328 = vmatprep.subr.bf16.mxu0 0
    %3329 = vmatpush1.bf16.msra.mxu0 0
    %3330 = vmatprep.subr.bf16.mxu0 0
    %3331 = vmatpush1.bf16.msra.mxu0 0
    %3332 = vmatprep.subr.bf16.mxu0 0
    %3333 = vmatpush1.bf16.msra.mxu0 0
    %3334 = vmatprep.subr.bf16.mxu0 0
    %3335 = vmatpush1.bf16.msra.mxu0 0
    %3336 = vmatprep.subr.bf16.mxu0 0
    %3337 = vmatpush1.bf16.msra.mxu0 0
    %3338 = vmatprep.subr.bf16.mxu0 0
    %3339 = vmatpush1.bf16.msra.mxu0 0
    %3340 = vmatprep.subr.bf16.mxu0 0
    %3341 = vmatpush1.bf16.msra.mxu0 0
    %3342 = vmatprep.subr.bf16.mxu0 0
    %3343 = vmatpush1.bf16.msra.mxu0 0
    %3344 = vmatprep.subr.bf16.mxu0 0
    %3345 = vmatpush1.bf16.msra.mxu0 0
    %3346 = vmatprep.subr.bf16.mxu0 0
    %3347 = vmatpush1.bf16.msra.mxu0 0
    %3348 = vmatprep.subr.bf16.mxu0 0
    %3349 = vmatpush1.bf16.msra.mxu0 0
    %3350 = vmatprep.subr.bf16.mxu0 0
    %3351 = vmatpush1.bf16.msra.mxu0 0
    %3352 = vmatprep.mubr.bf16.mxu0 0
    %3353 = vmatmul.mubr.bf16.gmra.mrb[0].mxu0 %v3315
    %v3354 = vpop.f32.mrb[0].mxu0
    %v3355 = vadd.f32 0.0, %v3354
    %v3356 = vpop.f32.mrb[0].mxu0
    %v3357 = vpop.f32.mrb[0].mxu0
    %v3358 = vpop.f32.mrb[0].mxu0
    %3359 = vdwg.mxu0
    %3362 = vrot.lane.b32.xlu0 %v2866, 16
    %v3363 = vpop.permute.xlu0 %3362
    %3364 = vrot.lane.b32.xlu0 %v2915, 16
    %v3365 = vpop.permute.xlu0 %3364
    %3370 = vrot.lane.b32.xlu0 %v3087, 32
    %v3371 = vpop.permute.xlu0 %3370
    %3372 = vrot.lane.b32.xlu0 %v3135, 32
    %v3373 = vpop.permute.xlu0 %3372
    %3378 = vrot.lane.b32.xlu0 %v3307, 48
    %v3379 = vpop.permute.xlu0 %3378
    %3380 = vrot.lane.b32.xlu0 %v3355, 48
    %v3381 = vpop.permute.xlu0 %3380
    %v3384 = vsel %vm729, %v2647, %v3363
    %v3385 = vsel %vm729, %v2693, %v3365
    %v3386 = vsel %vm1938, %v3384, %v3371
    %v3387 = vsel %vm1938, %v3385, %v3373
    %v3388 = vsel %vm1941, %v3386, %v3379
    %v3389 = vsel %vm1941, %v3387, %v3381
    %v3390 = vld [vmem:[%s57] sm:$0xf]
    %v3391 = vld [vmem:[%s57 + $0x4] sm:$0xf]
    %v3392 = vld [vmem:[%s57 + $0x8] sm:$0xf]
    %v3393 = vld [vmem:[%s57 + $0xc] sm:$0xf]
    %v3394 = vld [vmem:[%s57 + $0x10] sm:$0xf]
    %v3395 = vld [vmem:[%s57 + $0x14] sm:$0xf]
    %v3396 = vld [vmem:[%s57 + $0x18] sm:$0xf]
    %v3397 = vld [vmem:[%s57 + $0x1c] sm:$0xf]
    %v3398 = vld [vmem:[#allocation14] sm:$0x1]
    %v3401 = vcombine.low %v3388, %v3389
    %v3403 = vpack.c.bf16 %v3401, %v3401
    %v3405 = vlaneseq
    %v3406 = vshrl.u32 %v3405, 7
    %v3407 = vsub.s32 0, %v3406
    %v3408 = vrot.slane %v3398, %v3407
    %v3418 = vunpack.c.l.b16 %v3390
    %v3419 = vunpack.c.l.b16 %v3391
    %v3420 = vunpack.c.l.b16 %v3392
    %v3421 = vunpack.c.l.b16 %v3393
    %v3422 = vunpack.c.l.b16 %v3394
    %v3423 = vunpack.c.l.b16 %v3395
    %v3424 = vunpack.c.l.b16 %v3396
    %v3425 = vunpack.c.l.b16 %v3397
    %v3426 = vpack.c.b16 %v3419, %v3418
    %v3427 = vpack.c.b16 %v3421, %v3420
    %v3428 = vpack.c.b16 %v3423, %v3422
    %v3429 = vpack.c.b16 %v3425, %v3424
    %v3435 = vsel %vm667, %v3403, 0
    %3437 = vmatprep.subr.bf16.mxu0 0
    %3438 = vmatpush1.bf16.msra.mxu0 %v3426
    %3439 = vmatprep.subr.bf16.mxu0 0
    %3440 = vmatpush1.bf16.msra.mxu0 %v3427
    %3441 = vmatprep.subr.bf16.mxu0 0
    %3442 = vmatpush1.bf16.msra.mxu0 %v3428
    %3443 = vmatprep.subr.bf16.mxu0 0
    %3444 = vmatpush1.bf16.msra.mxu0 %v3429
    %3445 = vmatprep.subr.bf16.mxu0 0
    %3446 = vmatpush1.bf16.msra.mxu0 0
    %3447 = vmatprep.subr.bf16.mxu0 0
    %3448 = vmatpush1.bf16.msra.mxu0 0
    %3449 = vmatprep.subr.bf16.mxu0 0
    %3450 = vmatpush1.bf16.msra.mxu0 0
    %3451 = vmatprep.subr.bf16.mxu0 0
    %3452 = vmatpush1.bf16.msra.mxu0 0
    %3453 = vmatprep.subr.bf16.mxu0 0
    %3454 = vmatpush1.bf16.msra.mxu0 0
    %3455 = vmatprep.subr.bf16.mxu0 0
    %3456 = vmatpush1.bf16.msra.mxu0 0
    %3457 = vmatprep.subr.bf16.mxu0 0
    %3458 = vmatpush1.bf16.msra.mxu0 0
    %3459 = vmatprep.subr.bf16.mxu0 0
    %3460 = vmatpush1.bf16.msra.mxu0 0
    %3461 = vmatprep.subr.bf16.mxu0 0
    %3462 = vmatpush1.bf16.msra.mxu0 0
    %3463 = vmatprep.subr.bf16.mxu0 0
    %3464 = vmatpush1.bf16.msra.mxu0 0
    %3465 = vmatprep.subr.bf16.mxu0 0
    %3466 = vmatpush1.bf16.msra.mxu0 0
    %3467 = vmatprep.subr.bf16.mxu0 0
    %3468 = vmatpush1.bf16.msra.mxu0 0
    %3469 = vmatprep.mubr.bf16.mxu0 0
    %3470 = vmatmul.mubr.bf16.gmra.mrb[0].mxu0 %v3435
    %v3471 = vpop.f32.mrb[0].mxu0
    %v3472 = vadd.f32 %v3408, %v3471
    %v3473 = vpop.f32.mrb[0].mxu0
    %v3474 = vpop.f32.mrb[0].mxu0
    %v3475 = vpop.f32.mrb[0].mxu0
    %3476 = vdwg.mxu0
    %v3477 = vadd.f32 %v3472, %v889
    %v3478 = vld [vmem:[#allocation13] sm:$0x1]
    %v3479 = vld [vmem:[#allocation11] sm:$0x1]
    %v3480 = vsel %vm667, %v3477, 0.0
    %3481 = vadd.xlane.f32.xlu0 %v3480
    %v3482 = vpop.xlane.xlu0 %3481
    %v3483 = vmul.f32 %v3482, %v674
    %v3484 = vsub.f32 %v3477, %v3483
    %v3485 = vmul.f32 %v3484, %v3484
    %v3486 = vsel %vm667, %v3485, 0.0
    %3487 = vadd.xlane.f32.xlu0 %v3486
    %v3488 = vpop.xlane.xlu0 %3487
    %v3489 = vmul.f32 %v3488, %v674
    %v3490 = vadd.f32 %v3489, 1e-12
    %v3491 = vrsqrt.pop %v3490
    %v3492 = vmul.f32 %v3484, %v3491
    %v3494 = vlaneseq
    %v3495 = vshrl.u32 %v3494, 7
    %v3496 = vsub.s32 0, %v3495
    %v3497 = vrot.slane %v3478, %v3496
    %v3499 = vmul.f32 %v3492, %v3497
    %v3501 = vlaneseq
    %v3502 = vshrl.u32 %v3501, 7
    %v3503 = vsub.s32 0, %v3502
    %v3504 = vrot.slane %v3479, %v3503
    %v3506 = vadd.f32 %v3499, %v3504
    %v3507 = vld [vmem:[%s65] sm:$0xf]
    %v3508 = vld [vmem:[%s65 + $0x4] sm:$0xf]
    %v3509 = vld [vmem:[%s65 + $0x8] sm:$0xf]
    %v3510 = vld [vmem:[%s65 + $0xc] sm:$0xf]
    %v3511 = vld [vmem:[%s65 + $0x10] sm:$0xf]
    %v3512 = vld [vmem:[%s65 + $0x14] sm:$0xf]
    %v3513 = vld [vmem:[%s65 + $0x18] sm:$0xf]
    %v3514 = vld [vmem:[%s65 + $0x1c] sm:$0xf]
    %v3515 = vld [vmem:[#allocation16] sm:$0x1]
    %v3516 = vpack.c.bf16 %v3506, %v3506
    %v3518 = vlaneseq
    %v3519 = vshrl.u32 %v3518, 7
    %v3520 = vsub.s32 0, %v3519
    %v3521 = vrot.slane %v3515, %v3520
    %v3531 = vunpack.c.l.b16 %v3507
    %v3532 = vunpack.c.l.b16 %v3508
    %v3533 = vunpack.c.l.b16 %v3509
    %v3534 = vunpack.c.l.b16 %v3510
    %v3535 = vunpack.c.l.b16 %v3511
    %v3536 = vunpack.c.l.b16 %v3512
    %v3537 = vunpack.c.l.b16 %v3513
    %v3538 = vunpack.c.l.b16 %v3514
    %v3539 = vpack.c.b16 %v3532, %v3531
    %v3540 = vpack.c.b16 %v3534, %v3533
    %v3541 = vpack.c.b16 %v3536, %v3535
    %v3542 = vpack.c.b16 %v3538, %v3537
    %v3548 = vsel %vm667, %v3516, 0
    %3550 = vmatprep.subr.bf16.mxu0 0
    %3551 = vmatpush1.bf16.msra.mxu0 %v3539
    %3552 = vmatprep.subr.bf16.mxu0 0
    %3553 = vmatpush1.bf16.msra.mxu0 %v3540
    %3554 = vmatprep.subr.bf16.mxu0 0
    %3555 = vmatpush1.bf16.msra.mxu0 %v3541
    %3556 = vmatprep.subr.bf16.mxu0 0
    %3557 = vmatpush1.bf16.msra.mxu0 %v3542
    %3558 = vmatprep.subr.bf16.mxu0 0
    %3559 = vmatpush1.bf16.msra.mxu0 0
    %3560 = vmatprep.subr.bf16.mxu0 0
    %3561 = vmatpush1.bf16.msra.mxu0 0
    %3562 = vmatprep.subr.bf16.mxu0 0
    %3563 = vmatpush1.bf16.msra.mxu0 0
    %3564 = vmatprep.subr.bf16.mxu0 0
    %3565 = vmatpush1.bf16.msra.mxu0 0
    %3566 = vmatprep.subr.bf16.mxu0 0
    %3567 = vmatpush1.bf16.msra.mxu0 0
    %3568 = vmatprep.subr.bf16.mxu0 0
    %3569 = vmatpush1.bf16.msra.mxu0 0
    %3570 = vmatprep.subr.bf16.mxu0 0
    %3571 = vmatpush1.bf16.msra.mxu0 0
    %3572 = vmatprep.subr.bf16.mxu0 0
    %3573 = vmatpush1.bf16.msra.mxu0 0
    %3574 = vmatprep.subr.bf16.mxu0 0
    %3575 = vmatpush1.bf16.msra.mxu0 0
    %3576 = vmatprep.subr.bf16.mxu0 0
    %3577 = vmatpush1.bf16.msra.mxu0 0
    %3578 = vmatprep.subr.bf16.mxu0 0
    %3579 = vmatpush1.bf16.msra.mxu0 0
    %3580 = vmatprep.subr.bf16.mxu0 0
    %3581 = vmatpush1.bf16.msra.mxu0 0
    %3582 = vmatprep.mubr.bf16.mxu0 0
    %3583 = vmatmul.mubr.bf16.gmra.mrb[0].mxu0 %v3548
    %v3584 = vpop.f32.mrb[0].mxu0
    %v3585 = vadd.f32 %v3521, %v3584
    %v3586 = vpop.f32.mrb[0].mxu0
    %v3587 = vpop.f32.mrb[0].mxu0
    %v3588 = vpop.f32.mrb[0].mxu0
    %3589 = vdwg.mxu0
    %v3590 = vmul.f32 %v3585, 0.5
    %v3591 = vmul.f32 %v3585, 0.044715
    %v3592 = vmul.f32 %v3591, %v3585
    %v3593 = vmul.f32 %v3592, %v3585
    %v3594 = vadd.f32 %v3585, %v3593
    %v3595 = vmul.f32 %v3594, 0.7978846
    %v3596 = vtanh.pop %v3595
    %v3597 = vadd.f32 %v3596, 1.0
    %v3598 = vmul.f32 %v3590, %v3597
    %v3599 = vld [vmem:[%s73] sm:$0xf]
    %v3600 = vld [vmem:[%s73 + $0x4] sm:$0xf]
    %v3601 = vld [vmem:[%s73 + $0x8] sm:$0xf]
    %v3602 = vld [vmem:[%s73 + $0xc] sm:$0xf]
    %v3603 = vld [vmem:[%s73 + $0x10] sm:$0xf]
    %v3604 = vld [vmem:[%s73 + $0x14] sm:$0xf]
    %v3605 = vld [vmem:[%s73 + $0x18] sm:$0xf]
    %v3606 = vld [vmem:[%s73 + $0x1c] sm:$0xf]
    %v3607 = vld [vmem:[%s73 + $0x20] sm:$0xf]
    %v3608 = vld [vmem:[%s73 + $0x24] sm:$0xf]
    %v3609 = vld [vmem:[%s73 + $0x28] sm:$0xf]
    %v3610 = vld [vmem:[%s73 + $0x2c] sm:$0xf]
    %v3611 = vld [vmem:[%s73 + $0x30] sm:$0xf]
    %v3612 = vld [vmem:[%s73 + $0x34] sm:$0xf]
    %v3613 = vld [vmem:[%s73 + $0x38] sm:$0xf]
    %v3614 = vld [vmem:[%s73 + $0x3c] sm:$0xf]
    %v3615 = vld [vmem:[#allocation20] sm:$0x1]
    %v3616 = vpack.c.bf16 %v3598, %v3598
    %v3618 = vlaneseq
    %v3619 = vshrl.u32 %v3618, 7
    %v3620 = vsub.s32 0, %v3619
    %v3621 = vrot.slane %v3615, %v3620
    %v3639 = vunpack.c.l.b16 %v3599
    %v3640 = vunpack.c.l.b16 %v3600
    %v3641 = vunpack.c.l.b16 %v3601
    %v3642 = vunpack.c.l.b16 %v3602
    %v3643 = vunpack.c.l.b16 %v3603
    %v3644 = vunpack.c.l.b16 %v3604
    %v3645 = vunpack.c.l.b16 %v3605
    %v3646 = vunpack.c.l.b16 %v3606
    %v3647 = vunpack.c.l.b16 %v3607
    %v3648 = vunpack.c.l.b16 %v3608
    %v3649 = vunpack.c.l.b16 %v3609
    %v3650 = vunpack.c.l.b16 %v3610
    %v3651 = vunpack.c.l.b16 %v3611
    %v3652 = vunpack.c.l.b16 %v3612
    %v3653 = vunpack.c.l.b16 %v3613
    %v3654 = vunpack.c.l.b16 %v3614
    %v3655 = vpack.c.b16 %v3640, %v3639
    %v3656 = vpack.c.b16 %v3642, %v3641
    %v3657 = vpack.c.b16 %v3644, %v3643
    %v3658 = vpack.c.b16 %v3646, %v3645
    %v3659 = vpack.c.b16 %v3648, %v3647
    %v3660 = vpack.c.b16 %v3650, %v3649
    %v3661 = vpack.c.b16 %v3652, %v3651
    %v3662 = vpack.c.b16 %v3654, %v3653
    %3671 = vmatprep.subr.bf16.mxu0 0
    %3672 = vmatpush1.bf16.msra.mxu0 %v3655
    %3673 = vmatprep.subr.bf16.mxu0 0
    %3674 = vmatpush1.bf16.msra.mxu0 %v3656
    %3675 = vmatprep.subr.bf16.mxu0 0
    %3676 = vmatpush1.bf16.msra.mxu0 %v3657
    %3677 = vmatprep.subr.bf16.mxu0 0
    %3678 = vmatpush1.bf16.msra.mxu0 %v3658
    %3679 = vmatprep.subr.bf16.mxu0 0
    %3680 = vmatpush1.bf16.msra.mxu0 %v3659
    %3681 = vmatprep.subr.bf16.mxu0 0
    %3682 = vmatpush1.bf16.msra.mxu0 %v3660
    %3683 = vmatprep.subr.bf16.mxu0 0
    %3684 = vmatpush1.bf16.msra.mxu0 %v3661
    %3685 = vmatprep.subr.bf16.mxu0 0
    %3686 = vmatpush1.bf16.msra.mxu0 %v3662
    %3687 = vmatprep.subr.bf16.mxu0 0
    %3688 = vmatpush1.bf16.msra.mxu0 0
    %3689 = vmatprep.subr.bf16.mxu0 0
    %3690 = vmatpush1.bf16.msra.mxu0 0
    %3691 = vmatprep.subr.bf16.mxu0 0
    %3692 = vmatpush1.bf16.msra.mxu0 0
    %3693 = vmatprep.subr.bf16.mxu0 0
    %3694 = vmatpush1.bf16.msra.mxu0 0
    %3695 = vmatprep.subr.bf16.mxu0 0
    %3696 = vmatpush1.bf16.msra.mxu0 0
    %3697 = vmatprep.subr.bf16.mxu0 0
    %3698 = vmatpush1.bf16.msra.mxu0 0
    %3699 = vmatprep.subr.bf16.mxu0 0
    %3700 = vmatpush1.bf16.msra.mxu0 0
    %3701 = vmatprep.subr.bf16.mxu0 0
    %3702 = vmatpush1.bf16.msra.mxu0 0
    %3703 = vmatprep.mubr.bf16.mxu0 0
    %3704 = vmatmul.mubr.bf16.gmra.mrb[0].mxu0 %v3616
    %v3705 = vpop.f32.mrb[0].mxu0
    %v3706 = vadd.f32 %v3621, %v3705
    %v3707 = vpop.f32.mrb[0].mxu0
    %v3708 = vpop.f32.mrb[0].mxu0
    %v3709 = vpop.f32.mrb[0].mxu0
    %3710 = vdwg.mxu0
    %v3711 = vadd.f32 %v3706, %v3506
    %v3712 = vld [vmem:[#allocation19] sm:$0x1]
    %v3713 = vld [vmem:[#allocation17] sm:$0x1]
    %v3714 = vsel %vm667, %v3711, 0.0
    %3715 = vadd.xlane.f32.xlu0 %v3714
    %v3716 = vpop.xlane.xlu0 %3715
    %v3717 = vmul.f32 %v3716, %v674
    %v3718 = vsub.f32 %v3711, %v3717
    %v3719 = vmul.f32 %v3718, %v3718
    %v3720 = vsel %vm667, %v3719, 0.0
    %3721 = vadd.xlane.f32.xlu0 %v3720
    %v3722 = vpop.xlane.xlu0 %3721
    %v3723 = vmul.f32 %v3722, %v674
    %v3724 = vadd.f32 %v3723, 1e-12
    %v3725 = vrsqrt.pop %v3724
    %v3726 = vmul.f32 %v3718, %v3725
    %v3728 = vlaneseq
    %v3729 = vshrl.u32 %v3728, 7
    %v3730 = vsub.s32 0, %v3729
    %v3731 = vrot.slane %v3712, %v3730
    %v3733 = vmul.f32 %v3726, %v3731
    %v3735 = vlaneseq
    %v3736 = vshrl.u32 %v3735, 7
    %v3737 = vsub.s32 0, %v3736
    %v3738 = vrot.slane %v3713, %v3737
    %v3740 = vadd.f32 %v3733, %v3738
    %v3741 = vld [vmem:[%s93] sm:$0xff]
    %v3742 = vld [vmem:[%s93 + $0x8] sm:$0xff]
    %v3743 = vld [vmem:[%s93 + $0x10] sm:$0xff]
    %v3744 = vld [vmem:[%s93 + $0x18] sm:$0xff]
    %v3745 = vld [vmem:[%s93 + $0x20] sm:$0xff]
    %v3746 = vld [vmem:[%s93 + $0x28] sm:$0xff]
    %v3747 = vld [vmem:[%s93 + $0x30] sm:$0xff]
    %v3748 = vld [vmem:[%s93 + $0x38] sm:$0xff]
    %v3749 = vld [vmem:[%s91] sm:$0x3]
    %v3750 = vpack.c.bf16 %v2334, %v2333
    %v3751 = vpack.c.bf16 %v3740, %v3740
    %v3753 = vlaneseq
    %v3754 = vshrl.u32 %v3753, 7
    %v3755 = vsub.s32 0, %v3754
    %v3756 = vrot.slane %v3749, %v3755
    %v3757 = vlaneseq
    %v3758 = vshrl.u32 %v3757, 7
    %v3759 = vsub.s32 1, %v3758
    %v3760 = vrot.slane %v3749, %v3759
    %v3771 = vunpack.c.l.b16 %v3741
    %v3772 = vunpack.c.h.b16 %v3741
    %v3773 = vunpack.c.l.b16 %v3742
    %v3774 = vunpack.c.h.b16 %v3742
    %v3775 = vunpack.c.l.b16 %v3743
    %v3776 = vunpack.c.h.b16 %v3743
    %v3777 = vunpack.c.l.b16 %v3744
    %v3778 = vunpack.c.h.b16 %v3744
    %v3779 = vunpack.c.l.b16 %v3745
    %v3780 = vunpack.c.h.b16 %v3745
    %v3781 = vunpack.c.l.b16 %v3746
    %v3782 = vunpack.c.h.b16 %v3746
    %v3783 = vunpack.c.l.b16 %v3747
    %v3784 = vunpack.c.h.b16 %v3747
    %v3785 = vunpack.c.l.b16 %v3748
    %v3786 = vunpack.c.h.b16 %v3748
    %v3787 = vpack.c.b16 %v3773, %v3771
    %v3788 = vpack.c.b16 %v3774, %v3772
    %v3789 = vpack.c.b16 %v3777, %v3775
    %v3790 = vpack.c.b16 %v3778, %v3776
    %v3791 = vpack.c.b16 %v3781, %v3779
    %v3792 = vpack.c.b16 %v3782, %v3780
    %v3793 = vpack.c.b16 %v3785, %v3783
    %v3794 = vpack.c.b16 %v3786, %v3784
    %v3804 = vsel %vm667, %v3750, 0
    %v3807 = vsel %vm667, %v3751, 0
    %3809 = vmatprep.subr.bf16.mxu0 %v3788
    %3810 = vmatpush1.bf16.msra.mxu0 %v3787
    %3811 = vmatprep.subr.bf16.mxu0 %v3790
    %3812 = vmatpush1.bf16.msra.mxu0 %v3789
    %3813 = vmatprep.subr.bf16.mxu0 %v3792
    %3814 = vmatpush1.bf16.msra.mxu0 %v3791
    %3815 = vmatprep.subr.bf16.mxu0 %v3794
    %3816 = vmatpush1.bf16.msra.mxu0 %v3793
    %3817 = vmatprep.subr.bf16.mxu0 0
    %3818 = vmatpush1.bf16.msra.mxu0 0
    %3819 = vmatprep.subr.bf16.mxu0 0
    %3820 = vmatpush1.bf16.msra.mxu0 0
    %3821 = vmatprep.subr.bf16.mxu0 0
    %3822 = vmatpush1.bf16.msra.mxu0 0
    %3823 = vmatprep.subr.bf16.mxu0 0
    %3824 = vmatpush1.bf16.msra.mxu0 0
    %3825 = vmatprep.subr.bf16.mxu0 0
    %3826 = vmatpush1.bf16.msra.mxu0 0
    %3827 = vmatprep.subr.bf16.mxu0 0
    %3828 = vmatpush1.bf16.msra.mxu0 0
    %3829 = vmatprep.subr.bf16.mxu0 0
    %3830 = vmatpush1.bf16.msra.mxu0 0
    %3831 = vmatprep.subr.bf16.mxu0 0
    %3832 = vmatpush1.bf16.msra.mxu0 0
    %3833 = vmatprep.subr.bf16.mxu0 0
    %3834 = vmatpush1.bf16.msra.mxu0 0
    %3835 = vmatprep.subr.bf16.mxu0 0
    %3836 = vmatpush1.bf16.msra.mxu0 0
    %3837 = vmatprep.subr.bf16.mxu0 0
    %3838 = vmatpush1.bf16.msra.mxu0 0
    %3839 = vmatprep.subr.bf16.mxu0 0
    %3840 = vmatpush1.bf16.msra.mxu0 0
    %3841 = vmatprep.mubr.bf16.mxu0 0
    %3842 = vmatmul.mubr.bf16.gmra.mrb[0].mxu0 %v3804
    %v3843 = vpop.f32.mrb[0].mxu0
    %v3844 = vadd.f32 %v3756, %v3843
    %v3845 = vpop.f32.mrb[0].mxu0
    %v3846 = vpop.f32.mrb[0].mxu0
    %v3847 = vadd.f32 %v3756, %v3846
    %v3848 = vpop.f32.mrb[0].mxu0
    %3849 = vmatprep.mubr.bf16.mxu0 0
    %3850 = vmatmul.mubr.bf16.gmra.mrb[0].mxu0 %v3807
    %v3851 = vpop.f32.mrb[0].mxu0
    %v3852 = vadd.f32 %v3756, %v3851
    %v3853 = vpop.f32.mrb[0].mxu0
    %v3854 = vadd.f32 %v3760, %v3853
    %v3855 = vpop.f32.mrb[0].mxu0
    %v3856 = vpop.f32.mrb[0].mxu0
    %3857 = vdwg.mxu0
    %v3858 = vpack.c.bf16 %v3844, %v3844
    %v3859 = vpack.c.bf16 %v3847, %v3847
    %v3861 = vcombine.high %v3852, %v3852
    %v3863 = vpack.c.bf16 %v3852, %v3852
    %v3864 = vpack.c.bf16 %v3861, %v3861
    %v3866 = vcombine.high %v3854, %v3854
    %v3868 = vpack.c.bf16 %v3854, %v3854
    %v3869 = vpack.c.bf16 %v3866, %v3866
    %3871 = vrot.lane.b32.xlu0 %v3863, 64
    %v3872 = vpop.permute.xlu0 %3871
    %v3874 = vsel %vm729, %v3858, 0
    %v3877 = vsel %vm729, %v3872, 0
    %3879 = vmatprep.subr.bf16.mxu0 0
    %3880 = vmatpush1.bf16.xpose.msra.mxu0 %v3877
    %3881 = vmatprep.subr.bf16.mxu0 0
    %3882 = vmatpush1.bf16.xpose.msra.mxu0 0
    %3883 = vmatprep.subr.bf16.mxu0 0
    %3884 = vmatpush1.bf16.xpose.msra.mxu0 0
    %3885 = vmatprep.subr.bf16.mxu0 0
    %3886 = vmatpush1.bf16.xpose.msra.mxu0 0
    %3887 = vmatprep.subr.bf16.mxu0 0
    %3888 = vmatpush1.bf16.xpose.msra.mxu0 0
    %3889 = vmatprep.subr.bf16.mxu0 0
    %3890 = vmatpush1.bf16.xpose.msra.mxu0 0
    %3891 = vmatprep.subr.bf16.mxu0 0
    %3892 = vmatpush1.bf16.xpose.msra.mxu0 0
    %3893 = vmatprep.subr.bf16.mxu0 0
    %3894 = vmatpush1.bf16.xpose.msra.mxu0 0
    %3895 = vmatprep.subr.bf16.mxu0 0
    %3896 = vmatpush1.bf16.xpose.msra.mxu0 0
    %3897 = vmatprep.subr.bf16.mxu0 0
    %3898 = vmatpush1.bf16.xpose.msra.mxu0 0
    %3899 = vmatprep.subr.bf16.mxu0 0
    %3900 = vmatpush1.bf16.xpose.msra.mxu0 0
    %3901 = vmatprep.subr.bf16.mxu0 0
    %3902 = vmatpush1.bf16.xpose.msra.mxu0 0
    %3903 = vmatprep.subr.bf16.mxu0 0
    %3904 = vmatpush1.bf16.xpose.msra.mxu0 0
    %3905 = vmatprep.subr.bf16.mxu0 0
    %3906 = vmatpush1.bf16.xpose.msra.mxu0 0
    %3907 = vmatprep.subr.bf16.mxu0 0
    %3908 = vmatpush1.bf16.xpose.msra.mxu0 0
    %3909 = vmatprep.subr.bf16.mxu0 0
    %3910 = vmatpush1.bf16.xpose.msra.mxu0 0
    %3911 = vmatprep.mubr.bf16.mxu0 0
    %3912 = vmatmul.mubr.bf16.gmra.mrb[0].mxu0 %v3874
    %v3913 = vpop.f32.mrb[0].mxu0
    %v3914 = vadd.f32 %v2476, %v3913
    %v3915 = vpop.f32.mrb[0].mxu0
    %v3916 = vpop.f32.mrb[0].mxu0
    %v3917 = vpop.f32.mrb[0].mxu0
    %3918 = vdwg.mxu0
    %3920 = vrot.lane.b32.xlu0 %v3864, 64
    %v3921 = vpop.permute.xlu0 %3920
    %v3923 = vsel %vm729, %v3859, 0
    %v3926 = vsel %vm729, %v3921, 0
    %3928 = vmatprep.subr.bf16.mxu0 0
    %3929 = vmatpush1.bf16.xpose.msra.mxu0 %v3926
    %3930 = vmatprep.subr.bf16.mxu0 0
    %3931 = vmatpush1.bf16.xpose.msra.mxu0 0
    %3932 = vmatprep.subr.bf16.mxu0 0
    %3933 = vmatpush1.bf16.xpose.msra.mxu0 0
    %3934 = vmatprep.subr.bf16.mxu0 0
    %3935 = vmatpush1.bf16.xpose.msra.mxu0 0
    %3936 = vmatprep.subr.bf16.mxu0 0
    %3937 = vmatpush1.bf16.xpose.msra.mxu0 0
    %3938 = vmatprep.subr.bf16.mxu0 0
    %3939 = vmatpush1.bf16.xpose.msra.mxu0 0
    %3940 = vmatprep.subr.bf16.mxu0 0
    %3941 = vmatpush1.bf16.xpose.msra.mxu0 0
    %3942 = vmatprep.subr.bf16.mxu0 0
    %3943 = vmatpush1.bf16.xpose.msra.mxu0 0
    %3944 = vmatprep.subr.bf16.mxu0 0
    %3945 = vmatpush1.bf16.xpose.msra.mxu0 0
    %3946 = vmatprep.subr.bf16.mxu0 0
    %3947 = vmatpush1.bf16.xpose.msra.mxu0 0
    %3948 = vmatprep.subr.bf16.mxu0 0
    %3949 = vmatpush1.bf16.xpose.msra.mxu0 0
    %3950 = vmatprep.subr.bf16.mxu0 0
    %3951 = vmatpush1.bf16.xpose.msra.mxu0 0
    %3952 = vmatprep.subr.bf16.mxu0 0
    %3953 = vmatpush1.bf16.xpose.msra.mxu0 0
    %3954 = vmatprep.subr.bf16.mxu0 0
    %3955 = vmatpush1.bf16.xpose.msra.mxu0 0
    %3956 = vmatprep.subr.bf16.mxu0 0
    %3957 = vmatpush1.bf16.xpose.msra.mxu0 0
    %3958 = vmatprep.subr.bf16.mxu0 0
    %3959 = vmatpush1.bf16.xpose.msra.mxu0 0
    %3960 = vmatprep.mubr.bf16.mxu0 0
    %3961 = vmatmul.mubr.bf16.gmra.mrb[0].mxu0 %v3923
    %v3962 = vpop.f32.mrb[0].mxu0
    %v3963 = vadd.f32 %v2480, %v3962
    %v3964 = vpop.f32.mrb[0].mxu0
    %v3965 = vpop.f32.mrb[0].mxu0
    %v3966 = vpop.f32.mrb[0].mxu0
    %3967 = vdwg.mxu0
    %v3968 = vsel %vm811, %v3914, -inf
    %3969 = vmax.xlane.f32.xlu0 %v3968
    %v3970 = vpop.xlane.xlu0 %3969
    %v3971 = vsel %vm811, %v3963, -inf
    %3972 = vmax.xlane.f32.xlu0 %v3971
    %v3973 = vpop.xlane.xlu0 %3972
    %v3974 = vsub.f32 %v3914, %v3970
    %v3975 = vsub.f32 %v3963, %v3973
    %v3976 = vmul.f32 %v3974, 1.442695
    %v3977 = vpow.pop %v3976
    %v3978 = vmul.f32 %v3975, 1.442695
    %v3979 = vpow.pop %v3978
    %v3980 = vsel %vm811, %v3977, 0.0
    %3981 = vadd.xlane.f32.xlu0 %v3980
    %v3982 = vpop.xlane.xlu0 %3981
    %v3983 = vsel %vm811, %v3979, 0.0
    %3984 = vadd.xlane.f32.xlu0 %v3983
    %v3985 = vpop.xlane.xlu0 %3984
    %v3986 = vrcp.pop %v3982
    %v3987 = vrcp.pop %v3985
    %v3988 = vmul.f32 %v3977, %v3986
    %v3989 = vmul.f32 %v3979, %v3987
    %v3990 = vpack.c.bf16 %v3988, %v3988
    %v3991 = vpack.c.bf16 %v3989, %v3989
    %v3993 = vsel %vm811, %v3990, 0
    %v3996 = vsel %vm815, %v3868, 0
    %3998 = vmatprep.subr.bf16.mxu0 0
    %3999 = vmatpush1.bf16.msra.mxu0 %v3996
    %4000 = vmatprep.subr.bf16.mxu0 0
    %4001 = vmatpush1.bf16.msra.mxu0 0
    %4002 = vmatprep.subr.bf16.mxu0 0
    %4003 = vmatpush1.bf16.msra.mxu0 0
    %4004 = vmatprep.subr.bf16.mxu0 0
    %4005 = vmatpush1.bf16.msra.mxu0 0
    %4006 = vmatprep.subr.bf16.mxu0 0
    %4007 = vmatpush1.bf16.msra.mxu0 0
    %4008 = vmatprep.subr.bf16.mxu0 0
    %4009 = vmatpush1.bf16.msra.mxu0 0
    %4010 = vmatprep.subr.bf16.mxu0 0
    %4011 = vmatpush1.bf16.msra.mxu0 0
    %4012 = vmatprep.subr.bf16.mxu0 0
    %4013 = vmatpush1.bf16.msra.mxu0 0
    %4014 = vmatprep.subr.bf16.mxu0 0
    %4015 = vmatpush1.bf16.msra.mxu0 0
    %4016 = vmatprep.subr.bf16.mxu0 0
    %4017 = vmatpush1.bf16.msra.mxu0 0
    %4018 = vmatprep.subr.bf16.mxu0 0
    %4019 = vmatpush1.bf16.msra.mxu0 0
    %4020 = vmatprep.subr.bf16.mxu0 0
    %4021 = vmatpush1.bf16.msra.mxu0 0
    %4022 = vmatprep.subr.bf16.mxu0 0
    %4023 = vmatpush1.bf16.msra.mxu0 0
    %4024 = vmatprep.subr.bf16.mxu0 0
    %4025 = vmatpush1.bf16.msra.mxu0 0
    %4026 = vmatprep.subr.bf16.mxu0 0
    %4027 = vmatpush1.bf16.msra.mxu0 0
    %4028 = vmatprep.subr.bf16.mxu0 0
    %4029 = vmatpush1.bf16.msra.mxu0 0
    %4030 = vmatprep.mubr.bf16.mxu0 0
    %4031 = vmatmul.mubr.bf16.gmra.mrb[0].mxu0 %v3993
    %v4032 = vpop.f32.mrb[0].mxu0
    %v4033 = vadd.f32 0.0, %v4032
    %v4034 = vpop.f32.mrb[0].mxu0
    %v4035 = vpop.f32.mrb[0].mxu0
    %v4036 = vpop.f32.mrb[0].mxu0
    %4037 = vdwg.mxu0
    %v4039 = vsel %vm811, %v3991, 0
    %v4042 = vsel %vm815, %v3869, 0
    %4044 = vmatprep.subr.bf16.mxu0 0
    %4045 = vmatpush1.bf16.msra.mxu0 %v4042
    %4046 = vmatprep.subr.bf16.mxu0 0
    %4047 = vmatpush1.bf16.msra.mxu0 0
    %4048 = vmatprep.subr.bf16.mxu0 0
    %4049 = vmatpush1.bf16.msra.mxu0 0
    %4050 = vmatprep.subr.bf16.mxu0 0
    %4051 = vmatpush1.bf16.msra.mxu0 0
    %4052 = vmatprep.subr.bf16.mxu0 0
    %4053 = vmatpush1.bf16.msra.mxu0 0
    %4054 = vmatprep.subr.bf16.mxu0 0
    %4055 = vmatpush1.bf16.msra.mxu0 0
    %4056 = vmatprep.subr.bf16.mxu0 0
    %4057 = vmatpush1.bf16.msra.mxu0 0
    %4058 = vmatprep.subr.bf16.mxu0 0
    %4059 = vmatpush1.bf16.msra.mxu0 0
    %4060 = vmatprep.subr.bf16.mxu0 0
    %4061 = vmatpush1.bf16.msra.mxu0 0
    %4062 = vmatprep.subr.bf16.mxu0 0
    %4063 = vmatpush1.bf16.msra.mxu0 0
    %4064 = vmatprep.subr.bf16.mxu0 0
    %4065 = vmatpush1.bf16.msra.mxu0 0
    %4066 = vmatprep.subr.bf16.mxu0 0
    %4067 = vmatpush1.bf16.msra.mxu0 0
    %4068 = vmatprep.subr.bf16.mxu0 0
    %4069 = vmatpush1.bf16.msra.mxu0 0
    %4070 = vmatprep.subr.bf16.mxu0 0
    %4071 = vmatpush1.bf16.msra.mxu0 0
    %4072 = vmatprep.subr.bf16.mxu0 0
    %4073 = vmatpush1.bf16.msra.mxu0 0
    %4074 = vmatprep.subr.bf16.mxu0 0
    %4075 = vmatpush1.bf16.msra.mxu0 0
    %4076 = vmatprep.mubr.bf16.mxu0 0
    %4077 = vmatmul.mubr.bf16.gmra.mrb[0].mxu0 %v4039
    %v4078 = vpop.f32.mrb[0].mxu0
    %v4079 = vadd.f32 0.0, %v4078
    %v4080 = vpop.f32.mrb[0].mxu0
    %v4081 = vpop.f32.mrb[0].mxu0
    %v4082 = vpop.f32.mrb[0].mxu0
    %4083 = vdwg.mxu0
    %4085 = vrot.lane.b32.xlu0 %v3858, 112
    %v4086 = vpop.permute.xlu0 %4085
    %4087 = vrot.lane.b32.xlu0 %v3863, 48
    %v4088 = vpop.permute.xlu0 %4087
    %v4090 = vsel %vm729, %v4086, 0
    %v4093 = vsel %vm729, %v4088, 0
    %4095 = vmatprep.subr.bf16.mxu0 0
    %4096 = vmatpush1.bf16.xpose.msra.mxu0 %v4093
    %4097 = vmatprep.subr.bf16.mxu0 0
    %4098 = vmatpush1.bf16.xpose.msra.mxu0 0
    %4099 = vmatprep.subr.bf16.mxu0 0
    %4100 = vmatpush1.bf16.xpose.msra.mxu0 0
    %4101 = vmatprep.subr.bf16.mxu0 0
    %4102 = vmatpush1.bf16.xpose.msra.mxu0 0
    %4103 = vmatprep.subr.bf16.mxu0 0
    %4104 = vmatpush1.bf16.xpose.msra.mxu0 0
    %4105 = vmatprep.subr.bf16.mxu0 0
    %4106 = vmatpush1.bf16.xpose.msra.mxu0 0
    %4107 = vmatprep.subr.bf16.mxu0 0
    %4108 = vmatpush1.bf16.xpose.msra.mxu0 0
    %4109 = vmatprep.subr.bf16.mxu0 0
    %4110 = vmatpush1.bf16.xpose.msra.mxu0 0
    %4111 = vmatprep.subr.bf16.mxu0 0
    %4112 = vmatpush1.bf16.xpose.msra.mxu0 0
    %4113 = vmatprep.subr.bf16.mxu0 0
    %4114 = vmatpush1.bf16.xpose.msra.mxu0 0
    %4115 = vmatprep.subr.bf16.mxu0 0
    %4116 = vmatpush1.bf16.xpose.msra.mxu0 0
    %4117 = vmatprep.subr.bf16.mxu0 0
    %4118 = vmatpush1.bf16.xpose.msra.mxu0 0
    %4119 = vmatprep.subr.bf16.mxu0 0
    %4120 = vmatpush1.bf16.xpose.msra.mxu0 0
    %4121 = vmatprep.subr.bf16.mxu0 0
    %4122 = vmatpush1.bf16.xpose.msra.mxu0 0
    %4123 = vmatprep.subr.bf16.mxu0 0
    %4124 = vmatpush1.bf16.xpose.msra.mxu0 0
    %4125 = vmatprep.subr.bf16.mxu0 0
    %4126 = vmatpush1.bf16.xpose.msra.mxu0 0
    %4127 = vmatprep.mubr.bf16.mxu0 0
    %4128 = vmatmul.mubr.bf16.gmra.mrb[0].mxu0 %v4090
    %v4129 = vpop.f32.mrb[0].mxu0
    %v4130 = vadd.f32 %v2476, %v4129
    %v4131 = vpop.f32.mrb[0].mxu0
    %v4132 = vpop.f32.mrb[0].mxu0
    %v4133 = vpop.f32.mrb[0].mxu0
    %4134 = vdwg.mxu0
    %4136 = vrot.lane.b32.xlu0 %v3859, 112
    %v4137 = vpop.permute.xlu0 %4136
    %4138 = vrot.lane.b32.xlu0 %v3864, 48
    %v4139 = vpop.permute.xlu0 %4138
    %v4141 = vsel %vm729, %v4137, 0
    %v4144 = vsel %vm729, %v4139, 0
    %4146 = vmatprep.subr.bf16.mxu0 0
    %4147 = vmatpush1.bf16.xpose.msra.mxu0 %v4144
    %4148 = vmatprep.subr.bf16.mxu0 0
    %4149 = vmatpush1.bf16.xpose.msra.mxu0 0
    %4150 = vmatprep.subr.bf16.mxu0 0
    %4151 = vmatpush1.bf16.xpose.msra.mxu0 0
    %4152 = vmatprep.subr.bf16.mxu0 0
    %4153 = vmatpush1.bf16.xpose.msra.mxu0 0
    %4154 = vmatprep.subr.bf16.mxu0 0
    %4155 = vmatpush1.bf16.xpose.msra.mxu0 0
    %4156 = vmatprep.subr.bf16.mxu0 0
    %4157 = vmatpush1.bf16.xpose.msra.mxu0 0
    %4158 = vmatprep.subr.bf16.mxu0 0
    %4159 = vmatpush1.bf16.xpose.msra.mxu0 0
    %4160 = vmatprep.subr.bf16.mxu0 0
    %4161 = vmatpush1.bf16.xpose.msra.mxu0 0
    %4162 = vmatprep.subr.bf16.mxu0 0
    %4163 = vmatpush1.bf16.xpose.msra.mxu0 0
    %4164 = vmatprep.subr.bf16.mxu0 0
    %4165 = vmatpush1.bf16.xpose.msra.mxu0 0
    %4166 = vmatprep.subr.bf16.mxu0 0
    %4167 = vmatpush1.bf16.xpose.msra.mxu0 0
    %4168 = vmatprep.subr.bf16.mxu0 0
    %4169 = vmatpush1.bf16.xpose.msra.mxu0 0
    %4170 = vmatprep.subr.bf16.mxu0 0
    %4171 = vmatpush1.bf16.xpose.msra.mxu0 0
    %4172 = vmatprep.subr.bf16.mxu0 0
    %4173 = vmatpush1.bf16.xpose.msra.mxu0 0
    %4174 = vmatprep.subr.bf16.mxu0 0
    %4175 = vmatpush1.bf16.xpose.msra.mxu0 0
    %4176 = vmatprep.subr.bf16.mxu0 0
    %4177 = vmatpush1.bf16.xpose.msra.mxu0 0
    %4178 = vmatprep.mubr.bf16.mxu0 0
    %4179 = vmatmul.mubr.bf16.gmra.mrb[0].mxu0 %v4141
    %v4180 = vpop.f32.mrb[0].mxu0
    %v4181 = vadd.f32 %v2480, %v4180
    %v4182 = vpop.f32.mrb[0].mxu0
    %v4183 = vpop.f32.mrb[0].mxu0
    %v4184 = vpop.f32.mrb[0].mxu0
    %4185 = vdwg.mxu0
    %v4186 = vsel %vm811, %v4130, -inf
    %4187 = vmax.xlane.f32.xlu0 %v4186
    %v4188 = vpop.xlane.xlu0 %4187
    %v4189 = vsel %vm811, %v4181, -inf
    %4190 = vmax.xlane.f32.xlu0 %v4189
    %v4191 = vpop.xlane.xlu0 %4190
    %v4192 = vsub.f32 %v4130, %v4188
    %v4193 = vsub.f32 %v4181, %v4191
    %v4194 = vmul.f32 %v4192, 1.442695
    %v4195 = vpow.pop %v4194
    %v4196 = vmul.f32 %v4193, 1.442695
    %v4197 = vpow.pop %v4196
    %v4198 = vsel %vm811, %v4195, 0.0
    %4199 = vadd.xlane.f32.xlu0 %v4198
    %v4200 = vpop.xlane.xlu0 %4199
    %v4201 = vsel %vm811, %v4197, 0.0
    %4202 = vadd.xlane.f32.xlu0 %v4201
    %v4203 = vpop.xlane.xlu0 %4202
    %v4204 = vrcp.pop %v4200
    %v4205 = vrcp.pop %v4203
    %v4206 = vmul.f32 %v4195, %v4204
    %v4207 = vmul.f32 %v4197, %v4205
    %v4208 = vpack.c.bf16 %v4206, %v4206
    %v4209 = vpack.c.bf16 %v4207, %v4207
    %4211 = vrot.lane.b32.xlu0 %v3868, 112
    %v4212 = vpop.permute.xlu0 %4211
    %v4214 = vsel %vm811, %v4208, 0
    %v4217 = vsel %vm815, %v4212, 0
    %4219 = vmatprep.subr.bf16.mxu0 0
    %4220 = vmatpush1.bf16.msra.mxu0 %v4217
    %4221 = vmatprep.subr.bf16.mxu0 0
    %4222 = vmatpush1.bf16.msra.mxu0 0
    %4223 = vmatprep.subr.bf16.mxu0 0
    %4224 = vmatpush1.bf16.msra.mxu0 0
    %4225 = vmatprep.subr.bf16.mxu0 0
    %4226 = vmatpush1.bf16.msra.mxu0 0
    %4227 = vmatprep.subr.bf16.mxu0 0
    %4228 = vmatpush1.bf16.msra.mxu0 0
    %4229 = vmatprep.subr.bf16.mxu0 0
    %4230 = vmatpush1.bf16.msra.mxu0 0
    %4231 = vmatprep.subr.bf16.mxu0 0
    %4232 = vmatpush1.bf16.msra.mxu0 0
    %4233 = vmatprep.subr.bf16.mxu0 0
    %4234 = vmatpush1.bf16.msra.mxu0 0
    %4235 = vmatprep.subr.bf16.mxu0 0
    %4236 = vmatpush1.bf16.msra.mxu0 0
    %4237 = vmatprep.subr.bf16.mxu0 0
    %4238 = vmatpush1.bf16.msra.mxu0 0
    %4239 = vmatprep.subr.bf16.mxu0 0
    %4240 = vmatpush1.bf16.msra.mxu0 0
    %4241 = vmatprep.subr.bf16.mxu0 0
    %4242 = vmatpush1.bf16.msra.mxu0 0
    %4243 = vmatprep.subr.bf16.mxu0 0
    %4244 = vmatpush1.bf16.msra.mxu0 0
    %4245 = vmatprep.subr.bf16.mxu0 0
    %4246 = vmatpush1.bf16.msra.mxu0 0
    %4247 = vmatprep.subr.bf16.mxu0 0
    %4248 = vmatpush1.bf16.msra.mxu0 0
    %4249 = vmatprep.subr.bf16.mxu0 0
    %4250 = vmatpush1.bf16.msra.mxu0 0
    %4251 = vmatprep.mubr.bf16.mxu0 0
    %4252 = vmatmul.mubr.bf16.gmra.mrb[0].mxu0 %v4214
    %v4253 = vpop.f32.mrb[0].mxu0
    %v4254 = vadd.f32 0.0, %v4253
    %v4255 = vpop.f32.mrb[0].mxu0
    %v4256 = vpop.f32.mrb[0].mxu0
    %v4257 = vpop.f32.mrb[0].mxu0
    %4258 = vdwg.mxu0
    %4260 = vrot.lane.b32.xlu0 %v3869, 112
    %v4261 = vpop.permute.xlu0 %4260
    %v4263 = vsel %vm811, %v4209, 0
    %v4266 = vsel %vm815, %v4261, 0
    %4268 = vmatprep.subr.bf16.mxu0 0
    %4269 = vmatpush1.bf16.msra.mxu0 %v4266
    %4270 = vmatprep.subr.bf16.mxu0 0
    %4271 = vmatpush1.bf16.msra.mxu0 0
    %4272 = vmatprep.subr.bf16.mxu0 0
    %4273 = vmatpush1.bf16.msra.mxu0 0
    %4274 = vmatprep.subr.bf16.mxu0 0
    %4275 = vmatpush1.bf16.msra.mxu0 0
    %4276 = vmatprep.subr.bf16.mxu0 0
    %4277 = vmatpush1.bf16.msra.mxu0 0
    %4278 = vmatprep.subr.bf16.mxu0 0
    %4279 = vmatpush1.bf16.msra.mxu0 0
    %4280 = vmatprep.subr.bf16.mxu0 0
    %4281 = vmatpush1.bf16.msra.mxu0 0
    %4282 = vmatprep.subr.bf16.mxu0 0
    %4283 = vmatpush1.bf16.msra.mxu0 0
    %4284 = vmatprep.subr.bf16.mxu0 0
    %4285 = vmatpush1.bf16.msra.mxu0 0
    %4286 = vmatprep.subr.bf16.mxu0 0
    %4287 = vmatpush1.bf16.msra.mxu0 0
    %4288 = vmatprep.subr.bf16.mxu0 0
    %4289 = vmatpush1.bf16.msra.mxu0 0
    %4290 = vmatprep.subr.bf16.mxu0 0
    %4291 = vmatpush1.bf16.msra.mxu0 0
    %4292 = vmatprep.subr.bf16.mxu0 0
    %4293 = vmatpush1.bf16.msra.mxu0 0
    %4294 = vmatprep.subr.bf16.mxu0 0
    %4295 = vmatpush1.bf16.msra.mxu0 0
    %4296 = vmatprep.subr.bf16.mxu0 0
    %4297 = vmatpush1.bf16.msra.mxu0 0
    %4298 = vmatprep.subr.bf16.mxu0 0
    %4299 = vmatpush1.bf16.msra.mxu0 0
    %4300 = vmatprep.mubr.bf16.mxu0 0
    %4301 = vmatmul.mubr.bf16.gmra.mrb[0].mxu0 %v4263
    %v4302 = vpop.f32.mrb[0].mxu0
    %v4303 = vadd.f32 0.0, %v4302
    %v4304 = vpop.f32.mrb[0].mxu0
    %v4305 = vpop.f32.mrb[0].mxu0
    %v4306 = vpop.f32.mrb[0].mxu0
    %4307 = vdwg.mxu0
    %4308 = vrot.lane.b32.xlu0 %v3858, 96
    %v4309 = vpop.permute.xlu0 %4308
    %4310 = vrot.lane.b32.xlu0 %v3863, 32
    %v4311 = vpop.permute.xlu0 %4310
    %v4313 = vsel %vm729, %v4309, 0
    %v4316 = vsel %vm729, %v4311, 0
    %4318 = vmatprep.subr.bf16.mxu0 0
    %4319 = vmatpush1.bf16.xpose.msra.mxu0 %v4316
    %4320 = vmatprep.subr.bf16.mxu0 0
    %4321 = vmatpush1.bf16.xpose.msra.mxu0 0
    %4322 = vmatprep.subr.bf16.mxu0 0
    %4323 = vmatpush1.bf16.xpose.msra.mxu0 0
    %4324 = vmatprep.subr.bf16.mxu0 0
    %4325 = vmatpush1.bf16.xpose.msra.mxu0 0
    %4326 = vmatprep.subr.bf16.mxu0 0
    %4327 = vmatpush1.bf16.xpose.msra.mxu0 0
    %4328 = vmatprep.subr.bf16.mxu0 0
    %4329 = vmatpush1.bf16.xpose.msra.mxu0 0
    %4330 = vmatprep.subr.bf16.mxu0 0
    %4331 = vmatpush1.bf16.xpose.msra.mxu0 0
    %4332 = vmatprep.subr.bf16.mxu0 0
    %4333 = vmatpush1.bf16.xpose.msra.mxu0 0
    %4334 = vmatprep.subr.bf16.mxu0 0
    %4335 = vmatpush1.bf16.xpose.msra.mxu0 0
    %4336 = vmatprep.subr.bf16.mxu0 0
    %4337 = vmatpush1.bf16.xpose.msra.mxu0 0
    %4338 = vmatprep.subr.bf16.mxu0 0
    %4339 = vmatpush1.bf16.xpose.msra.mxu0 0
    %4340 = vmatprep.subr.bf16.mxu0 0
    %4341 = vmatpush1.bf16.xpose.msra.mxu0 0
    %4342 = vmatprep.subr.bf16.mxu0 0
    %4343 = vmatpush1.bf16.xpose.msra.mxu0 0
    %4344 = vmatprep.subr.bf16.mxu0 0
    %4345 = vmatpush1.bf16.xpose.msra.mxu0 0
    %4346 = vmatprep.subr.bf16.mxu0 0
    %4347 = vmatpush1.bf16.xpose.msra.mxu0 0
    %4348 = vmatprep.subr.bf16.mxu0 0
    %4349 = vmatpush1.bf16.xpose.msra.mxu0 0
    %4350 = vmatprep.mubr.bf16.mxu0 0
    %4351 = vmatmul.mubr.bf16.gmra.mrb[0].mxu0 %v4313
    %v4352 = vpop.f32.mrb[0].mxu0
    %v4353 = vadd.f32 %v2476, %v4352
    %v4354 = vpop.f32.mrb[0].mxu0
    %v4355 = vpop.f32.mrb[0].mxu0
    %v4356 = vpop.f32.mrb[0].mxu0
    %4357 = vdwg.mxu0
    %4358 = vrot.lane.b32.xlu0 %v3859, 96
    %v4359 = vpop.permute.xlu0 %4358
    %4360 = vrot.lane.b32.xlu0 %v3864, 32
    %v4361 = vpop.permute.xlu0 %4360
    %v4363 = vsel %vm729, %v4359, 0
    %v4366 = vsel %vm729, %v4361, 0
    %4368 = vmatprep.subr.bf16.mxu0 0
    %4369 = vmatpush1.bf16.xpose.msra.mxu0 %v4366
    %4370 = vmatprep.subr.bf16.mxu0 0
    %4371 = vmatpush1.bf16.xpose.msra.mxu0 0
    %4372 = vmatprep.subr.bf16.mxu0 0
    %4373 = vmatpush1.bf16.xpose.msra.mxu0 0
    %4374 = vmatprep.subr.bf16.mxu0 0
    %4375 = vmatpush1.bf16.xpose.msra.mxu0 0
    %4376 = vmatprep.subr.bf16.mxu0 0
    %4377 = vmatpush1.bf16.xpose.msra.mxu0 0
    %4378 = vmatprep.subr.bf16.mxu0 0
    %4379 = vmatpush1.bf16.xpose.msra.mxu0 0
    %4380 = vmatprep.subr.bf16.mxu0 0
    %4381 = vmatpush1.bf16.xpose.msra.mxu0 0
    %4382 = vmatprep.subr.bf16.mxu0 0
    %4383 = vmatpush1.bf16.xpose.msra.mxu0 0
    %4384 = vmatprep.subr.bf16.mxu0 0
    %4385 = vmatpush1.bf16.xpose.msra.mxu0 0
    %4386 = vmatprep.subr.bf16.mxu0 0
    %4387 = vmatpush1.bf16.xpose.msra.mxu0 0
    %4388 = vmatprep.subr.bf16.mxu0 0
    %4389 = vmatpush1.bf16.xpose.msra.mxu0 0
    %4390 = vmatprep.subr.bf16.mxu0 0
    %4391 = vmatpush1.bf16.xpose.msra.mxu0 0
    %4392 = vmatprep.subr.bf16.mxu0 0
    %4393 = vmatpush1.bf16.xpose.msra.mxu0 0
    %4394 = vmatprep.subr.bf16.mxu0 0
    %4395 = vmatpush1.bf16.xpose.msra.mxu0 0
    %4396 = vmatprep.subr.bf16.mxu0 0
    %4397 = vmatpush1.bf16.xpose.msra.mxu0 0
    %4398 = vmatprep.subr.bf16.mxu0 0
    %4399 = vmatpush1.bf16.xpose.msra.mxu0 0
    %4400 = vmatprep.mubr.bf16.mxu0 0
    %4401 = vmatmul.mubr.bf16.gmra.mrb[0].mxu0 %v4363
    %v4402 = vpop.f32.mrb[0].mxu0
    %v4403 = vadd.f32 %v2480, %v4402
    %v4404 = vpop.f32.mrb[0].mxu0
    %v4405 = vpop.f32.mrb[0].mxu0
    %v4406 = vpop.f32.mrb[0].mxu0
    %4407 = vdwg.mxu0
    %v4408 = vsel %vm811, %v4353, -inf
    %4409 = vmax.xlane.f32.xlu0 %v4408
    %v4410 = vpop.xlane.xlu0 %4409
    %v4411 = vsel %vm811, %v4403, -inf
    %4412 = vmax.xlane.f32.xlu0 %v4411
    %v4413 = vpop.xlane.xlu0 %4412
    %v4414 = vsub.f32 %v4353, %v4410
    %v4415 = vsub.f32 %v4403, %v4413
    %v4416 = vmul.f32 %v4414, 1.442695
    %v4417 = vpow.pop %v4416
    %v4418 = vmul.f32 %v4415, 1.442695
    %v4419 = vpow.pop %v4418
    %v4420 = vsel %vm811, %v4417, 0.0
    %4421 = vadd.xlane.f32.xlu0 %v4420
    %v4422 = vpop.xlane.xlu0 %4421
    %v4423 = vsel %vm811, %v4419, 0.0
    %4424 = vadd.xlane.f32.xlu0 %v4423
    %v4425 = vpop.xlane.xlu0 %4424
    %v4426 = vrcp.pop %v4422
    %v4427 = vrcp.pop %v4425
    %v4428 = vmul.f32 %v4417, %v4426
    %v4429 = vmul.f32 %v4419, %v4427
    %v4430 = vpack.c.bf16 %v4428, %v4428
    %v4431 = vpack.c.bf16 %v4429, %v4429
    %4432 = vrot.lane.b32.xlu0 %v3868, 96
    %v4433 = vpop.permute.xlu0 %4432
    %v4435 = vsel %vm811, %v4430, 0
    %v4438 = vsel %vm815, %v4433, 0
    %4440 = vmatprep.subr.bf16.mxu0 0
    %4441 = vmatpush1.bf16.msra.mxu0 %v4438
    %4442 = vmatprep.subr.bf16.mxu0 0
    %4443 = vmatpush1.bf16.msra.mxu0 0
    %4444 = vmatprep.subr.bf16.mxu0 0
    %4445 = vmatpush1.bf16.msra.mxu0 0
    %4446 = vmatprep.subr.bf16.mxu0 0
    %4447 = vmatpush1.bf16.msra.mxu0 0
    %4448 = vmatprep.subr.bf16.mxu0 0
    %4449 = vmatpush1.bf16.msra.mxu0 0
    %4450 = vmatprep.subr.bf16.mxu0 0
    %4451 = vmatpush1.bf16.msra.mxu0 0
    %4452 = vmatprep.subr.bf16.mxu0 0
    %4453 = vmatpush1.bf16.msra.mxu0 0
    %4454 = vmatprep.subr.bf16.mxu0 0
    %4455 = vmatpush1.bf16.msra.mxu0 0
    %4456 = vmatprep.subr.bf16.mxu0 0
    %4457 = vmatpush1.bf16.msra.mxu0 0
    %4458 = vmatprep.subr.bf16.mxu0 0
    %4459 = vmatpush1.bf16.msra.mxu0 0
    %4460 = vmatprep.subr.bf16.mxu0 0
    %4461 = vmatpush1.bf16.msra.mxu0 0
    %4462 = vmatprep.subr.bf16.mxu0 0
    %4463 = vmatpush1.bf16.msra.mxu0 0
    %4464 = vmatprep.subr.bf16.mxu0 0
    %4465 = vmatpush1.bf16.msra.mxu0 0
    %4466 = vmatprep.subr.bf16.mxu0 0
    %4467 = vmatpush1.bf16.msra.mxu0 0
    %4468 = vmatprep.subr.bf16.mxu0 0
    %4469 = vmatpush1.bf16.msra.mxu0 0
    %4470 = vmatprep.subr.bf16.mxu0 0
    %4471 = vmatpush1.bf16.msra.mxu0 0
    %4472 = vmatprep.mubr.bf16.mxu0 0
    %4473 = vmatmul.mubr.bf16.gmra.mrb[0].mxu0 %v4435
    %v4474 = vpop.f32.mrb[0].mxu0
    %v4475 = vadd.f32 0.0, %v4474
    %v4476 = vpop.f32.mrb[0].mxu0
    %v4477 = vpop.f32.mrb[0].mxu0
    %v4478 = vpop.f32.mrb[0].mxu0
    %4479 = vdwg.mxu0
    %4480 = vrot.lane.b32.xlu0 %v3869, 96
    %v4481 = vpop.permute.xlu0 %4480
    %v4483 = vsel %vm811, %v4431, 0
    %v4486 = vsel %vm815, %v4481, 0
    %4488 = vmatprep.subr.bf16.mxu0 0
    %4489 = vmatpush1.bf16.msra.mxu0 %v4486
    %4490 = vmatprep.subr.bf16.mxu0 0
    %4491 = vmatpush1.bf16.msra.mxu0 0
    %4492 = vmatprep.subr.bf16.mxu0 0
    %4493 = vmatpush1.bf16.msra.mxu0 0
    %4494 = vmatprep.subr.bf16.mxu0 0
    %4495 = vmatpush1.bf16.msra.mxu0 0
    %4496 = vmatprep.subr.bf16.mxu0 0
    %4497 = vmatpush1.bf16.msra.mxu0 0
    %4498 = vmatprep.subr.bf16.mxu0 0
    %4499 = vmatpush1.bf16.msra.mxu0 0
    %4500 = vmatprep.subr.bf16.mxu0 0
    %4501 = vmatpush1.bf16.msra.mxu0 0
    %4502 = vmatprep.subr.bf16.mxu0 0
    %4503 = vmatpush1.bf16.msra.mxu0 0
    %4504 = vmatprep.subr.bf16.mxu0 0
    %4505 = vmatpush1.bf16.msra.mxu0 0
    %4506 = vmatprep.subr.bf16.mxu0 0
    %4507 = vmatpush1.bf16.msra.mxu0 0
    %4508 = vmatprep.subr.bf16.mxu0 0
    %4509 = vmatpush1.bf16.msra.mxu0 0
    %4510 = vmatprep.subr.bf16.mxu0 0
    %4511 = vmatpush1.bf16.msra.mxu0 0
    %4512 = vmatprep.subr.bf16.mxu0 0
    %4513 = vmatpush1.bf16.msra.mxu0 0
    %4514 = vmatprep.subr.bf16.mxu0 0
    %4515 = vmatpush1.bf16.msra.mxu0 0
    %4516 = vmatprep.subr.bf16.mxu0 0
    %4517 = vmatpush1.bf16.msra.mxu0 0
    %4518 = vmatprep.subr.bf16.mxu0 0
    %4519 = vmatpush1.bf16.msra.mxu0 0
    %4520 = vmatprep.mubr.bf16.mxu0 0
    %4521 = vmatmul.mubr.bf16.gmra.mrb[0].mxu0 %v4483
    %v4522 = vpop.f32.mrb[0].mxu0
    %v4523 = vadd.f32 0.0, %v4522
    %v4524 = vpop.f32.mrb[0].mxu0
    %v4525 = vpop.f32.mrb[0].mxu0
    %v4526 = vpop.f32.mrb[0].mxu0
    %4527 = vdwg.mxu0
    %4528 = vrot.lane.b32.xlu0 %v3858, 80
    %v4529 = vpop.permute.xlu0 %4528
    %4530 = vrot.lane.b32.xlu0 %v3863, 16
    %v4531 = vpop.permute.xlu0 %4530
    %v4533 = vsel %vm729, %v4529, 0
    %v4536 = vsel %vm729, %v4531, 0
    %4538 = vmatprep.subr.bf16.mxu0 0
    %4539 = vmatpush1.bf16.xpose.msra.mxu0 %v4536
    %4540 = vmatprep.subr.bf16.mxu0 0
    %4541 = vmatpush1.bf16.xpose.msra.mxu0 0
    %4542 = vmatprep.subr.bf16.mxu0 0
    %4543 = vmatpush1.bf16.xpose.msra.mxu0 0
    %4544 = vmatprep.subr.bf16.mxu0 0
    %4545 = vmatpush1.bf16.xpose.msra.mxu0 0
    %4546 = vmatprep.subr.bf16.mxu0 0
    %4547 = vmatpush1.bf16.xpose.msra.mxu0 0
    %4548 = vmatprep.subr.bf16.mxu0 0
    %4549 = vmatpush1.bf16.xpose.msra.mxu0 0
    %4550 = vmatprep.subr.bf16.mxu0 0
    %4551 = vmatpush1.bf16.xpose.msra.mxu0 0
    %4552 = vmatprep.subr.bf16.mxu0 0
    %4553 = vmatpush1.bf16.xpose.msra.mxu0 0
    %4554 = vmatprep.subr.bf16.mxu0 0
    %4555 = vmatpush1.bf16.xpose.msra.mxu0 0
    %4556 = vmatprep.subr.bf16.mxu0 0
    %4557 = vmatpush1.bf16.xpose.msra.mxu0 0
    %4558 = vmatprep.subr.bf16.mxu0 0
    %4559 = vmatpush1.bf16.xpose.msra.mxu0 0
    %4560 = vmatprep.subr.bf16.mxu0 0
    %4561 = vmatpush1.bf16.xpose.msra.mxu0 0
    %4562 = vmatprep.subr.bf16.mxu0 0
    %4563 = vmatpush1.bf16.xpose.msra.mxu0 0
    %4564 = vmatprep.subr.bf16.mxu0 0
    %4565 = vmatpush1.bf16.xpose.msra.mxu0 0
    %4566 = vmatprep.subr.bf16.mxu0 0
    %4567 = vmatpush1.bf16.xpose.msra.mxu0 0
    %4568 = vmatprep.subr.bf16.mxu0 0
    %4569 = vmatpush1.bf16.xpose.msra.mxu0 0
    %4570 = vmatprep.mubr.bf16.mxu0 0
    %4571 = vmatmul.mubr.bf16.gmra.mrb[0].mxu0 %v4533
    %v4572 = vpop.f32.mrb[0].mxu0
    %v4573 = vadd.f32 %v2476, %v4572
    %v4574 = vpop.f32.mrb[0].mxu0
    %v4575 = vpop.f32.mrb[0].mxu0
    %v4576 = vpop.f32.mrb[0].mxu0
    %4577 = vdwg.mxu0
    %4578 = vrot.lane.b32.xlu0 %v3859, 80
    %v4579 = vpop.permute.xlu0 %4578
    %4580 = vrot.lane.b32.xlu0 %v3864, 16
    %v4581 = vpop.permute.xlu0 %4580
    %v4583 = vsel %vm729, %v4579, 0
    %v4586 = vsel %vm729, %v4581, 0
    %4588 = vmatprep.subr.bf16.mxu0 0
    %4589 = vmatpush1.bf16.xpose.msra.mxu0 %v4586
    %4590 = vmatprep.subr.bf16.mxu0 0
    %4591 = vmatpush1.bf16.xpose.msra.mxu0 0
    %4592 = vmatprep.subr.bf16.mxu0 0
    %4593 = vmatpush1.bf16.xpose.msra.mxu0 0
    %4594 = vmatprep.subr.bf16.mxu0 0
    %4595 = vmatpush1.bf16.xpose.msra.mxu0 0
    %4596 = vmatprep.subr.bf16.mxu0 0
    %4597 = vmatpush1.bf16.xpose.msra.mxu0 0
    %4598 = vmatprep.subr.bf16.mxu0 0
    %4599 = vmatpush1.bf16.xpose.msra.mxu0 0
    %4600 = vmatprep.subr.bf16.mxu0 0
    %4601 = vmatpush1.bf16.xpose.msra.mxu0 0
    %4602 = vmatprep.subr.bf16.mxu0 0
    %4603 = vmatpush1.bf16.xpose.msra.mxu0 0
    %4604 = vmatprep.subr.bf16.mxu0 0
    %4605 = vmatpush1.bf16.xpose.msra.mxu0 0
    %4606 = vmatprep.subr.bf16.mxu0 0
    %4607 = vmatpush1.bf16.xpose.msra.mxu0 0
    %4608 = vmatprep.subr.bf16.mxu0 0
    %4609 = vmatpush1.bf16.xpose.msra.mxu0 0
    %4610 = vmatprep.subr.bf16.mxu0 0
    %4611 = vmatpush1.bf16.xpose.msra.mxu0 0
    %4612 = vmatprep.subr.bf16.mxu0 0
    %4613 = vmatpush1.bf16.xpose.msra.mxu0 0
    %4614 = vmatprep.subr.bf16.mxu0 0
    %4615 = vmatpush1.bf16.xpose.msra.mxu0 0
    %4616 = vmatprep.subr.bf16.mxu0 0
    %4617 = vmatpush1.bf16.xpose.msra.mxu0 0
    %4618 = vmatprep.subr.bf16.mxu0 0
    %4619 = vmatpush1.bf16.xpose.msra.mxu0 0
    %4620 = vmatprep.mubr.bf16.mxu0 0
    %4621 = vmatmul.mubr.bf16.gmra.mrb[0].mxu0 %v4583
    %v4622 = vpop.f32.mrb[0].mxu0
    %v4623 = vadd.f32 %v2480, %v4622
    %v4624 = vpop.f32.mrb[0].mxu0
    %v4625 = vpop.f32.mrb[0].mxu0
    %v4626 = vpop.f32.mrb[0].mxu0
    %4627 = vdwg.mxu0
    %v4628 = vsel %vm811, %v4573, -inf
    %4629 = vmax.xlane.f32.xlu0 %v4628
    %v4630 = vpop.xlane.xlu0 %4629
    %v4631 = vsel %vm811, %v4623, -inf
    %4632 = vmax.xlane.f32.xlu0 %v4631
    %v4633 = vpop.xlane.xlu0 %4632
    %v4634 = vsub.f32 %v4573, %v4630
    %v4635 = vsub.f32 %v4623, %v4633
    %v4636 = vmul.f32 %v4634, 1.442695
    %v4637 = vpow.pop %v4636
    %v4638 = vmul.f32 %v4635, 1.442695
    %v4639 = vpow.pop %v4638
    %v4640 = vsel %vm811, %v4637, 0.0
    %4641 = vadd.xlane.f32.xlu0 %v4640
    %v4642 = vpop.xlane.xlu0 %4641
    %v4643 = vsel %vm811, %v4639, 0.0
    %4644 = vadd.xlane.f32.xlu0 %v4643
    %v4645 = vpop.xlane.xlu0 %4644
    %v4646 = vrcp.pop %v4642
    %v4647 = vrcp.pop %v4645
    %v4648 = vmul.f32 %v4637, %v4646
    %v4649 = vmul.f32 %v4639, %v4647
    %v4650 = vpack.c.bf16 %v4648, %v4648
    %v4651 = vpack.c.bf16 %v4649, %v4649
    %4652 = vrot.lane.b32.xlu0 %v3868, 80
    %v4653 = vpop.permute.xlu0 %4652
    %v4655 = vsel %vm811, %v4650, 0
    %v4658 = vsel %vm815, %v4653, 0
    %4660 = vmatprep.subr.bf16.mxu0 0
    %4661 = vmatpush1.bf16.msra.mxu0 %v4658
    %4662 = vmatprep.subr.bf16.mxu0 0
    %4663 = vmatpush1.bf16.msra.mxu0 0
    %4664 = vmatprep.subr.bf16.mxu0 0
    %4665 = vmatpush1.bf16.msra.mxu0 0
    %4666 = vmatprep.subr.bf16.mxu0 0
    %4667 = vmatpush1.bf16.msra.mxu0 0
    %4668 = vmatprep.subr.bf16.mxu0 0
    %4669 = vmatpush1.bf16.msra.mxu0 0
    %4670 = vmatprep.subr.bf16.mxu0 0
    %4671 = vmatpush1.bf16.msra.mxu0 0
    %4672 = vmatprep.subr.bf16.mxu0 0
    %4673 = vmatpush1.bf16.msra.mxu0 0
    %4674 = vmatprep.subr.bf16.mxu0 0
    %4675 = vmatpush1.bf16.msra.mxu0 0
    %4676 = vmatprep.subr.bf16.mxu0 0
    %4677 = vmatpush1.bf16.msra.mxu0 0
    %4678 = vmatprep.subr.bf16.mxu0 0
    %4679 = vmatpush1.bf16.msra.mxu0 0
    %4680 = vmatprep.subr.bf16.mxu0 0
    %4681 = vmatpush1.bf16.msra.mxu0 0
    %4682 = vmatprep.subr.bf16.mxu0 0
    %4683 = vmatpush1.bf16.msra.mxu0 0
    %4684 = vmatprep.subr.bf16.mxu0 0
    %4685 = vmatpush1.bf16.msra.mxu0 0
    %4686 = vmatprep.subr.bf16.mxu0 0
    %4687 = vmatpush1.bf16.msra.mxu0 0
    %4688 = vmatprep.subr.bf16.mxu0 0
    %4689 = vmatpush1.bf16.msra.mxu0 0
    %4690 = vmatprep.subr.bf16.mxu0 0
    %4691 = vmatpush1.bf16.msra.mxu0 0
    %4692 = vmatprep.mubr.bf16.mxu0 0
    %4693 = vmatmul.mubr.bf16.gmra.mrb[0].mxu0 %v4655
    %v4694 = vpop.f32.mrb[0].mxu0
    %v4695 = vadd.f32 0.0, %v4694
    %v4696 = vpop.f32.mrb[0].mxu0
    %v4697 = vpop.f32.mrb[0].mxu0
    %v4698 = vpop.f32.mrb[0].mxu0
    %4699 = vdwg.mxu0
    %4700 = vrot.lane.b32.xlu0 %v3869, 80
    %v4701 = vpop.permute.xlu0 %4700
    %v4703 = vsel %vm811, %v4651, 0
    %v4706 = vsel %vm815, %v4701, 0
    %4708 = vmatprep.subr.bf16.mxu0 0
    %4709 = vmatpush1.bf16.msra.mxu0 %v4706
    %4710 = vmatprep.subr.bf16.mxu0 0
    %4711 = vmatpush1.bf16.msra.mxu0 0
    %4712 = vmatprep.subr.bf16.mxu0 0
    %4713 = vmatpush1.bf16.msra.mxu0 0
    %4714 = vmatprep.subr.bf16.mxu0 0
    %4715 = vmatpush1.bf16.msra.mxu0 0
    %4716 = vmatprep.subr.bf16.mxu0 0
    %4717 = vmatpush1.bf16.msra.mxu0 0
    %4718 = vmatprep.subr.bf16.mxu0 0
    %4719 = vmatpush1.bf16.msra.mxu0 0
    %4720 = vmatprep.subr.bf16.mxu0 0
    %4721 = vmatpush1.bf16.msra.mxu0 0
    %4722 = vmatprep.subr.bf16.mxu0 0
    %4723 = vmatpush1.bf16.msra.mxu0 0
    %4724 = vmatprep.subr.bf16.mxu0 0
    %4725 = vmatpush1.bf16.msra.mxu0 0
    %4726 = vmatprep.subr.bf16.mxu0 0
    %4727 = vmatpush1.bf16.msra.mxu0 0
    %4728 = vmatprep.subr.bf16.mxu0 0
    %4729 = vmatpush1.bf16.msra.mxu0 0
    %4730 = vmatprep.subr.bf16.mxu0 0
    %4731 = vmatpush1.bf16.msra.mxu0 0
    %4732 = vmatprep.subr.bf16.mxu0 0
    %4733 = vmatpush1.bf16.msra.mxu0 0
    %4734 = vmatprep.subr.bf16.mxu0 0
    %4735 = vmatpush1.bf16.msra.mxu0 0
    %4736 = vmatprep.subr.bf16.mxu0 0
    %4737 = vmatpush1.bf16.msra.mxu0 0
    %4738 = vmatprep.subr.bf16.mxu0 0
    %4739 = vmatpush1.bf16.msra.mxu0 0
    %4740 = vmatprep.mubr.bf16.mxu0 0
    %4741 = vmatmul.mubr.bf16.gmra.mrb[0].mxu0 %v4703
    %v4742 = vpop.f32.mrb[0].mxu0
    %v4743 = vadd.f32 0.0, %v4742
    %v4744 = vpop.f32.mrb[0].mxu0
    %v4745 = vpop.f32.mrb[0].mxu0
    %v4746 = vpop.f32.mrb[0].mxu0
    %4747 = vdwg.mxu0
    %4750 = vrot.lane.b32.xlu0 %v4254, 16
    %v4751 = vpop.permute.xlu0 %4750
    %4752 = vrot.lane.b32.xlu0 %v4303, 16
    %v4753 = vpop.permute.xlu0 %4752
    %4758 = vrot.lane.b32.xlu0 %v4475, 32
    %v4759 = vpop.permute.xlu0 %4758
    %4760 = vrot.lane.b32.xlu0 %v4523, 32
    %v4761 = vpop.permute.xlu0 %4760
    %4766 = vrot.lane.b32.xlu0 %v4695, 48
    %v4767 = vpop.permute.xlu0 %4766
    %4768 = vrot.lane.b32.xlu0 %v4743, 48
    %v4769 = vpop.permute.xlu0 %4768
    %v4772 = vsel %vm729, %v4033, %v4751
    %v4773 = vsel %vm729, %v4079, %v4753
    %v4774 = vsel %vm1938, %v4772, %v4759
    %v4775 = vsel %vm1938, %v4773, %v4761
    %v4776 = vsel %vm1941, %v4774, %v4767
    %v4777 = vsel %vm1941, %v4775, %v4769
    %v4778 = vld [vmem:[%s89] sm:$0xf]
    %v4779 = vld [vmem:[%s89 + $0x4] sm:$0xf]
    %v4780 = vld [vmem:[%s89 + $0x8] sm:$0xf]
    %v4781 = vld [vmem:[%s89 + $0xc] sm:$0xf]
    %v4782 = vld [vmem:[%s89 + $0x10] sm:$0xf]
    %v4783 = vld [vmem:[%s89 + $0x14] sm:$0xf]
    %v4784 = vld [vmem:[%s89 + $0x18] sm:$0xf]
    %v4785 = vld [vmem:[%s89 + $0x1c] sm:$0xf]
    %v4786 = vld [vmem:[#allocation29] sm:$0x1]
    %v4787 = vpack.c.bf16 %v4777, %v4776
    %v4789 = vlaneseq
    %v4790 = vshrl.u32 %v4789, 7
    %v4791 = vsub.s32 0, %v4790
    %v4792 = vrot.slane %v4786, %v4791
    %v4802 = vunpack.c.l.b16 %v4778
    %v4803 = vunpack.c.l.b16 %v4779
    %v4804 = vunpack.c.l.b16 %v4780
    %v4805 = vunpack.c.l.b16 %v4781
    %v4806 = vunpack.c.l.b16 %v4782
    %v4807 = vunpack.c.l.b16 %v4783
    %v4808 = vunpack.c.l.b16 %v4784
    %v4809 = vunpack.c.l.b16 %v4785
    %v4810 = vpack.c.b16 %v4803, %v4802
    %v4811 = vpack.c.b16 %v4805, %v4804
    %v4812 = vpack.c.b16 %v4807, %v4806
    %v4813 = vpack.c.b16 %v4809, %v4808
    %v4819 = vsel %vm667, %v4787, 0
    %4821 = vmatprep.subr.bf16.mxu0 0
    %4822 = vmatpush1.bf16.msra.mxu0 %v4810
    %4823 = vmatprep.subr.bf16.mxu0 0
    %4824 = vmatpush1.bf16.msra.mxu0 %v4811
    %4825 = vmatprep.subr.bf16.mxu0 0
    %4826 = vmatpush1.bf16.msra.mxu0 %v4812
    %4827 = vmatprep.subr.bf16.mxu0 0
    %4828 = vmatpush1.bf16.msra.mxu0 %v4813
    %4829 = vmatprep.subr.bf16.mxu0 0
    %4830 = vmatpush1.bf16.msra.mxu0 0
    %4831 = vmatprep.subr.bf16.mxu0 0
    %4832 = vmatpush1.bf16.msra.mxu0 0
    %4833 = vmatprep.subr.bf16.mxu0 0
    %4834 = vmatpush1.bf16.msra.mxu0 0
    %4835 = vmatprep.subr.bf16.mxu0 0
    %4836 = vmatpush1.bf16.msra.mxu0 0
    %4837 = vmatprep.subr.bf16.mxu0 0
    %4838 = vmatpush1.bf16.msra.mxu0 0
    %4839 = vmatprep.subr.bf16.mxu0 0
    %4840 = vmatpush1.bf16.msra.mxu0 0
    %4841 = vmatprep.subr.bf16.mxu0 0
    %4842 = vmatpush1.bf16.msra.mxu0 0
    %4843 = vmatprep.subr.bf16.mxu0 0
    %4844 = vmatpush1.bf16.msra.mxu0 0
    %4845 = vmatprep.subr.bf16.mxu0 0
    %4846 = vmatpush1.bf16.msra.mxu0 0
    %4847 = vmatprep.subr.bf16.mxu0 0
    %4848 = vmatpush1.bf16.msra.mxu0 0
    %4849 = vmatprep.subr.bf16.mxu0 0
    %4850 = vmatpush1.bf16.msra.mxu0 0
    %4851 = vmatprep.subr.bf16.mxu0 0
    %4852 = vmatpush1.bf16.msra.mxu0 0
    %4853 = vmatprep.mubr.bf16.mxu0 0
    %4854 = vmatmul.mubr.bf16.gmra.mrb[0].mxu0 %v4819
    %v4855 = vpop.f32.mrb[0].mxu0
    %v4856 = vadd.f32 %v4792, %v4855
    %v4857 = vpop.f32.mrb[0].mxu0
    %v4858 = vpop.f32.mrb[0].mxu0
    %v4859 = vadd.f32 %v4792, %v4858
    %v4860 = vpop.f32.mrb[0].mxu0
    %4861 = vdwg.mxu0
    %v4862 = vadd.f32 %v4856, %v2333
    %v4863 = vadd.f32 %v4859, %v2334
    %v4864 = vld [vmem:[#allocation28] sm:$0x1]
    %v4865 = vld [vmem:[#allocation26] sm:$0x1]
    %v4866 = vsel %vm667, %v4862, 0.0
    %4867 = vadd.xlane.f32.xlu0 %v4866
    %v4868 = vpop.xlane.xlu0 %4867
    %v4869 = vsel %vm667, %v4863, 0.0
    %4870 = vadd.xlane.f32.xlu0 %v4869
    %v4871 = vpop.xlane.xlu0 %4870
    %v4872 = vmul.f32 %v4868, %v674
    %v4873 = vmul.f32 %v4871, %v674
    %v4874 = vsub.f32 %v4862, %v4872
    %v4875 = vsub.f32 %v4863, %v4873
    %v4876 = vmul.f32 %v4874, %v4874
    %v4877 = vmul.f32 %v4875, %v4875
    %v4878 = vsel %vm667, %v4876, 0.0
    %4879 = vadd.xlane.f32.xlu0 %v4878
    %v4880 = vpop.xlane.xlu0 %4879
    %v4881 = vsel %vm667, %v4877, 0.0
    %4882 = vadd.xlane.f32.xlu0 %v4881
    %v4883 = vpop.xlane.xlu0 %4882
    %v4884 = vmul.f32 %v4880, %v674
    %v4885 = vmul.f32 %v4883, %v674
    %v4886 = vadd.f32 %v4884, 1e-12
    %v4887 = vadd.f32 %v4885, 1e-12
    %v4888 = vrsqrt.pop %v4886
    %v4889 = vrsqrt.pop %v4887
    %v4890 = vmul.f32 %v4874, %v4888
    %v4891 = vmul.f32 %v4875, %v4889
    %v4893 = vlaneseq
    %v4894 = vshrl.u32 %v4893, 7
    %v4895 = vsub.s32 0, %v4894
    %v4896 = vrot.slane %v4864, %v4895
    %v4898 = vmul.f32 %v4890, %v4896
    %v4899 = vmul.f32 %v4891, %v4896
    %v4901 = vlaneseq
    %v4902 = vshrl.u32 %v4901, 7
    %v4903 = vsub.s32 0, %v4902
    %v4904 = vrot.slane %v4865, %v4903
    %v4906 = vadd.f32 %v4898, %v4904
    %v4907 = vadd.f32 %v4899, %v4904
    %v4908 = vld [vmem:[%s117] sm:$0xff]
    %v4909 = vld [vmem:[%s117 + $0x8] sm:$0xff]
    %v4910 = vld [vmem:[%s117 + $0x10] sm:$0xff]
    %v4911 = vld [vmem:[%s117 + $0x18] sm:$0xff]
    %v4912 = vld [vmem:[%s117 + $0x20] sm:$0xff]
    %v4913 = vld [vmem:[%s117 + $0x28] sm:$0xff]
    %v4914 = vld [vmem:[%s117 + $0x30] sm:$0xff]
    %v4915 = vld [vmem:[%s117 + $0x38] sm:$0xff]
    %v4916 = vld [vmem:[%s115] sm:$0x3]
    %v4917 = vpack.c.bf16 %v4907, %v4906
    %v4919 = vlaneseq
    %v4920 = vshrl.u32 %v4919, 7
    %v4921 = vsub.s32 0, %v4920
    %v4922 = vrot.slane %v4916, %v4921
    %v4923 = vlaneseq
    %v4924 = vshrl.u32 %v4923, 7
    %v4925 = vsub.s32 1, %v4924
    %v4926 = vrot.slane %v4916, %v4925
    %v4937 = vunpack.c.l.b16 %v4908
    %v4938 = vunpack.c.h.b16 %v4908
    %v4939 = vunpack.c.l.b16 %v4909
    %v4940 = vunpack.c.h.b16 %v4909
    %v4941 = vunpack.c.l.b16 %v4910
    %v4942 = vunpack.c.h.b16 %v4910
    %v4943 = vunpack.c.l.b16 %v4911
    %v4944 = vunpack.c.h.b16 %v4911
    %v4945 = vunpack.c.l.b16 %v4912
    %v4946 = vunpack.c.h.b16 %v4912
    %v4947 = vunpack.c.l.b16 %v4913
    %v4948 = vunpack.c.h.b16 %v4913
    %v4949 = vunpack.c.l.b16 %v4914
    %v4950 = vunpack.c.h.b16 %v4914
    %v4951 = vunpack.c.l.b16 %v4915
    %v4952 = vunpack.c.h.b16 %v4915
    %v4953 = vpack.c.b16 %v4939, %v4937
    %v4954 = vpack.c.b16 %v4940, %v4938
    %v4955 = vpack.c.b16 %v4943, %v4941
    %v4956 = vpack.c.b16 %v4944, %v4942
    %v4957 = vpack.c.b16 %v4947, %v4945
    %v4958 = vpack.c.b16 %v4948, %v4946
    %v4959 = vpack.c.b16 %v4951, %v4949
    %v4960 = vpack.c.b16 %v4952, %v4950
    %v4970 = vsel %vm667, %v4917, 0
    %4972 = vmatprep.subr.bf16.mxu0 %v4954
    %4973 = vmatpush1.bf16.msra.mxu0 %v4953
    %4974 = vmatprep.subr.bf16.mxu0 %v4956
    %4975 = vmatpush1.bf16.msra.mxu0 %v4955
    %4976 = vmatprep.subr.bf16.mxu0 %v4958
    %4977 = vmatpush1.bf16.msra.mxu0 %v4957
    %4978 = vmatprep.subr.bf16.mxu0 %v4960
    %4979 = vmatpush1.bf16.msra.mxu0 %v4959
    %4980 = vmatprep.subr.bf16.mxu0 0
    %4981 = vmatpush1.bf16.msra.mxu0 0
    %4982 = vmatprep.subr.bf16.mxu0 0
    %4983 = vmatpush1.bf16.msra.mxu0 0
    %4984 = vmatprep.subr.bf16.mxu0 0
    %4985 = vmatpush1.bf16.msra.mxu0 0
    %4986 = vmatprep.subr.bf16.mxu0 0
    %4987 = vmatpush1.bf16.msra.mxu0 0
    %4988 = vmatprep.subr.bf16.mxu0 0
    %4989 = vmatpush1.bf16.msra.mxu0 0
    %4990 = vmatprep.subr.bf16.mxu0 0
    %4991 = vmatpush1.bf16.msra.mxu0 0
    %4992 = vmatprep.subr.bf16.mxu0 0
    %4993 = vmatpush1.bf16.msra.mxu0 0
    %4994 = vmatprep.subr.bf16.mxu0 0
    %4995 = vmatpush1.bf16.msra.mxu0 0
    %4996 = vmatprep.subr.bf16.mxu0 0
    %4997 = vmatpush1.bf16.msra.mxu0 0
    %4998 = vmatprep.subr.bf16.mxu0 0
    %4999 = vmatpush1.bf16.msra.mxu0 0
    %5000 = vmatprep.subr.bf16.mxu0 0
    %5001 = vmatpush1.bf16.msra.mxu0 0
    %5002 = vmatprep.subr.bf16.mxu0 0
    %5003 = vmatpush1.bf16.msra.mxu0 0
    %5004 = vmatprep.mubr.bf16.mxu0 0
    %5005 = vmatmul.mubr.bf16.gmra.mrb[0].mxu0 %v4970
    %v5006 = vpop.f32.mrb[0].mxu0
    %v5007 = vadd.f32 %v4922, %v5006
    %v5008 = vpop.f32.mrb[0].mxu0
    %v5009 = vadd.f32 %v4926, %v5008
    %v5010 = vpop.f32.mrb[0].mxu0
    %v5011 = vadd.f32 %v4922, %v5010
    %v5012 = vpop.f32.mrb[0].mxu0
    %v5013 = vadd.f32 %v4926, %v5012
    %5014 = vdwg.mxu0
    %v5015 = vpack.c.bf16 %v5007, %v5007
    %v5016 = vpack.c.bf16 %v5011, %v5011
    %v5017 = vpack.c.bf16 %v5009, %v5009
    %v5018 = vpack.c.bf16 %v5013, %v5013
    %5020 = vrot.lane.b32.xlu0 %v5015, 64
    %v5021 = vpop.permute.xlu0 %5020
    %v5023 = vsel %vm729, %v5015, 0
    %v5026 = vsel %vm729, %v5021, 0
    %5028 = vmatprep.subr.bf16.mxu0 0
    %5029 = vmatpush1.bf16.xpose.msra.mxu0 %v5026
    %5030 = vmatprep.subr.bf16.mxu0 0
    %5031 = vmatpush1.bf16.xpose.msra.mxu0 0
    %5032 = vmatprep.subr.bf16.mxu0 0
    %5033 = vmatpush1.bf16.xpose.msra.mxu0 0
    %5034 = vmatprep.subr.bf16.mxu0 0
    %5035 = vmatpush1.bf16.xpose.msra.mxu0 0
    %5036 = vmatprep.subr.bf16.mxu0 0
    %5037 = vmatpush1.bf16.xpose.msra.mxu0 0
    %5038 = vmatprep.subr.bf16.mxu0 0
    %5039 = vmatpush1.bf16.xpose.msra.mxu0 0
    %5040 = vmatprep.subr.bf16.mxu0 0
    %5041 = vmatpush1.bf16.xpose.msra.mxu0 0
    %5042 = vmatprep.subr.bf16.mxu0 0
    %5043 = vmatpush1.bf16.xpose.msra.mxu0 0
    %5044 = vmatprep.subr.bf16.mxu0 0
    %5045 = vmatpush1.bf16.xpose.msra.mxu0 0
    %5046 = vmatprep.subr.bf16.mxu0 0
    %5047 = vmatpush1.bf16.xpose.msra.mxu0 0
    %5048 = vmatprep.subr.bf16.mxu0 0
    %5049 = vmatpush1.bf16.xpose.msra.mxu0 0
    %5050 = vmatprep.subr.bf16.mxu0 0
    %5051 = vmatpush1.bf16.xpose.msra.mxu0 0
    %5052 = vmatprep.subr.bf16.mxu0 0
    %5053 = vmatpush1.bf16.xpose.msra.mxu0 0
    %5054 = vmatprep.subr.bf16.mxu0 0
    %5055 = vmatpush1.bf16.xpose.msra.mxu0 0
    %5056 = vmatprep.subr.bf16.mxu0 0
    %5057 = vmatpush1.bf16.xpose.msra.mxu0 0
    %5058 = vmatprep.subr.bf16.mxu0 0
    %5059 = vmatpush1.bf16.xpose.msra.mxu0 0
    %5060 = vmatprep.mubr.bf16.mxu0 0
    %5061 = vmatmul.mubr.bf16.gmra.mrb[0].mxu0 %v5023
    %v5062 = vpop.f32.mrb[0].mxu0
    %v5063 = vadd.f32 %v1027, %v5062
    %v5064 = vpop.f32.mrb[0].mxu0
    %v5065 = vpop.f32.mrb[0].mxu0
    %v5066 = vpop.f32.mrb[0].mxu0
    %5067 = vdwg.mxu0
    %5069 = vrot.lane.b32.xlu0 %v5016, 64
    %v5070 = vpop.permute.xlu0 %5069
    %v5072 = vsel %vm729, %v5016, 0
    %v5075 = vsel %vm729, %v5070, 0
    %5077 = vmatprep.subr.bf16.mxu0 0
    %5078 = vmatpush1.bf16.xpose.msra.mxu0 %v5075
    %5079 = vmatprep.subr.bf16.mxu0 0
    %5080 = vmatpush1.bf16.xpose.msra.mxu0 0
    %5081 = vmatprep.subr.bf16.mxu0 0
    %5082 = vmatpush1.bf16.xpose.msra.mxu0 0
    %5083 = vmatprep.subr.bf16.mxu0 0
    %5084 = vmatpush1.bf16.xpose.msra.mxu0 0
    %5085 = vmatprep.subr.bf16.mxu0 0
    %5086 = vmatpush1.bf16.xpose.msra.mxu0 0
    %5087 = vmatprep.subr.bf16.mxu0 0
    %5088 = vmatpush1.bf16.xpose.msra.mxu0 0
    %5089 = vmatprep.subr.bf16.mxu0 0
    %5090 = vmatpush1.bf16.xpose.msra.mxu0 0
    %5091 = vmatprep.subr.bf16.mxu0 0
    %5092 = vmatpush1.bf16.xpose.msra.mxu0 0
    %5093 = vmatprep.subr.bf16.mxu0 0
    %5094 = vmatpush1.bf16.xpose.msra.mxu0 0
    %5095 = vmatprep.subr.bf16.mxu0 0
    %5096 = vmatpush1.bf16.xpose.msra.mxu0 0
    %5097 = vmatprep.subr.bf16.mxu0 0
    %5098 = vmatpush1.bf16.xpose.msra.mxu0 0
    %5099 = vmatprep.subr.bf16.mxu0 0
    %5100 = vmatpush1.bf16.xpose.msra.mxu0 0
    %5101 = vmatprep.subr.bf16.mxu0 0
    %5102 = vmatpush1.bf16.xpose.msra.mxu0 0
    %5103 = vmatprep.subr.bf16.mxu0 0
    %5104 = vmatpush1.bf16.xpose.msra.mxu0 0
    %5105 = vmatprep.subr.bf16.mxu0 0
    %5106 = vmatpush1.bf16.xpose.msra.mxu0 0
    %5107 = vmatprep.subr.bf16.mxu0 0
    %5108 = vmatpush1.bf16.xpose.msra.mxu0 0
    %5109 = vmatprep.mubr.bf16.mxu0 0
    %5110 = vmatmul.mubr.bf16.gmra.mrb[0].mxu0 %v5072
    %v5111 = vpop.f32.mrb[0].mxu0
    %v5112 = vadd.f32 %v1031, %v5111
    %v5113 = vpop.f32.mrb[0].mxu0
    %v5114 = vpop.f32.mrb[0].mxu0
    %v5115 = vpop.f32.mrb[0].mxu0
    %5116 = vdwg.mxu0
    %v5117 = vsel %vm1132, %v5063, -inf
    %5118 = vmax.xlane.f32.xlu0 %v5117
    %v5119 = vpop.xlane.xlu0 %5118
    %v5120 = vsel %vm1132, %v5112, -inf
    %5121 = vmax.xlane.f32.xlu0 %v5120
    %v5122 = vpop.xlane.xlu0 %5121
    %v5123 = vsub.f32 %v5063, %v5119
    %v5124 = vsub.f32 %v5112, %v5122
    %v5125 = vmul.f32 %v5123, 1.442695
    %v5126 = vpow.pop %v5125
    %v5127 = vmul.f32 %v5124, 1.442695
    %v5128 = vpow.pop %v5127
    %v5129 = vsel %vm1132, %v5126, 0.0
    %5130 = vadd.xlane.f32.xlu0 %v5129
    %v5131 = vpop.xlane.xlu0 %5130
    %v5132 = vsel %vm1132, %v5128, 0.0
    %5133 = vadd.xlane.f32.xlu0 %v5132
    %v5134 = vpop.xlane.xlu0 %5133
    %v5135 = vrcp.pop %v5131
    %v5136 = vrcp.pop %v5134
    %v5137 = vmul.f32 %v5126, %v5135
    %v5138 = vmul.f32 %v5128, %v5136
    %v5139 = vpack.c.bf16 %v5137, %v5137
    %v5140 = vpack.c.bf16 %v5138, %v5138
    %v5142 = vsel %vm1132, %v5139, 0
    %v5145 = vsel %vm1160, %v5017, 0
    %5147 = vmatprep.subr.bf16.mxu0 0
    %5148 = vmatpush1.bf16.msra.mxu0 %v5145
    %5149 = vmatprep.subr.bf16.mxu0 0
    %5150 = vmatpush1.bf16.msra.mxu0 0
    %5151 = vmatprep.subr.bf16.mxu0 0
    %5152 = vmatpush1.bf16.msra.mxu0 0
    %5153 = vmatprep.subr.bf16.mxu0 0
    %5154 = vmatpush1.bf16.msra.mxu0 0
    %5155 = vmatprep.subr.bf16.mxu0 0
    %5156 = vmatpush1.bf16.msra.mxu0 0
    %5157 = vmatprep.subr.bf16.mxu0 0
    %5158 = vmatpush1.bf16.msra.mxu0 0
    %5159 = vmatprep.subr.bf16.mxu0 0
    %5160 = vmatpush1.bf16.msra.mxu0 0
    %5161 = vmatprep.subr.bf16.mxu0 0
    %5162 = vmatpush1.bf16.msra.mxu0 0
    %5163 = vmatprep.subr.bf16.mxu0 0
    %5164 = vmatpush1.bf16.msra.mxu0 0
    %5165 = vmatprep.subr.bf16.mxu0 0
    %5166 = vmatpush1.bf16.msra.mxu0 0
    %5167 = vmatprep.subr.bf16.mxu0 0
    %5168 = vmatpush1.bf16.msra.mxu0 0
    %5169 = vmatprep.subr.bf16.mxu0 0
    %5170 = vmatpush1.bf16.msra.mxu0 0
    %5171 = vmatprep.subr.bf16.mxu0 0
    %5172 = vmatpush1.bf16.msra.mxu0 0
    %5173 = vmatprep.subr.bf16.mxu0 0
    %5174 = vmatpush1.bf16.msra.mxu0 0
    %5175 = vmatprep.subr.bf16.mxu0 0
    %5176 = vmatpush1.bf16.msra.mxu0 0
    %5177 = vmatprep.subr.bf16.mxu0 0
    %5178 = vmatpush1.bf16.msra.mxu0 0
    %5179 = vmatprep.mubr.bf16.mxu0 0
    %5180 = vmatmul.mubr.bf16.gmra.mrb[0].mxu0 %v5142
    %v5181 = vpop.f32.mrb[0].mxu0
    %v5182 = vadd.f32 0.0, %v5181
    %v5183 = vpop.f32.mrb[0].mxu0
    %v5184 = vpop.f32.mrb[0].mxu0
    %v5185 = vpop.f32.mrb[0].mxu0
    %5186 = vdwg.mxu0
    %v5188 = vsel %vm1132, %v5140, 0
    %v5191 = vsel %vm1160, %v5018, 0
    %5193 = vmatprep.subr.bf16.mxu0 0
    %5194 = vmatpush1.bf16.msra.mxu0 %v5191
    %5195 = vmatprep.subr.bf16.mxu0 0
    %5196 = vmatpush1.bf16.msra.mxu0 0
    %5197 = vmatprep.subr.bf16.mxu0 0
    %5198 = vmatpush1.bf16.msra.mxu0 0
    %5199 = vmatprep.subr.bf16.mxu0 0
    %5200 = vmatpush1.bf16.msra.mxu0 0
    %5201 = vmatprep.subr.bf16.mxu0 0
    %5202 = vmatpush1.bf16.msra.mxu0 0
    %5203 = vmatprep.subr.bf16.mxu0 0
    %5204 = vmatpush1.bf16.msra.mxu0 0
    %5205 = vmatprep.subr.bf16.mxu0 0
    %5206 = vmatpush1.bf16.msra.mxu0 0
    %5207 = vmatprep.subr.bf16.mxu0 0
    %5208 = vmatpush1.bf16.msra.mxu0 0
    %5209 = vmatprep.subr.bf16.mxu0 0
    %5210 = vmatpush1.bf16.msra.mxu0 0
    %5211 = vmatprep.subr.bf16.mxu0 0
    %5212 = vmatpush1.bf16.msra.mxu0 0
    %5213 = vmatprep.subr.bf16.mxu0 0
    %5214 = vmatpush1.bf16.msra.mxu0 0
    %5215 = vmatprep.subr.bf16.mxu0 0
    %5216 = vmatpush1.bf16.msra.mxu0 0
    %5217 = vmatprep.subr.bf16.mxu0 0
    %5218 = vmatpush1.bf16.msra.mxu0 0
    %5219 = vmatprep.subr.bf16.mxu0 0
    %5220 = vmatpush1.bf16.msra.mxu0 0
    %5221 = vmatprep.subr.bf16.mxu0 0
    %5222 = vmatpush1.bf16.msra.mxu0 0
    %5223 = vmatprep.subr.bf16.mxu0 0
    %5224 = vmatpush1.bf16.msra.mxu0 0
    %5225 = vmatprep.mubr.bf16.mxu0 0
    %5226 = vmatmul.mubr.bf16.gmra.mrb[0].mxu0 %v5188
    %v5227 = vpop.f32.mrb[0].mxu0
    %v5228 = vadd.f32 0.0, %v5227
    %v5229 = vpop.f32.mrb[0].mxu0
    %v5230 = vpop.f32.mrb[0].mxu0
    %v5231 = vpop.f32.mrb[0].mxu0
    %5232 = vdwg.mxu0
    %5233 = vrot.lane.b32.xlu0 %v5015, 112
    %v5234 = vpop.permute.xlu0 %5233
    %5235 = vrot.lane.b32.xlu0 %v5015, 48
    %v5236 = vpop.permute.xlu0 %5235
    %v5238 = vsel %vm729, %v5234, 0
    %v5241 = vsel %vm729, %v5236, 0
    %5243 = vmatprep.subr.bf16.mxu0 0
    %5244 = vmatpush1.bf16.xpose.msra.mxu0 %v5241
    %5245 = vmatprep.subr.bf16.mxu0 0
    %5246 = vmatpush1.bf16.xpose.msra.mxu0 0
    %5247 = vmatprep.subr.bf16.mxu0 0
    %5248 = vmatpush1.bf16.xpose.msra.mxu0 0
    %5249 = vmatprep.subr.bf16.mxu0 0
    %5250 = vmatpush1.bf16.xpose.msra.mxu0 0
    %5251 = vmatprep.subr.bf16.mxu0 0
    %5252 = vmatpush1.bf16.xpose.msra.mxu0 0
    %5253 = vmatprep.subr.bf16.mxu0 0
    %5254 = vmatpush1.bf16.xpose.msra.mxu0 0
    %5255 = vmatprep.subr.bf16.mxu0 0
    %5256 = vmatpush1.bf16.xpose.msra.mxu0 0
    %5257 = vmatprep.subr.bf16.mxu0 0
    %5258 = vmatpush1.bf16.xpose.msra.mxu0 0
    %5259 = vmatprep.subr.bf16.mxu0 0
    %5260 = vmatpush1.bf16.xpose.msra.mxu0 0
    %5261 = vmatprep.subr.bf16.mxu0 0
    %5262 = vmatpush1.bf16.xpose.msra.mxu0 0
    %5263 = vmatprep.subr.bf16.mxu0 0
    %5264 = vmatpush1.bf16.xpose.msra.mxu0 0
    %5265 = vmatprep.subr.bf16.mxu0 0
    %5266 = vmatpush1.bf16.xpose.msra.mxu0 0
    %5267 = vmatprep.subr.bf16.mxu0 0
    %5268 = vmatpush1.bf16.xpose.msra.mxu0 0
    %5269 = vmatprep.subr.bf16.mxu0 0
    %5270 = vmatpush1.bf16.xpose.msra.mxu0 0
    %5271 = vmatprep.subr.bf16.mxu0 0
    %5272 = vmatpush1.bf16.xpose.msra.mxu0 0
    %5273 = vmatprep.subr.bf16.mxu0 0
    %5274 = vmatpush1.bf16.xpose.msra.mxu0 0
    %5275 = vmatprep.mubr.bf16.mxu0 0
    %5276 = vmatmul.mubr.bf16.gmra.mrb[0].mxu0 %v5238
    %v5277 = vpop.f32.mrb[0].mxu0
    %v5278 = vadd.f32 %v1027, %v5277
    %v5279 = vpop.f32.mrb[0].mxu0
    %v5280 = vpop.f32.mrb[0].mxu0
    %v5281 = vpop.f32.mrb[0].mxu0
    %5282 = vdwg.mxu0
    %5283 = vrot.lane.b32.xlu0 %v5016, 112
    %v5284 = vpop.permute.xlu0 %5283
    %5285 = vrot.lane.b32.xlu0 %v5016, 48
    %v5286 = vpop.permute.xlu0 %5285
    %v5288 = vsel %vm729, %v5284, 0
    %v5291 = vsel %vm729, %v5286, 0
    %5293 = vmatprep.subr.bf16.mxu0 0
    %5294 = vmatpush1.bf16.xpose.msra.mxu0 %v5291
    %5295 = vmatprep.subr.bf16.mxu0 0
    %5296 = vmatpush1.bf16.xpose.msra.mxu0 0
    %5297 = vmatprep.subr.bf16.mxu0 0
    %5298 = vmatpush1.bf16.xpose.msra.mxu0 0
    %5299 = vmatprep.subr.bf16.mxu0 0
    %5300 = vmatpush1.bf16.xpose.msra.mxu0 0
    %5301 = vmatprep.subr.bf16.mxu0 0
    %5302 = vmatpush1.bf16.xpose.msra.mxu0 0
    %5303 = vmatprep.subr.bf16.mxu0 0
    %5304 = vmatpush1.bf16.xpose.msra.mxu0 0
    %5305 = vmatprep.subr.bf16.mxu0 0
    %5306 = vmatpush1.bf16.xpose.msra.mxu0 0
    %5307 = vmatprep.subr.bf16.mxu0 0
    %5308 = vmatpush1.bf16.xpose.msra.mxu0 0
    %5309 = vmatprep.subr.bf16.mxu0 0
    %5310 = vmatpush1.bf16.xpose.msra.mxu0 0
    %5311 = vmatprep.subr.bf16.mxu0 0
    %5312 = vmatpush1.bf16.xpose.msra.mxu0 0
    %5313 = vmatprep.subr.bf16.mxu0 0
    %5314 = vmatpush1.bf16.xpose.msra.mxu0 0
    %5315 = vmatprep.subr.bf16.mxu0 0
    %5316 = vmatpush1.bf16.xpose.msra.mxu0 0
    %5317 = vmatprep.subr.bf16.mxu0 0
    %5318 = vmatpush1.bf16.xpose.msra.mxu0 0
    %5319 = vmatprep.subr.bf16.mxu0 0
    %5320 = vmatpush1.bf16.xpose.msra.mxu0 0
    %5321 = vmatprep.subr.bf16.mxu0 0
    %5322 = vmatpush1.bf16.xpose.msra.mxu0 0
    %5323 = vmatprep.subr.bf16.mxu0 0
    %5324 = vmatpush1.bf16.xpose.msra.mxu0 0
    %5325 = vmatprep.mubr.bf16.mxu0 0
    %5326 = vmatmul.mubr.bf16.gmra.mrb[0].mxu0 %v5288
    %v5327 = vpop.f32.mrb[0].mxu0
    %v5328 = vadd.f32 %v1031, %v5327
    %v5329 = vpop.f32.mrb[0].mxu0
    %v5330 = vpop.f32.mrb[0].mxu0
    %v5331 = vpop.f32.mrb[0].mxu0
    %5332 = vdwg.mxu0
    %v5333 = vsel %vm1132, %v5278, -inf
    %5334 = vmax.xlane.f32.xlu0 %v5333
    %v5335 = vpop.xlane.xlu0 %5334
    %v5336 = vsel %vm1132, %v5328, -inf
    %5337 = vmax.xlane.f32.xlu0 %v5336
    %v5338 = vpop.xlane.xlu0 %5337
    %v5339 = vsub.f32 %v5278, %v5335
    %v5340 = vsub.f32 %v5328, %v5338
    %v5341 = vmul.f32 %v5339, 1.442695
    %v5342 = vpow.pop %v5341
    %v5343 = vmul.f32 %v5340, 1.442695
    %v5344 = vpow.pop %v5343
    %v5345 = vsel %vm1132, %v5342, 0.0
    %5346 = vadd.xlane.f32.xlu0 %v5345
    %v5347 = vpop.xlane.xlu0 %5346
    %v5348 = vsel %vm1132, %v5344, 0.0
    %5349 = vadd.xlane.f32.xlu0 %v5348
    %v5350 = vpop.xlane.xlu0 %5349
    %v5351 = vrcp.pop %v5347
    %v5352 = vrcp.pop %v5350
    %v5353 = vmul.f32 %v5342, %v5351
    %v5354 = vmul.f32 %v5344, %v5352
    %v5355 = vpack.c.bf16 %v5353, %v5353
    %v5356 = vpack.c.bf16 %v5354, %v5354
    %5358 = vrot.lane.b32.xlu0 %v5017, 112
    %v5359 = vpop.permute.xlu0 %5358
    %v5361 = vsel %vm1132, %v5355, 0
    %v5364 = vsel %vm1160, %v5359, 0
    %5366 = vmatprep.subr.bf16.mxu0 0
    %5367 = vmatpush1.bf16.msra.mxu0 %v5364
    %5368 = vmatprep.subr.bf16.mxu0 0
    %5369 = vmatpush1.bf16.msra.mxu0 0
    %5370 = vmatprep.subr.bf16.mxu0 0
    %5371 = vmatpush1.bf16.msra.mxu0 0
    %5372 = vmatprep.subr.bf16.mxu0 0
    %5373 = vmatpush1.bf16.msra.mxu0 0
    %5374 = vmatprep.subr.bf16.mxu0 0
    %5375 = vmatpush1.bf16.msra.mxu0 0
    %5376 = vmatprep.subr.bf16.mxu0 0
    %5377 = vmatpush1.bf16.msra.mxu0 0
    %5378 = vmatprep.subr.bf16.mxu0 0
    %5379 = vmatpush1.bf16.msra.mxu0 0
    %5380 = vmatprep.subr.bf16.mxu0 0
    %5381 = vmatpush1.bf16.msra.mxu0 0
    %5382 = vmatprep.subr.bf16.mxu0 0
    %5383 = vmatpush1.bf16.msra.mxu0 0
    %5384 = vmatprep.subr.bf16.mxu0 0
    %5385 = vmatpush1.bf16.msra.mxu0 0
    %5386 = vmatprep.subr.bf16.mxu0 0
    %5387 = vmatpush1.bf16.msra.mxu0 0
    %5388 = vmatprep.subr.bf16.mxu0 0
    %5389 = vmatpush1.bf16.msra.mxu0 0
    %5390 = vmatprep.subr.bf16.mxu0 0
    %5391 = vmatpush1.bf16.msra.mxu0 0
    %5392 = vmatprep.subr.bf16.mxu0 0
    %5393 = vmatpush1.bf16.msra.mxu0 0
    %5394 = vmatprep.subr.bf16.mxu0 0
    %5395 = vmatpush1.bf16.msra.mxu0 0
    %5396 = vmatprep.subr.bf16.mxu0 0
    %5397 = vmatpush1.bf16.msra.mxu0 0
    %5398 = vmatprep.mubr.bf16.mxu0 0
    %5399 = vmatmul.mubr.bf16.gmra.mrb[0].mxu0 %v5361
    %v5400 = vpop.f32.mrb[0].mxu0
    %v5401 = vadd.f32 0.0, %v5400
    %v5402 = vpop.f32.mrb[0].mxu0
    %v5403 = vpop.f32.mrb[0].mxu0
    %v5404 = vpop.f32.mrb[0].mxu0
    %5405 = vdwg.mxu0
    %5407 = vrot.lane.b32.xlu0 %v5018, 112
    %v5408 = vpop.permute.xlu0 %5407
    %v5410 = vsel %vm1132, %v5356, 0
    %v5413 = vsel %vm1160, %v5408, 0
    %5415 = vmatprep.subr.bf16.mxu0 0
    %5416 = vmatpush1.bf16.msra.mxu0 %v5413
    %5417 = vmatprep.subr.bf16.mxu0 0
    %5418 = vmatpush1.bf16.msra.mxu0 0
    %5419 = vmatprep.subr.bf16.mxu0 0
    %5420 = vmatpush1.bf16.msra.mxu0 0
    %5421 = vmatprep.subr.bf16.mxu0 0
    %5422 = vmatpush1.bf16.msra.mxu0 0
    %5423 = vmatprep.subr.bf16.mxu0 0
    %5424 = vmatpush1.bf16.msra.mxu0 0
    %5425 = vmatprep.subr.bf16.mxu0 0
    %5426 = vmatpush1.bf16.msra.mxu0 0
    %5427 = vmatprep.subr.bf16.mxu0 0
    %5428 = vmatpush1.bf16.msra.mxu0 0
    %5429 = vmatprep.subr.bf16.mxu0 0
    %5430 = vmatpush1.bf16.msra.mxu0 0
    %5431 = vmatprep.subr.bf16.mxu0 0
    %5432 = vmatpush1.bf16.msra.mxu0 0
    %5433 = vmatprep.subr.bf16.mxu0 0
    %5434 = vmatpush1.bf16.msra.mxu0 0
    %5435 = vmatprep.subr.bf16.mxu0 0
    %5436 = vmatpush1.bf16.msra.mxu0 0
    %5437 = vmatprep.subr.bf16.mxu0 0
    %5438 = vmatpush1.bf16.msra.mxu0 0
    %5439 = vmatprep.subr.bf16.mxu0 0
    %5440 = vmatpush1.bf16.msra.mxu0 0
    %5441 = vmatprep.subr.bf16.mxu0 0
    %5442 = vmatpush1.bf16.msra.mxu0 0
    %5443 = vmatprep.subr.bf16.mxu0 0
    %5444 = vmatpush1.bf16.msra.mxu0 0
    %5445 = vmatprep.subr.bf16.mxu0 0
    %5446 = vmatpush1.bf16.msra.mxu0 0
    %5447 = vmatprep.mubr.bf16.mxu0 0
    %5448 = vmatmul.mubr.bf16.gmra.mrb[0].mxu0 %v5410
    %v5449 = vpop.f32.mrb[0].mxu0
    %v5450 = vadd.f32 0.0, %v5449
    %v5451 = vpop.f32.mrb[0].mxu0
    %v5452 = vpop.f32.mrb[0].mxu0
    %v5453 = vpop.f32.mrb[0].mxu0
    %5454 = vdwg.mxu0
    %5455 = vrot.lane.b32.xlu0 %v5015, 96
    %v5456 = vpop.permute.xlu0 %5455
    %5457 = vrot.lane.b32.xlu0 %v5015, 32
    %v5458 = vpop.permute.xlu0 %5457
    %v5460 = vsel %vm729, %v5456, 0
    %v5463 = vsel %vm729, %v5458, 0
    %5465 = vmatprep.subr.bf16.mxu0 0
    %5466 = vmatpush1.bf16.xpose.msra.mxu0 %v5463
    %5467 = vmatprep.subr.bf16.mxu0 0
    %5468 = vmatpush1.bf16.xpose.msra.mxu0 0
    %5469 = vmatprep.subr.bf16.mxu0 0
    %5470 = vmatpush1.bf16.xpose.msra.mxu0 0
    %5471 = vmatprep.subr.bf16.mxu0 0
    %5472 = vmatpush1.bf16.xpose.msra.mxu0 0
    %5473 = vmatprep.subr.bf16.mxu0 0
    %5474 = vmatpush1.bf16.xpose.msra.mxu0 0
    %5475 = vmatprep.subr.bf16.mxu0 0
    %5476 = vmatpush1.bf16.xpose.msra.mxu0 0
    %5477 = vmatprep.subr.bf16.mxu0 0
    %5478 = vmatpush1.bf16.xpose.msra.mxu0 0
    %5479 = vmatprep.subr.bf16.mxu0 0
    %5480 = vmatpush1.bf16.xpose.msra.mxu0 0
    %5481 = vmatprep.subr.bf16.mxu0 0
    %5482 = vmatpush1.bf16.xpose.msra.mxu0 0
    %5483 = vmatprep.subr.bf16.mxu0 0
    %5484 = vmatpush1.bf16.xpose.msra.mxu0 0
    %5485 = vmatprep.subr.bf16.mxu0 0
    %5486 = vmatpush1.bf16.xpose.msra.mxu0 0
    %5487 = vmatprep.subr.bf16.mxu0 0
    %5488 = vmatpush1.bf16.xpose.msra.mxu0 0
    %5489 = vmatprep.subr.bf16.mxu0 0
    %5490 = vmatpush1.bf16.xpose.msra.mxu0 0
    %5491 = vmatprep.subr.bf16.mxu0 0
    %5492 = vmatpush1.bf16.xpose.msra.mxu0 0
    %5493 = vmatprep.subr.bf16.mxu0 0
    %5494 = vmatpush1.bf16.xpose.msra.mxu0 0
    %5495 = vmatprep.subr.bf16.mxu0 0
    %5496 = vmatpush1.bf16.xpose.msra.mxu0 0
    %5497 = vmatprep.mubr.bf16.mxu0 0
    %5498 = vmatmul.mubr.bf16.gmra.mrb[0].mxu0 %v5460
    %v5499 = vpop.f32.mrb[0].mxu0
    %v5500 = vadd.f32 %v1027, %v5499
    %v5501 = vpop.f32.mrb[0].mxu0
    %v5502 = vpop.f32.mrb[0].mxu0
    %v5503 = vpop.f32.mrb[0].mxu0
    %5504 = vdwg.mxu0
    %5505 = vrot.lane.b32.xlu0 %v5016, 96
    %v5506 = vpop.permute.xlu0 %5505
    %5507 = vrot.lane.b32.xlu0 %v5016, 32
    %v5508 = vpop.permute.xlu0 %5507
    %v5510 = vsel %vm729, %v5506, 0
    %v5513 = vsel %vm729, %v5508, 0
    %5515 = vmatprep.subr.bf16.mxu0 0
    %5516 = vmatpush1.bf16.xpose.msra.mxu0 %v5513
    %5517 = vmatprep.subr.bf16.mxu0 0
    %5518 = vmatpush1.bf16.xpose.msra.mxu0 0
    %5519 = vmatprep.subr.bf16.mxu0 0
    %5520 = vmatpush1.bf16.xpose.msra.mxu0 0
    %5521 = vmatprep.subr.bf16.mxu0 0
    %5522 = vmatpush1.bf16.xpose.msra.mxu0 0
    %5523 = vmatprep.subr.bf16.mxu0 0
    %5524 = vmatpush1.bf16.xpose.msra.mxu0 0
    %5525 = vmatprep.subr.bf16.mxu0 0
    %5526 = vmatpush1.bf16.xpose.msra.mxu0 0
    %5527 = vmatprep.subr.bf16.mxu0 0
    %5528 = vmatpush1.bf16.xpose.msra.mxu0 0
    %5529 = vmatprep.subr.bf16.mxu0 0
    %5530 = vmatpush1.bf16.xpose.msra.mxu0 0
    %5531 = vmatprep.subr.bf16.mxu0 0
    %5532 = vmatpush1.bf16.xpose.msra.mxu0 0
    %5533 = vmatprep.subr.bf16.mxu0 0
    %5534 = vmatpush1.bf16.xpose.msra.mxu0 0
    %5535 = vmatprep.subr.bf16.mxu0 0
    %5536 = vmatpush1.bf16.xpose.msra.mxu0 0
    %5537 = vmatprep.subr.bf16.mxu0 0
    %5538 = vmatpush1.bf16.xpose.msra.mxu0 0
    %5539 = vmatprep.subr.bf16.mxu0 0
    %5540 = vmatpush1.bf16.xpose.msra.mxu0 0
    %5541 = vmatprep.subr.bf16.mxu0 0
    %5542 = vmatpush1.bf16.xpose.msra.mxu0 0
    %5543 = vmatprep.subr.bf16.mxu0 0
    %5544 = vmatpush1.bf16.xpose.msra.mxu0 0
    %5545 = vmatprep.subr.bf16.mxu0 0
    %5546 = vmatpush1.bf16.xpose.msra.mxu0 0
    %5547 = vmatprep.mubr.bf16.mxu0 0
    %5548 = vmatmul.mubr.bf16.gmra.mrb[0].mxu0 %v5510
    %v5549 = vpop.f32.mrb[0].mxu0
    %v5550 = vadd.f32 %v1031, %v5549
    %v5551 = vpop.f32.mrb[0].mxu0
    %v5552 = vpop.f32.mrb[0].mxu0
    %v5553 = vpop.f32.mrb[0].mxu0
    %5554 = vdwg.mxu0
    %v5555 = vsel %vm1132, %v5500, -inf
    %5556 = vmax.xlane.f32.xlu0 %v5555
    %v5557 = vpop.xlane.xlu0 %5556
    %v5558 = vsel %vm1132, %v5550, -inf
    %5559 = vmax.xlane.f32.xlu0 %v5558
    %v5560 = vpop.xlane.xlu0 %5559
    %v5561 = vsub.f32 %v5500, %v5557
    %v5562 = vsub.f32 %v5550, %v5560
    %v5563 = vmul.f32 %v5561, 1.442695
    %v5564 = vpow.pop %v5563
    %v5565 = vmul.f32 %v5562, 1.442695
    %v5566 = vpow.pop %v5565
    %v5567 = vsel %vm1132, %v5564, 0.0
    %5568 = vadd.xlane.f32.xlu0 %v5567
    %v5569 = vpop.xlane.xlu0 %5568
    %v5570 = vsel %vm1132, %v5566, 0.0
    %5571 = vadd.xlane.f32.xlu0 %v5570
    %v5572 = vpop.xlane.xlu0 %5571
    %v5573 = vrcp.pop %v5569
    %v5574 = vrcp.pop %v5572
    %v5575 = vmul.f32 %v5564, %v5573
    %v5576 = vmul.f32 %v5566, %v5574
    %v5577 = vpack.c.bf16 %v5575, %v5575
    %v5578 = vpack.c.bf16 %v5576, %v5576
    %5579 = vrot.lane.b32.xlu0 %v5017, 96
    %v5580 = vpop.permute.xlu0 %5579
    %v5582 = vsel %vm1132, %v5577, 0
    %v5585 = vsel %vm1160, %v5580, 0
    %5587 = vmatprep.subr.bf16.mxu0 0
    %5588 = vmatpush1.bf16.msra.mxu0 %v5585
    %5589 = vmatprep.subr.bf16.mxu0 0
    %5590 = vmatpush1.bf16.msra.mxu0 0
    %5591 = vmatprep.subr.bf16.mxu0 0
    %5592 = vmatpush1.bf16.msra.mxu0 0
    %5593 = vmatprep.subr.bf16.mxu0 0
    %5594 = vmatpush1.bf16.msra.mxu0 0
    %5595 = vmatprep.subr.bf16.mxu0 0
    %5596 = vmatpush1.bf16.msra.mxu0 0
    %5597 = vmatprep.subr.bf16.mxu0 0
    %5598 = vmatpush1.bf16.msra.mxu0 0
    %5599 = vmatprep.subr.bf16.mxu0 0
    %5600 = vmatpush1.bf16.msra.mxu0 0
    %5601 = vmatprep.subr.bf16.mxu0 0
    %5602 = vmatpush1.bf16.msra.mxu0 0
    %5603 = vmatprep.subr.bf16.mxu0 0
    %5604 = vmatpush1.bf16.msra.mxu0 0
    %5605 = vmatprep.subr.bf16.mxu0 0
    %5606 = vmatpush1.bf16.msra.mxu0 0
    %5607 = vmatprep.subr.bf16.mxu0 0
    %5608 = vmatpush1.bf16.msra.mxu0 0
    %5609 = vmatprep.subr.bf16.mxu0 0
    %5610 = vmatpush1.bf16.msra.mxu0 0
    %5611 = vmatprep.subr.bf16.mxu0 0
    %5612 = vmatpush1.bf16.msra.mxu0 0
    %5613 = vmatprep.subr.bf16.mxu0 0
    %5614 = vmatpush1.bf16.msra.mxu0 0
    %5615 = vmatprep.subr.bf16.mxu0 0
    %5616 = vmatpush1.bf16.msra.mxu0 0
    %5617 = vmatprep.subr.bf16.mxu0 0
    %5618 = vmatpush1.bf16.msra.mxu0 0
    %5619 = vmatprep.mubr.bf16.mxu0 0
    %5620 = vmatmul.mubr.bf16.gmra.mrb[0].mxu0 %v5582
    %v5621 = vpop.f32.mrb[0].mxu0
    %v5622 = vadd.f32 0.0, %v5621
    %v5623 = vpop.f32.mrb[0].mxu0
    %v5624 = vpop.f32.mrb[0].mxu0
    %v5625 = vpop.f32.mrb[0].mxu0
    %5626 = vdwg.mxu0
    %5627 = vrot.lane.b32.xlu0 %v5018, 96
    %v5628 = vpop.permute.xlu0 %5627
    %v5630 = vsel %vm1132, %v5578, 0
    %v5633 = vsel %vm1160, %v5628, 0
    %5635 = vmatprep.subr.bf16.mxu0 0
    %5636 = vmatpush1.bf16.msra.mxu0 %v5633
    %5637 = vmatprep.subr.bf16.mxu0 0
    %5638 = vmatpush1.bf16.msra.mxu0 0
    %5639 = vmatprep.subr.bf16.mxu0 0
    %5640 = vmatpush1.bf16.msra.mxu0 0
    %5641 = vmatprep.subr.bf16.mxu0 0
    %5642 = vmatpush1.bf16.msra.mxu0 0
    %5643 = vmatprep.subr.bf16.mxu0 0
    %5644 = vmatpush1.bf16.msra.mxu0 0
    %5645 = vmatprep.subr.bf16.mxu0 0
    %5646 = vmatpush1.bf16.msra.mxu0 0
    %5647 = vmatprep.subr.bf16.mxu0 0
    %5648 = vmatpush1.bf16.msra.mxu0 0
    %5649 = vmatprep.subr.bf16.mxu0 0
    %5650 = vmatpush1.bf16.msra.mxu0 0
    %5651 = vmatprep.subr.bf16.mxu0 0
    %5652 = vmatpush1.bf16.msra.mxu0 0
    %5653 = vmatprep.subr.bf16.mxu0 0
    %5654 = vmatpush1.bf16.msra.mxu0 0
    %5655 = vmatprep.subr.bf16.mxu0 0
    %5656 = vmatpush1.bf16.msra.mxu0 0
    %5657 = vmatprep.subr.bf16.mxu0 0
    %5658 = vmatpush1.bf16.msra.mxu0 0
    %5659 = vmatprep.subr.bf16.mxu0 0
    %5660 = vmatpush1.bf16.msra.mxu0 0
    %5661 = vmatprep.subr.bf16.mxu0 0
    %5662 = vmatpush1.bf16.msra.mxu0 0
    %5663 = vmatprep.subr.bf16.mxu0 0
    %5664 = vmatpush1.bf16.msra.mxu0 0
    %5665 = vmatprep.subr.bf16.mxu0 0
    %5666 = vmatpush1.bf16.msra.mxu0 0
    %5667 = vmatprep.mubr.bf16.mxu0 0
    %5668 = vmatmul.mubr.bf16.gmra.mrb[0].mxu0 %v5630
    %v5669 = vpop.f32.mrb[0].mxu0
    %v5670 = vadd.f32 0.0, %v5669
    %v5671 = vpop.f32.mrb[0].mxu0
    %v5672 = vpop.f32.mrb[0].mxu0
    %v5673 = vpop.f32.mrb[0].mxu0
    %5674 = vdwg.mxu0
    %5675 = vrot.lane.b32.xlu0 %v5015, 80
    %v5676 = vpop.permute.xlu0 %5675
    %5677 = vrot.lane.b32.xlu0 %v5015, 16
    %v5678 = vpop.permute.xlu0 %5677
    %v5680 = vsel %vm729, %v5676, 0
    %v5683 = vsel %vm729, %v5678, 0
    %5685 = vmatprep.subr.bf16.mxu0 0
    %5686 = vmatpush1.bf16.xpose.msra.mxu0 %v5683
    %5687 = vmatprep.subr.bf16.mxu0 0
    %5688 = vmatpush1.bf16.xpose.msra.mxu0 0
    %5689 = vmatprep.subr.bf16.mxu0 0
    %5690 = vmatpush1.bf16.xpose.msra.mxu0 0
    %5691 = vmatprep.subr.bf16.mxu0 0
    %5692 = vmatpush1.bf16.xpose.msra.mxu0 0
    %5693 = vmatprep.subr.bf16.mxu0 0
    %5694 = vmatpush1.bf16.xpose.msra.mxu0 0
    %5695 = vmatprep.subr.bf16.mxu0 0
    %5696 = vmatpush1.bf16.xpose.msra.mxu0 0
    %5697 = vmatprep.subr.bf16.mxu0 0
    %5698 = vmatpush1.bf16.xpose.msra.mxu0 0
    %5699 = vmatprep.subr.bf16.mxu0 0
    %5700 = vmatpush1.bf16.xpose.msra.mxu0 0
    %5701 = vmatprep.subr.bf16.mxu0 0
    %5702 = vmatpush1.bf16.xpose.msra.mxu0 0
    %5703 = vmatprep.subr.bf16.mxu0 0
    %5704 = vmatpush1.bf16.xpose.msra.mxu0 0
    %5705 = vmatprep.subr.bf16.mxu0 0
    %5706 = vmatpush1.bf16.xpose.msra.mxu0 0
    %5707 = vmatprep.subr.bf16.mxu0 0
    %5708 = vmatpush1.bf16.xpose.msra.mxu0 0
    %5709 = vmatprep.subr.bf16.mxu0 0
    %5710 = vmatpush1.bf16.xpose.msra.mxu0 0
    %5711 = vmatprep.subr.bf16.mxu0 0
    %5712 = vmatpush1.bf16.xpose.msra.mxu0 0
    %5713 = vmatprep.subr.bf16.mxu0 0
    %5714 = vmatpush1.bf16.xpose.msra.mxu0 0
    %5715 = vmatprep.subr.bf16.mxu0 0
    %5716 = vmatpush1.bf16.xpose.msra.mxu0 0
    %5717 = vmatprep.mubr.bf16.mxu0 0
    %5718 = vmatmul.mubr.bf16.gmra.mrb[0].mxu0 %v5680
    %v5719 = vpop.f32.mrb[0].mxu0
    %v5720 = vadd.f32 %v1027, %v5719
    %v5721 = vpop.f32.mrb[0].mxu0
    %v5722 = vpop.f32.mrb[0].mxu0
    %v5723 = vpop.f32.mrb[0].mxu0
    %5724 = vdwg.mxu0
    %5725 = vrot.lane.b32.xlu0 %v5016, 80
    %v5726 = vpop.permute.xlu0 %5725
    %5727 = vrot.lane.b32.xlu0 %v5016, 16
    %v5728 = vpop.permute.xlu0 %5727
    %v5730 = vsel %vm729, %v5726, 0
    %v5733 = vsel %vm729, %v5728, 0
    %5735 = vmatprep.subr.bf16.mxu0 0
    %5736 = vmatpush1.bf16.xpose.msra.mxu0 %v5733
    %5737 = vmatprep.subr.bf16.mxu0 0
    %5738 = vmatpush1.bf16.xpose.msra.mxu0 0
    %5739 = vmatprep.subr.bf16.mxu0 0
    %5740 = vmatpush1.bf16.xpose.msra.mxu0 0
    %5741 = vmatprep.subr.bf16.mxu0 0
    %5742 = vmatpush1.bf16.xpose.msra.mxu0 0
    %5743 = vmatprep.subr.bf16.mxu0 0
    %5744 = vmatpush1.bf16.xpose.msra.mxu0 0
    %5745 = vmatprep.subr.bf16.mxu0 0
    %5746 = vmatpush1.bf16.xpose.msra.mxu0 0
    %5747 = vmatprep.subr.bf16.mxu0 0
    %5748 = vmatpush1.bf16.xpose.msra.mxu0 0
    %5749 = vmatprep.subr.bf16.mxu0 0
    %5750 = vmatpush1.bf16.xpose.msra.mxu0 0
    %5751 = vmatprep.subr.bf16.mxu0 0
    %5752 = vmatpush1.bf16.xpose.msra.mxu0 0
    %5753 = vmatprep.subr.bf16.mxu0 0
    %5754 = vmatpush1.bf16.xpose.msra.mxu0 0
    %5755 = vmatprep.subr.bf16.mxu0 0
    %5756 = vmatpush1.bf16.xpose.msra.mxu0 0
    %5757 = vmatprep.subr.bf16.mxu0 0
    %5758 = vmatpush1.bf16.xpose.msra.mxu0 0
    %5759 = vmatprep.subr.bf16.mxu0 0
    %5760 = vmatpush1.bf16.xpose.msra.mxu0 0
    %5761 = vmatprep.subr.bf16.mxu0 0
    %5762 = vmatpush1.bf16.xpose.msra.mxu0 0
    %5763 = vmatprep.subr.bf16.mxu0 0
    %5764 = vmatpush1.bf16.xpose.msra.mxu0 0
    %5765 = vmatprep.subr.bf16.mxu0 0
    %5766 = vmatpush1.bf16.xpose.msra.mxu0 0
    %5767 = vmatprep.mubr.bf16.mxu0 0
    %5768 = vmatmul.mubr.bf16.gmra.mrb[0].mxu0 %v5730
    %v5769 = vpop.f32.mrb[0].mxu0
    %v5770 = vadd.f32 %v1031, %v5769
    %v5771 = vpop.f32.mrb[0].mxu0
    %v5772 = vpop.f32.mrb[0].mxu0
    %v5773 = vpop.f32.mrb[0].mxu0
    %5774 = vdwg.mxu0
    %v5775 = vsel %vm1132, %v5720, -inf
    %5776 = vmax.xlane.f32.xlu0 %v5775
    %v5777 = vpop.xlane.xlu0 %5776
    %v5778 = vsel %vm1132, %v5770, -inf
    %5779 = vmax.xlane.f32.xlu0 %v5778
    %v5780 = vpop.xlane.xlu0 %5779
    %v5781 = vsub.f32 %v5720, %v5777
    %v5782 = vsub.f32 %v5770, %v5780
    %v5783 = vmul.f32 %v5781, 1.442695
    %v5784 = vpow.pop %v5783
    %v5785 = vmul.f32 %v5782, 1.442695
    %v5786 = vpow.pop %v5785
    %v5787 = vsel %vm1132, %v5784, 0.0
    %5788 = vadd.xlane.f32.xlu0 %v5787
    %v5789 = vpop.xlane.xlu0 %5788
    %v5790 = vsel %vm1132, %v5786, 0.0
    %5791 = vadd.xlane.f32.xlu0 %v5790
    %v5792 = vpop.xlane.xlu0 %5791
    %v5793 = vrcp.pop %v5789
    %v5794 = vrcp.pop %v5792
    %v5795 = vmul.f32 %v5784, %v5793
    %v5796 = vmul.f32 %v5786, %v5794
    %v5797 = vpack.c.bf16 %v5795, %v5795
    %v5798 = vpack.c.bf16 %v5796, %v5796
    %5799 = vrot.lane.b32.xlu0 %v5017, 80
    %v5800 = vpop.permute.xlu0 %5799
    %v5802 = vsel %vm1132, %v5797, 0
    %v5805 = vsel %vm1160, %v5800, 0
    %5807 = vmatprep.subr.bf16.mxu0 0
    %5808 = vmatpush1.bf16.msra.mxu0 %v5805
    %5809 = vmatprep.subr.bf16.mxu0 0
    %5810 = vmatpush1.bf16.msra.mxu0 0
    %5811 = vmatprep.subr.bf16.mxu0 0
    %5812 = vmatpush1.bf16.msra.mxu0 0
    %5813 = vmatprep.subr.bf16.mxu0 0
    %5814 = vmatpush1.bf16.msra.mxu0 0
    %5815 = vmatprep.subr.bf16.mxu0 0
    %5816 = vmatpush1.bf16.msra.mxu0 0
    %5817 = vmatprep.subr.bf16.mxu0 0
    %5818 = vmatpush1.bf16.msra.mxu0 0
    %5819 = vmatprep.subr.bf16.mxu0 0
    %5820 = vmatpush1.bf16.msra.mxu0 0
    %5821 = vmatprep.subr.bf16.mxu0 0
    %5822 = vmatpush1.bf16.msra.mxu0 0
    %5823 = vmatprep.subr.bf16.mxu0 0
    %5824 = vmatpush1.bf16.msra.mxu0 0
    %5825 = vmatprep.subr.bf16.mxu0 0
    %5826 = vmatpush1.bf16.msra.mxu0 0
    %5827 = vmatprep.subr.bf16.mxu0 0
    %5828 = vmatpush1.bf16.msra.mxu0 0
    %5829 = vmatprep.subr.bf16.mxu0 0
    %5830 = vmatpush1.bf16.msra.mxu0 0
    %5831 = vmatprep.subr.bf16.mxu0 0
    %5832 = vmatpush1.bf16.msra.mxu0 0
    %5833 = vmatprep.subr.bf16.mxu0 0
    %5834 = vmatpush1.bf16.msra.mxu0 0
    %5835 = vmatprep.subr.bf16.mxu0 0
    %5836 = vmatpush1.bf16.msra.mxu0 0
    %5837 = vmatprep.subr.bf16.mxu0 0
    %5838 = vmatpush1.bf16.msra.mxu0 0
    %5839 = vmatprep.mubr.bf16.mxu0 0
    %5840 = vmatmul.mubr.bf16.gmra.mrb[0].mxu0 %v5802
    %v5841 = vpop.f32.mrb[0].mxu0
    %v5842 = vadd.f32 0.0, %v5841
    %v5843 = vpop.f32.mrb[0].mxu0
    %v5844 = vpop.f32.mrb[0].mxu0
    %v5845 = vpop.f32.mrb[0].mxu0
    %5846 = vdwg.mxu0
    %5847 = vrot.lane.b32.xlu0 %v5018, 80
    %v5848 = vpop.permute.xlu0 %5847
    %v5850 = vsel %vm1132, %v5798, 0
    %v5853 = vsel %vm1160, %v5848, 0
    %5855 = vmatprep.subr.bf16.mxu0 0
    %5856 = vmatpush1.bf16.msra.mxu0 %v5853
    %5857 = vmatprep.subr.bf16.mxu0 0
    %5858 = vmatpush1.bf16.msra.mxu0 0
    %5859 = vmatprep.subr.bf16.mxu0 0
    %5860 = vmatpush1.bf16.msra.mxu0 0
    %5861 = vmatprep.subr.bf16.mxu0 0
    %5862 = vmatpush1.bf16.msra.mxu0 0
    %5863 = vmatprep.subr.bf16.mxu0 0
    %5864 = vmatpush1.bf16.msra.mxu0 0
    %5865 = vmatprep.subr.bf16.mxu0 0
    %5866 = vmatpush1.bf16.msra.mxu0 0
    %5867 = vmatprep.subr.bf16.mxu0 0
    %5868 = vmatpush1.bf16.msra.mxu0 0
    %5869 = vmatprep.subr.bf16.mxu0 0
    %5870 = vmatpush1.bf16.msra.mxu0 0
    %5871 = vmatprep.subr.bf16.mxu0 0
    %5872 = vmatpush1.bf16.msra.mxu0 0
    %5873 = vmatprep.subr.bf16.mxu0 0
    %5874 = vmatpush1.bf16.msra.mxu0 0
    %5875 = vmatprep.subr.bf16.mxu0 0
    %5876 = vmatpush1.bf16.msra.mxu0 0
    %5877 = vmatprep.subr.bf16.mxu0 0
    %5878 = vmatpush1.bf16.msra.mxu0 0
    %5879 = vmatprep.subr.bf16.mxu0 0
    %5880 = vmatpush1.bf16.msra.mxu0 0
    %5881 = vmatprep.subr.bf16.mxu0 0
    %5882 = vmatpush1.bf16.msra.mxu0 0
    %5883 = vmatprep.subr.bf16.mxu0 0
    %5884 = vmatpush1.bf16.msra.mxu0 0
    %5885 = vmatprep.subr.bf16.mxu0 0
    %5886 = vmatpush1.bf16.msra.mxu0 0
    %5887 = vmatprep.mubr.bf16.mxu0 0
    %5888 = vmatmul.mubr.bf16.gmra.mrb[0].mxu0 %v5850
    %v5889 = vpop.f32.mrb[0].mxu0
    %v5890 = vadd.f32 0.0, %v5889
    %v5891 = vpop.f32.mrb[0].mxu0
    %v5892 = vpop.f32.mrb[0].mxu0
    %v5893 = vpop.f32.mrb[0].mxu0
    %5894 = vdwg.mxu0
    %5897 = vrot.lane.b32.xlu0 %v5401, 16
    %v5898 = vpop.permute.xlu0 %5897
    %5899 = vrot.lane.b32.xlu0 %v5450, 16
    %v5900 = vpop.permute.xlu0 %5899
    %5905 = vrot.lane.b32.xlu0 %v5622, 32
    %v5906 = vpop.permute.xlu0 %5905
    %5907 = vrot.lane.b32.xlu0 %v5670, 32
    %v5908 = vpop.permute.xlu0 %5907
    %5913 = vrot.lane.b32.xlu0 %v5842, 48
    %v5914 = vpop.permute.xlu0 %5913
    %5915 = vrot.lane.b32.xlu0 %v5890, 48
    %v5916 = vpop.permute.xlu0 %5915
    %v5919 = vsel %vm729, %v5182, %v5898
    %v5920 = vsel %vm729, %v5228, %v5900
    %v5921 = vsel %vm1938, %v5919, %v5906
    %v5922 = vsel %vm1938, %v5920, %v5908
    %v5923 = vsel %vm1941, %v5921, %v5914
    %v5924 = vsel %vm1941, %v5922, %v5916
    %v5925 = vld [vmem:[%s113] sm:$0xf]
    %v5926 = vld [vmem:[%s113 + $0x4] sm:$0xf]
    %v5927 = vld [vmem:[%s113 + $0x8] sm:$0xf]
    %v5928 = vld [vmem:[%s113 + $0xc] sm:$0xf]
    %v5929 = vld [vmem:[%s113 + $0x10] sm:$0xf]
    %v5930 = vld [vmem:[%s113 + $0x14] sm:$0xf]
    %v5931 = vld [vmem:[%s113 + $0x18] sm:$0xf]
    %v5932 = vld [vmem:[%s113 + $0x1c] sm:$0xf]
    %v5933 = vld [vmem:[#allocation40] sm:$0x1]
    %v5934 = vpack.c.bf16 %v5924, %v5923
    %v5936 = vlaneseq
    %v5937 = vshrl.u32 %v5936, 7
    %v5938 = vsub.s32 0, %v5937
    %v5939 = vrot.slane %v5933, %v5938
    %v5949 = vunpack.c.l.b16 %v5925
    %v5950 = vunpack.c.l.b16 %v5926
    %v5951 = vunpack.c.l.b16 %v5927
    %v5952 = vunpack.c.l.b16 %v5928
    %v5953 = vunpack.c.l.b16 %v5929
    %v5954 = vunpack.c.l.b16 %v5930
    %v5955 = vunpack.c.l.b16 %v5931
    %v5956 = vunpack.c.l.b16 %v5932
    %v5957 = vpack.c.b16 %v5950, %v5949
    %v5958 = vpack.c.b16 %v5952, %v5951
    %v5959 = vpack.c.b16 %v5954, %v5953
    %v5960 = vpack.c.b16 %v5956, %v5955
    %v5966 = vsel %vm667, %v5934, 0
    %5968 = vmatprep.subr.bf16.mxu0 0
    %5969 = vmatpush1.bf16.msra.mxu0 %v5957
    %5970 = vmatprep.subr.bf16.mxu0 0
    %5971 = vmatpush1.bf16.msra.mxu0 %v5958
    %5972 = vmatprep.subr.bf16.mxu0 0
    %5973 = vmatpush1.bf16.msra.mxu0 %v5959
    %5974 = vmatprep.subr.bf16.mxu0 0
    %5975 = vmatpush1.bf16.msra.mxu0 %v5960
    %5976 = vmatprep.subr.bf16.mxu0 0
    %5977 = vmatpush1.bf16.msra.mxu0 0
    %5978 = vmatprep.subr.bf16.mxu0 0
    %5979 = vmatpush1.bf16.msra.mxu0 0
    %5980 = vmatprep.subr.bf16.mxu0 0
    %5981 = vmatpush1.bf16.msra.mxu0 0
    %5982 = vmatprep.subr.bf16.mxu0 0
    %5983 = vmatpush1.bf16.msra.mxu0 0
    %5984 = vmatprep.subr.bf16.mxu0 0
    %5985 = vmatpush1.bf16.msra.mxu0 0
    %5986 = vmatprep.subr.bf16.mxu0 0
    %5987 = vmatpush1.bf16.msra.mxu0 0
    %5988 = vmatprep.subr.bf16.mxu0 0
    %5989 = vmatpush1.bf16.msra.mxu0 0
    %5990 = vmatprep.subr.bf16.mxu0 0
    %5991 = vmatpush1.bf16.msra.mxu0 0
    %5992 = vmatprep.subr.bf16.mxu0 0
    %5993 = vmatpush1.bf16.msra.mxu0 0
    %5994 = vmatprep.subr.bf16.mxu0 0
    %5995 = vmatpush1.bf16.msra.mxu0 0
    %5996 = vmatprep.subr.bf16.mxu0 0
    %5997 = vmatpush1.bf16.msra.mxu0 0
    %5998 = vmatprep.subr.bf16.mxu0 0
    %5999 = vmatpush1.bf16.msra.mxu0 0
    %6000 = vmatprep.mubr.bf16.mxu0 0
    %6001 = vmatmul.mubr.bf16.gmra.mrb[0].mxu0 %v5966
    %v6002 = vpop.f32.mrb[0].mxu0
    %v6003 = vadd.f32 %v5939, %v6002
    %v6004 = vpop.f32.mrb[0].mxu0
    %v6005 = vpop.f32.mrb[0].mxu0
    %v6006 = vadd.f32 %v5939, %v6005
    %v6007 = vpop.f32.mrb[0].mxu0
    %6008 = vdwg.mxu0
    %v6009 = vadd.f32 %v6003, %v4906
    %v6010 = vadd.f32 %v6006, %v4907
    %v6011 = vld [vmem:[#allocation38] sm:$0x1]
    %v6012 = vld [vmem:[#allocation37] sm:$0x1]
    %v6013 = vsel %vm667, %v6009, 0.0
    %6014 = vadd.xlane.f32.xlu0 %v6013
    %v6015 = vpop.xlane.xlu0 %6014
    %v6016 = vsel %vm667, %v6010, 0.0
    %6017 = vadd.xlane.f32.xlu0 %v6016
    %v6018 = vpop.xlane.xlu0 %6017
    %v6019 = vmul.f32 %v6015, %v674
    %v6020 = vmul.f32 %v6018, %v674
    %v6021 = vsub.f32 %v6009, %v6019
    %v6022 = vsub.f32 %v6010, %v6020
    %v6023 = vmul.f32 %v6021, %v6021
    %v6024 = vmul.f32 %v6022, %v6022
    %v6025 = vsel %vm667, %v6023, 0.0
    %6026 = vadd.xlane.f32.xlu0 %v6025
    %v6027 = vpop.xlane.xlu0 %6026
    %v6028 = vsel %vm667, %v6024, 0.0
    %6029 = vadd.xlane.f32.xlu0 %v6028
    %v6030 = vpop.xlane.xlu0 %6029
    %v6031 = vmul.f32 %v6027, %v674
    %v6032 = vmul.f32 %v6030, %v674
    %v6033 = vadd.f32 %v6031, 1e-12
    %v6034 = vadd.f32 %v6032, 1e-12
    %v6035 = vrsqrt.pop %v6033
    %v6036 = vrsqrt.pop %v6034
    %v6037 = vmul.f32 %v6021, %v6035
    %v6038 = vmul.f32 %v6022, %v6036
    %v6040 = vlaneseq
    %v6041 = vshrl.u32 %v6040, 7
    %v6042 = vsub.s32 0, %v6041
    %v6043 = vrot.slane %v6011, %v6042
    %v6045 = vmul.f32 %v6037, %v6043
    %v6046 = vmul.f32 %v6038, %v6043
    %v6048 = vlaneseq
    %v6049 = vshrl.u32 %v6048, 7
    %v6050 = vsub.s32 0, %v6049
    %v6051 = vrot.slane %v6012, %v6050
    %v6053 = vadd.f32 %v6045, %v6051
    %v6054 = vadd.f32 %v6046, %v6051
    %v6055 = vld [vmem:[%s97] sm:$0xf]
    %v6056 = vld [vmem:[%s97 + $0x4] sm:$0xf]
    %v6057 = vld [vmem:[%s97 + $0x8] sm:$0xf]
    %v6058 = vld [vmem:[%s97 + $0xc] sm:$0xf]
    %v6059 = vld [vmem:[%s97 + $0x10] sm:$0xf]
    %v6060 = vld [vmem:[%s97 + $0x14] sm:$0xf]
    %v6061 = vld [vmem:[%s97 + $0x18] sm:$0xf]
    %v6062 = vld [vmem:[%s97 + $0x1c] sm:$0xf]
    %v6063 = vld [vmem:[#allocation31] sm:$0x1]
    %v6064 = vpack.c.bf16 %v6054, %v6053
    %v6066 = vlaneseq
    %v6067 = vshrl.u32 %v6066, 7
    %v6068 = vsub.s32 0, %v6067
    %v6069 = vrot.slane %v6063, %v6068
    %v6079 = vunpack.c.l.b16 %v6055
    %v6080 = vunpack.c.l.b16 %v6056
    %v6081 = vunpack.c.l.b16 %v6057
    %v6082 = vunpack.c.l.b16 %v6058
    %v6083 = vunpack.c.l.b16 %v6059
    %v6084 = vunpack.c.l.b16 %v6060
    %v6085 = vunpack.c.l.b16 %v6061
    %v6086 = vunpack.c.l.b16 %v6062
    %v6087 = vpack.c.b16 %v6080, %v6079
    %v6088 = vpack.c.b16 %v6082, %v6081
    %v6089 = vpack.c.b16 %v6084, %v6083
    %v6090 = vpack.c.b16 %v6086, %v6085
    %v6096 = vsel %vm667, %v6064, 0
    %6098 = vmatprep.subr.bf16.mxu0 0
    %6099 = vmatpush1.bf16.msra.mxu0 %v6087
    %6100 = vmatprep.subr.bf16.mxu0 0
    %6101 = vmatpush1.bf16.msra.mxu0 %v6088
    %6102 = vmatprep.subr.bf16.mxu0 0
    %6103 = vmatpush1.bf16.msra.mxu0 %v6089
    %6104 = vmatprep.subr.bf16.mxu0 0
    %6105 = vmatpush1.bf16.msra.mxu0 %v6090
    %6106 = vmatprep.subr.bf16.mxu0 0
    %6107 = vmatpush1.bf16.msra.mxu0 0
    %6108 = vmatprep.subr.bf16.mxu0 0
    %6109 = vmatpush1.bf16.msra.mxu0 0
    %6110 = vmatprep.subr.bf16.mxu0 0
    %6111 = vmatpush1.bf16.msra.mxu0 0
    %6112 = vmatprep.subr.bf16.mxu0 0
    %6113 = vmatpush1.bf16.msra.mxu0 0
    %6114 = vmatprep.subr.bf16.mxu0 0
    %6115 = vmatpush1.bf16.msra.mxu0 0
    %6116 = vmatprep.subr.bf16.mxu0 0
    %6117 = vmatpush1.bf16.msra.mxu0 0
    %6118 = vmatprep.subr.bf16.mxu0 0
    %6119 = vmatpush1.bf16.msra.mxu0 0
    %6120 = vmatprep.subr.bf16.mxu0 0
    %6121 = vmatpush1.bf16.msra.mxu0 0
    %6122 = vmatprep.subr.bf16.mxu0 0
    %6123 = vmatpush1.bf16.msra.mxu0 0
    %6124 = vmatprep.subr.bf16.mxu0 0
    %6125 = vmatpush1.bf16.msra.mxu0 0
    %6126 = vmatprep.subr.bf16.mxu0 0
    %6127 = vmatpush1.bf16.msra.mxu0 0
    %6128 = vmatprep.subr.bf16.mxu0 0
    %6129 = vmatpush1.bf16.msra.mxu0 0
    %6130 = vmatprep.mubr.bf16.mxu0 0
    %6131 = vmatmul.mubr.bf16.gmra.mrb[0].mxu0 %v6096
    %v6132 = vpop.f32.mrb[0].mxu0
    %v6133 = vadd.f32 %v6069, %v6132
    %v6134 = vpop.f32.mrb[0].mxu0
    %v6135 = vpop.f32.mrb[0].mxu0
    %v6136 = vadd.f32 %v6069, %v6135
    %v6137 = vpop.f32.mrb[0].mxu0
    %6138 = vdwg.mxu0
    %v6139 = vmul.f32 %v6133, 0.5
    %v6140 = vmul.f32 %v6136, 0.5
    %v6141 = vmul.f32 %v6133, 0.044715
    %v6142 = vmul.f32 %v6136, 0.044715
    %v6143 = vmul.f32 %v6141, %v6133
    %v6144 = vmul.f32 %v6142, %v6136
    %v6145 = vmul.f32 %v6143, %v6133
    %v6146 = vmul.f32 %v6144, %v6136
    %v6147 = vadd.f32 %v6133, %v6145
    %v6148 = vadd.f32 %v6136, %v6146
    %v6149 = vmul.f32 %v6147, 0.7978846
    %v6150 = vmul.f32 %v6148, 0.7978846
    %v6151 = vtanh.pop %v6149
    %v6152 = vtanh.pop %v6150
    %v6153 = vadd.f32 %v6151, 1.0
    %v6154 = vadd.f32 %v6152, 1.0
    %v6155 = vmul.f32 %v6139, %v6153
    %v6156 = vmul.f32 %v6140, %v6154
    %v6157 = vld [vmem:[%s105] sm:$0xf]
    %v6158 = vld [vmem:[%s105 + $0x4] sm:$0xf]
    %v6159 = vld [vmem:[%s105 + $0x8] sm:$0xf]
    %v6160 = vld [vmem:[%s105 + $0xc] sm:$0xf]
    %v6161 = vld [vmem:[%s105 + $0x10] sm:$0xf]
    %v6162 = vld [vmem:[%s105 + $0x14] sm:$0xf]
    %v6163 = vld [vmem:[%s105 + $0x18] sm:$0xf]
    %v6164 = vld [vmem:[%s105 + $0x1c] sm:$0xf]
    %v6165 = vld [vmem:[%s105 + $0x20] sm:$0xf]
    %v6166 = vld [vmem:[%s105 + $0x24] sm:$0xf]
    %v6167 = vld [vmem:[%s105 + $0x28] sm:$0xf]
    %v6168 = vld [vmem:[%s105 + $0x2c] sm:$0xf]
    %v6169 = vld [vmem:[%s105 + $0x30] sm:$0xf]
    %v6170 = vld [vmem:[%s105 + $0x34] sm:$0xf]
    %v6171 = vld [vmem:[%s105 + $0x38] sm:$0xf]
    %v6172 = vld [vmem:[%s105 + $0x3c] sm:$0xf]
    %v6173 = vld [vmem:[#allocation35] sm:$0x1]
    %v6174 = vpack.c.bf16 %v6156, %v6155
    %v6176 = vlaneseq
    %v6177 = vshrl.u32 %v6176, 7
    %v6178 = vsub.s32 0, %v6177
    %v6179 = vrot.slane %v6173, %v6178
    %v6197 = vunpack.c.l.b16 %v6157
    %v6198 = vunpack.c.l.b16 %v6158
    %v6199 = vunpack.c.l.b16 %v6159
    %v6200 = vunpack.c.l.b16 %v6160
    %v6201 = vunpack.c.l.b16 %v6161
    %v6202 = vunpack.c.l.b16 %v6162
    %v6203 = vunpack.c.l.b16 %v6163
    %v6204 = vunpack.c.l.b16 %v6164
    %v6205 = vunpack.c.l.b16 %v6165
    %v6206 = vunpack.c.l.b16 %v6166
    %v6207 = vunpack.c.l.b16 %v6167
    %v6208 = vunpack.c.l.b16 %v6168
    %v6209 = vunpack.c.l.b16 %v6169
    %v6210 = vunpack.c.l.b16 %v6170
    %v6211 = vunpack.c.l.b16 %v6171
    %v6212 = vunpack.c.l.b16 %v6172
    %v6213 = vpack.c.b16 %v6198, %v6197
    %v6214 = vpack.c.b16 %v6200, %v6199
    %v6215 = vpack.c.b16 %v6202, %v6201
    %v6216 = vpack.c.b16 %v6204, %v6203
    %v6217 = vpack.c.b16 %v6206, %v6205
    %v6218 = vpack.c.b16 %v6208, %v6207
    %v6219 = vpack.c.b16 %v6210, %v6209
    %v6220 = vpack.c.b16 %v6212, %v6211
    %6229 = vmatprep.subr.bf16.mxu0 0
    %6230 = vmatpush1.bf16.msra.mxu0 %v6213
    %6231 = vmatprep.subr.bf16.mxu0 0
    %6232 = vmatpush1.bf16.msra.mxu0 %v6214
    %6233 = vmatprep.subr.bf16.mxu0 0
    %6234 = vmatpush1.bf16.msra.mxu0 %v6215
    %6235 = vmatprep.subr.bf16.mxu0 0
    %6236 = vmatpush1.bf16.msra.mxu0 %v6216
    %6237 = vmatprep.subr.bf16.mxu0 0
    %6238 = vmatpush1.bf16.msra.mxu0 %v6217
    %6239 = vmatprep.subr.bf16.mxu0 0
    %6240 = vmatpush1.bf16.msra.mxu0 %v6218
    %6241 = vmatprep.subr.bf16.mxu0 0
    %6242 = vmatpush1.bf16.msra.mxu0 %v6219
    %6243 = vmatprep.subr.bf16.mxu0 0
    %6244 = vmatpush1.bf16.msra.mxu0 %v6220
    %6245 = vmatprep.subr.bf16.mxu0 0
    %6246 = vmatpush1.bf16.msra.mxu0 0
    %6247 = vmatprep.subr.bf16.mxu0 0
    %6248 = vmatpush1.bf16.msra.mxu0 0
    %6249 = vmatprep.subr.bf16.mxu0 0
    %6250 = vmatpush1.bf16.msra.mxu0 0
    %6251 = vmatprep.subr.bf16.mxu0 0
    %6252 = vmatpush1.bf16.msra.mxu0 0
    %6253 = vmatprep.subr.bf16.mxu0 0
    %6254 = vmatpush1.bf16.msra.mxu0 0
    %6255 = vmatprep.subr.bf16.mxu0 0
    %6256 = vmatpush1.bf16.msra.mxu0 0
    %6257 = vmatprep.subr.bf16.mxu0 0
    %6258 = vmatpush1.bf16.msra.mxu0 0
    %6259 = vmatprep.subr.bf16.mxu0 0
    %6260 = vmatpush1.bf16.msra.mxu0 0
    %6261 = vmatprep.mubr.bf16.mxu0 0
    %6262 = vmatmul.mubr.bf16.gmra.mrb[0].mxu0 %v6174
    %v6263 = vpop.f32.mrb[0].mxu0
    %v6264 = vadd.f32 %v6179, %v6263
    %v6265 = vpop.f32.mrb[0].mxu0
    %v6266 = vpop.f32.mrb[0].mxu0
    %v6267 = vadd.f32 %v6179, %v6266
    %v6268 = vpop.f32.mrb[0].mxu0
    %6269 = vdwg.mxu0
    %v6270 = vadd.f32 %v6264, %v6053
    %v6271 = vadd.f32 %v6267, %v6054
    %v6272 = vld [vmem:[#allocation34] sm:$0x1]
    %v6273 = vld [vmem:[#allocation32] sm:$0x1]
    %v6274 = vsel %vm667, %v6270, 0.0
    %6275 = vadd.xlane.f32.xlu0 %v6274
    %v6276 = vpop.xlane.xlu0 %6275
    %v6277 = vsel %vm667, %v6271, 0.0
    %6278 = vadd.xlane.f32.xlu0 %v6277
    %v6279 = vpop.xlane.xlu0 %6278
    %v6280 = vmul.f32 %v6276, %v674
    %v6281 = vmul.f32 %v6279, %v674
    %v6282 = vsub.f32 %v6270, %v6280
    %v6283 = vsub.f32 %v6271, %v6281
    %v6284 = vmul.f32 %v6282, %v6282
    %v6285 = vmul.f32 %v6283, %v6283
    %v6286 = vsel %vm667, %v6284, 0.0
    %6287 = vadd.xlane.f32.xlu0 %v6286
    %v6288 = vpop.xlane.xlu0 %6287
    %v6289 = vsel %vm667, %v6285, 0.0
    %6290 = vadd.xlane.f32.xlu0 %v6289
    %v6291 = vpop.xlane.xlu0 %6290
    %v6292 = vmul.f32 %v6288, %v674
    %v6293 = vmul.f32 %v6291, %v674
    %v6294 = vadd.f32 %v6292, 1e-12
    %v6295 = vadd.f32 %v6293, 1e-12
    %v6296 = vrsqrt.pop %v6294
    %v6297 = vrsqrt.pop %v6295
    %v6298 = vmul.f32 %v6282, %v6296
    %v6299 = vmul.f32 %v6283, %v6297
    %v6301 = vlaneseq
    %v6302 = vshrl.u32 %v6301, 7
    %v6303 = vsub.s32 0, %v6302
    %v6304 = vrot.slane %v6272, %v6303
    %v6306 = vmul.f32 %v6298, %v6304
    %v6307 = vmul.f32 %v6299, %v6304
    %v6309 = vlaneseq
    %v6310 = vshrl.u32 %v6309, 7
    %v6311 = vsub.s32 0, %v6310
    %v6312 = vrot.slane %v6273, %v6311
    %v6314 = vadd.f32 %v6306, %v6312
    %v6315 = vadd.f32 %v6307, %v6312
    %v6316 = vld [vmem:[%s49] sm:$0xf]
    %v6317 = vld [vmem:[%s49 + $0x4] sm:$0xf]
    %v6318 = vld [vmem:[%s49 + $0x8] sm:$0xf]
    %v6319 = vld [vmem:[%s49 + $0xc] sm:$0xf]
    %v6320 = vld [vmem:[%s49 + $0x10] sm:$0xf]
    %v6321 = vld [vmem:[%s49 + $0x14] sm:$0xf]
    %v6322 = vld [vmem:[%s49 + $0x18] sm:$0xf]
    %v6323 = vld [vmem:[%s49 + $0x1c] sm:$0xf]
    %v6324 = vld [vmem:[#allocation10] sm:$0x1]
    %v6325 = vpack.c.bf16 %v6314, %v6314
    %v6326 = vpack.c.bf16 %v6315, %v6315
    %v6328 = vlaneseq
    %v6329 = vshrl.u32 %v6328, 7
    %v6330 = vsub.s32 0, %v6329
    %v6331 = vrot.slane %v6324, %v6330
    %v6335 = vunpack.c.l.b16 %v6325
    %v6336 = vunpack.c.l.b16 %v6326
    %v6337 = vrot.slane %v6336, 7
    %vm6338 = vcmask 1041409
    %v6339 = vsel %vm6338, %v6337, %v6335
    %v6340 = vpack.c.b16 %v6339, %v6339
    %v6349 = vunpack.c.l.b16 %v6316
    %v6350 = vunpack.c.l.b16 %v6317
    %v6351 = vunpack.c.l.b16 %v6318
    %v6352 = vunpack.c.l.b16 %v6319
    %v6353 = vunpack.c.l.b16 %v6320
    %v6354 = vunpack.c.l.b16 %v6321
    %v6355 = vunpack.c.l.b16 %v6322
    %v6356 = vunpack.c.l.b16 %v6323
    %v6357 = vpack.c.b16 %v6350, %v6349
    %v6358 = vpack.c.b16 %v6352, %v6351
    %v6359 = vpack.c.b16 %v6354, %v6353
    %v6360 = vpack.c.b16 %v6356, %v6355
    %v6366 = vsel %vm667, %v6340, 0
    %6368 = vmatprep.subr.bf16.mxu0 0
    %6369 = vmatpush1.bf16.msra.mxu0 %v6357
    %6370 = vmatprep.subr.bf16.mxu0 0
    %6371 = vmatpush1.bf16.msra.mxu0 %v6358
    %6372 = vmatprep.subr.bf16.mxu0 0
    %6373 = vmatpush1.bf16.msra.mxu0 %v6359
    %6374 = vmatprep.subr.bf16.mxu0 0
    %6375 = vmatpush1.bf16.msra.mxu0 %v6360
    %6376 = vmatprep.subr.bf16.mxu0 0
    %6377 = vmatpush1.bf16.msra.mxu0 0
    %6378 = vmatprep.subr.bf16.mxu0 0
    %6379 = vmatpush1.bf16.msra.mxu0 0
    %6380 = vmatprep.subr.bf16.mxu0 0
    %6381 = vmatpush1.bf16.msra.mxu0 0
    %6382 = vmatprep.subr.bf16.mxu0 0
    %6383 = vmatpush1.bf16.msra.mxu0 0
    %6384 = vmatprep.subr.bf16.mxu0 0
    %6385 = vmatpush1.bf16.msra.mxu0 0
    %6386 = vmatprep.subr.bf16.mxu0 0
    %6387 = vmatpush1.bf16.msra.mxu0 0
    %6388 = vmatprep.subr.bf16.mxu0 0
    %6389 = vmatpush1.bf16.msra.mxu0 0
    %6390 = vmatprep.subr.bf16.mxu0 0
    %6391 = vmatpush1.bf16.msra.mxu0 0
    %6392 = vmatprep.subr.bf16.mxu0 0
    %6393 = vmatpush1.bf16.msra.mxu0 0
    %6394 = vmatprep.subr.bf16.mxu0 0
    %6395 = vmatpush1.bf16.msra.mxu0 0
    %6396 = vmatprep.subr.bf16.mxu0 0
    %6397 = vmatpush1.bf16.msra.mxu0 0
    %6398 = vmatprep.subr.bf16.mxu0 0
    %6399 = vmatpush1.bf16.msra.mxu0 0
    %6400 = vmatprep.mubr.bf16.mxu0 0
    %6401 = vmatmul.mubr.bf16.gmra.mrb[0].mxu0 %v6366
    %v6402 = vpop.f32.mrb[0].mxu0
    %v6403 = vadd.f32 %v6331, %v6402
    %v6404 = vpop.f32.mrb[0].mxu0
    %v6405 = vpop.f32.mrb[0].mxu0
    %v6406 = vpop.f32.mrb[0].mxu0
    %6407 = vdwg.mxu0
    %v6408 = vtanh.pop %v6403
    %vm6409 = vcmask 517120
    %6410 = vst.msk [vmem:[#allocation52] sm:$0x3] %vm6409, %v6408
    // Predicated region
    $region414: #{lxrt_encoder_forward.1} parent=1 // pred_check
      _
    $region415: #{lxrt_encoder_forward.1} parent=1 // pred_check_branch
      %6412 = sbr.rel (0) target = $region417
    $region416: #{lxrt_encoder_forward.1} parent=1 // pred_region
      %s6414 = ssub.s32 32, 32
      %6415 = vsyncadd [#allocation4], %s6414
      %s6417 = sshll.u32 [#allocation52], 4
      %s6418 = int_to_ptr.vmem [resolvable:$true] %s6417
      %6420 = dma.vmem_to_hbm [thread:$0]  %s6418, 32, %s143, [#allocation4]
    $region417: #{lxrt_encoder_forward.1} parent=1 // pred_fallthru
      _
    // Predicated region
    $region418: #{lxrt_encoder_forward.1} parent=1 // pred_check
      _
    $region419: #{lxrt_encoder_forward.1} parent=1 // pred_check_branch
      %6422 = sbr.rel (0) target = $region421
    $region420: #{lxrt_encoder_forward.1} parent=1 // pred_region
      %6423 = dma.done [#allocation4], 32
    $region421: #{lxrt_encoder_forward.1} parent=1 // pred_fallthru
      _
    %6424 = vsyncpa [#allocation3], 1
    %6425 = vsyncpa [#allocation6], 1
    %6426 = vsyncpa [#allocation9], 1
    %6427 = vsyncpa [#allocation12], 1
    %6428 = vsyncpa [#allocation15], 1
    %6429 = vsyncpa [#allocation18], 1
    %6430 = vsyncpa [#allocation21], 1
    %6431 = vsyncpa [#allocation24], 1
    %6432 = vsyncpa [#allocation27], 1
    %6433 = vsyncpa [#allocation30], 1
    %6434 = vsyncpa [#allocation33], 1
    %6435 = vsyncpa [#allocation36], 1
    %6436 = vsyncpa [#allocation39], 1
    %6437 = vsyncpa [#allocation42], 1
    %6438 = vsyncpa [#allocation45], 1
    %6439 = vsyncpa [#allocation48], 1
    %6440 = vsyncpa [#allocation51], 1
    %6441 = vsyncpa [#allocation4], 1

</llo_original>
